<compile_context>
chip_gen: v7x
topology: tpu7x:2x2x1
jax: 0.10.0
libtpu: 0.0.40
codegen_flags: <defaults>
</compile_context>

<pallas_src>
import math

import jax
import jax.numpy as jnp
from jax.experimental import pallas as pl
from jax.experimental.pallas import tpu as pltpu

# ----------------------- hyper-parameters (small, forward-consistent) -----------------
BATCH = 2
NUM_SENSOR = 3
M_CH = 4                 # channels per sensor (last dim of `inputs`)
L_SEQ = 32               # window length
D_EMB = 16               # D
P_PATCH = 8              # P
S_STRIDE = 4             # S
T_PATCH = L_SEQ // S_STRIDE   # T = 8
KSIZE = 5
RATIO = 1
NUM_LAYERS = 2
NUM_CLASSES = 17
PRED_PAD = 128           # lane-dense padded logits width

D_MODEL_ATT = D_EMB * T_PATCH          # 128
D_MODEL_MAMBA = NUM_SENSOR * D_EMB     # 48
D_STATE = 16
D_CONV = 4
EXPAND = 2
D_INNER = EXPAND * D_MODEL_MAMBA       # 96
DT_RANK = math.ceil(D_MODEL_MAMBA / 16)  # 3
N_HEADS = 8
HEAD_DIM = D_MODEL_ATT // N_HEADS      # 16
D_LAYERS = 1

assert P_PATCH == 2 * S_STRIDE, "two-matmul patch embedding assumes P == 2*S"

_PARAM_ORDER = [
    'w_emb_lo', 'w_emb_hi', 'b_emb',
    'w_dw', 'b_dw', 'w1', 'b1', 'w2', 'b2',
    'w_in', 'b_in', 'w_conv', 'b_conv',
    'w_xproj', 'b_xproj', 'w_dt', 'b_dt',
    'A_log', 'D', 'w_out', 'b_out', 'lnm_g', 'lnm_b',
    'wqkv', 'bqkv', 'wo', 'bo', 'lna_g', 'lna_b',
    'fc_w', 'fc_b',
]


# ----------------------------------- small helpers ------------------------------------
def _sigmoid(x):
    return 1.0 / (1.0 + jnp.exp(-x))


def _layernorm(x, g, b, eps=1e-5):
    mu = jnp.mean(x, axis=-1, keepdims=True)
    xc = x - mu
    var = jnp.mean(xc * xc, axis=-1, keepdims=True)
    return xc * jax.lax.rsqrt(var + eps) * g + b


# ----------------------------------- fused Pallas kernel ------------------------------
def _fused_forward_kernel(
    x_ref,                                           # (1, NS, M, L)
    w_emb_lo_ref, w_emb_hi_ref, b_emb_ref,           # (M*S, M*D) x2, (1, M*D)
    w_dw_ref, b_dw_ref, w1_ref, b1_ref, w2_ref, b2_ref,            # backbone
    w_in_ref, b_in_ref, w_conv_ref, b_conv_ref,
    w_xproj_ref, b_xproj_ref, w_dt_ref, b_dt_ref,
    a_log_ref, d_ref, w_out_ref, b_out_ref, lnm_g_ref, lnm_b_ref,  # mamba
    wqkv_ref, bqkv_ref, wo_ref, bo_ref, lna_g_ref, lna_b_ref,      # attention
    fc_w_ref, fc_b_ref,                              # classifier (lane-dense padded)
    feat_ref, pred_ref,                              # (1, 1, NS*D*T), (1, 1, PRED_PAD)
):
    f32 = jnp.float32
    bf16 = jnp.bfloat16
    _, NS, M, L = x_ref.shape
    S = S_STRIDE
    P = P_PATCH
    T = L // S
    D = D_EMB
    MD = M * D
    NL = w_dw_ref.shape[0]
    K = w_dw_ref.shape[1]
    pad = K // 2
    dm = w_in_ref.shape[0]
    dI = D_INNER
    dS = D_STATE
    dtR = DT_RANK
    Kc = w_conv_ref.shape[0]
    da = wo_ref.shape[2]
    H = N_HEADS
    Dh = da // H
    AL = wqkv_ref.shape[0]

    # ---------------- Phase 1: patch embedding (two block-diag matmuls, no patch stack) --
    x = x_ref[0]                                                    # (NS, M, L)
    rep = jnp.broadcast_to(x[:, :, L - 1:L], (NS, M, P - S))        # replicate right pad
    xp = jnp.concatenate([x, rep], axis=2).reshape(NS, M, T + 1, S)
    xp = jnp.transpose(xp, (0, 2, 1, 3))                            # (NS, T+1, M, S)
    lo = xp[:, :T].reshape(NS * T, M * S)
    hi = xp[:, 1:].reshape(NS * T, M * S)
    emb = (jnp.dot(lo, w_emb_lo_ref[...], preferred_element_type=f32)
           + jnp.dot(hi, w_emb_hi_ref[...], preferred_element_type=f32)
           + b_emb_ref[...])                                        # (NS*T, M*D)
    y = emb.reshape(NS, T, MD)

    # ---------------- Phase 1: backbone blocks, batched over the M channels --------------
    for layer in range(NL):
        # depthwise temporal conv (zero 'same' pad) + residual; tap-major weight rows
        w_dw = w_dw_ref[layer]                                      # (K, M*D)
        b_dw = b_dw_ref[layer]                                      # (1, M*D)
        zpad = jnp.zeros((NS, pad, MD), f32)
        yp = jnp.concatenate([zpad, y, zpad], axis=1)               # (NS, T+K-1, M*D)
        acc = jnp.broadcast_to(b_dw[None, :, :], (NS, T, MD))
        for k in range(K):
            acc = acc + w_dw[k][None, None, :] * yp[:, k:k + T, :]
        y = acc + y
        # grouped (per-channel) ConvFFN as one block-diagonal lane-dense matmul + residual
        y2 = y.reshape(NS * T, MD)
        z1 = (jnp.dot(y2.astype(bf16), w1_ref[layer], preferred_element_type=f32)
              + b1_ref[layer])
        z1 = jax.nn.gelu(z1, approximate=True)
        z2 = (jnp.dot(z1.astype(bf16), w2_ref[layer], preferred_element_type=f32)
              + b2_ref[layer])
        y = (z2 + y2).reshape(NS, T, MD)

    # sensor-channel mean (lane-slice sum over the M groups of D lanes)
    xg = y[:, :, 0:D]
    for m in range(1, M):
        xg = xg + y[:, :, m * D:(m + 1) * D]
    xg = xg * (1.0 / M)                                             # (NS, T, D)

    # (NS, T, D) -> (T, NS*D) with a single transpose
    x_mamba = jnp.transpose(xg, (1, 0, 2)).reshape(T, NS * D)       # (T, dm)

    # ---------------- Phase 2: Mamba_Layer  ( LayerNorm(x + Mamba(x)) ) -------------------
    xz = (jnp.dot(x_mamba.astype(bf16), w_in_ref[...], preferred_element_type=f32)
          + b_in_ref[...])                                          # (T, 2*dI)
    xc = xz[:, :dI]
    zg = xz[:, dI:2 * dI]

    # causal depthwise conv (left zero pad) + SiLU; tap-major weight rows
    w_conv = w_conv_ref[...]                                        # (Kc, dI)
    xc_pad = jnp.concatenate([jnp.zeros((Kc - 1, dI), f32), xc], axis=0)
    cacc = jnp.broadcast_to(b_conv_ref[...], (T, dI))
    for k in range(Kc):
        cacc = cacc + w_conv[k][None, :] * xc_pad[k:k + T, :]
    u = cacc * _sigmoid(cacc)                                       # (T, dI)

    # input-dependent SSM parameters
    x_dbl = (jnp.dot(u.astype(bf16), w_xproj_ref[...], preferred_element_type=f32)
             + b_xproj_ref[...])                                    # (T, dtR+2*dS)
    dt_r = x_dbl[:, :dtR]
    Bm = x_dbl[:, dtR:dtR + dS]                                     # (T, dS)
    Cm = x_dbl[:, dtR + dS:dtR + 2 * dS]                            # (T, dS)
    dt_raw = jnp.dot(dt_r, w_dt_ref[...], preferred_element_type=f32) + b_dt_ref[...]
    dt = jnp.maximum(dt_raw, 0.0) + jnp.log(1.0 + jnp.exp(-jnp.abs(dt_raw)))  # softplus

    # discretization hoisted out of the recurrence; dI=96 on the lane axis
    A = -jnp.exp(a_log_ref[...])                                    # (dS, dI)
    dA = jnp.exp(dt[:, None, :] * A[None, :, :])                    # (T, dS, dI)
    dBu = dt[:, None, :] * Bm[:, :, None] * u[:, None, :]           # (T, dS, dI)
    gate = zg * _sigmoid(zg)                                        # SiLU(z), (T, dI)
    Dp = d_ref[...]                                                 # (1, dI)

    h = jnp.zeros((dS, dI), f32)
    ys = []
    for t in range(T):                                              # recurrence only
        h = dA[t] * h + dBu[t]
        ys.append(jnp.sum(h * Cm[t][:, None], axis=0, keepdims=True))   # (1, dI)
    y_scan = (jnp.concatenate(ys, axis=0) + Dp * u) * gate          # (T, dI)

    m_out = (jnp.dot(y_scan.astype(bf16), w_out_ref[...], preferred_element_type=f32)
             + b_out_ref[...])
    x_m = _layernorm(x_mamba + m_out, lnm_g_ref[...], lnm_b_ref[...])    # (T, dm)

    # (T, NS*D) -> (NS, D*T) attention token layout (index d*T + t), one transpose
    xa = jnp.transpose(x_m.reshape(T, NS, D), (1, 2, 0)).reshape(NS, D * T)

    # ---------------- Phase 3: attention layer(s)  ( LayerNorm(x + MHA(x)) ) --------------
    scale = 1.0 / math.sqrt(Dh)
    for li in range(AL):
        qkv = (jnp.dot(xa.astype(bf16), wqkv_ref[li], preferred_element_type=f32)
               + bqkv_ref[li])                                      # fused QKV (NS, 3*da)
        q = jnp.transpose(qkv[:, 0 * da:1 * da].reshape(NS, H, Dh), (1, 0, 2))
        k_ = jnp.transpose(qkv[:, 1 * da:2 * da].reshape(NS, H, Dh), (1, 0, 2))
        v = jnp.transpose(qkv[:, 2 * da:3 * da].reshape(NS, H, Dh), (1, 0, 2))
        sc = jnp.einsum('hld,hsd->hls', q, k_, preferred_element_type=f32) * scale
        sc = sc - jnp.max(sc, axis=-1, keepdims=True)
        pexp = jnp.exp(sc)
        pr = pexp * pl.reciprocal(jnp.sum(pexp, axis=-1, keepdims=True), approx=True)
        o = jnp.einsum('hls,hsd->hld', pr, v, preferred_element_type=f32)   # (H, NS, Dh)
        o = jnp.transpose(o, (1, 0, 2)).reshape(NS, da)
        o = (jnp.dot(o.astype(bf16), wo_ref[li], preferred_element_type=f32)
             + bo_ref[li])
        # TODO(synk): attention / residual dropout (p=0.05) is identity in eval mode.
        xa = _layernorm(xa + o, lna_g_ref[li], lna_b_ref[li])

    # ---------------- Head ----------------------------------------------------------------
    x_flat = xa.reshape(1, NS * da)                                 # (1, 384) lane-dense
    feat_ref[...] = x_flat.reshape(feat_ref.shape)
    # TODO(synk): F.dropout(p=0.6) is identity in eval mode, so it is not applied.
    logits = (jnp.dot(x_flat.astype(bf16), fc_w_ref[...], preferred_element_type=f32)
              + fc_b_ref[...])                                      # (1, PRED_PAD)
    pred_ref[...] = logits.reshape(pred_ref.shape)


# ----------------------------------- wrapper ------------------------------------------
def decompose_whar_forward(inputs, params):
    # inputs: (B0, num_sensor, L, M)
    B0, NS, L, M = inputs.shape
    # Single cheap layout op outside the fused kernel: (B0, NS, L, M) -> (B0, NS, M, L).
    x = jnp.transpose(inputs, (0, 1, 3, 2))
    weights = [params[k] for k in _PARAM_ORDER]

    def rep_spec(arr):
        nd = arr.ndim
        return pl.BlockSpec(arr.shape, lambda i, _n=nd: (0,) * _n)

    in_specs = ([pl.BlockSpec((1, NS, M, L), lambda i: (i, 0, 0, 0))]
                + [rep_spec(w) for w in weights])
    out_specs = (
        pl.BlockSpec((1, 1, NS * D_EMB * T_PATCH), lambda i: (i, 0, 0)),
        pl.BlockSpec((1, 1, PRED_PAD), lambda i: (i, 0, 0)),
    )
    out_shape = (
        jax.ShapeDtypeStruct((B0, 1, NS * D_EMB * T_PATCH), jnp.float32),
        jax.ShapeDtypeStruct((B0, 1, PRED_PAD), jnp.float32),
    )
    feat, pred = pl.pallas_call(
        _fused_forward_kernel,
        grid=(B0,),                      # one program per outer batch sample
        in_specs=in_specs,
        out_specs=out_specs,
        out_shape=out_shape,
        compiler_params=pltpu.CompilerParams(dimension_semantics=("parallel",)),
    )(x, *weights)
    feat = feat.reshape(B0, NS * D_EMB * T_PATCH)
    pred = pred.reshape(B0, PRED_PAD)[:, :NUM_CLASSES]
    return feat, pred


# ----------------------------------- parameter init -----------------------------------
def _block_diag(blocks):
    # blocks: (M, a, b) -> block-diagonal (M*a, M*b)
    Mb, a, b = blocks.shape
    out = jnp.zeros((Mb * a, Mb * b), blocks.dtype)
    for m in range(Mb):
        out = out.at[m * a:(m + 1) * a, m * b:(m + 1) * b].set(blocks[m])
    return out


def init_params(key):
    keys = iter(jax.random.split(key, 64))

    def nrm(shape, scale=0.05):
        return scale * jax.random.normal(next(keys), shape, jnp.float32)

    bf16 = jnp.bfloat16
    rD = RATIO * D_EMB
    dm = D_MODEL_MAMBA
    da = D_MODEL_ATT
    M = M_CH
    S = S_STRIDE
    D = D_EMB

    # Embedding: Conv1d(1, D, kernel=P, stride=S) shared over channels, stored as two
    # block-diagonal (M*S, M*D) halves (low / high S-chunk of each patch).
    w_emb = nrm((P_PATCH, D))
    b_emb = nrm((1, D))
    w_emb_lo = _block_diag(jnp.broadcast_to(w_emb[:S][None], (M, S, D)))
    w_emb_hi = _block_diag(jnp.broadcast_to(w_emb[S:][None], (M, S, D)))

    # Backbone: depthwise-conv weights tap-major (NL, K, M*D); ConvFFN block-diagonal.
    w_dw = nrm((NUM_LAYERS, M, D, KSIZE))
    w_dw_k = jnp.transpose(w_dw, (0, 3, 1, 2)).reshape(NUM_LAYERS, KSIZE, M * D)
    b_dw = nrm((NUM_LAYERS, M, D)).reshape(NUM_LAYERS, 1, M * D)
    w1 = nrm((NUM_LAYERS, M, D, rD))
    w2 = nrm((NUM_LAYERS, M, rD, D))
    w1_bd = jnp.stack([_block_diag(w1[l]) for l in range(NUM_LAYERS)]).astype(bf16)
    w2_bd = jnp.stack([_block_diag(w2[l]) for l in range(NUM_LAYERS)]).astype(bf16)
    b1 = nrm((NUM_LAYERS, M, rD)).reshape(NUM_LAYERS, 1, M * rD)
    b2 = nrm((NUM_LAYERS, M, D)).reshape(NUM_LAYERS, 1, M * D)

    # Classifier head, padded lane-dense to PRED_PAD columns.
    fc_w = jnp.zeros((NUM_SENSOR * da, PRED_PAD), jnp.float32)
    fc_w = fc_w.at[:, :NUM_CLASSES].set(nrm((NUM_SENSOR * da, NUM_CLASSES))).astype(bf16)
    fc_b = jnp.zeros((1, PRED_PAD), jnp.float32)
    fc_b = fc_b.at[:, :NUM_CLASSES].set(nrm((1, NUM_CLASSES)))

    params = {
        'w_emb_lo': w_emb_lo,
        'w_emb_hi': w_emb_hi,
        'b_emb': jnp.tile(b_emb, (1, M)),
        'w_dw': w_dw_k,
        'b_dw': b_dw,
        'w1': w1_bd, 'b1': b1,
        'w2': w2_bd, 'b2': b2,
        # Mamba.
        'w_in': nrm((dm, 2 * D_INNER)).astype(bf16),
        'b_in': jnp.zeros((1, 2 * D_INNER), jnp.float32),        # in_proj has no bias
        'w_conv': nrm((D_CONV, D_INNER)),                        # tap-major (Kc, dI)
        'b_conv': nrm((1, D_INNER)),
        'w_xproj': nrm((D_INNER, DT_RANK + 2 * D_STATE)).astype(bf16),
        'b_xproj': jnp.zeros((1, DT_RANK + 2 * D_STATE), jnp.float32),
        'w_dt': nrm((DT_RANK, D_INNER)),
        'b_dt': jnp.full((1, D_INNER), 0.01, jnp.float32),
        'A_log': jnp.log(jnp.tile(                               # transposed: (dS, dI)
            jnp.arange(1, D_STATE + 1, dtype=jnp.float32)[:, None], (1, D_INNER))),
        'D': jnp.ones((1, D_INNER), jnp.float32),
        'w_out': nrm((D_INNER, dm)).astype(bf16),
        'b_out': jnp.zeros((1, dm), jnp.float32),                # out_proj has no bias
        'lnm_g': jnp.ones((1, dm), jnp.float32),
        'lnm_b': jnp.zeros((1, dm), jnp.float32),
        # Attention layers, fused QKV projection.
        'wqkv': jnp.stack([jnp.concatenate(
            [nrm((da, da)), nrm((da, da)), nrm((da, da))], axis=1)
            for _ in range(D_LAYERS)], axis=0).astype(bf16),     # (AL, da, 3*da)
        'bqkv': jnp.stack([jnp.concatenate(
            [nrm((1, da)), nrm((1, da)), nrm((1, da))], axis=1)
            for _ in range(D_LAYERS)], axis=0),                  # (AL, 1, 3*da)
        'wo': nrm((D_LAYERS, da, da)).astype(bf16),
        'bo': nrm((D_LAYERS, 1, da)),
        'lna_g': jnp.ones((D_LAYERS, 1, da), jnp.float32),
        'lna_b': jnp.zeros((D_LAYERS, 1, da), jnp.float32),
        'fc_w': fc_w,
        'fc_b': fc_b,
    }
    return params


if __name__ == "__main__":
    key = jax.random.PRNGKey(0)
    kp, kx = jax.random.split(key)
    params = init_params(kp)
    inputs = jax.random.normal(kx, (BATCH, NUM_SENSOR, L_SEQ, M_CH), jnp.float32)

    fwd = jax.jit(decompose_whar_forward)
    feats, pred = fwd(inputs, params)
    jax.block_until_ready((feats, pred))

    assert feats.shape == (BATCH, NUM_SENSOR * D_EMB * T_PATCH)
    assert pred.shape == (BATCH, NUM_CLASSES)
    assert bool(jnp.all(jnp.isfinite(feats))) and bool(jnp.all(jnp.isfinite(pred)))
    print("KERNEL_OK")
</pallas_src>

<mosaic_0001>
module attributes {stable_mosaic.version = 11 : i64} {
  func.func @_fused_forward_kernel(%arg0: i32, %arg1: memref<1x3x4x32xf32, #tpu.memory_space<vmem>>, %arg2: memref<16x64xf32, #tpu.memory_space<vmem>>, %arg3: memref<16x64xf32, #tpu.memory_space<vmem>>, %arg4: memref<1x64xf32, #tpu.memory_space<vmem>>, %arg5: memref<2x5x64xf32, #tpu.memory_space<vmem>>, %arg6: memref<2x1x64xf32, #tpu.memory_space<vmem>>, %arg7: memref<2x64x64xbf16, #tpu.memory_space<vmem>>, %arg8: memref<2x1x64xf32, #tpu.memory_space<vmem>>, %arg9: memref<2x64x64xbf16, #tpu.memory_space<vmem>>, %arg10: memref<2x1x64xf32, #tpu.memory_space<vmem>>, %arg11: memref<48x192xbf16, #tpu.memory_space<vmem>>, %arg12: memref<1x192xf32, #tpu.memory_space<vmem>>, %arg13: memref<4x96xf32, #tpu.memory_space<vmem>>, %arg14: memref<1x96xf32, #tpu.memory_space<vmem>>, %arg15: memref<96x35xbf16, #tpu.memory_space<vmem>>, %arg16: memref<1x35xf32, #tpu.memory_space<vmem>>, %arg17: memref<3x96xf32, #tpu.memory_space<vmem>>, %arg18: memref<1x96xf32, #tpu.memory_space<vmem>>, %arg19: memref<16x96xf32, #tpu.memory_space<vmem>>, %arg20: memref<1x96xf32, #tpu.memory_space<vmem>>, %arg21: memref<96x48xbf16, #tpu.memory_space<vmem>>, %arg22: memref<1x48xf32, #tpu.memory_space<vmem>>, %arg23: memref<1x48xf32, #tpu.memory_space<vmem>>, %arg24: memref<1x48xf32, #tpu.memory_space<vmem>>, %arg25: memref<1x128x384xbf16, #tpu.memory_space<vmem>>, %arg26: memref<1x1x384xf32, #tpu.memory_space<vmem>>, %arg27: memref<1x128x128xbf16, #tpu.memory_space<vmem>>, %arg28: memref<1x1x128xf32, #tpu.memory_space<vmem>>, %arg29: memref<1x1x128xf32, #tpu.memory_space<vmem>>, %arg30: memref<1x1x128xf32, #tpu.memory_space<vmem>>, %arg31: memref<384x128xbf16, #tpu.memory_space<vmem>>, %arg32: memref<1x128xf32, #tpu.memory_space<vmem>>, %arg33: memref<1x1x384xf32, #tpu.memory_space<vmem>>, %arg34: memref<1x1x128xf32, #tpu.memory_space<vmem>>) attributes {dimension_semantics = [#tpu.dimension_semantics<parallel>], iteration_bounds = array<i64: 2>, scalar_prefetch = 0 : i64, scratch_operands = 0 : i64, tpu.core_type = #tpu.core_type<tc>, window_params = [{transform_indices = @transform_0, window_bounds = array<i64: 1, 3, 4, 32>}, {pipeline_mode = #tpu.pipeline_mode<synchronous>, transform_indices = @transform_1, window_bounds = array<i64: 16, 64>}, {pipeline_mode = #tpu.pipeline_mode<synchronous>, transform_indices = @transform_2, window_bounds = array<i64: 16, 64>}, {pipeline_mode = #tpu.pipeline_mode<synchronous>, transform_indices = @transform_3, window_bounds = array<i64: 1, 64>}, {pipeline_mode = #tpu.pipeline_mode<synchronous>, transform_indices = @transform_4, window_bounds = array<i64: 2, 5, 64>}, {pipeline_mode = #tpu.pipeline_mode<synchronous>, transform_indices = @transform_5, window_bounds = array<i64: 2, 1, 64>}, {pipeline_mode = #tpu.pipeline_mode<synchronous>, transform_indices = @transform_6, window_bounds = array<i64: 2, 64, 64>}, {pipeline_mode = #tpu.pipeline_mode<synchronous>, transform_indices = @transform_7, window_bounds = array<i64: 2, 1, 64>}, {pipeline_mode = #tpu.pipeline_mode<synchronous>, transform_indices = @transform_8, window_bounds = array<i64: 2, 64, 64>}, {pipeline_mode = #tpu.pipeline_mode<synchronous>, transform_indices = @transform_9, window_bounds = array<i64: 2, 1, 64>}, {pipeline_mode = #tpu.pipeline_mode<synchronous>, transform_indices = @transform_10, window_bounds = array<i64: 48, 192>}, {pipeline_mode = #tpu.pipeline_mode<synchronous>, transform_indices = @transform_11, window_bounds = array<i64: 1, 192>}, {pipeline_mode = #tpu.pipeline_mode<synchronous>, transform_indices = @transform_12, window_bounds = array<i64: 4, 96>}, {pipeline_mode = #tpu.pipeline_mode<synchronous>, transform_indices = @transform_13, window_bounds = array<i64: 1, 96>}, {pipeline_mode = #tpu.pipeline_mode<synchronous>, transform_indices = @transform_14, window_bounds = array<i64: 96, 35>}, {pipeline_mode = #tpu.pipeline_mode<synchronous>, transform_indices = @transform_15, window_bounds = array<i64: 1, 35>}, {pipeline_mode = #tpu.pipeline_mode<synchronous>, transform_indices = @transform_16, window_bounds = array<i64: 3, 96>}, {pipeline_mode = #tpu.pipeline_mode<synchronous>, transform_indices = @transform_17, window_bounds = array<i64: 1, 96>}, {pipeline_mode = #tpu.pipeline_mode<synchronous>, transform_indices = @transform_18, window_bounds = array<i64: 16, 96>}, {pipeline_mode = #tpu.pipeline_mode<synchronous>, transform_indices = @transform_19, window_bounds = array<i64: 1, 96>}, {pipeline_mode = #tpu.pipeline_mode<synchronous>, transform_indices = @transform_20, window_bounds = array<i64: 96, 48>}, {pipeline_mode = #tpu.pipeline_mode<synchronous>, transform_indices = @transform_21, window_bounds = array<i64: 1, 48>}, {pipeline_mode = #tpu.pipeline_mode<synchronous>, transform_indices = @transform_22, window_bounds = array<i64: 1, 48>}, {pipeline_mode = #tpu.pipeline_mode<synchronous>, transform_indices = @transform_23, window_bounds = array<i64: 1, 48>}, {pipeline_mode = #tpu.pipeline_mode<synchronous>, transform_indices = @transform_24, window_bounds = array<i64: 1, 128, 384>}, {pipeline_mode = #tpu.pipeline_mode<synchronous>, transform_indices = @transform_25, window_bounds = array<i64: 1, 1, 384>}, {pipeline_mode = #tpu.pipeline_mode<synchronous>, transform_indices = @transform_26, window_bounds = array<i64: 1, 128, 128>}, {pipeline_mode = #tpu.pipeline_mode<synchronous>, transform_indices = @transform_27, window_bounds = array<i64: 1, 1, 128>}, {pipeline_mode = #tpu.pipeline_mode<synchronous>, transform_indices = @transform_28, window_bounds = array<i64: 1, 1, 128>}, {pipeline_mode = #tpu.pipeline_mode<synchronous>, transform_indices = @transform_29, window_bounds = array<i64: 1, 1, 128>}, {pipeline_mode = #tpu.pipeline_mode<synchronous>, transform_indices = @transform_30, window_bounds = array<i64: 384, 128>}, {pipeline_mode = #tpu.pipeline_mode<synchronous>, transform_indices = @transform_31, window_bounds = array<i64: 1, 128>}, {transform_indices = @transform_32, window_bounds = array<i64: 1, 1, 384>}, {transform_indices = @transform_33, window_bounds = array<i64: 1, 1, 128>}]} {
    %c0 = arith.constant 0 : index
    %c0_0 = arith.constant 0 : index
    %c0_1 = arith.constant 0 : index
    %c0_2 = arith.constant 0 : index
    %0 = vector.load %arg1[%c0, %c0_0, %c0_1, %c0_2] : memref<1x3x4x32xf32, #tpu.memory_space<vmem>>, vector<1x3x4x32xf32>
    %1 = vector.shape_cast %0 : vector<1x3x4x32xf32> to vector<3x4x32xf32>
    %2 = vector.extract_strided_slice %1 {offsets = [0, 0, 31], sizes = [3, 4, 1], strides = [1, 1, 1]} : vector<3x4x32xf32> to vector<3x4x1xf32>
    %3 = vector.shape_cast %2 : vector<3x4x1xf32> to vector<3x4x1xf32>
    %4 = vector.broadcast %3 : vector<3x4x1xf32> to vector<3x4x4xf32>
    %5 = tpu.concatenate %1, %4 in 2 : vector<3x4x32xf32>, vector<3x4x4xf32> -> vector<3x4x36xf32>
    %6 = vector.shape_cast %5 : vector<3x4x36xf32> to vector<3x4x9x4xf32>
    %7 = tpu.transpose %6, [0, 2, 1, 3] : vector<3x4x9x4xf32> -> vector<3x9x4x4xf32>
    %8 = vector.extract_strided_slice %7 {offsets = [0, 0, 0, 0], sizes = [3, 8, 4, 4], strides = [1, 1, 1, 1]} : vector<3x9x4x4xf32> to vector<3x8x4x4xf32>
    %9 = vector.shape_cast %8 : vector<3x8x4x4xf32> to vector<24x16xf32>
    %10 = vector.extract_strided_slice %7 {offsets = [0, 1, 0, 0], sizes = [3, 8, 4, 4], strides = [1, 1, 1, 1]} : vector<3x9x4x4xf32> to vector<3x8x4x4xf32>
    %11 = vector.shape_cast %10 : vector<3x8x4x4xf32> to vector<24x16xf32>
    %c0_3 = arith.constant 0 : index
    %c0_4 = arith.constant 0 : index
    %12 = vector.load %arg2[%c0_3, %c0_4] : memref<16x64xf32, #tpu.memory_space<vmem>>, vector<16x64xf32>
    %cst = arith.constant dense<0.000000e+00> : vector<24x64xf32>
    %13 = tpu.matmul %9, %12, %cst {dimension_numbers = #tpu.dot_dimension_numbers<[1], [0], [0], [1], [0, 0, 1, 1], [], []>} : vector<24x16xf32>, vector<16x64xf32>, vector<24x64xf32> -> vector<24x64xf32>
    %c0_5 = arith.constant 0 : index
    %c0_6 = arith.constant 0 : index
    %14 = vector.load %arg3[%c0_5, %c0_6] : memref<16x64xf32, #tpu.memory_space<vmem>>, vector<16x64xf32>
    %cst_7 = arith.constant dense<0.000000e+00> : vector<24x64xf32>
    %15 = tpu.matmul %11, %14, %cst_7 {dimension_numbers = #tpu.dot_dimension_numbers<[1], [0], [0], [1], [0, 0, 1, 1], [], []>} : vector<24x16xf32>, vector<16x64xf32>, vector<24x64xf32> -> vector<24x64xf32>
    %16 = arith.addf %13, %15 : vector<24x64xf32>
    %c0_8 = arith.constant 0 : index
    %c0_9 = arith.constant 0 : index
    %17 = vector.load %arg4[%c0_8, %c0_9] : memref<1x64xf32, #tpu.memory_space<vmem>>, vector<1x64xf32>
    %18 = vector.broadcast %17 : vector<1x64xf32> to vector<24x64xf32>
    %19 = arith.addf %16, %18 : vector<24x64xf32>
    %20 = vector.shape_cast %19 : vector<24x64xf32> to vector<3x8x64xf32>
    %c0_10 = arith.constant 0 : index
    %c0_11 = arith.constant 0 : index
    %c0_12 = arith.constant 0 : index
    %21 = vector.load %arg5[%c0_10, %c0_11, %c0_12] : memref<2x5x64xf32, #tpu.memory_space<vmem>>, vector<1x5x64xf32>
    %22 = vector.shape_cast %21 : vector<1x5x64xf32> to vector<5x64xf32>
    %c0_13 = arith.constant 0 : index
    %c0_14 = arith.constant 0 : index
    %c0_15 = arith.constant 0 : index
    %23 = vector.load %arg6[%c0_13, %c0_14, %c0_15] : memref<2x1x64xf32, #tpu.memory_space<vmem>>, vector<1x1x64xf32>
    %24 = vector.shape_cast %23 : vector<1x1x64xf32> to vector<1x64xf32>
    %cst_16 = arith.constant 0.000000e+00 : f32
    %25 = vector.broadcast %cst_16 : f32 to vector<3x2x64xf32>
    %26 = tpu.concatenate %25, %20, %25 in 1 : vector<3x2x64xf32>, vector<3x8x64xf32>, vector<3x2x64xf32> -> vector<3x12x64xf32>
    %27 = vector.shape_cast %24 : vector<1x64xf32> to vector<1x1x64xf32>
    %28 = vector.shape_cast %27 : vector<1x1x64xf32> to vector<1x1x64xf32>
    %29 = vector.broadcast %28 : vector<1x1x64xf32> to vector<3x8x64xf32>
    %30 = vector.extract_strided_slice %22 {offsets = [0, 0], sizes = [1, 64], strides = [1, 1]} : vector<5x64xf32> to vector<1x64xf32>
    %31 = vector.shape_cast %30 : vector<1x64xf32> to vector<64xf32>
    %32 = vector.shape_cast %31 : vector<64xf32> to vector<1x1x64xf32>
    %33 = vector.extract_strided_slice %26 {offsets = [0, 0, 0], sizes = [3, 8, 64], strides = [1, 1, 1]} : vector<3x12x64xf32> to vector<3x8x64xf32>
    %34 = vector.broadcast %32 : vector<1x1x64xf32> to vector<3x8x64xf32>
    %35 = arith.mulf %34, %33 : vector<3x8x64xf32>
    %36 = arith.addf %29, %35 : vector<3x8x64xf32>
    %37 = vector.extract_strided_slice %22 {offsets = [1, 0], sizes = [1, 64], strides = [1, 1]} : vector<5x64xf32> to vector<1x64xf32>
    %38 = vector.shape_cast %37 : vector<1x64xf32> to vector<64xf32>
    %39 = vector.shape_cast %38 : vector<64xf32> to vector<1x1x64xf32>
    %40 = vector.extract_strided_slice %26 {offsets = [0, 1, 0], sizes = [3, 8, 64], strides = [1, 1, 1]} : vector<3x12x64xf32> to vector<3x8x64xf32>
    %41 = vector.broadcast %39 : vector<1x1x64xf32> to vector<3x8x64xf32>
    %42 = arith.mulf %41, %40 : vector<3x8x64xf32>
    %43 = arith.addf %36, %42 : vector<3x8x64xf32>
    %44 = vector.extract_strided_slice %22 {offsets = [2, 0], sizes = [1, 64], strides = [1, 1]} : vector<5x64xf32> to vector<1x64xf32>
    %45 = vector.shape_cast %44 : vector<1x64xf32> to vector<64xf32>
    %46 = vector.shape_cast %45 : vector<64xf32> to vector<1x1x64xf32>
    %47 = vector.extract_strided_slice %26 {offsets = [0, 2, 0], sizes = [3, 8, 64], strides = [1, 1, 1]} : vector<3x12x64xf32> to vector<3x8x64xf32>
    %48 = vector.broadcast %46 : vector<1x1x64xf32> to vector<3x8x64xf32>
    %49 = arith.mulf %48, %47 : vector<3x8x64xf32>
    %50 = arith.addf %43, %49 : vector<3x8x64xf32>
    %51 = vector.extract_strided_slice %22 {offsets = [3, 0], sizes = [1, 64], strides = [1, 1]} : vector<5x64xf32> to vector<1x64xf32>
    %52 = vector.shape_cast %51 : vector<1x64xf32> to vector<64xf32>
    %53 = vector.shape_cast %52 : vector<64xf32> to vector<1x1x64xf32>
    %54 = vector.extract_strided_slice %26 {offsets = [0, 3, 0], sizes = [3, 8, 64], strides = [1, 1, 1]} : vector<3x12x64xf32> to vector<3x8x64xf32>
    %55 = vector.broadcast %53 : vector<1x1x64xf32> to vector<3x8x64xf32>
    %56 = arith.mulf %55, %54 : vector<3x8x64xf32>
    %57 = arith.addf %50, %56 : vector<3x8x64xf32>
    %58 = vector.extract_strided_slice %22 {offsets = [4, 0], sizes = [1, 64], strides = [1, 1]} : vector<5x64xf32> to vector<1x64xf32>
    %59 = vector.shape_cast %58 : vector<1x64xf32> to vector<64xf32>
    %60 = vector.shape_cast %59 : vector<64xf32> to vector<1x1x64xf32>
    %61 = vector.extract_strided_slice %26 {offsets = [0, 4, 0], sizes = [3, 8, 64], strides = [1, 1, 1]} : vector<3x12x64xf32> to vector<3x8x64xf32>
    %62 = vector.broadcast %60 : vector<1x1x64xf32> to vector<3x8x64xf32>
    %63 = arith.mulf %62, %61 : vector<3x8x64xf32>
    %64 = arith.addf %57, %63 : vector<3x8x64xf32>
    %65 = arith.addf %64, %20 : vector<3x8x64xf32>
    %66 = vector.shape_cast %65 : vector<3x8x64xf32> to vector<24x64xf32>
    %67 = arith.truncf %66 : vector<24x64xf32> to vector<24x64xbf16>
    %c0_17 = arith.constant 0 : index
    %c0_18 = arith.constant 0 : index
    %c0_19 = arith.constant 0 : index
    %68 = vector.load %arg7[%c0_17, %c0_18, %c0_19] : memref<2x64x64xbf16, #tpu.memory_space<vmem>>, vector<1x64x64xbf16>
    %69 = vector.shape_cast %68 : vector<1x64x64xbf16> to vector<64x64xbf16>
    %cst_20 = arith.constant dense<0.000000e+00> : vector<24x64xf32>
    %70 = tpu.matmul %67, %69, %cst_20 {dimension_numbers = #tpu.dot_dimension_numbers<[1], [0], [0], [1], [0, 0, 1, 1], [], []>} : vector<24x64xbf16>, vector<64x64xbf16>, vector<24x64xf32> -> vector<24x64xf32>
    %c0_21 = arith.constant 0 : index
    %c0_22 = arith.constant 0 : index
    %c0_23 = arith.constant 0 : index
    %71 = vector.load %arg8[%c0_21, %c0_22, %c0_23] : memref<2x1x64xf32, #tpu.memory_space<vmem>>, vector<1x1x64xf32>
    %72 = vector.shape_cast %71 : vector<1x1x64xf32> to vector<1x64xf32>
    %73 = vector.broadcast %72 : vector<1x64xf32> to vector<24x64xf32>
    %74 = arith.addf %70, %73 : vector<24x64xf32>
    %75 = arith.mulf %74, %74 : vector<24x64xf32>
    %76 = arith.mulf %74, %75 : vector<24x64xf32>
    %cst_24 = arith.constant 4.471500e-02 : f32
    %77 = vector.broadcast %cst_24 : f32 to vector<24x64xf32>
    %78 = arith.mulf %77, %76 : vector<24x64xf32>
    %79 = arith.addf %74, %78 : vector<24x64xf32>
    %cst_25 = arith.constant 0.797884583 : f32
    %80 = vector.broadcast %cst_25 : f32 to vector<24x64xf32>
    %81 = arith.mulf %80, %79 : vector<24x64xf32>
    %82 = math.tanh %81 : vector<24x64xf32>
    %cst_26 = arith.constant 1.000000e+00 : f32
    %83 = vector.broadcast %cst_26 : f32 to vector<24x64xf32>
    %84 = arith.addf %83, %82 : vector<24x64xf32>
    %cst_27 = arith.constant 5.000000e-01 : f32
    %85 = vector.broadcast %cst_27 : f32 to vector<24x64xf32>
    %86 = arith.mulf %85, %84 : vector<24x64xf32>
    %87 = arith.mulf %74, %86 : vector<24x64xf32>
    %88 = arith.truncf %87 : vector<24x64xf32> to vector<24x64xbf16>
    %c0_28 = arith.constant 0 : index
    %c0_29 = arith.constant 0 : index
    %c0_30 = arith.constant 0 : index
    %89 = vector.load %arg9[%c0_28, %c0_29, %c0_30] : memref<2x64x64xbf16, #tpu.memory_space<vmem>>, vector<1x64x64xbf16>
    %90 = vector.shape_cast %89 : vector<1x64x64xbf16> to vector<64x64xbf16>
    %cst_31 = arith.constant dense<0.000000e+00> : vector<24x64xf32>
    %91 = tpu.matmul %88, %90, %cst_31 {dimension_numbers = #tpu.dot_dimension_numbers<[1], [0], [0], [1], [0, 0, 1, 1], [], []>} : vector<24x64xbf16>, vector<64x64xbf16>, vector<24x64xf32> -> vector<24x64xf32>
    %c0_32 = arith.constant 0 : index
    %c0_33 = arith.constant 0 : index
    %c0_34 = arith.constant 0 : index
    %92 = vector.load %arg10[%c0_32, %c0_33, %c0_34] : memref<2x1x64xf32, #tpu.memory_space<vmem>>, vector<1x1x64xf32>
    %93 = vector.shape_cast %92 : vector<1x1x64xf32> to vector<1x64xf32>
    %94 = vector.broadcast %93 : vector<1x64xf32> to vector<24x64xf32>
    %95 = arith.addf %91, %94 : vector<24x64xf32>
    %96 = arith.addf %95, %66 : vector<24x64xf32>
    %97 = vector.shape_cast %96 : vector<24x64xf32> to vector<3x8x64xf32>
    %c1 = arith.constant 1 : index
    %c0_35 = arith.constant 0 : index
    %c0_36 = arith.constant 0 : index
    %98 = vector.load %arg5[%c1, %c0_35, %c0_36] : memref<2x5x64xf32, #tpu.memory_space<vmem>>, vector<1x5x64xf32>
    %99 = vector.shape_cast %98 : vector<1x5x64xf32> to vector<5x64xf32>
    %c1_37 = arith.constant 1 : index
    %c0_38 = arith.constant 0 : index
    %c0_39 = arith.constant 0 : index
    %100 = vector.load %arg6[%c1_37, %c0_38, %c0_39] : memref<2x1x64xf32, #tpu.memory_space<vmem>>, vector<1x1x64xf32>
    %101 = vector.shape_cast %100 : vector<1x1x64xf32> to vector<1x64xf32>
    %cst_40 = arith.constant 0.000000e+00 : f32
    %102 = vector.broadcast %cst_40 : f32 to vector<3x2x64xf32>
    %103 = tpu.concatenate %102, %97, %102 in 1 : vector<3x2x64xf32>, vector<3x8x64xf32>, vector<3x2x64xf32> -> vector<3x12x64xf32>
    %104 = vector.shape_cast %101 : vector<1x64xf32> to vector<1x1x64xf32>
    %105 = vector.shape_cast %104 : vector<1x1x64xf32> to vector<1x1x64xf32>
    %106 = vector.broadcast %105 : vector<1x1x64xf32> to vector<3x8x64xf32>
    %107 = vector.extract_strided_slice %99 {offsets = [0, 0], sizes = [1, 64], strides = [1, 1]} : vector<5x64xf32> to vector<1x64xf32>
    %108 = vector.shape_cast %107 : vector<1x64xf32> to vector<64xf32>
    %109 = vector.shape_cast %108 : vector<64xf32> to vector<1x1x64xf32>
    %110 = vector.extract_strided_slice %103 {offsets = [0, 0, 0], sizes = [3, 8, 64], strides = [1, 1, 1]} : vector<3x12x64xf32> to vector<3x8x64xf32>
    %111 = vector.broadcast %109 : vector<1x1x64xf32> to vector<3x8x64xf32>
    %112 = arith.mulf %111, %110 : vector<3x8x64xf32>
    %113 = arith.addf %106, %112 : vector<3x8x64xf32>
    %114 = vector.extract_strided_slice %99 {offsets = [1, 0], sizes = [1, 64], strides = [1, 1]} : vector<5x64xf32> to vector<1x64xf32>
    %115 = vector.shape_cast %114 : vector<1x64xf32> to vector<64xf32>
    %116 = vector.shape_cast %115 : vector<64xf32> to vector<1x1x64xf32>
    %117 = vector.extract_strided_slice %103 {offsets = [0, 1, 0], sizes = [3, 8, 64], strides = [1, 1, 1]} : vector<3x12x64xf32> to vector<3x8x64xf32>
    %118 = vector.broadcast %116 : vector<1x1x64xf32> to vector<3x8x64xf32>
    %119 = arith.mulf %118, %117 : vector<3x8x64xf32>
    %120 = arith.addf %113, %119 : vector<3x8x64xf32>
    %121 = vector.extract_strided_slice %99 {offsets = [2, 0], sizes = [1, 64], strides = [1, 1]} : vector<5x64xf32> to vector<1x64xf32>
    %122 = vector.shape_cast %121 : vector<1x64xf32> to vector<64xf32>
    %123 = vector.shape_cast %122 : vector<64xf32> to vector<1x1x64xf32>
    %124 = vector.extract_strided_slice %103 {offsets = [0, 2, 0], sizes = [3, 8, 64], strides = [1, 1, 1]} : vector<3x12x64xf32> to vector<3x8x64xf32>
    %125 = vector.broadcast %123 : vector<1x1x64xf32> to vector<3x8x64xf32>
    %126 = arith.mulf %125, %124 : vector<3x8x64xf32>
    %127 = arith.addf %120, %126 : vector<3x8x64xf32>
    %128 = vector.extract_strided_slice %99 {offsets = [3, 0], sizes = [1, 64], strides = [1, 1]} : vector<5x64xf32> to vector<1x64xf32>
    %129 = vector.shape_cast %128 : vector<1x64xf32> to vector<64xf32>
    %130 = vector.shape_cast %129 : vector<64xf32> to vector<1x1x64xf32>
    %131 = vector.extract_strided_slice %103 {offsets = [0, 3, 0], sizes = [3, 8, 64], strides = [1, 1, 1]} : vector<3x12x64xf32> to vector<3x8x64xf32>
    %132 = vector.broadcast %130 : vector<1x1x64xf32> to vector<3x8x64xf32>
    %133 = arith.mulf %132, %131 : vector<3x8x64xf32>
    %134 = arith.addf %127, %133 : vector<3x8x64xf32>
    %135 = vector.extract_strided_slice %99 {offsets = [4, 0], sizes = [1, 64], strides = [1, 1]} : vector<5x64xf32> to vector<1x64xf32>
    %136 = vector.shape_cast %135 : vector<1x64xf32> to vector<64xf32>
    %137 = vector.shape_cast %136 : vector<64xf32> to vector<1x1x64xf32>
    %138 = vector.extract_strided_slice %103 {offsets = [0, 4, 0], sizes = [3, 8, 64], strides = [1, 1, 1]} : vector<3x12x64xf32> to vector<3x8x64xf32>
    %139 = vector.broadcast %137 : vector<1x1x64xf32> to vector<3x8x64xf32>
    %140 = arith.mulf %139, %138 : vector<3x8x64xf32>
    %141 = arith.addf %134, %140 : vector<3x8x64xf32>
    %142 = arith.addf %141, %97 : vector<3x8x64xf32>
    %143 = vector.shape_cast %142 : vector<3x8x64xf32> to vector<24x64xf32>
    %144 = arith.truncf %143 : vector<24x64xf32> to vector<24x64xbf16>
    %c1_41 = arith.constant 1 : index
    %c0_42 = arith.constant 0 : index
    %c0_43 = arith.constant 0 : index
    %145 = vector.load %arg7[%c1_41, %c0_42, %c0_43] : memref<2x64x64xbf16, #tpu.memory_space<vmem>>, vector<1x64x64xbf16>
    %146 = vector.shape_cast %145 : vector<1x64x64xbf16> to vector<64x64xbf16>
    %cst_44 = arith.constant dense<0.000000e+00> : vector<24x64xf32>
    %147 = tpu.matmul %144, %146, %cst_44 {dimension_numbers = #tpu.dot_dimension_numbers<[1], [0], [0], [1], [0, 0, 1, 1], [], []>} : vector<24x64xbf16>, vector<64x64xbf16>, vector<24x64xf32> -> vector<24x64xf32>
    %c1_45 = arith.constant 1 : index
    %c0_46 = arith.constant 0 : index
    %c0_47 = arith.constant 0 : index
    %148 = vector.load %arg8[%c1_45, %c0_46, %c0_47] : memref<2x1x64xf32, #tpu.memory_space<vmem>>, vector<1x1x64xf32>
    %149 = vector.shape_cast %148 : vector<1x1x64xf32> to vector<1x64xf32>
    %150 = vector.broadcast %149 : vector<1x64xf32> to vector<24x64xf32>
    %151 = arith.addf %147, %150 : vector<24x64xf32>
    %152 = arith.mulf %151, %151 : vector<24x64xf32>
    %153 = arith.mulf %151, %152 : vector<24x64xf32>
    %cst_48 = arith.constant 4.471500e-02 : f32
    %154 = vector.broadcast %cst_48 : f32 to vector<24x64xf32>
    %155 = arith.mulf %154, %153 : vector<24x64xf32>
    %156 = arith.addf %151, %155 : vector<24x64xf32>
    %cst_49 = arith.constant 0.797884583 : f32
    %157 = vector.broadcast %cst_49 : f32 to vector<24x64xf32>
    %158 = arith.mulf %157, %156 : vector<24x64xf32>
    %159 = math.tanh %158 : vector<24x64xf32>
    %cst_50 = arith.constant 1.000000e+00 : f32
    %160 = vector.broadcast %cst_50 : f32 to vector<24x64xf32>
    %161 = arith.addf %160, %159 : vector<24x64xf32>
    %cst_51 = arith.constant 5.000000e-01 : f32
    %162 = vector.broadcast %cst_51 : f32 to vector<24x64xf32>
    %163 = arith.mulf %162, %161 : vector<24x64xf32>
    %164 = arith.mulf %151, %163 : vector<24x64xf32>
    %165 = arith.truncf %164 : vector<24x64xf32> to vector<24x64xbf16>
    %c1_52 = arith.constant 1 : index
    %c0_53 = arith.constant 0 : index
    %c0_54 = arith.constant 0 : index
    %166 = vector.load %arg9[%c1_52, %c0_53, %c0_54] : memref<2x64x64xbf16, #tpu.memory_space<vmem>>, vector<1x64x64xbf16>
    %167 = vector.shape_cast %166 : vector<1x64x64xbf16> to vector<64x64xbf16>
    %cst_55 = arith.constant dense<0.000000e+00> : vector<24x64xf32>
    %168 = tpu.matmul %165, %167, %cst_55 {dimension_numbers = #tpu.dot_dimension_numbers<[1], [0], [0], [1], [0, 0, 1, 1], [], []>} : vector<24x64xbf16>, vector<64x64xbf16>, vector<24x64xf32> -> vector<24x64xf32>
    %c1_56 = arith.constant 1 : index
    %c0_57 = arith.constant 0 : index
    %c0_58 = arith.constant 0 : index
    %169 = vector.load %arg10[%c1_56, %c0_57, %c0_58] : memref<2x1x64xf32, #tpu.memory_space<vmem>>, vector<1x1x64xf32>
    %170 = vector.shape_cast %169 : vector<1x1x64xf32> to vector<1x64xf32>
    %171 = vector.broadcast %170 : vector<1x64xf32> to vector<24x64xf32>
    %172 = arith.addf %168, %171 : vector<24x64xf32>
    %173 = arith.addf %172, %143 : vector<24x64xf32>
    %174 = vector.shape_cast %173 : vector<24x64xf32> to vector<3x8x64xf32>
    %175 = vector.extract_strided_slice %174 {offsets = [0, 0, 0], sizes = [3, 8, 16], strides = [1, 1, 1]} : vector<3x8x64xf32> to vector<3x8x16xf32>
    %176 = vector.extract_strided_slice %174 {offsets = [0, 0, 16], sizes = [3, 8, 16], strides = [1, 1, 1]} : vector<3x8x64xf32> to vector<3x8x16xf32>
    %177 = arith.addf %175, %176 : vector<3x8x16xf32>
    %178 = vector.extract_strided_slice %174 {offsets = [0, 0, 32], sizes = [3, 8, 16], strides = [1, 1, 1]} : vector<3x8x64xf32> to vector<3x8x16xf32>
    %179 = arith.addf %177, %178 : vector<3x8x16xf32>
    %180 = vector.extract_strided_slice %174 {offsets = [0, 0, 48], sizes = [3, 8, 16], strides = [1, 1, 1]} : vector<3x8x64xf32> to vector<3x8x16xf32>
    %181 = arith.addf %179, %180 : vector<3x8x16xf32>
    %cst_59 = arith.constant 2.500000e-01 : f32
    %182 = vector.broadcast %cst_59 : f32 to vector<3x8x16xf32>
    %183 = arith.mulf %181, %182 : vector<3x8x16xf32>
    %184 = tpu.transpose %183, [1, 0, 2] : vector<3x8x16xf32> -> vector<8x3x16xf32>
    %185 = vector.shape_cast %184 : vector<8x3x16xf32> to vector<8x48xf32>
    %186 = arith.truncf %185 : vector<8x48xf32> to vector<8x48xbf16>
    %c0_60 = arith.constant 0 : index
    %c0_61 = arith.constant 0 : index
    %187 = vector.load %arg11[%c0_60, %c0_61] : memref<48x192xbf16, #tpu.memory_space<vmem>>, vector<48x192xbf16>
    %cst_62 = arith.constant dense<0.000000e+00> : vector<8x192xf32>
    %188 = tpu.matmul %186, %187, %cst_62 {dimension_numbers = #tpu.dot_dimension_numbers<[1], [0], [0], [1], [0, 0, 1, 1], [], []>} : vector<8x48xbf16>, vector<48x192xbf16>, vector<8x192xf32> -> vector<8x192xf32>
    %c0_63 = arith.constant 0 : index
    %c0_64 = arith.constant 0 : index
    %189 = vector.load %arg12[%c0_63, %c0_64] : memref<1x192xf32, #tpu.memory_space<vmem>>, vector<1x192xf32>
    %190 = vector.broadcast %189 : vector<1x192xf32> to vector<8x192xf32>
    %191 = arith.addf %188, %190 : vector<8x192xf32>
    %192 = vector.extract_strided_slice %191 {offsets = [0, 0], sizes = [8, 96], strides = [1, 1]} : vector<8x192xf32> to vector<8x96xf32>
    %193 = vector.extract_strided_slice %191 {offsets = [0, 96], sizes = [8, 96], strides = [1, 1]} : vector<8x192xf32> to vector<8x96xf32>
    %c0_65 = arith.constant 0 : index
    %c0_66 = arith.constant 0 : index
    %194 = vector.load %arg13[%c0_65, %c0_66] : memref<4x96xf32, #tpu.memory_space<vmem>>, vector<4x96xf32>
    %cst_67 = arith.constant 0.000000e+00 : f32
    %195 = vector.broadcast %cst_67 : f32 to vector<3x96xf32>
    %196 = tpu.concatenate %195, %192 in 0 : vector<3x96xf32>, vector<8x96xf32> -> vector<11x96xf32>
    %c0_68 = arith.constant 0 : index
    %c0_69 = arith.constant 0 : index
    %197 = vector.load %arg14[%c0_68, %c0_69] : memref<1x96xf32, #tpu.memory_space<vmem>>, vector<1x96xf32>
    %198 = vector.shape_cast %197 : vector<1x96xf32> to vector<1x96xf32>
    %199 = vector.broadcast %198 : vector<1x96xf32> to vector<8x96xf32>
    %200 = vector.extract_strided_slice %194 {offsets = [0, 0], sizes = [1, 96], strides = [1, 1]} : vector<4x96xf32> to vector<1x96xf32>
    %201 = vector.shape_cast %200 : vector<1x96xf32> to vector<96xf32>
    %202 = vector.shape_cast %201 : vector<96xf32> to vector<1x96xf32>
    %203 = vector.extract_strided_slice %196 {offsets = [0, 0], sizes = [8, 96], strides = [1, 1]} : vector<11x96xf32> to vector<8x96xf32>
    %204 = vector.broadcast %202 : vector<1x96xf32> to vector<8x96xf32>
    %205 = arith.mulf %204, %203 : vector<8x96xf32>
    %206 = arith.addf %199, %205 : vector<8x96xf32>
    %207 = vector.extract_strided_slice %194 {offsets = [1, 0], sizes = [1, 96], strides = [1, 1]} : vector<4x96xf32> to vector<1x96xf32>
    %208 = vector.shape_cast %207 : vector<1x96xf32> to vector<96xf32>
    %209 = vector.shape_cast %208 : vector<96xf32> to vector<1x96xf32>
    %210 = vector.extract_strided_slice %196 {offsets = [1, 0], sizes = [8, 96], strides = [1, 1]} : vector<11x96xf32> to vector<8x96xf32>
    %211 = vector.broadcast %209 : vector<1x96xf32> to vector<8x96xf32>
    %212 = arith.mulf %211, %210 : vector<8x96xf32>
    %213 = arith.addf %206, %212 : vector<8x96xf32>
    %214 = vector.extract_strided_slice %194 {offsets = [2, 0], sizes = [1, 96], strides = [1, 1]} : vector<4x96xf32> to vector<1x96xf32>
    %215 = vector.shape_cast %214 : vector<1x96xf32> to vector<96xf32>
    %216 = vector.shape_cast %215 : vector<96xf32> to vector<1x96xf32>
    %217 = vector.extract_strided_slice %196 {offsets = [2, 0], sizes = [8, 96], strides = [1, 1]} : vector<11x96xf32> to vector<8x96xf32>
    %218 = vector.broadcast %216 : vector<1x96xf32> to vector<8x96xf32>
    %219 = arith.mulf %218, %217 : vector<8x96xf32>
    %220 = arith.addf %213, %219 : vector<8x96xf32>
    %221 = vector.extract_strided_slice %194 {offsets = [3, 0], sizes = [1, 96], strides = [1, 1]} : vector<4x96xf32> to vector<1x96xf32>
    %222 = vector.shape_cast %221 : vector<1x96xf32> to vector<96xf32>
    %223 = vector.shape_cast %222 : vector<96xf32> to vector<1x96xf32>
    %224 = vector.extract_strided_slice %196 {offsets = [3, 0], sizes = [8, 96], strides = [1, 1]} : vector<11x96xf32> to vector<8x96xf32>
    %225 = vector.broadcast %223 : vector<1x96xf32> to vector<8x96xf32>
    %226 = arith.mulf %225, %224 : vector<8x96xf32>
    %227 = arith.addf %220, %226 : vector<8x96xf32>
    %cst_70 = arith.constant 0.000000e+00 : f32
    %228 = vector.broadcast %cst_70 : f32 to vector<8x96xf32>
    %229 = arith.subf %228, %227 : vector<8x96xf32>
    %230 = math.exp %229 : vector<8x96xf32>
    %cst_71 = arith.constant 1.000000e+00 : f32
    %231 = vector.broadcast %cst_71 : f32 to vector<8x96xf32>
    %232 = arith.addf %231, %230 : vector<8x96xf32>
    %cst_72 = arith.constant 1.000000e+00 : f32
    %233 = vector.broadcast %cst_72 : f32 to vector<8x96xf32>
    %234 = arith.divf %233, %232 : vector<8x96xf32>
    %235 = arith.mulf %227, %234 : vector<8x96xf32>
    %236 = arith.truncf %235 : vector<8x96xf32> to vector<8x96xbf16>
    %c0_73 = arith.constant 0 : index
    %c0_74 = arith.constant 0 : index
    %237 = vector.load %arg15[%c0_73, %c0_74] : memref<96x35xbf16, #tpu.memory_space<vmem>>, vector<96x35xbf16>
    %cst_75 = arith.constant dense<0.000000e+00> : vector<8x35xf32>
    %238 = tpu.matmul %236, %237, %cst_75 {dimension_numbers = #tpu.dot_dimension_numbers<[1], [0], [0], [1], [0, 0, 1, 1], [], []>} : vector<8x96xbf16>, vector<96x35xbf16>, vector<8x35xf32> -> vector<8x35xf32>
    %c0_76 = arith.constant 0 : index
    %c0_77 = arith.constant 0 : index
    %239 = vector.load %arg16[%c0_76, %c0_77] : memref<1x35xf32, #tpu.memory_space<vmem>>, vector<1x35xf32>
    %240 = vector.broadcast %239 : vector<1x35xf32> to vector<8x35xf32>
    %241 = arith.addf %238, %240 : vector<8x35xf32>
    %242 = vector.extract_strided_slice %241 {offsets = [0, 0], sizes = [8, 3], strides = [1, 1]} : vector<8x35xf32> to vector<8x3xf32>
    %243 = vector.extract_strided_slice %241 {offsets = [0, 3], sizes = [8, 16], strides = [1, 1]} : vector<8x35xf32> to vector<8x16xf32>
    %244 = vector.extract_strided_slice %241 {offsets = [0, 19], sizes = [8, 16], strides = [1, 1]} : vector<8x35xf32> to vector<8x16xf32>
    %c0_78 = arith.constant 0 : index
    %c0_79 = arith.constant 0 : index
    %245 = vector.load %arg17[%c0_78, %c0_79] : memref<3x96xf32, #tpu.memory_space<vmem>>, vector<3x96xf32>
    %cst_80 = arith.constant dense<0.000000e+00> : vector<8x96xf32>
    %246 = tpu.matmul %242, %245, %cst_80 {dimension_numbers = #tpu.dot_dimension_numbers<[1], [0], [0], [1], [0, 0, 1, 1], [], []>} : vector<8x3xf32>, vector<3x96xf32>, vector<8x96xf32> -> vector<8x96xf32>
    %c0_81 = arith.constant 0 : index
    %c0_82 = arith.constant 0 : index
    %247 = vector.load %arg18[%c0_81, %c0_82] : memref<1x96xf32, #tpu.memory_space<vmem>>, vector<1x96xf32>
    %248 = vector.broadcast %247 : vector<1x96xf32> to vector<8x96xf32>
    %249 = arith.addf %246, %248 : vector<8x96xf32>
    %cst_83 = arith.constant 0.000000e+00 : f32
    %250 = vector.broadcast %cst_83 : f32 to vector<8x96xf32>
    %251 = arith.maximumf %249, %250 : vector<8x96xf32>
    %252 = math.absf %249 : vector<8x96xf32>
    %cst_84 = arith.constant 0.000000e+00 : f32
    %253 = vector.broadcast %cst_84 : f32 to vector<8x96xf32>
    %254 = arith.subf %253, %252 : vector<8x96xf32>
    %255 = math.exp %254 : vector<8x96xf32>
    %cst_85 = arith.constant 1.000000e+00 : f32
    %256 = vector.broadcast %cst_85 : f32 to vector<8x96xf32>
    %257 = arith.addf %256, %255 : vector<8x96xf32>
    %258 = math.log %257 : vector<8x96xf32>
    %259 = arith.addf %251, %258 : vector<8x96xf32>
    %c0_86 = arith.constant 0 : index
    %c0_87 = arith.constant 0 : index
    %260 = vector.load %arg19[%c0_86, %c0_87] : memref<16x96xf32, #tpu.memory_space<vmem>>, vector<16x96xf32>
    %261 = math.exp %260 : vector<16x96xf32>
    %cst_88 = arith.constant 0.000000e+00 : f32
    %262 = vector.broadcast %cst_88 : f32 to vector<16x96xf32>
    %263 = arith.subf %262, %261 : vector<16x96xf32>
    %264 = vector.shape_cast %259 : vector<8x96xf32> to vector<8x1x96xf32>
    %265 = vector.shape_cast %263 : vector<16x96xf32> to vector<1x16x96xf32>
    %266 = vector.broadcast %264 : vector<8x1x96xf32> to vector<8x16x96xf32>
    %267 = vector.broadcast %265 : vector<1x16x96xf32> to vector<8x16x96xf32>
    %268 = arith.mulf %266, %267 : vector<8x16x96xf32>
    %269 = math.exp %268 : vector<8x16x96xf32>
    %270 = vector.shape_cast %259 : vector<8x96xf32> to vector<8x1x96xf32>
    %271 = vector.shape_cast %243 : vector<8x16xf32> to vector<8x16x1xf32>
    %272 = vector.broadcast %270 : vector<8x1x96xf32> to vector<8x16x96xf32>
    %273 = vector.broadcast %271 : vector<8x16x1xf32> to vector<8x16x96xf32>
    %274 = arith.mulf %272, %273 : vector<8x16x96xf32>
    %275 = vector.shape_cast %235 : vector<8x96xf32> to vector<8x1x96xf32>
    %276 = vector.broadcast %275 : vector<8x1x96xf32> to vector<8x16x96xf32>
    %277 = arith.mulf %274, %276 : vector<8x16x96xf32>
    %cst_89 = arith.constant 0.000000e+00 : f32
    %278 = vector.broadcast %cst_89 : f32 to vector<8x96xf32>
    %279 = arith.subf %278, %193 : vector<8x96xf32>
    %280 = math.exp %279 : vector<8x96xf32>
    %cst_90 = arith.constant 1.000000e+00 : f32
    %281 = vector.broadcast %cst_90 : f32 to vector<8x96xf32>
    %282 = arith.addf %281, %280 : vector<8x96xf32>
    %cst_91 = arith.constant 1.000000e+00 : f32
    %283 = vector.broadcast %cst_91 : f32 to vector<8x96xf32>
    %284 = arith.divf %283, %282 : vector<8x96xf32>
    %285 = arith.mulf %193, %284 : vector<8x96xf32>
    %c0_92 = arith.constant 0 : index
    %c0_93 = arith.constant 0 : index
    %286 = vector.load %arg20[%c0_92, %c0_93] : memref<1x96xf32, #tpu.memory_space<vmem>>, vector<1x96xf32>
    %cst_94 = arith.constant 0.000000e+00 : f32
    %287 = vector.broadcast %cst_94 : f32 to vector<16x96xf32>
    %288 = vector.extract_strided_slice %269 {offsets = [0, 0, 0], sizes = [1, 16, 96], strides = [1, 1, 1]} : vector<8x16x96xf32> to vector<1x16x96xf32>
    %289 = vector.shape_cast %288 : vector<1x16x96xf32> to vector<16x96xf32>
    %290 = arith.mulf %289, %287 : vector<16x96xf32>
    %291 = vector.extract_strided_slice %277 {offsets = [0, 0, 0], sizes = [1, 16, 96], strides = [1, 1, 1]} : vector<8x16x96xf32> to vector<1x16x96xf32>
    %292 = vector.shape_cast %291 : vector<1x16x96xf32> to vector<16x96xf32>
    %293 = arith.addf %290, %292 : vector<16x96xf32>
    %294 = vector.extract_strided_slice %244 {offsets = [0, 0], sizes = [1, 16], strides = [1, 1]} : vector<8x16xf32> to vector<1x16xf32>
    %295 = vector.shape_cast %294 : vector<1x16xf32> to vector<16xf32>
    %296 = vector.shape_cast %295 : vector<16xf32> to vector<16x1xf32>
    %297 = vector.broadcast %296 : vector<16x1xf32> to vector<16x96xf32>
    %298 = arith.mulf %293, %297 : vector<16x96xf32>
    %cst_95 = arith.constant dense<0.000000e+00> : vector<96xf32>
    %299 = vector.multi_reduction <add>, %298, %cst_95 [0] : vector<16x96xf32> to vector<96xf32>
    %300 = vector.shape_cast %299 : vector<96xf32> to vector<1x96xf32>
    %301 = vector.extract_strided_slice %269 {offsets = [1, 0, 0], sizes = [1, 16, 96], strides = [1, 1, 1]} : vector<8x16x96xf32> to vector<1x16x96xf32>
    %302 = vector.shape_cast %301 : vector<1x16x96xf32> to vector<16x96xf32>
    %303 = arith.mulf %302, %293 : vector<16x96xf32>
    %304 = vector.extract_strided_slice %277 {offsets = [1, 0, 0], sizes = [1, 16, 96], strides = [1, 1, 1]} : vector<8x16x96xf32> to vector<1x16x96xf32>
    %305 = vector.shape_cast %304 : vector<1x16x96xf32> to vector<16x96xf32>
    %306 = arith.addf %303, %305 : vector<16x96xf32>
    %307 = vector.extract_strided_slice %244 {offsets = [1, 0], sizes = [1, 16], strides = [1, 1]} : vector<8x16xf32> to vector<1x16xf32>
    %308 = vector.shape_cast %307 : vector<1x16xf32> to vector<16xf32>
    %309 = vector.shape_cast %308 : vector<16xf32> to vector<16x1xf32>
    %310 = vector.broadcast %309 : vector<16x1xf32> to vector<16x96xf32>
    %311 = arith.mulf %306, %310 : vector<16x96xf32>
    %cst_96 = arith.constant dense<0.000000e+00> : vector<96xf32>
    %312 = vector.multi_reduction <add>, %311, %cst_96 [0] : vector<16x96xf32> to vector<96xf32>
    %313 = vector.shape_cast %312 : vector<96xf32> to vector<1x96xf32>
    %314 = vector.extract_strided_slice %269 {offsets = [2, 0, 0], sizes = [1, 16, 96], strides = [1, 1, 1]} : vector<8x16x96xf32> to vector<1x16x96xf32>
    %315 = vector.shape_cast %314 : vector<1x16x96xf32> to vector<16x96xf32>
    %316 = arith.mulf %315, %306 : vector<16x96xf32>
    %317 = vector.extract_strided_slice %277 {offsets = [2, 0, 0], sizes = [1, 16, 96], strides = [1, 1, 1]} : vector<8x16x96xf32> to vector<1x16x96xf32>
    %318 = vector.shape_cast %317 : vector<1x16x96xf32> to vector<16x96xf32>
    %319 = arith.addf %316, %318 : vector<16x96xf32>
    %320 = vector.extract_strided_slice %244 {offsets = [2, 0], sizes = [1, 16], strides = [1, 1]} : vector<8x16xf32> to vector<1x16xf32>
    %321 = vector.shape_cast %320 : vector<1x16xf32> to vector<16xf32>
    %322 = vector.shape_cast %321 : vector<16xf32> to vector<16x1xf32>
    %323 = vector.broadcast %322 : vector<16x1xf32> to vector<16x96xf32>
    %324 = arith.mulf %319, %323 : vector<16x96xf32>
    %cst_97 = arith.constant dense<0.000000e+00> : vector<96xf32>
    %325 = vector.multi_reduction <add>, %324, %cst_97 [0] : vector<16x96xf32> to vector<96xf32>
    %326 = vector.shape_cast %325 : vector<96xf32> to vector<1x96xf32>
    %327 = vector.extract_strided_slice %269 {offsets = [3, 0, 0], sizes = [1, 16, 96], strides = [1, 1, 1]} : vector<8x16x96xf32> to vector<1x16x96xf32>
    %328 = vector.shape_cast %327 : vector<1x16x96xf32> to vector<16x96xf32>
    %329 = arith.mulf %328, %319 : vector<16x96xf32>
    %330 = vector.extract_strided_slice %277 {offsets = [3, 0, 0], sizes = [1, 16, 96], strides = [1, 1, 1]} : vector<8x16x96xf32> to vector<1x16x96xf32>
    %331 = vector.shape_cast %330 : vector<1x16x96xf32> to vector<16x96xf32>
    %332 = arith.addf %329, %331 : vector<16x96xf32>
    %333 = vector.extract_strided_slice %244 {offsets = [3, 0], sizes = [1, 16], strides = [1, 1]} : vector<8x16xf32> to vector<1x16xf32>
    %334 = vector.shape_cast %333 : vector<1x16xf32> to vector<16xf32>
    %335 = vector.shape_cast %334 : vector<16xf32> to vector<16x1xf32>
    %336 = vector.broadcast %335 : vector<16x1xf32> to vector<16x96xf32>
    %337 = arith.mulf %332, %336 : vector<16x96xf32>
    %cst_98 = arith.constant dense<0.000000e+00> : vector<96xf32>
    %338 = vector.multi_reduction <add>, %337, %cst_98 [0] : vector<16x96xf32> to vector<96xf32>
    %339 = vector.shape_cast %338 : vector<96xf32> to vector<1x96xf32>
    %340 = vector.extract_strided_slice %269 {offsets = [4, 0, 0], sizes = [1, 16, 96], strides = [1, 1, 1]} : vector<8x16x96xf32> to vector<1x16x96xf32>
    %341 = vector.shape_cast %340 : vector<1x16x96xf32> to vector<16x96xf32>
    %342 = arith.mulf %341, %332 : vector<16x96xf32>
    %343 = vector.extract_strided_slice %277 {offsets = [4, 0, 0], sizes = [1, 16, 96], strides = [1, 1, 1]} : vector<8x16x96xf32> to vector<1x16x96xf32>
    %344 = vector.shape_cast %343 : vector<1x16x96xf32> to vector<16x96xf32>
    %345 = arith.addf %342, %344 : vector<16x96xf32>
    %346 = vector.extract_strided_slice %244 {offsets = [4, 0], sizes = [1, 16], strides = [1, 1]} : vector<8x16xf32> to vector<1x16xf32>
    %347 = vector.shape_cast %346 : vector<1x16xf32> to vector<16xf32>
    %348 = vector.shape_cast %347 : vector<16xf32> to vector<16x1xf32>
    %349 = vector.broadcast %348 : vector<16x1xf32> to vector<16x96xf32>
    %350 = arith.mulf %345, %349 : vector<16x96xf32>
    %cst_99 = arith.constant dense<0.000000e+00> : vector<96xf32>
    %351 = vector.multi_reduction <add>, %350, %cst_99 [0] : vector<16x96xf32> to vector<96xf32>
    %352 = vector.shape_cast %351 : vector<96xf32> to vector<1x96xf32>
    %353 = vector.extract_strided_slice %269 {offsets = [5, 0, 0], sizes = [1, 16, 96], strides = [1, 1, 1]} : vector<8x16x96xf32> to vector<1x16x96xf32>
    %354 = vector.shape_cast %353 : vector<1x16x96xf32> to vector<16x96xf32>
    %355 = arith.mulf %354, %345 : vector<16x96xf32>
    %356 = vector.extract_strided_slice %277 {offsets = [5, 0, 0], sizes = [1, 16, 96], strides = [1, 1, 1]} : vector<8x16x96xf32> to vector<1x16x96xf32>
    %357 = vector.shape_cast %356 : vector<1x16x96xf32> to vector<16x96xf32>
    %358 = arith.addf %355, %357 : vector<16x96xf32>
    %359 = vector.extract_strided_slice %244 {offsets = [5, 0], sizes = [1, 16], strides = [1, 1]} : vector<8x16xf32> to vector<1x16xf32>
    %360 = vector.shape_cast %359 : vector<1x16xf32> to vector<16xf32>
    %361 = vector.shape_cast %360 : vector<16xf32> to vector<16x1xf32>
    %362 = vector.broadcast %361 : vector<16x1xf32> to vector<16x96xf32>
    %363 = arith.mulf %358, %362 : vector<16x96xf32>
    %cst_100 = arith.constant dense<0.000000e+00> : vector<96xf32>
    %364 = vector.multi_reduction <add>, %363, %cst_100 [0] : vector<16x96xf32> to vector<96xf32>
    %365 = vector.shape_cast %364 : vector<96xf32> to vector<1x96xf32>
    %366 = vector.extract_strided_slice %269 {offsets = [6, 0, 0], sizes = [1, 16, 96], strides = [1, 1, 1]} : vector<8x16x96xf32> to vector<1x16x96xf32>
    %367 = vector.shape_cast %366 : vector<1x16x96xf32> to vector<16x96xf32>
    %368 = arith.mulf %367, %358 : vector<16x96xf32>
    %369 = vector.extract_strided_slice %277 {offsets = [6, 0, 0], sizes = [1, 16, 96], strides = [1, 1, 1]} : vector<8x16x96xf32> to vector<1x16x96xf32>
    %370 = vector.shape_cast %369 : vector<1x16x96xf32> to vector<16x96xf32>
    %371 = arith.addf %368, %370 : vector<16x96xf32>
    %372 = vector.extract_strided_slice %244 {offsets = [6, 0], sizes = [1, 16], strides = [1, 1]} : vector<8x16xf32> to vector<1x16xf32>
    %373 = vector.shape_cast %372 : vector<1x16xf32> to vector<16xf32>
    %374 = vector.shape_cast %373 : vector<16xf32> to vector<16x1xf32>
    %375 = vector.broadcast %374 : vector<16x1xf32> to vector<16x96xf32>
    %376 = arith.mulf %371, %375 : vector<16x96xf32>
    %cst_101 = arith.constant dense<0.000000e+00> : vector<96xf32>
    %377 = vector.multi_reduction <add>, %376, %cst_101 [0] : vector<16x96xf32> to vector<96xf32>
    %378 = vector.shape_cast %377 : vector<96xf32> to vector<1x96xf32>
    %379 = vector.extract_strided_slice %269 {offsets = [7, 0, 0], sizes = [1, 16, 96], strides = [1, 1, 1]} : vector<8x16x96xf32> to vector<1x16x96xf32>
    %380 = vector.shape_cast %379 : vector<1x16x96xf32> to vector<16x96xf32>
    %381 = arith.mulf %380, %371 : vector<16x96xf32>
    %382 = vector.extract_strided_slice %277 {offsets = [7, 0, 0], sizes = [1, 16, 96], strides = [1, 1, 1]} : vector<8x16x96xf32> to vector<1x16x96xf32>
    %383 = vector.shape_cast %382 : vector<1x16x96xf32> to vector<16x96xf32>
    %384 = arith.addf %381, %383 : vector<16x96xf32>
    %385 = vector.extract_strided_slice %244 {offsets = [7, 0], sizes = [1, 16], strides = [1, 1]} : vector<8x16xf32> to vector<1x16xf32>
    %386 = vector.shape_cast %385 : vector<1x16xf32> to vector<16xf32>
    %387 = vector.shape_cast %386 : vector<16xf32> to vector<16x1xf32>
    %388 = vector.broadcast %387 : vector<16x1xf32> to vector<16x96xf32>
    %389 = arith.mulf %384, %388 : vector<16x96xf32>
    %cst_102 = arith.constant dense<0.000000e+00> : vector<96xf32>
    %390 = vector.multi_reduction <add>, %389, %cst_102 [0] : vector<16x96xf32> to vector<96xf32>
    %391 = vector.shape_cast %390 : vector<96xf32> to vector<1x96xf32>
    %392 = tpu.concatenate %300, %313, %326, %339, %352, %365, %378, %391 in 0 : vector<1x96xf32>, vector<1x96xf32>, vector<1x96xf32>, vector<1x96xf32>, vector<1x96xf32>, vector<1x96xf32>, vector<1x96xf32>, vector<1x96xf32> -> vector<8x96xf32>
    %393 = vector.broadcast %286 : vector<1x96xf32> to vector<8x96xf32>
    %394 = arith.mulf %393, %235 : vector<8x96xf32>
    %395 = arith.addf %392, %394 : vector<8x96xf32>
    %396 = arith.mulf %395, %285 : vector<8x96xf32>
    %397 = arith.truncf %396 : vector<8x96xf32> to vector<8x96xbf16>
    %c0_103 = arith.constant 0 : index
    %c0_104 = arith.constant 0 : index
    %398 = vector.load %arg21[%c0_103, %c0_104] : memref<96x48xbf16, #tpu.memory_space<vmem>>, vector<96x48xbf16>
    %cst_105 = arith.constant dense<0.000000e+00> : vector<8x48xf32>
    %399 = tpu.matmul %397, %398, %cst_105 {dimension_numbers = #tpu.dot_dimension_numbers<[1], [0], [0], [1], [0, 0, 1, 1], [], []>} : vector<8x96xbf16>, vector<96x48xbf16>, vector<8x48xf32> -> vector<8x48xf32>
    %c0_106 = arith.constant 0 : index
    %c0_107 = arith.constant 0 : index
    %400 = vector.load %arg22[%c0_106, %c0_107] : memref<1x48xf32, #tpu.memory_space<vmem>>, vector<1x48xf32>
    %401 = vector.broadcast %400 : vector<1x48xf32> to vector<8x48xf32>
    %402 = arith.addf %399, %401 : vector<8x48xf32>
    %403 = arith.addf %185, %402 : vector<8x48xf32>
    %c0_108 = arith.constant 0 : index
    %c0_109 = arith.constant 0 : index
    %404 = vector.load %arg23[%c0_108, %c0_109] : memref<1x48xf32, #tpu.memory_space<vmem>>, vector<1x48xf32>
    %c0_110 = arith.constant 0 : index
    %c0_111 = arith.constant 0 : index
    %405 = vector.load %arg24[%c0_110, %c0_111] : memref<1x48xf32, #tpu.memory_space<vmem>>, vector<1x48xf32>
    %cst_112 = arith.constant dense<0.000000e+00> : vector<8xf32>
    %406 = vector.multi_reduction <add>, %403, %cst_112 [1] : vector<8x48xf32> to vector<8xf32>
    %407 = vector.shape_cast %406 : vector<8xf32> to vector<8x1xf32>
    %cst_113 = arith.constant 4.800000e+01 : f32
    %408 = vector.broadcast %cst_113 : f32 to vector<8x1xf32>
    %409 = arith.divf %407, %408 : vector<8x1xf32>
    %410 = vector.broadcast %409 : vector<8x1xf32> to vector<8x48xf32>
    %411 = arith.subf %403, %410 : vector<8x48xf32>
    %412 = arith.mulf %411, %411 : vector<8x48xf32>
    %cst_114 = arith.constant dense<0.000000e+00> : vector<8xf32>
    %413 = vector.multi_reduction <add>, %412, %cst_114 [1] : vector<8x48xf32> to vector<8xf32>
    %414 = vector.shape_cast %413 : vector<8xf32> to vector<8x1xf32>
    %cst_115 = arith.constant 4.800000e+01 : f32
    %415 = vector.broadcast %cst_115 : f32 to vector<8x1xf32>
    %416 = arith.divf %414, %415 : vector<8x1xf32>
    %cst_116 = arith.constant 9.99999974E-6 : f32
    %417 = vector.broadcast %cst_116 : f32 to vector<8x1xf32>
    %418 = arith.addf %416, %417 : vector<8x1xf32>
    %419 = math.rsqrt %418 : vector<8x1xf32>
    %420 = vector.broadcast %419 : vector<8x1xf32> to vector<8x48xf32>
    %421 = arith.mulf %411, %420 : vector<8x48xf32>
    %422 = vector.broadcast %404 : vector<1x48xf32> to vector<8x48xf32>
    %423 = arith.mulf %421, %422 : vector<8x48xf32>
    %424 = vector.broadcast %405 : vector<1x48xf32> to vector<8x48xf32>
    %425 = arith.addf %423, %424 : vector<8x48xf32>
    %426 = vector.shape_cast %425 : vector<8x48xf32> to vector<8x3x16xf32>
    %427 = tpu.transpose %426, [1, 2, 0] : vector<8x3x16xf32> -> vector<3x16x8xf32>
    %428 = vector.shape_cast %427 : vector<3x16x8xf32> to vector<3x128xf32>
    %429 = arith.truncf %428 : vector<3x128xf32> to vector<3x128xbf16>
    %c0_117 = arith.constant 0 : index
    %c0_118 = arith.constant 0 : index
    %c0_119 = arith.constant 0 : index
    %430 = vector.load %arg25[%c0_117, %c0_118, %c0_119] : memref<1x128x384xbf16, #tpu.memory_space<vmem>>, vector<1x128x384xbf16>
    %431 = vector.shape_cast %430 : vector<1x128x384xbf16> to vector<128x384xbf16>
    %cst_120 = arith.constant dense<0.000000e+00> : vector<3x384xf32>
    %432 = tpu.matmul %429, %431, %cst_120 {dimension_numbers = #tpu.dot_dimension_numbers<[1], [0], [0], [1], [0, 0, 1, 1], [], []>} : vector<3x128xbf16>, vector<128x384xbf16>, vector<3x384xf32> -> vector<3x384xf32>
    %c0_121 = arith.constant 0 : index
    %c0_122 = arith.constant 0 : index
    %c0_123 = arith.constant 0 : index
    %433 = vector.load %arg26[%c0_121, %c0_122, %c0_123] : memref<1x1x384xf32, #tpu.memory_space<vmem>>, vector<1x1x384xf32>
    %434 = vector.shape_cast %433 : vector<1x1x384xf32> to vector<1x384xf32>
    %435 = vector.broadcast %434 : vector<1x384xf32> to vector<3x384xf32>
    %436 = arith.addf %432, %435 : vector<3x384xf32>
    %437 = vector.extract_strided_slice %436 {offsets = [0, 0], sizes = [3, 128], strides = [1, 1]} : vector<3x384xf32> to vector<3x128xf32>
    %438 = vector.shape_cast %437 : vector<3x128xf32> to vector<3x8x16xf32>
    %439 = tpu.transpose %438, [1, 0, 2] : vector<3x8x16xf32> -> vector<8x3x16xf32>
    %440 = vector.extract_strided_slice %436 {offsets = [0, 128], sizes = [3, 128], strides = [1, 1]} : vector<3x384xf32> to vector<3x128xf32>
    %441 = vector.shape_cast %440 : vector<3x128xf32> to vector<3x8x16xf32>
    %442 = tpu.transpose %441, [1, 0, 2] : vector<3x8x16xf32> -> vector<8x3x16xf32>
    %443 = vector.extract_strided_slice %436 {offsets = [0, 256], sizes = [3, 128], strides = [1, 1]} : vector<3x384xf32> to vector<3x128xf32>
    %444 = vector.shape_cast %443 : vector<3x128xf32> to vector<3x8x16xf32>
    %445 = tpu.transpose %444, [1, 0, 2] : vector<3x8x16xf32> -> vector<8x3x16xf32>
    "tpu.trace_start"() <{level = 10 : i32, message = "hld,hsd->hls"}> : () -> ()
    %cst_124 = arith.constant dense<0.000000e+00> : vector<8x3x3xf32>
    %446 = tpu.matmul %439, %442, %cst_124 {dimension_numbers = #tpu.dot_dimension_numbers<[2], [2], [1], [1], [0, 0, 0, 1, 1, 1], [0], [0]>} : vector<8x3x16xf32>, vector<8x3x16xf32>, vector<8x3x3xf32> -> vector<8x3x3xf32>
    "tpu.trace_stop"() : () -> ()
    %cst_125 = arith.constant 2.500000e-01 : f32
    %447 = vector.broadcast %cst_125 : f32 to vector<8x3x3xf32>
    %448 = arith.mulf %446, %447 : vector<8x3x3xf32>
    %cst_126 = arith.constant dense<0xFF800000> : vector<8x3xf32>
    %449 = vector.multi_reduction <maximumf>, %448, %cst_126 [2] : vector<8x3x3xf32> to vector<8x3xf32>
    %450 = vector.shape_cast %449 : vector<8x3xf32> to vector<8x3x1xf32>
    %451 = vector.broadcast %450 : vector<8x3x1xf32> to vector<8x3x3xf32>
    %452 = arith.subf %448, %451 : vector<8x3x3xf32>
    %453 = math.exp %452 : vector<8x3x3xf32>
    %cst_127 = arith.constant dense<0.000000e+00> : vector<8x3xf32>
    %454 = vector.multi_reduction <add>, %453, %cst_127 [2] : vector<8x3x3xf32> to vector<8x3xf32>
    %455 = vector.shape_cast %454 : vector<8x3xf32> to vector<8x3x1xf32>
    %456 = tpu.reciprocal %455 {approx = true} : vector<8x3x1xf32> -> vector<8x3x1xf32>
    %457 = vector.broadcast %456 : vector<8x3x1xf32> to vector<8x3x3xf32>
    %458 = arith.mulf %453, %457 : vector<8x3x3xf32>
    "tpu.trace_start"() <{level = 10 : i32, message = "hls,hsd->hld"}> : () -> ()
    %cst_128 = arith.constant dense<0.000000e+00> : vector<8x3x16xf32>
    %459 = tpu.matmul %458, %445, %cst_128 {dimension_numbers = #tpu.dot_dimension_numbers<[2], [1], [1], [2], [0, 0, 0, 1, 1, 2], [0], [0]>} : vector<8x3x3xf32>, vector<8x3x16xf32>, vector<8x3x16xf32> -> vector<8x3x16xf32>
    "tpu.trace_stop"() : () -> ()
    %460 = tpu.transpose %459, [1, 0, 2] : vector<8x3x16xf32> -> vector<3x8x16xf32>
    %461 = vector.shape_cast %460 : vector<3x8x16xf32> to vector<3x128xf32>
    %462 = arith.truncf %461 : vector<3x128xf32> to vector<3x128xbf16>
    %c0_129 = arith.constant 0 : index
    %c0_130 = arith.constant 0 : index
    %c0_131 = arith.constant 0 : index
    %463 = vector.load %arg27[%c0_129, %c0_130, %c0_131] : memref<1x128x128xbf16, #tpu.memory_space<vmem>>, vector<1x128x128xbf16>
    %464 = vector.shape_cast %463 : vector<1x128x128xbf16> to vector<128x128xbf16>
    %cst_132 = arith.constant dense<0.000000e+00> : vector<3x128xf32>
    %465 = tpu.matmul %462, %464, %cst_132 {dimension_numbers = #tpu.dot_dimension_numbers<[1], [0], [0], [1], [0, 0, 1, 1], [], []>} : vector<3x128xbf16>, vector<128x128xbf16>, vector<3x128xf32> -> vector<3x128xf32>
    %c0_133 = arith.constant 0 : index
    %c0_134 = arith.constant 0 : index
    %c0_135 = arith.constant 0 : index
    %466 = vector.load %arg28[%c0_133, %c0_134, %c0_135] : memref<1x1x128xf32, #tpu.memory_space<vmem>>, vector<1x1x128xf32>
    %467 = vector.shape_cast %466 : vector<1x1x128xf32> to vector<1x128xf32>
    %468 = vector.broadcast %467 : vector<1x128xf32> to vector<3x128xf32>
    %469 = arith.addf %465, %468 : vector<3x128xf32>
    %470 = arith.addf %428, %469 : vector<3x128xf32>
    %c0_136 = arith.constant 0 : index
    %c0_137 = arith.constant 0 : index
    %c0_138 = arith.constant 0 : index
    %471 = vector.load %arg29[%c0_136, %c0_137, %c0_138] : memref<1x1x128xf32, #tpu.memory_space<vmem>>, vector<1x1x128xf32>
    %472 = vector.shape_cast %471 : vector<1x1x128xf32> to vector<1x128xf32>
    %c0_139 = arith.constant 0 : index
    %c0_140 = arith.constant 0 : index
    %c0_141 = arith.constant 0 : index
    %473 = vector.load %arg30[%c0_139, %c0_140, %c0_141] : memref<1x1x128xf32, #tpu.memory_space<vmem>>, vector<1x1x128xf32>
    %474 = vector.shape_cast %473 : vector<1x1x128xf32> to vector<1x128xf32>
    %cst_142 = arith.constant dense<0.000000e+00> : vector<3xf32>
    %475 = vector.multi_reduction <add>, %470, %cst_142 [1] : vector<3x128xf32> to vector<3xf32>
    %476 = vector.shape_cast %475 : vector<3xf32> to vector<3x1xf32>
    %cst_143 = arith.constant 1.280000e+02 : f32
    %477 = vector.broadcast %cst_143 : f32 to vector<3x1xf32>
    %478 = arith.divf %476, %477 : vector<3x1xf32>
    %479 = vector.broadcast %478 : vector<3x1xf32> to vector<3x128xf32>
    %480 = arith.subf %470, %479 : vector<3x128xf32>
    %481 = arith.mulf %480, %480 : vector<3x128xf32>
    %cst_144 = arith.constant dense<0.000000e+00> : vector<3xf32>
    %482 = vector.multi_reduction <add>, %481, %cst_144 [1] : vector<3x128xf32> to vector<3xf32>
    %483 = vector.shape_cast %482 : vector<3xf32> to vector<3x1xf32>
    %cst_145 = arith.constant 1.280000e+02 : f32
    %484 = vector.broadcast %cst_145 : f32 to vector<3x1xf32>
    %485 = arith.divf %483, %484 : vector<3x1xf32>
    %cst_146 = arith.constant 9.99999974E-6 : f32
    %486 = vector.broadcast %cst_146 : f32 to vector<3x1xf32>
    %487 = arith.addf %485, %486 : vector<3x1xf32>
    %488 = math.rsqrt %487 : vector<3x1xf32>
    %489 = vector.broadcast %488 : vector<3x1xf32> to vector<3x128xf32>
    %490 = arith.mulf %480, %489 : vector<3x128xf32>
    %491 = vector.broadcast %472 : vector<1x128xf32> to vector<3x128xf32>
    %492 = arith.mulf %490, %491 : vector<3x128xf32>
    %493 = vector.broadcast %474 : vector<1x128xf32> to vector<3x128xf32>
    %494 = arith.addf %492, %493 : vector<3x128xf32>
    %495 = vector.shape_cast %494 : vector<3x128xf32> to vector<1x384xf32>
    %496 = vector.shape_cast %495 : vector<1x384xf32> to vector<1x1x384xf32>
    %c0_147 = arith.constant 0 : index
    %c0_148 = arith.constant 0 : index
    %c0_149 = arith.constant 0 : index
    %497 = vector.load %arg33[%c0_147, %c0_148, %c0_149] : memref<1x1x384xf32, #tpu.memory_space<vmem>>, vector<1x1x384xf32>
    tpu.vector_store %arg33[%c0_147, %c0_148, %c0_149], %496 {strides = array<i32>} : memref<1x1x384xf32, #tpu.memory_space<vmem>>, vector<1x1x384xf32>,
    %498 = arith.truncf %495 : vector<1x384xf32> to vector<1x384xbf16>
    %c0_150 = arith.constant 0 : index
    %c0_151 = arith.constant 0 : index
    %499 = vector.load %arg31[%c0_150, %c0_151] : memref<384x128xbf16, #tpu.memory_space<vmem>>, vector<384x128xbf16>
    %cst_152 = arith.constant dense<0.000000e+00> : vector<1x128xf32>
    %500 = tpu.matmul %498, %499, %cst_152 {dimension_numbers = #tpu.dot_dimension_numbers<[1], [0], [0], [1], [0, 0, 1, 1], [], []>} : vector<1x384xbf16>, vector<384x128xbf16>, vector<1x128xf32> -> vector<1x128xf32>
    %c0_153 = arith.constant 0 : index
    %c0_154 = arith.constant 0 : index
    %501 = vector.load %arg32[%c0_153, %c0_154] : memref<1x128xf32, #tpu.memory_space<vmem>>, vector<1x128xf32>
    %502 = arith.addf %500, %501 : vector<1x128xf32>
    %503 = vector.shape_cast %502 : vector<1x128xf32> to vector<1x1x128xf32>
    %c0_155 = arith.constant 0 : index
    %c0_156 = arith.constant 0 : index
    %c0_157 = arith.constant 0 : index
    %504 = vector.load %arg34[%c0_155, %c0_156, %c0_157] : memref<1x1x128xf32, #tpu.memory_space<vmem>>, vector<1x1x128xf32>
    tpu.vector_store %arg34[%c0_155, %c0_156, %c0_157], %503 {strides = array<i32>} : memref<1x1x128xf32, #tpu.memory_space<vmem>>, vector<1x1x128xf32>,
    return
  }
  func.func @transform_0(%arg0: i32) -> (i32, i32, i32, i32) {
    %c0_i32 = arith.constant 0 : i32
    %c0_i32_0 = arith.constant 0 : i32
    %c0_i32_1 = arith.constant 0 : i32
    %c0_i32_2 = arith.constant 0 : i32
    return %arg0, %c0_i32, %c0_i32_0, %c0_i32_1 : i32, i32, i32, i32
  }
  func.func @transform_1(%arg0: i32) -> (i32, i32) {
    %c0_i32 = arith.constant 0 : i32
    %c0_i32_0 = arith.constant 0 : i32
    %c0_i32_1 = arith.constant 0 : i32
    return %c0_i32, %c0_i32_0 : i32, i32
  }
  func.func @transform_2(%arg0: i32) -> (i32, i32) {
    %c0_i32 = arith.constant 0 : i32
    %c0_i32_0 = arith.constant 0 : i32
    %c0_i32_1 = arith.constant 0 : i32
    return %c0_i32, %c0_i32_0 : i32, i32
  }
  func.func @transform_3(%arg0: i32) -> (i32, i32) {
    %c0_i32 = arith.constant 0 : i32
    %c0_i32_0 = arith.constant 0 : i32
    %c0_i32_1 = arith.constant 0 : i32
    return %c0_i32, %c0_i32_0 : i32, i32
  }
  func.func @transform_4(%arg0: i32) -> (i32, i32, i32) {
    %c0_i32 = arith.constant 0 : i32
    %c0_i32_0 = arith.constant 0 : i32
    %c0_i32_1 = arith.constant 0 : i32
    %c0_i32_2 = arith.constant 0 : i32
    return %c0_i32, %c0_i32_0, %c0_i32_1 : i32, i32, i32
  }
  func.func @transform_5(%arg0: i32) -> (i32, i32, i32) {
    %c0_i32 = arith.constant 0 : i32
    %c0_i32_0 = arith.constant 0 : i32
    %c0_i32_1 = arith.constant 0 : i32
    %c0_i32_2 = arith.constant 0 : i32
    return %c0_i32, %c0_i32_0, %c0_i32_1 : i32, i32, i32
  }
  func.func @transform_6(%arg0: i32) -> (i32, i32, i32) {
    %c0_i32 = arith.constant 0 : i32
    %c0_i32_0 = arith.constant 0 : i32
    %c0_i32_1 = arith.constant 0 : i32
    %c0_i32_2 = arith.constant 0 : i32
    return %c0_i32, %c0_i32_0, %c0_i32_1 : i32, i32, i32
  }
  func.func @transform_7(%arg0: i32) -> (i32, i32, i32) {
    %c0_i32 = arith.constant 0 : i32
    %c0_i32_0 = arith.constant 0 : i32
    %c0_i32_1 = arith.constant 0 : i32
    %c0_i32_2 = arith.constant 0 : i32
    return %c0_i32, %c0_i32_0, %c0_i32_1 : i32, i32, i32
  }
  func.func @transform_8(%arg0: i32) -> (i32, i32, i32) {
    %c0_i32 = arith.constant 0 : i32
    %c0_i32_0 = arith.constant 0 : i32
    %c0_i32_1 = arith.constant 0 : i32
    %c0_i32_2 = arith.constant 0 : i32
    return %c0_i32, %c0_i32_0, %c0_i32_1 : i32, i32, i32
  }
  func.func @transform_9(%arg0: i32) -> (i32, i32, i32) {
    %c0_i32 = arith.constant 0 : i32
    %c0_i32_0 = arith.constant 0 : i32
    %c0_i32_1 = arith.constant 0 : i32
    %c0_i32_2 = arith.constant 0 : i32
    return %c0_i32, %c0_i32_0, %c0_i32_1 : i32, i32, i32
  }
  func.func @transform_10(%arg0: i32) -> (i32, i32) {
    %c0_i32 = arith.constant 0 : i32
    %c0_i32_0 = arith.constant 0 : i32
    %c0_i32_1 = arith.constant 0 : i32
    return %c0_i32, %c0_i32_0 : i32, i32
  }
  func.func @transform_11(%arg0: i32) -> (i32, i32) {
    %c0_i32 = arith.constant 0 : i32
    %c0_i32_0 = arith.constant 0 : i32
    %c0_i32_1 = arith.constant 0 : i32
    return %c0_i32, %c0_i32_0 : i32, i32
  }
  func.func @transform_12(%arg0: i32) -> (i32, i32) {
    %c0_i32 = arith.constant 0 : i32
    %c0_i32_0 = arith.constant 0 : i32
    %c0_i32_1 = arith.constant 0 : i32
    return %c0_i32, %c0_i32_0 : i32, i32
  }
  func.func @transform_13(%arg0: i32) -> (i32, i32) {
    %c0_i32 = arith.constant 0 : i32
    %c0_i32_0 = arith.constant 0 : i32
    %c0_i32_1 = arith.constant 0 : i32
    return %c0_i32, %c0_i32_0 : i32, i32
  }
  func.func @transform_14(%arg0: i32) -> (i32, i32) {
    %c0_i32 = arith.constant 0 : i32
    %c0_i32_0 = arith.constant 0 : i32
    %c0_i32_1 = arith.constant 0 : i32
    return %c0_i32, %c0_i32_0 : i32, i32
  }
  func.func @transform_15(%arg0: i32) -> (i32, i32) {
    %c0_i32 = arith.constant 0 : i32
    %c0_i32_0 = arith.constant 0 : i32
    %c0_i32_1 = arith.constant 0 : i32
    return %c0_i32, %c0_i32_0 : i32, i32
  }
  func.func @transform_16(%arg0: i32) -> (i32, i32) {
    %c0_i32 = arith.constant 0 : i32
    %c0_i32_0 = arith.constant 0 : i32
    %c0_i32_1 = arith.constant 0 : i32
    return %c0_i32, %c0_i32_0 : i32, i32
  }
  func.func @transform_17(%arg0: i32) -> (i32, i32) {
    %c0_i32 = arith.constant 0 : i32
    %c0_i32_0 = arith.constant 0 : i32
    %c0_i32_1 = arith.constant 0 : i32
    return %c0_i32, %c0_i32_0 : i32, i32
  }
  func.func @transform_18(%arg0: i32) -> (i32, i32) {
    %c0_i32 = arith.constant 0 : i32
    %c0_i32_0 = arith.constant 0 : i32
    %c0_i32_1 = arith.constant 0 : i32
    return %c0_i32, %c0_i32_0 : i32, i32
  }
  func.func @transform_19(%arg0: i32) -> (i32, i32) {
    %c0_i32 = arith.constant 0 : i32
    %c0_i32_0 = arith.constant 0 : i32
    %c0_i32_1 = arith.constant 0 : i32
    return %c0_i32, %c0_i32_0 : i32, i32
  }
  func.func @transform_20(%arg0: i32) -> (i32, i32) {
    %c0_i32 = arith.constant 0 : i32
    %c0_i32_0 = arith.constant 0 : i32
    %c0_i32_1 = arith.constant 0 : i32
    return %c0_i32, %c0_i32_0 : i32, i32
  }
  func.func @transform_21(%arg0: i32) -> (i32, i32) {
    %c0_i32 = arith.constant 0 : i32
    %c0_i32_0 = arith.constant 0 : i32
    %c0_i32_1 = arith.constant 0 : i32
    return %c0_i32, %c0_i32_0 : i32, i32
  }
  func.func @transform_22(%arg0: i32) -> (i32, i32) {
    %c0_i32 = arith.constant 0 : i32
    %c0_i32_0 = arith.constant 0 : i32
    %c0_i32_1 = arith.constant 0 : i32
    return %c0_i32, %c0_i32_0 : i32, i32
  }
  func.func @transform_23(%arg0: i32) -> (i32, i32) {
    %c0_i32 = arith.constant 0 : i32
    %c0_i32_0 = arith.constant 0 : i32
    %c0_i32_1 = arith.constant 0 : i32
    return %c0_i32, %c0_i32_0 : i32, i32
  }
  func.func @transform_24(%arg0: i32) -> (i32, i32, i32) {
    %c0_i32 = arith.constant 0 : i32
    %c0_i32_0 = arith.constant 0 : i32
    %c0_i32_1 = arith.constant 0 : i32
    %c0_i32_2 = arith.constant 0 : i32
    return %c0_i32, %c0_i32_0, %c0_i32_1 : i32, i32, i32
  }
  func.func @transform_25(%arg0: i32) -> (i32, i32, i32) {
    %c0_i32 = arith.constant 0 : i32
    %c0_i32_0 = arith.constant 0 : i32
    %c0_i32_1 = arith.constant 0 : i32
    %c0_i32_2 = arith.constant 0 : i32
    return %c0_i32, %c0_i32_0, %c0_i32_1 : i32, i32, i32
  }
  func.func @transform_26(%arg0: i32) -> (i32, i32, i32) {
    %c0_i32 = arith.constant 0 : i32
    %c0_i32_0 = arith.constant 0 : i32
    %c0_i32_1 = arith.constant 0 : i32
    %c0_i32_2 = arith.constant 0 : i32
    return %c0_i32, %c0_i32_0, %c0_i32_1 : i32, i32, i32
  }
  func.func @transform_27(%arg0: i32) -> (i32, i32, i32) {
    %c0_i32 = arith.constant 0 : i32
    %c0_i32_0 = arith.constant 0 : i32
    %c0_i32_1 = arith.constant 0 : i32
    %c0_i32_2 = arith.constant 0 : i32
    return %c0_i32, %c0_i32_0, %c0_i32_1 : i32, i32, i32
  }
  func.func @transform_28(%arg0: i32) -> (i32, i32, i32) {
    %c0_i32 = arith.constant 0 : i32
    %c0_i32_0 = arith.constant 0 : i32
    %c0_i32_1 = arith.constant 0 : i32
    %c0_i32_2 = arith.constant 0 : i32
    return %c0_i32, %c0_i32_0, %c0_i32_1 : i32, i32, i32
  }
  func.func @transform_29(%arg0: i32) -> (i32, i32, i32) {
    %c0_i32 = arith.constant 0 : i32
    %c0_i32_0 = arith.constant 0 : i32
    %c0_i32_1 = arith.constant 0 : i32
    %c0_i32_2 = arith.constant 0 : i32
    return %c0_i32, %c0_i32_0, %c0_i32_1 : i32, i32, i32
  }
  func.func @transform_30(%arg0: i32) -> (i32, i32) {
    %c0_i32 = arith.constant 0 : i32
    %c0_i32_0 = arith.constant 0 : i32
    %c0_i32_1 = arith.constant 0 : i32
    return %c0_i32, %c0_i32_0 : i32, i32
  }
  func.func @transform_31(%arg0: i32) -> (i32, i32) {
    %c0_i32 = arith.constant 0 : i32
    %c0_i32_0 = arith.constant 0 : i32
    %c0_i32_1 = arith.constant 0 : i32
    return %c0_i32, %c0_i32_0 : i32, i32
  }
  func.func @transform_32(%arg0: i32) -> (i32, i32, i32) {
    %c0_i32 = arith.constant 0 : i32
    %c0_i32_0 = arith.constant 0 : i32
    %c0_i32_1 = arith.constant 0 : i32
    return %arg0, %c0_i32, %c0_i32_0 : i32, i32, i32
  }
  func.func @transform_33(%arg0: i32) -> (i32, i32, i32) {
    %c0_i32 = arith.constant 0 : i32
    %c0_i32_0 = arith.constant 0 : i32
    %c0_i32_1 = arith.constant 0 : i32
    return %arg0, %c0_i32, %c0_i32_0 : i32, i32, i32
  }
}

</mosaic_0001>

<llo_original>
// kernel: decompose_whar_forward.1
$region0: #{decompose_whar_forward.1}
  #allocation0 [shape = 'u32[]', space=smem, size = 0x4, offset = 0x4, fixed_abs, tag = 'smem constant byte address 0x4 - core index']
  #allocation1 [shape = 'u32[144,128]{1,0:T(1,128)}', space=vmem, size = 0x12000, scoped, tag = 'internal scratch']
  %s0 = inlined_call_operand.smem [shape: u32[34], index: -1, kind: input, shape index: {}]
  %s1 = sld [smem:[%s0]]
  %s2 = scalar_lea.smem %s0, 1
  %s3 = sld [smem:[%s2]]
  %s4 = scalar_lea.smem %s0, 2
  %s5 = sld [smem:[%s4]]
  %s6 = scalar_lea.smem %s0, 3
  %s7 = sld [smem:[%s6]]
  %s8 = scalar_lea.smem %s0, 4
  %s9 = sld [smem:[%s8]]
  %s10 = scalar_lea.smem %s0, 5
  %s11 = sld [smem:[%s10]]
  %s12 = scalar_lea.smem %s0, 6
  %s13 = sld [smem:[%s12]]
  %s14 = scalar_lea.smem %s0, 7
  %s15 = sld [smem:[%s14]]
  %s16 = scalar_lea.smem %s0, 8
  %s17 = sld [smem:[%s16]]
  %s18 = scalar_lea.smem %s0, 9
  %s19 = sld [smem:[%s18]]
  %s20 = scalar_lea.smem %s0, 10
  %s21 = sld [smem:[%s20]]
  %s22 = scalar_lea.smem %s0, 11
  %s23 = sld [smem:[%s22]]
  %s24 = scalar_lea.smem %s0, 12
  %s25 = sld [smem:[%s24]]
  %s26 = scalar_lea.smem %s0, 13
  %s27 = sld [smem:[%s26]]
  %s28 = scalar_lea.smem %s0, 14
  %s29 = sld [smem:[%s28]]
  %s30 = scalar_lea.smem %s0, 15
  %s31 = sld [smem:[%s30]]
  %s32 = scalar_lea.smem %s0, 16
  %s33 = sld [smem:[%s32]]
  %s34 = scalar_lea.smem %s0, 17
  %s35 = sld [smem:[%s34]]
  %s36 = scalar_lea.smem %s0, 18
  %s37 = sld [smem:[%s36]]
  %s38 = scalar_lea.smem %s0, 19
  %s39 = sld [smem:[%s38]]
  %s40 = scalar_lea.smem %s0, 20
  %s41 = sld [smem:[%s40]]
  %s42 = scalar_lea.smem %s0, 21
  %s43 = sld [smem:[%s42]]
  %s44 = scalar_lea.smem %s0, 22
  %s45 = sld [smem:[%s44]]
  %s46 = scalar_lea.smem %s0, 23
  %s47 = sld [smem:[%s46]]
  %s48 = scalar_lea.smem %s0, 24
  %s49 = sld [smem:[%s48]]
  %s50 = scalar_lea.smem %s0, 25
  %s51 = sld [smem:[%s50]]
  %s52 = scalar_lea.smem %s0, 26
  %s53 = sld [smem:[%s52]]
  %s54 = scalar_lea.smem %s0, 27
  %s55 = sld [smem:[%s54]]
  %s56 = scalar_lea.smem %s0, 28
  %s57 = sld [smem:[%s56]]
  %s58 = scalar_lea.smem %s0, 29
  %s59 = sld [smem:[%s58]]
  %s60 = scalar_lea.smem %s0, 30
  %s61 = sld [smem:[%s60]]
  %s62 = scalar_lea.smem %s0, 31
  %s63 = sld [smem:[%s62]]
  %s64 = scalar_lea.smem %s0, 32
  %s65 = sld [smem:[%s64]]
  %s66 = scalar_lea.smem %s0, 33
  %s67 = sld [smem:[%s66]]
  %68 = xla_tuple %s65, %s67
  %s69 = sld [smem:[#allocation0]]
  $region265: #{decompose_whar_forward.1} parent=0
    _
  %s71 = ssub.s32 1, %s69
  %s72 = scalar_select 0, %s71, %s69
  $region1: #{decompose_whar_forward.1} parent=0
    #allocation2 [shape = 'u8[8192]{0}', space=vmem, size = 0x2000, scoped, tag = 'input window, operand 1, single buffered']
    #allocation3 [shape = 's32[2]{0}', space=sflag, size = 0x8, scoped, tag = 'scoped memory for decompose_whar_forward.1']
    #allocation4 [shape = 's32[2]{0}', space=sflag, size = 0x8, scoped, tag = 'scoped memory for decompose_whar_forward.1']
    #allocation5 [shape = 'u8[8192]{0}', space=vmem, size = 0x2000, scoped, tag = 'input window, operand 2, single buffered']
    #allocation6 [shape = 's32[1]{0}', space=sflag, size = 0x4, scoped, tag = 'scoped memory for decompose_whar_forward.1']
    #allocation7 [shape = 'u8[512]{0}', space=vmem, size = 0x400, scoped, tag = 'input window, operand 3, single buffered']
    #allocation8 [shape = 'u8[1024]{0}', space=vmem, size = 0x400, scoped, tag = 'input window, operand 5, single buffered']
    #allocation9 [shape = 's32[1]{0}', space=sflag, size = 0x4, scoped, tag = 'scoped memory for decompose_whar_forward.1']
    #allocation10 [shape = 'u8[1024]{0}', space=vmem, size = 0x400, scoped, tag = 'input window, operand 7, single buffered']
    #allocation11 [shape = 'u8[32768]{0}', space=vmem, size = 0x8000, scoped, tag = 'input window, operand 8, single buffered']
    #allocation12 [shape = 's32[1]{0}', space=sflag, size = 0x4, scoped, tag = 'scoped memory for decompose_whar_forward.1']
    #allocation13 [shape = 'u8[1024]{0}', space=vmem, size = 0x400, scoped, tag = 'input window, operand 9, single buffered']
    #allocation14 [shape = 'u8[24576]{0}', space=vmem, size = 0x6000, scoped, tag = 'input window, operand 10, single buffered']
    #allocation15 [shape = 's32[1]{0}', space=sflag, size = 0x4, scoped, tag = 'scoped memory for decompose_whar_forward.1']
    #allocation16 [shape = 'u8[1024]{0}', space=vmem, size = 0x400, scoped, tag = 'input window, operand 11, single buffered']
    #allocation17 [shape = 'u8[512]{0}', space=vmem, size = 0x400, scoped, tag = 'input window, operand 13, single buffered']
    #allocation18 [shape = 's32[1]{0}', space=sflag, size = 0x4, scoped, tag = 'scoped memory for decompose_whar_forward.1']
    #allocation19 [shape = 'u8[512]{0}', space=vmem, size = 0x400, scoped, tag = 'input window, operand 15, single buffered']
    #allocation20 [shape = 'u8[2048]{0}', space=vmem, size = 0x800, scoped, tag = 'input window, operand 16, single buffered']
    #allocation21 [shape = 's32[1]{0}', space=sflag, size = 0x4, scoped, tag = 'scoped memory for decompose_whar_forward.1']
    #allocation22 [shape = 'u8[512]{0}', space=vmem, size = 0x400, scoped, tag = 'input window, operand 17, single buffered']
    #allocation23 [shape = 'u8[8192]{0}', space=vmem, size = 0x2000, scoped, tag = 'input window, operand 18, single buffered']
    #allocation24 [shape = 's32[1]{0}', space=sflag, size = 0x4, scoped, tag = 'scoped memory for decompose_whar_forward.1']
    #allocation25 [shape = 'u8[512]{0}', space=vmem, size = 0x400, scoped, tag = 'input window, operand 19, single buffered']
    #allocation26 [shape = 'u8[512]{0}', space=vmem, size = 0x400, scoped, tag = 'input window, operand 21, single buffered']
    #allocation27 [shape = 's32[1]{0}', space=sflag, size = 0x4, scoped, tag = 'scoped memory for decompose_whar_forward.1']
    #allocation28 [shape = 'u8[512]{0}', space=vmem, size = 0x400, scoped, tag = 'input window, operand 22, single buffered']
    #allocation29 [shape = 'u8[512]{0}', space=vmem, size = 0x400, scoped, tag = 'input window, operand 23, single buffered']
    #allocation30 [shape = 's32[1]{0}', space=sflag, size = 0x4, scoped, tag = 'scoped memory for decompose_whar_forward.1']
    #allocation31 [shape = 'u8[32768]{0}', space=vmem, size = 0x8000, scoped, tag = 'input window, operand 26, single buffered']
    #allocation32 [shape = 'u8[512]{0}', space=vmem, size = 0x400, scoped, tag = 'input window, operand 27, single buffered']
    #allocation33 [shape = 's32[1]{0}', space=sflag, size = 0x4, scoped, tag = 'scoped memory for decompose_whar_forward.1']
    #allocation34 [shape = 'u8[512]{0}', space=vmem, size = 0x400, scoped, tag = 'input window, operand 28, single buffered']
    #allocation35 [shape = 'u8[512]{0}', space=vmem, size = 0x400, scoped, tag = 'input window, operand 29, single buffered']
    #allocation36 [shape = 's32[1]{0}', space=sflag, size = 0x4, scoped, tag = 'scoped memory for decompose_whar_forward.1']
    #allocation37 [shape = 'u8[98304]{0}', space=vmem, size = 0x18000, scoped, tag = 'input window, operand 30, single buffered']
    #allocation38 [shape = 'u8[512]{0}', space=vmem, size = 0x400, scoped, tag = 'input window, operand 31, single buffered']
    #allocation39 [shape = 's32[1]{0}', space=sflag, size = 0x4, scoped, tag = 'scoped memory for decompose_whar_forward.1']
    #allocation40 [shape = 'u8[1024]{0}', space=vmem, size = 0x400, scoped, tag = 'output window, operand 1']
    %73 = vsyncpa [#allocation3], 0
    %74 = vsyncpa [#allocation6], 0
    %75 = vsyncpa [#allocation9], 0
    %76 = vsyncpa [#allocation12], 0
    %77 = vsyncpa [#allocation15], 0
    %78 = vsyncpa [#allocation18], 0
    %79 = vsyncpa [#allocation21], 0
    %80 = vsyncpa [#allocation24], 0
    %81 = vsyncpa [#allocation27], 0
    %82 = vsyncpa [#allocation30], 0
    %83 = vsyncpa [#allocation33], 0
    %84 = vsyncpa [#allocation36], 0
    %85 = vsyncpa [#allocation39], 0
    %86 = vsyncpa [#allocation4], 0
    %s87 = scalar_lea.sflag [#allocation4], 1
    %88 = vsyncpa %s87, 0
    loop: start=0, step=1, limit=4
    $region2: #{decompose_whar_forward.1} parent=1 // loop_pre_header
      _
    $region3: #{decompose_whar_forward.1} parent=1 // loop_header
      %s90 = sphi 0, %s94
      %p91 = scmp.ge.s32.totalorder %s90, 4
      %s100 = sphi 0, %s102
      %s103 = sphi 0, %s100
      %s104 = sphi 0, %s103
      %s120 = sphi 0, %s104
      %s124 = sphi 0, %s124
      %s126 = sphi 0, %s124
      %s127 = sphi 0, %s126
      %s141 = sphi 0, %s127
      %s145 = sphi 0, %s145
      %s147 = sphi 0, %s145
      %s148 = sphi 0, %s147
      %s162 = sphi 0, %s148
      %s166 = sphi 0, %s166
      %s168 = sphi 0, %s166
      %s169 = sphi 0, %s168
      %s183 = sphi 0, %s169
      %s187 = sphi 0, %s187
      %s189 = sphi 0, %s187
      %s190 = sphi 0, %s189
      %s204 = sphi 0, %s190
      %s208 = sphi 0, %s208
      %s210 = sphi 0, %s208
      %s211 = sphi 0, %s210
      %s225 = sphi 0, %s211
      %s229 = sphi 0, %s229
      %s231 = sphi 0, %s229
      %s232 = sphi 0, %s231
      %s246 = sphi 0, %s232
      %s250 = sphi 0, %s250
      %s252 = sphi 0, %s250
      %s253 = sphi 0, %s252
      %s267 = sphi 0, %s253
      %s271 = sphi 0, %s271
      %s273 = sphi 0, %s271
      %s274 = sphi 0, %s273
      %s288 = sphi 0, %s274
      %s292 = sphi 0, %s292
      %s294 = sphi 0, %s292
      %s295 = sphi 0, %s294
      %s309 = sphi 0, %s295
      %s313 = sphi 0, %s313
      %s315 = sphi 0, %s313
      %s316 = sphi 0, %s315
      %s330 = sphi 0, %s316
      %s334 = sphi 0, %s334
      %s336 = sphi 0, %s334
      %s337 = sphi 0, %s336
      %s351 = sphi 0, %s337
      %s355 = sphi 0, %s355
      %s357 = sphi 0, %s355
      %s358 = sphi 0, %s357
      %s372 = sphi 0, %s358
      %s376 = sphi 0, %s376
      %s378 = sphi 0, %s376
      %s379 = sphi 0, %s378
      %s393 = sphi 0, %s379
      %s397 = sphi 0, %s397
      %s399 = sphi 0, %s397
      %s400 = sphi 0, %s399
      %s414 = sphi 0, %s400
      %s418 = sphi 0, %s418
      %s420 = sphi 0, %s418
      %s421 = sphi 0, %s420
      %s435 = sphi 0, %s421
      %s439 = sphi 0, %s439
      %s441 = sphi 0, %s439
      %s442 = sphi 0, %s441
      %s456 = sphi 0, %s442
      %s460 = sphi 0, %s460
      %s462 = sphi 0, %s460
      %s463 = sphi 0, %s462
      %s477 = sphi 0, %s463
      %s481 = sphi 0, %s481
      %s483 = sphi 0, %s481
      %s484 = sphi 0, %s483
      %s498 = sphi 0, %s484
      %s502 = sphi 0, %s502
      %s504 = sphi 0, %s502
      %s505 = sphi 0, %s504
      %s519 = sphi 0, %s505
      %s523 = sphi 0, %s523
      %s525 = sphi 0, %s523
      %s526 = sphi 0, %s525
      %s540 = sphi 0, %s526
      %s544 = sphi 0, %s544
      %s546 = sphi 0, %s544
      %s547 = sphi 0, %s546
      %s561 = sphi 0, %s547
      %s565 = sphi 0, %s565
      %s567 = sphi 0, %s565
      %s568 = sphi 0, %s567
      %s582 = sphi 0, %s568
      %s586 = sphi 0, %s586
      %s588 = sphi 0, %s586
      %s589 = sphi 0, %s588
      %s603 = sphi 0, %s589
      %s607 = sphi 0, %s607
      %s609 = sphi 0, %s607
      %s610 = sphi 0, %s609
      %s624 = sphi 0, %s610
      %s628 = sphi 0, %s628
      %s630 = sphi 0, %s628
      %s631 = sphi 0, %s630
      %s645 = sphi 0, %s631
      %s649 = sphi 0, %s649
      %s651 = sphi 0, %s649
      %s652 = sphi 0, %s651
      %s666 = sphi 0, %s652
      %s670 = sphi 0, %s670
      %s672 = sphi 0, %s670
      %s673 = sphi 0, %s672
      %s687 = sphi 0, %s673
      %s691 = sphi 0, %s691
      %s693 = sphi 0, %s691
      %s694 = sphi 0, %s693
      %s708 = sphi 0, %s694
      %s712 = sphi 0, %s712
      %s714 = sphi 0, %s712
      %s715 = sphi 0, %s714
      %s729 = sphi 0, %s715
      %s733 = sphi 0, %s733
      %s735 = sphi 0, %s733
      %s736 = sphi 0, %s735
      %s750 = sphi 0, %s736
      %s754 = sphi 0, %s754
      %s756 = sphi 0, %s754
      %s757 = sphi 0, %s756
      %s771 = sphi 0, %s757
      %s777 = sphi 0, %s779
      %s780 = sphi 0, %s777
      %s781 = sphi 0, %s780
      %s797 = sphi 0, %s781
      %s803 = sphi 0, %s805
      %s806 = sphi 0, %s803
      %s807 = sphi 0, %s806
      %s823 = sphi 0, %s807
    $region4: #{decompose_whar_forward.1} parent=1 // loop_header_branch
      %93 = sbr.rel (%p91) target = $region8
    $region5: #{decompose_whar_forward.1} parent=1 // loop_body
      %s95 = ssub.s32 %s90, 1
      %s96 = ssub.s32 %s90, 2
      %s97 = sadd.s32 %s90, 1
      %s98 = ssub.s32 %s90, %s97
      %p99 = scmp.eq.s32.totalorder %s98, 0
      %s101 = sadd.s32 %s100, 1
      %s102 = scalar_select %p99, %s100, %s101
      %p105 = pneg %p99
      %p106 = scmp.eq.s32.totalorder %s90, 1
      %p107 = por %p105, %p106
      %p108 = scmp.ne.s32.totalorder %s100, %s103
      %p109 = scmp.eq.s32.totalorder %s90, 0
      %p110 = por %p108, %p109
      %p111 = scmp.ne.s32.totalorder %s100, %s103
      %p112 = scmp.eq.s32.totalorder %s95, 1
      %p113 = por %p111, %p112
      %p114 = scmp.ne.s32.totalorder %s103, %s104
      %p115 = scmp.eq.s32.totalorder %s95, 0
      %p116 = por %p114, %p115
      %p117 = scmp.ne.s32.totalorder %s103, %s104
      %p118 = scmp.eq.s32.totalorder %s96, 1
      %p119 = por %p117, %p118
      %p121 = scmp.ne.s32.totalorder %s104, %s120
      %p122 = scmp.eq.s32.totalorder %s96, 0
      %p123 = por %p121, %p122
      %s125 = sadd.s32 %s124, 1
      %p128 = scmp.eq.s32.totalorder %s90, 1
      %p129 = scmp.ne.s32.totalorder %s124, %s126
      %p130 = scmp.eq.s32.totalorder %s90, 0
      %p131 = por %p129, %p130
      %p132 = scmp.ne.s32.totalorder %s124, %s126
      %p133 = scmp.eq.s32.totalorder %s95, 1
      %p134 = por %p132, %p133
      %p135 = scmp.ne.s32.totalorder %s126, %s127
      %p136 = scmp.eq.s32.totalorder %s95, 0
      %p137 = por %p135, %p136
      %p138 = scmp.ne.s32.totalorder %s126, %s127
      %p139 = scmp.eq.s32.totalorder %s96, 1
      %p140 = por %p138, %p139
      %p142 = scmp.ne.s32.totalorder %s127, %s141
      %p143 = scmp.eq.s32.totalorder %s96, 0
      %p144 = por %p142, %p143
      %s146 = sadd.s32 %s145, 1
      %p149 = scmp.eq.s32.totalorder %s90, 1
      %p150 = scmp.ne.s32.totalorder %s145, %s147
      %p151 = scmp.eq.s32.totalorder %s90, 0
      %p152 = por %p150, %p151
      %p153 = scmp.ne.s32.totalorder %s145, %s147
      %p154 = scmp.eq.s32.totalorder %s95, 1
      %p155 = por %p153, %p154
      %p156 = scmp.ne.s32.totalorder %s147, %s148
      %p157 = scmp.eq.s32.totalorder %s95, 0
      %p158 = por %p156, %p157
      %p159 = scmp.ne.s32.totalorder %s147, %s148
      %p160 = scmp.eq.s32.totalorder %s96, 1
      %p161 = por %p159, %p160
      %p163 = scmp.ne.s32.totalorder %s148, %s162
      %p164 = scmp.eq.s32.totalorder %s96, 0
      %p165 = por %p163, %p164
      %s167 = sadd.s32 %s166, 1
      %p170 = scmp.eq.s32.totalorder %s90, 1
      %p171 = scmp.ne.s32.totalorder %s166, %s168
      %p172 = scmp.eq.s32.totalorder %s90, 0
      %p173 = por %p171, %p172
      %p174 = scmp.ne.s32.totalorder %s166, %s168
      %p175 = scmp.eq.s32.totalorder %s95, 1
      %p176 = por %p174, %p175
      %p177 = scmp.ne.s32.totalorder %s168, %s169
      %p178 = scmp.eq.s32.totalorder %s95, 0
      %p179 = por %p177, %p178
      %p180 = scmp.ne.s32.totalorder %s168, %s169
      %p181 = scmp.eq.s32.totalorder %s96, 1
      %p182 = por %p180, %p181
      %p184 = scmp.ne.s32.totalorder %s169, %s183
      %p185 = scmp.eq.s32.totalorder %s96, 0
      %p186 = por %p184, %p185
      %s188 = sadd.s32 %s187, 1
      %p191 = scmp.eq.s32.totalorder %s90, 1
      %p192 = scmp.ne.s32.totalorder %s187, %s189
      %p193 = scmp.eq.s32.totalorder %s90, 0
      %p194 = por %p192, %p193
      %p195 = scmp.ne.s32.totalorder %s187, %s189
      %p196 = scmp.eq.s32.totalorder %s95, 1
      %p197 = por %p195, %p196
      %p198 = scmp.ne.s32.totalorder %s189, %s190
      %p199 = scmp.eq.s32.totalorder %s95, 0
      %p200 = por %p198, %p199
      %p201 = scmp.ne.s32.totalorder %s189, %s190
      %p202 = scmp.eq.s32.totalorder %s96, 1
      %p203 = por %p201, %p202
      %p205 = scmp.ne.s32.totalorder %s190, %s204
      %p206 = scmp.eq.s32.totalorder %s96, 0
      %p207 = por %p205, %p206
      %s209 = sadd.s32 %s208, 1
      %p212 = scmp.eq.s32.totalorder %s90, 1
      %p213 = scmp.ne.s32.totalorder %s208, %s210
      %p214 = scmp.eq.s32.totalorder %s90, 0
      %p215 = por %p213, %p214
      %p216 = scmp.ne.s32.totalorder %s208, %s210
      %p217 = scmp.eq.s32.totalorder %s95, 1
      %p218 = por %p216, %p217
      %p219 = scmp.ne.s32.totalorder %s210, %s211
      %p220 = scmp.eq.s32.totalorder %s95, 0
      %p221 = por %p219, %p220
      %p222 = scmp.ne.s32.totalorder %s210, %s211
      %p223 = scmp.eq.s32.totalorder %s96, 1
      %p224 = por %p222, %p223
      %p226 = scmp.ne.s32.totalorder %s211, %s225
      %p227 = scmp.eq.s32.totalorder %s96, 0
      %p228 = por %p226, %p227
      %s230 = sadd.s32 %s229, 1
      %p233 = scmp.eq.s32.totalorder %s90, 1
      %p234 = scmp.ne.s32.totalorder %s229, %s231
      %p235 = scmp.eq.s32.totalorder %s90, 0
      %p236 = por %p234, %p235
      %p237 = scmp.ne.s32.totalorder %s229, %s231
      %p238 = scmp.eq.s32.totalorder %s95, 1
      %p239 = por %p237, %p238
      %p240 = scmp.ne.s32.totalorder %s231, %s232
      %p241 = scmp.eq.s32.totalorder %s95, 0
      %p242 = por %p240, %p241
      %p243 = scmp.ne.s32.totalorder %s231, %s232
      %p244 = scmp.eq.s32.totalorder %s96, 1
      %p245 = por %p243, %p244
      %p247 = scmp.ne.s32.totalorder %s232, %s246
      %p248 = scmp.eq.s32.totalorder %s96, 0
      %p249 = por %p247, %p248
      %s251 = sadd.s32 %s250, 1
      %p254 = scmp.eq.s32.totalorder %s90, 1
      %p255 = scmp.ne.s32.totalorder %s250, %s252
      %p256 = scmp.eq.s32.totalorder %s90, 0
      %p257 = por %p255, %p256
      %p258 = scmp.ne.s32.totalorder %s250, %s252
      %p259 = scmp.eq.s32.totalorder %s95, 1
      %p260 = por %p258, %p259
      %p261 = scmp.ne.s32.totalorder %s252, %s253
      %p262 = scmp.eq.s32.totalorder %s95, 0
      %p263 = por %p261, %p262
      %p264 = scmp.ne.s32.totalorder %s252, %s253
      %p265 = scmp.eq.s32.totalorder %s96, 1
      %p266 = por %p264, %p265
      %p268 = scmp.ne.s32.totalorder %s253, %s267
      %p269 = scmp.eq.s32.totalorder %s96, 0
      %p270 = por %p268, %p269
      %s272 = sadd.s32 %s271, 1
      %p275 = scmp.eq.s32.totalorder %s90, 1
      %p276 = scmp.ne.s32.totalorder %s271, %s273
      %p277 = scmp.eq.s32.totalorder %s90, 0
      %p278 = por %p276, %p277
      %p279 = scmp.ne.s32.totalorder %s271, %s273
      %p280 = scmp.eq.s32.totalorder %s95, 1
      %p281 = por %p279, %p280
      %p282 = scmp.ne.s32.totalorder %s273, %s274
      %p283 = scmp.eq.s32.totalorder %s95, 0
      %p284 = por %p282, %p283
      %p285 = scmp.ne.s32.totalorder %s273, %s274
      %p286 = scmp.eq.s32.totalorder %s96, 1
      %p287 = por %p285, %p286
      %p289 = scmp.ne.s32.totalorder %s274, %s288
      %p290 = scmp.eq.s32.totalorder %s96, 0
      %p291 = por %p289, %p290
      %s293 = sadd.s32 %s292, 1
      %p296 = scmp.eq.s32.totalorder %s90, 1
      %p297 = scmp.ne.s32.totalorder %s292, %s294
      %p298 = scmp.eq.s32.totalorder %s90, 0
      %p299 = por %p297, %p298
      %p300 = scmp.ne.s32.totalorder %s292, %s294
      %p301 = scmp.eq.s32.totalorder %s95, 1
      %p302 = por %p300, %p301
      %p303 = scmp.ne.s32.totalorder %s294, %s295
      %p304 = scmp.eq.s32.totalorder %s95, 0
      %p305 = por %p303, %p304
      %p306 = scmp.ne.s32.totalorder %s294, %s295
      %p307 = scmp.eq.s32.totalorder %s96, 1
      %p308 = por %p306, %p307
      %p310 = scmp.ne.s32.totalorder %s295, %s309
      %p311 = scmp.eq.s32.totalorder %s96, 0
      %p312 = por %p310, %p311
      %s314 = sadd.s32 %s313, 1
      %p317 = scmp.eq.s32.totalorder %s90, 1
      %p318 = scmp.ne.s32.totalorder %s313, %s315
      %p319 = scmp.eq.s32.totalorder %s90, 0
      %p320 = por %p318, %p319
      %p321 = scmp.ne.s32.totalorder %s313, %s315
      %p322 = scmp.eq.s32.totalorder %s95, 1
      %p323 = por %p321, %p322
      %p324 = scmp.ne.s32.totalorder %s315, %s316
      %p325 = scmp.eq.s32.totalorder %s95, 0
      %p326 = por %p324, %p325
      %p327 = scmp.ne.s32.totalorder %s315, %s316
      %p328 = scmp.eq.s32.totalorder %s96, 1
      %p329 = por %p327, %p328
      %p331 = scmp.ne.s32.totalorder %s316, %s330
      %p332 = scmp.eq.s32.totalorder %s96, 0
      %p333 = por %p331, %p332
      %s335 = sadd.s32 %s334, 1
      %p338 = scmp.eq.s32.totalorder %s90, 1
      %p339 = scmp.ne.s32.totalorder %s334, %s336
      %p340 = scmp.eq.s32.totalorder %s90, 0
      %p341 = por %p339, %p340
      %p342 = scmp.ne.s32.totalorder %s334, %s336
      %p343 = scmp.eq.s32.totalorder %s95, 1
      %p344 = por %p342, %p343
      %p345 = scmp.ne.s32.totalorder %s336, %s337
      %p346 = scmp.eq.s32.totalorder %s95, 0
      %p347 = por %p345, %p346
      %p348 = scmp.ne.s32.totalorder %s336, %s337
      %p349 = scmp.eq.s32.totalorder %s96, 1
      %p350 = por %p348, %p349
      %p352 = scmp.ne.s32.totalorder %s337, %s351
      %p353 = scmp.eq.s32.totalorder %s96, 0
      %p354 = por %p352, %p353
      %s356 = sadd.s32 %s355, 1
      %p359 = scmp.eq.s32.totalorder %s90, 1
      %p360 = scmp.ne.s32.totalorder %s355, %s357
      %p361 = scmp.eq.s32.totalorder %s90, 0
      %p362 = por %p360, %p361
      %p363 = scmp.ne.s32.totalorder %s355, %s357
      %p364 = scmp.eq.s32.totalorder %s95, 1
      %p365 = por %p363, %p364
      %p366 = scmp.ne.s32.totalorder %s357, %s358
      %p367 = scmp.eq.s32.totalorder %s95, 0
      %p368 = por %p366, %p367
      %p369 = scmp.ne.s32.totalorder %s357, %s358
      %p370 = scmp.eq.s32.totalorder %s96, 1
      %p371 = por %p369, %p370
      %p373 = scmp.ne.s32.totalorder %s358, %s372
      %p374 = scmp.eq.s32.totalorder %s96, 0
      %p375 = por %p373, %p374
      %s377 = sadd.s32 %s376, 1
      %p380 = scmp.eq.s32.totalorder %s90, 1
      %p381 = scmp.ne.s32.totalorder %s376, %s378
      %p382 = scmp.eq.s32.totalorder %s90, 0
      %p383 = por %p381, %p382
      %p384 = scmp.ne.s32.totalorder %s376, %s378
      %p385 = scmp.eq.s32.totalorder %s95, 1
      %p386 = por %p384, %p385
      %p387 = scmp.ne.s32.totalorder %s378, %s379
      %p388 = scmp.eq.s32.totalorder %s95, 0
      %p389 = por %p387, %p388
      %p390 = scmp.ne.s32.totalorder %s378, %s379
      %p391 = scmp.eq.s32.totalorder %s96, 1
      %p392 = por %p390, %p391
      %p394 = scmp.ne.s32.totalorder %s379, %s393
      %p395 = scmp.eq.s32.totalorder %s96, 0
      %p396 = por %p394, %p395
      %s398 = sadd.s32 %s397, 1
      %p401 = scmp.eq.s32.totalorder %s90, 1
      %p402 = scmp.ne.s32.totalorder %s397, %s399
      %p403 = scmp.eq.s32.totalorder %s90, 0
      %p404 = por %p402, %p403
      %p405 = scmp.ne.s32.totalorder %s397, %s399
      %p406 = scmp.eq.s32.totalorder %s95, 1
      %p407 = por %p405, %p406
      %p408 = scmp.ne.s32.totalorder %s399, %s400
      %p409 = scmp.eq.s32.totalorder %s95, 0
      %p410 = por %p408, %p409
      %p411 = scmp.ne.s32.totalorder %s399, %s400
      %p412 = scmp.eq.s32.totalorder %s96, 1
      %p413 = por %p411, %p412
      %p415 = scmp.ne.s32.totalorder %s400, %s414
      %p416 = scmp.eq.s32.totalorder %s96, 0
      %p417 = por %p415, %p416
      %s419 = sadd.s32 %s418, 1
      %p422 = scmp.eq.s32.totalorder %s90, 1
      %p423 = scmp.ne.s32.totalorder %s418, %s420
      %p424 = scmp.eq.s32.totalorder %s90, 0
      %p425 = por %p423, %p424
      %p426 = scmp.ne.s32.totalorder %s418, %s420
      %p427 = scmp.eq.s32.totalorder %s95, 1
      %p428 = por %p426, %p427
      %p429 = scmp.ne.s32.totalorder %s420, %s421
      %p430 = scmp.eq.s32.totalorder %s95, 0
      %p431 = por %p429, %p430
      %p432 = scmp.ne.s32.totalorder %s420, %s421
      %p433 = scmp.eq.s32.totalorder %s96, 1
      %p434 = por %p432, %p433
      %p436 = scmp.ne.s32.totalorder %s421, %s435
      %p437 = scmp.eq.s32.totalorder %s96, 0
      %p438 = por %p436, %p437
      %s440 = sadd.s32 %s439, 1
      %p443 = scmp.eq.s32.totalorder %s90, 1
      %p444 = scmp.ne.s32.totalorder %s439, %s441
      %p445 = scmp.eq.s32.totalorder %s90, 0
      %p446 = por %p444, %p445
      %p447 = scmp.ne.s32.totalorder %s439, %s441
      %p448 = scmp.eq.s32.totalorder %s95, 1
      %p449 = por %p447, %p448
      %p450 = scmp.ne.s32.totalorder %s441, %s442
      %p451 = scmp.eq.s32.totalorder %s95, 0
      %p452 = por %p450, %p451
      %p453 = scmp.ne.s32.totalorder %s441, %s442
      %p454 = scmp.eq.s32.totalorder %s96, 1
      %p455 = por %p453, %p454
      %p457 = scmp.ne.s32.totalorder %s442, %s456
      %p458 = scmp.eq.s32.totalorder %s96, 0
      %p459 = por %p457, %p458
      %s461 = sadd.s32 %s460, 1
      %p464 = scmp.eq.s32.totalorder %s90, 1
      %p465 = scmp.ne.s32.totalorder %s460, %s462
      %p466 = scmp.eq.s32.totalorder %s90, 0
      %p467 = por %p465, %p466
      %p468 = scmp.ne.s32.totalorder %s460, %s462
      %p469 = scmp.eq.s32.totalorder %s95, 1
      %p470 = por %p468, %p469
      %p471 = scmp.ne.s32.totalorder %s462, %s463
      %p472 = scmp.eq.s32.totalorder %s95, 0
      %p473 = por %p471, %p472
      %p474 = scmp.ne.s32.totalorder %s462, %s463
      %p475 = scmp.eq.s32.totalorder %s96, 1
      %p476 = por %p474, %p475
      %p478 = scmp.ne.s32.totalorder %s463, %s477
      %p479 = scmp.eq.s32.totalorder %s96, 0
      %p480 = por %p478, %p479
      %s482 = sadd.s32 %s481, 1
      %p485 = scmp.eq.s32.totalorder %s90, 1
      %p486 = scmp.ne.s32.totalorder %s481, %s483
      %p487 = scmp.eq.s32.totalorder %s90, 0
      %p488 = por %p486, %p487
      %p489 = scmp.ne.s32.totalorder %s481, %s483
      %p490 = scmp.eq.s32.totalorder %s95, 1
      %p491 = por %p489, %p490
      %p492 = scmp.ne.s32.totalorder %s483, %s484
      %p493 = scmp.eq.s32.totalorder %s95, 0
      %p494 = por %p492, %p493
      %p495 = scmp.ne.s32.totalorder %s483, %s484
      %p496 = scmp.eq.s32.totalorder %s96, 1
      %p497 = por %p495, %p496
      %p499 = scmp.ne.s32.totalorder %s484, %s498
      %p500 = scmp.eq.s32.totalorder %s96, 0
      %p501 = por %p499, %p500
      %s503 = sadd.s32 %s502, 1
      %p506 = scmp.eq.s32.totalorder %s90, 1
      %p507 = scmp.ne.s32.totalorder %s502, %s504
      %p508 = scmp.eq.s32.totalorder %s90, 0
      %p509 = por %p507, %p508
      %p510 = scmp.ne.s32.totalorder %s502, %s504
      %p511 = scmp.eq.s32.totalorder %s95, 1
      %p512 = por %p510, %p511
      %p513 = scmp.ne.s32.totalorder %s504, %s505
      %p514 = scmp.eq.s32.totalorder %s95, 0
      %p515 = por %p513, %p514
      %p516 = scmp.ne.s32.totalorder %s504, %s505
      %p517 = scmp.eq.s32.totalorder %s96, 1
      %p518 = por %p516, %p517
      %p520 = scmp.ne.s32.totalorder %s505, %s519
      %p521 = scmp.eq.s32.totalorder %s96, 0
      %p522 = por %p520, %p521
      %s524 = sadd.s32 %s523, 1
      %p527 = scmp.eq.s32.totalorder %s90, 1
      %p528 = scmp.ne.s32.totalorder %s523, %s525
      %p529 = scmp.eq.s32.totalorder %s90, 0
      %p530 = por %p528, %p529
      %p531 = scmp.ne.s32.totalorder %s523, %s525
      %p532 = scmp.eq.s32.totalorder %s95, 1
      %p533 = por %p531, %p532
      %p534 = scmp.ne.s32.totalorder %s525, %s526
      %p535 = scmp.eq.s32.totalorder %s95, 0
      %p536 = por %p534, %p535
      %p537 = scmp.ne.s32.totalorder %s525, %s526
      %p538 = scmp.eq.s32.totalorder %s96, 1
      %p539 = por %p537, %p538
      %p541 = scmp.ne.s32.totalorder %s526, %s540
      %p542 = scmp.eq.s32.totalorder %s96, 0
      %p543 = por %p541, %p542
      %s545 = sadd.s32 %s544, 1
      %p548 = scmp.eq.s32.totalorder %s90, 1
      %p549 = scmp.ne.s32.totalorder %s544, %s546
      %p550 = scmp.eq.s32.totalorder %s90, 0
      %p551 = por %p549, %p550
      %p552 = scmp.ne.s32.totalorder %s544, %s546
      %p553 = scmp.eq.s32.totalorder %s95, 1
      %p554 = por %p552, %p553
      %p555 = scmp.ne.s32.totalorder %s546, %s547
      %p556 = scmp.eq.s32.totalorder %s95, 0
      %p557 = por %p555, %p556
      %p558 = scmp.ne.s32.totalorder %s546, %s547
      %p559 = scmp.eq.s32.totalorder %s96, 1
      %p560 = por %p558, %p559
      %p562 = scmp.ne.s32.totalorder %s547, %s561
      %p563 = scmp.eq.s32.totalorder %s96, 0
      %p564 = por %p562, %p563
      %s566 = sadd.s32 %s565, 1
      %p569 = scmp.eq.s32.totalorder %s90, 1
      %p570 = scmp.ne.s32.totalorder %s565, %s567
      %p571 = scmp.eq.s32.totalorder %s90, 0
      %p572 = por %p570, %p571
      %p573 = scmp.ne.s32.totalorder %s565, %s567
      %p574 = scmp.eq.s32.totalorder %s95, 1
      %p575 = por %p573, %p574
      %p576 = scmp.ne.s32.totalorder %s567, %s568
      %p577 = scmp.eq.s32.totalorder %s95, 0
      %p578 = por %p576, %p577
      %p579 = scmp.ne.s32.totalorder %s567, %s568
      %p580 = scmp.eq.s32.totalorder %s96, 1
      %p581 = por %p579, %p580
      %p583 = scmp.ne.s32.totalorder %s568, %s582
      %p584 = scmp.eq.s32.totalorder %s96, 0
      %p585 = por %p583, %p584
      %s587 = sadd.s32 %s586, 1
      %p590 = scmp.eq.s32.totalorder %s90, 1
      %p591 = scmp.ne.s32.totalorder %s586, %s588
      %p592 = scmp.eq.s32.totalorder %s90, 0
      %p593 = por %p591, %p592
      %p594 = scmp.ne.s32.totalorder %s586, %s588
      %p595 = scmp.eq.s32.totalorder %s95, 1
      %p596 = por %p594, %p595
      %p597 = scmp.ne.s32.totalorder %s588, %s589
      %p598 = scmp.eq.s32.totalorder %s95, 0
      %p599 = por %p597, %p598
      %p600 = scmp.ne.s32.totalorder %s588, %s589
      %p601 = scmp.eq.s32.totalorder %s96, 1
      %p602 = por %p600, %p601
      %p604 = scmp.ne.s32.totalorder %s589, %s603
      %p605 = scmp.eq.s32.totalorder %s96, 0
      %p606 = por %p604, %p605
      %s608 = sadd.s32 %s607, 1
      %p611 = scmp.eq.s32.totalorder %s90, 1
      %p612 = scmp.ne.s32.totalorder %s607, %s609
      %p613 = scmp.eq.s32.totalorder %s90, 0
      %p614 = por %p612, %p613
      %p615 = scmp.ne.s32.totalorder %s607, %s609
      %p616 = scmp.eq.s32.totalorder %s95, 1
      %p617 = por %p615, %p616
      %p618 = scmp.ne.s32.totalorder %s609, %s610
      %p619 = scmp.eq.s32.totalorder %s95, 0
      %p620 = por %p618, %p619
      %p621 = scmp.ne.s32.totalorder %s609, %s610
      %p622 = scmp.eq.s32.totalorder %s96, 1
      %p623 = por %p621, %p622
      %p625 = scmp.ne.s32.totalorder %s610, %s624
      %p626 = scmp.eq.s32.totalorder %s96, 0
      %p627 = por %p625, %p626
      %s629 = sadd.s32 %s628, 1
      %p632 = scmp.eq.s32.totalorder %s90, 1
      %p633 = scmp.ne.s32.totalorder %s628, %s630
      %p634 = scmp.eq.s32.totalorder %s90, 0
      %p635 = por %p633, %p634
      %p636 = scmp.ne.s32.totalorder %s628, %s630
      %p637 = scmp.eq.s32.totalorder %s95, 1
      %p638 = por %p636, %p637
      %p639 = scmp.ne.s32.totalorder %s630, %s631
      %p640 = scmp.eq.s32.totalorder %s95, 0
      %p641 = por %p639, %p640
      %p642 = scmp.ne.s32.totalorder %s630, %s631
      %p643 = scmp.eq.s32.totalorder %s96, 1
      %p644 = por %p642, %p643
      %p646 = scmp.ne.s32.totalorder %s631, %s645
      %p647 = scmp.eq.s32.totalorder %s96, 0
      %p648 = por %p646, %p647
      %s650 = sadd.s32 %s649, 1
      %p653 = scmp.eq.s32.totalorder %s90, 1
      %p654 = scmp.ne.s32.totalorder %s649, %s651
      %p655 = scmp.eq.s32.totalorder %s90, 0
      %p656 = por %p654, %p655
      %p657 = scmp.ne.s32.totalorder %s649, %s651
      %p658 = scmp.eq.s32.totalorder %s95, 1
      %p659 = por %p657, %p658
      %p660 = scmp.ne.s32.totalorder %s651, %s652
      %p661 = scmp.eq.s32.totalorder %s95, 0
      %p662 = por %p660, %p661
      %p663 = scmp.ne.s32.totalorder %s651, %s652
      %p664 = scmp.eq.s32.totalorder %s96, 1
      %p665 = por %p663, %p664
      %p667 = scmp.ne.s32.totalorder %s652, %s666
      %p668 = scmp.eq.s32.totalorder %s96, 0
      %p669 = por %p667, %p668
      %s671 = sadd.s32 %s670, 1
      %p674 = scmp.eq.s32.totalorder %s90, 1
      %p675 = scmp.ne.s32.totalorder %s670, %s672
      %p676 = scmp.eq.s32.totalorder %s90, 0
      %p677 = por %p675, %p676
      %p678 = scmp.ne.s32.totalorder %s670, %s672
      %p679 = scmp.eq.s32.totalorder %s95, 1
      %p680 = por %p678, %p679
      %p681 = scmp.ne.s32.totalorder %s672, %s673
      %p682 = scmp.eq.s32.totalorder %s95, 0
      %p683 = por %p681, %p682
      %p684 = scmp.ne.s32.totalorder %s672, %s673
      %p685 = scmp.eq.s32.totalorder %s96, 1
      %p686 = por %p684, %p685
      %p688 = scmp.ne.s32.totalorder %s673, %s687
      %p689 = scmp.eq.s32.totalorder %s96, 0
      %p690 = por %p688, %p689
      %s692 = sadd.s32 %s691, 1
      %p695 = scmp.eq.s32.totalorder %s90, 1
      %p696 = scmp.ne.s32.totalorder %s691, %s693
      %p697 = scmp.eq.s32.totalorder %s90, 0
      %p698 = por %p696, %p697
      %p699 = scmp.ne.s32.totalorder %s691, %s693
      %p700 = scmp.eq.s32.totalorder %s95, 1
      %p701 = por %p699, %p700
      %p702 = scmp.ne.s32.totalorder %s693, %s694
      %p703 = scmp.eq.s32.totalorder %s95, 0
      %p704 = por %p702, %p703
      %p705 = scmp.ne.s32.totalorder %s693, %s694
      %p706 = scmp.eq.s32.totalorder %s96, 1
      %p707 = por %p705, %p706
      %p709 = scmp.ne.s32.totalorder %s694, %s708
      %p710 = scmp.eq.s32.totalorder %s96, 0
      %p711 = por %p709, %p710
      %s713 = sadd.s32 %s712, 1
      %p716 = scmp.eq.s32.totalorder %s90, 1
      %p717 = scmp.ne.s32.totalorder %s712, %s714
      %p718 = scmp.eq.s32.totalorder %s90, 0
      %p719 = por %p717, %p718
      %p720 = scmp.ne.s32.totalorder %s712, %s714
      %p721 = scmp.eq.s32.totalorder %s95, 1
      %p722 = por %p720, %p721
      %p723 = scmp.ne.s32.totalorder %s714, %s715
      %p724 = scmp.eq.s32.totalorder %s95, 0
      %p725 = por %p723, %p724
      %p726 = scmp.ne.s32.totalorder %s714, %s715
      %p727 = scmp.eq.s32.totalorder %s96, 1
      %p728 = por %p726, %p727
      %p730 = scmp.ne.s32.totalorder %s715, %s729
      %p731 = scmp.eq.s32.totalorder %s96, 0
      %p732 = por %p730, %p731
      %s734 = sadd.s32 %s733, 1
      %p737 = scmp.eq.s32.totalorder %s90, 1
      %p738 = scmp.ne.s32.totalorder %s733, %s735
      %p739 = scmp.eq.s32.totalorder %s90, 0
      %p740 = por %p738, %p739
      %p741 = scmp.ne.s32.totalorder %s733, %s735
      %p742 = scmp.eq.s32.totalorder %s95, 1
      %p743 = por %p741, %p742
      %p744 = scmp.ne.s32.totalorder %s735, %s736
      %p745 = scmp.eq.s32.totalorder %s95, 0
      %p746 = por %p744, %p745
      %p747 = scmp.ne.s32.totalorder %s735, %s736
      %p748 = scmp.eq.s32.totalorder %s96, 1
      %p749 = por %p747, %p748
      %p751 = scmp.ne.s32.totalorder %s736, %s750
      %p752 = scmp.eq.s32.totalorder %s96, 0
      %p753 = por %p751, %p752
      %s755 = sadd.s32 %s754, 1
      %p758 = scmp.eq.s32.totalorder %s90, 1
      %p759 = scmp.ne.s32.totalorder %s754, %s756
      %p760 = scmp.eq.s32.totalorder %s90, 0
      %p761 = por %p759, %p760
      %p762 = scmp.ne.s32.totalorder %s754, %s756
      %p763 = scmp.eq.s32.totalorder %s95, 1
      %p764 = por %p762, %p763
      %p765 = scmp.ne.s32.totalorder %s756, %s757
      %p766 = scmp.eq.s32.totalorder %s95, 0
      %p767 = por %p765, %p766
      %p768 = scmp.ne.s32.totalorder %s756, %s757
      %p769 = scmp.eq.s32.totalorder %s96, 1
      %p770 = por %p768, %p769
      %p772 = scmp.ne.s32.totalorder %s757, %s771
      %p773 = scmp.eq.s32.totalorder %s96, 0
      %p774 = por %p772, %p773
      %s775 = ssub.s32 %s90, %s97
      %p776 = scmp.eq.s32.totalorder %s775, 0
      %s778 = sadd.s32 %s777, 1
      %s779 = scalar_select %p776, %s777, %s778
      %p782 = pneg %p776
      %p783 = scmp.eq.s32.totalorder %s90, 1
      %p784 = por %p782, %p783
      %p785 = scmp.ne.s32.totalorder %s777, %s780
      %p786 = scmp.eq.s32.totalorder %s90, 0
      %p787 = por %p785, %p786
      %p788 = scmp.ne.s32.totalorder %s777, %s780
      %p789 = scmp.eq.s32.totalorder %s95, 1
      %p790 = por %p788, %p789
      %p791 = scmp.ne.s32.totalorder %s780, %s781
      %p792 = scmp.eq.s32.totalorder %s95, 0
      %p793 = por %p791, %p792
      %p794 = scmp.ne.s32.totalorder %s780, %s781
      %p795 = scmp.eq.s32.totalorder %s96, 1
      %p796 = por %p794, %p795
      %p798 = scmp.ne.s32.totalorder %s781, %s797
      %p799 = scmp.eq.s32.totalorder %s96, 0
      %p800 = por %p798, %p799
      %s801 = ssub.s32 %s90, %s97
      %p802 = scmp.eq.s32.totalorder %s801, 0
      %s804 = sadd.s32 %s803, 1
      %s805 = scalar_select %p802, %s803, %s804
      %p808 = pneg %p802
      %p809 = scmp.eq.s32.totalorder %s90, 1
      %p810 = por %p808, %p809
      %p811 = scmp.ne.s32.totalorder %s803, %s806
      %p812 = scmp.eq.s32.totalorder %s90, 0
      %p813 = por %p811, %p812
      %p814 = scmp.ne.s32.totalorder %s803, %s806
      %p815 = scmp.eq.s32.totalorder %s95, 1
      %p816 = por %p814, %p815
      %p817 = scmp.ne.s32.totalorder %s806, %s807
      %p818 = scmp.eq.s32.totalorder %s95, 0
      %p819 = por %p817, %p818
      %p820 = scmp.ne.s32.totalorder %s806, %s807
      %p821 = scmp.eq.s32.totalorder %s96, 1
      %p822 = por %p820, %p821
      %p824 = scmp.ne.s32.totalorder %s807, %s823
      %p825 = scmp.eq.s32.totalorder %s96, 0
      %p826 = por %p824, %p825
      %p827 = scmp.le.s32.totalorder 1, %s90
      %p828 = scmp.lt.s32.totalorder %s90, 3
      %p829 = pnand %p827, %p828
      %p830 = pneg %p829
      // Predicated region
      $region9: #{decompose_whar_forward.1} parent=5 // pred_check
        _
      $region10: #{decompose_whar_forward.1} parent=5 // pred_check_branch
        %832 = sbr.rel (%p829) target = $region12
      $region11: #{decompose_whar_forward.1} parent=5 // pred_region
        %s833 = ssub.s32 %s90, 1
        // Predicated region
        $region13: #{decompose_whar_forward.1} parent=11 // pred_check
          %p834 = pneg %p137
        $region14: #{decompose_whar_forward.1} parent=11 // pred_check_branch
          %836 = sbr.rel (%p834) target = $region16
        $region15: #{decompose_whar_forward.1} parent=11 // pred_region
          %s838 = ssub.s32 256, 256
          %839 = vsyncadd [#allocation3], %s838
          %s840 = sshll.u32 [#allocation2], 4
          %s841 = int_to_ptr.vmem [resolvable:$true] %s840
          %846 = dma.hbm_to_vmem [thread:$0]  %s3, 256, %s841, [#allocation3], 128, 128, 8
        $region16: #{decompose_whar_forward.1} parent=11 // pred_fallthru
          _
        // Predicated region
        $region17: #{decompose_whar_forward.1} parent=11 // pred_check
          %p847 = pneg %p158
        $region18: #{decompose_whar_forward.1} parent=11 // pred_check_branch
          %849 = sbr.rel (%p847) target = $region20
        $region19: #{decompose_whar_forward.1} parent=11 // pred_region
          %s851 = ssub.s32 256, 256
          %852 = vsyncadd [#allocation6], %s851
          %s853 = sshll.u32 [#allocation5], 4
          %s854 = int_to_ptr.vmem [resolvable:$true] %s853
          %859 = dma.hbm_to_vmem [thread:$0]  %s5, 256, %s854, [#allocation6], 128, 128, 8
        $region20: #{decompose_whar_forward.1} parent=11 // pred_fallthru
          _
        // Predicated region
        $region21: #{decompose_whar_forward.1} parent=11 // pred_check
          %p860 = pneg %p179
        $region22: #{decompose_whar_forward.1} parent=11 // pred_check_branch
          %862 = sbr.rel (%p860) target = $region24
        $region23: #{decompose_whar_forward.1} parent=11 // pred_region
          %s864 = ssub.s32 16, 16
          %865 = vsyncadd [#allocation6], %s864
          %s867 = sshll.u32 [#allocation7], 4
          %s868 = int_to_ptr.vmem [resolvable:$true] %s867
          %870 = dma.hbm_to_vmem [thread:$0]  %s7, 16, %s868, [#allocation6]
        $region24: #{decompose_whar_forward.1} parent=11 // pred_fallthru
          _
        // Predicated region
        $region25: #{decompose_whar_forward.1} parent=11 // pred_check
          %p871 = pneg %p200
        $region26: #{decompose_whar_forward.1} parent=11 // pred_check_branch
          %873 = sbr.rel (%p871) target = $region28
        $region27: #{decompose_whar_forward.1} parent=11 // pred_region
          _
        $region28: #{decompose_whar_forward.1} parent=11 // pred_fallthru
          _
        // Predicated region
        $region29: #{decompose_whar_forward.1} parent=11 // pred_check
          %p874 = pneg %p221
        $region30: #{decompose_whar_forward.1} parent=11 // pred_check_branch
          %876 = sbr.rel (%p874) target = $region32
        $region31: #{decompose_whar_forward.1} parent=11 // pred_region
          %s878 = ssub.s32 32, 32
          %879 = vsyncadd [#allocation9], %s878
          %s880 = sshll.u32 [#allocation8], 4
          %s881 = int_to_ptr.vmem [resolvable:$true] %s880
          %886 = dma.hbm_to_vmem [thread:$0]  %s11, 32, %s881, [#allocation9], 16, 16, 1
        $region32: #{decompose_whar_forward.1} parent=11 // pred_fallthru
          _
        // Predicated region
        $region33: #{decompose_whar_forward.1} parent=11 // pred_check
          %p887 = pneg %p242
        $region34: #{decompose_whar_forward.1} parent=11 // pred_check_branch
          %889 = sbr.rel (%p887) target = $region36
        $region35: #{decompose_whar_forward.1} parent=11 // pred_region
          _
        $region36: #{decompose_whar_forward.1} parent=11 // pred_fallthru
          _
        // Predicated region
        $region37: #{decompose_whar_forward.1} parent=11 // pred_check
          %p890 = pneg %p263
        $region38: #{decompose_whar_forward.1} parent=11 // pred_check_branch
          %892 = sbr.rel (%p890) target = $region40
        $region39: #{decompose_whar_forward.1} parent=11 // pred_region
          %s894 = ssub.s32 32, 32
          %895 = vsyncadd [#allocation9], %s894
          %s896 = sshll.u32 [#allocation10], 4
          %s897 = int_to_ptr.vmem [resolvable:$true] %s896
          %902 = dma.hbm_to_vmem [thread:$0]  %s15, 32, %s897, [#allocation9], 16, 16, 1
        $region40: #{decompose_whar_forward.1} parent=11 // pred_fallthru
          _
        // Predicated region
        $region41: #{decompose_whar_forward.1} parent=11 // pred_check
          %p903 = pneg %p284
        $region42: #{decompose_whar_forward.1} parent=11 // pred_check_branch
          %905 = sbr.rel (%p903) target = $region44
        $region43: #{decompose_whar_forward.1} parent=11 // pred_region
          %s907 = ssub.s32 1024, 1024
          %908 = vsyncadd [#allocation12], %s907
          %s909 = sshll.u32 [#allocation11], 4
          %s910 = int_to_ptr.vmem [resolvable:$true] %s909
          %915 = dma.hbm_to_vmem [thread:$0]  %s17, 1024, %s910, [#allocation12], 64, 64, 4
        $region44: #{decompose_whar_forward.1} parent=11 // pred_fallthru
          _
        // Predicated region
        $region45: #{decompose_whar_forward.1} parent=11 // pred_check
          %p916 = pneg %p305
        $region46: #{decompose_whar_forward.1} parent=11 // pred_check_branch
          %918 = sbr.rel (%p916) target = $region48
        $region47: #{decompose_whar_forward.1} parent=11 // pred_region
          %s920 = ssub.s32 32, 32
          %921 = vsyncadd [#allocation12], %s920
          %s922 = sshll.u32 [#allocation13], 4
          %s923 = int_to_ptr.vmem [resolvable:$true] %s922
          %928 = dma.hbm_to_vmem [thread:$0]  %s19, 32, %s923, [#allocation12], 16, 16, 1
        $region48: #{decompose_whar_forward.1} parent=11 // pred_fallthru
          _
        // Predicated region
        $region49: #{decompose_whar_forward.1} parent=11 // pred_check
          %p929 = pneg %p326
        $region50: #{decompose_whar_forward.1} parent=11 // pred_check_branch
          %931 = sbr.rel (%p929) target = $region52
        $region51: #{decompose_whar_forward.1} parent=11 // pred_region
          %s933 = ssub.s32 768, 768
          %934 = vsyncadd [#allocation15], %s933
          %s935 = sshll.u32 [#allocation14], 4
          %s936 = int_to_ptr.vmem [resolvable:$true] %s935
          %941 = dma.hbm_to_vmem [thread:$0]  %s21, 768, %s936, [#allocation15], 128, 128, 8
        $region52: #{decompose_whar_forward.1} parent=11 // pred_fallthru
          _
        // Predicated region
        $region53: #{decompose_whar_forward.1} parent=11 // pred_check
          %p942 = pneg %p347
        $region54: #{decompose_whar_forward.1} parent=11 // pred_check_branch
          %944 = sbr.rel (%p942) target = $region56
        $region55: #{decompose_whar_forward.1} parent=11 // pred_region
          %s946 = ssub.s32 32, 32
          %947 = vsyncadd [#allocation15], %s946
          %s949 = sshll.u32 [#allocation16], 4
          %s950 = int_to_ptr.vmem [resolvable:$true] %s949
          %952 = dma.hbm_to_vmem [thread:$0]  %s23, 32, %s950, [#allocation15]
        $region56: #{decompose_whar_forward.1} parent=11 // pred_fallthru
          _
        // Predicated region
        $region57: #{decompose_whar_forward.1} parent=11 // pred_check
          %p953 = pneg %p368
        $region58: #{decompose_whar_forward.1} parent=11 // pred_check_branch
          %955 = sbr.rel (%p953) target = $region60
        $region59: #{decompose_whar_forward.1} parent=11 // pred_region
          _
        $region60: #{decompose_whar_forward.1} parent=11 // pred_fallthru
          _
        // Predicated region
        $region61: #{decompose_whar_forward.1} parent=11 // pred_check
          %p956 = pneg %p389
        $region62: #{decompose_whar_forward.1} parent=11 // pred_check_branch
          %958 = sbr.rel (%p956) target = $region64
        $region63: #{decompose_whar_forward.1} parent=11 // pred_region
          %s960 = ssub.s32 16, 16
          %961 = vsyncadd [#allocation18], %s960
          %s963 = sshll.u32 [#allocation17], 4
          %s964 = int_to_ptr.vmem [resolvable:$true] %s963
          %966 = dma.hbm_to_vmem [thread:$0]  %s27, 16, %s964, [#allocation18]
        $region64: #{decompose_whar_forward.1} parent=11 // pred_fallthru
          _
        // Predicated region
        $region65: #{decompose_whar_forward.1} parent=11 // pred_check
          %p967 = pneg %p410
        $region66: #{decompose_whar_forward.1} parent=11 // pred_check_branch
          %969 = sbr.rel (%p967) target = $region68
        $region67: #{decompose_whar_forward.1} parent=11 // pred_region
          _
        $region68: #{decompose_whar_forward.1} parent=11 // pred_fallthru
          _
        // Predicated region
        $region69: #{decompose_whar_forward.1} parent=11 // pred_check
          %p970 = pneg %p431
        $region70: #{decompose_whar_forward.1} parent=11 // pred_check_branch
          %972 = sbr.rel (%p970) target = $region72
        $region71: #{decompose_whar_forward.1} parent=11 // pred_region
          %s974 = ssub.s32 16, 16
          %975 = vsyncadd [#allocation18], %s974
          %s977 = sshll.u32 [#allocation19], 4
          %s978 = int_to_ptr.vmem [resolvable:$true] %s977
          %980 = dma.hbm_to_vmem [thread:$0]  %s31, 16, %s978, [#allocation18]
        $region72: #{decompose_whar_forward.1} parent=11 // pred_fallthru
          _
        // Predicated region
        $region73: #{decompose_whar_forward.1} parent=11 // pred_check
          %p981 = pneg %p452
        $region74: #{decompose_whar_forward.1} parent=11 // pred_check_branch
          %983 = sbr.rel (%p981) target = $region76
        $region75: #{decompose_whar_forward.1} parent=11 // pred_region
          %s985 = ssub.s32 64, 64
          %986 = vsyncadd [#allocation21], %s985
          %s988 = sshll.u32 [#allocation20], 4
          %s989 = int_to_ptr.vmem [resolvable:$true] %s988
          %991 = dma.hbm_to_vmem [thread:$0]  %s33, 64, %s989, [#allocation21]
        $region76: #{decompose_whar_forward.1} parent=11 // pred_fallthru
          _
        // Predicated region
        $region77: #{decompose_whar_forward.1} parent=11 // pred_check
          %p992 = pneg %p473
        $region78: #{decompose_whar_forward.1} parent=11 // pred_check_branch
          %994 = sbr.rel (%p992) target = $region80
        $region79: #{decompose_whar_forward.1} parent=11 // pred_region
          %s996 = ssub.s32 16, 16
          %997 = vsyncadd [#allocation21], %s996
          %s999 = sshll.u32 [#allocation22], 4
          %s1000 = int_to_ptr.vmem [resolvable:$true] %s999
          %1002 = dma.hbm_to_vmem [thread:$0]  %s35, 16, %s1000, [#allocation21]
        $region80: #{decompose_whar_forward.1} parent=11 // pred_fallthru
          _
        // Predicated region
        $region81: #{decompose_whar_forward.1} parent=11 // pred_check
          %p1003 = pneg %p494
        $region82: #{decompose_whar_forward.1} parent=11 // pred_check_branch
          %1005 = sbr.rel (%p1003) target = $region84
        $region83: #{decompose_whar_forward.1} parent=11 // pred_region
          %s1007 = ssub.s32 256, 256
          %1008 = vsyncadd [#allocation24], %s1007
          %s1009 = sshll.u32 [#allocation23], 4
          %s1010 = int_to_ptr.vmem [resolvable:$true] %s1009
          %1015 = dma.hbm_to_vmem [thread:$0]  %s37, 256, %s1010, [#allocation24], 128, 128, 8
        $region84: #{decompose_whar_forward.1} parent=11 // pred_fallthru
          _
        // Predicated region
        $region85: #{decompose_whar_forward.1} parent=11 // pred_check
          %p1016 = pneg %p515
        $region86: #{decompose_whar_forward.1} parent=11 // pred_check_branch
          %1018 = sbr.rel (%p1016) target = $region88
        $region87: #{decompose_whar_forward.1} parent=11 // pred_region
          %s1020 = ssub.s32 16, 16
          %1021 = vsyncadd [#allocation24], %s1020
          %s1023 = sshll.u32 [#allocation25], 4
          %s1024 = int_to_ptr.vmem [resolvable:$true] %s1023
          %1026 = dma.hbm_to_vmem [thread:$0]  %s39, 16, %s1024, [#allocation24]
        $region88: #{decompose_whar_forward.1} parent=11 // pred_fallthru
          _
        // Predicated region
        $region89: #{decompose_whar_forward.1} parent=11 // pred_check
          %p1027 = pneg %p536
        $region90: #{decompose_whar_forward.1} parent=11 // pred_check_branch
          %1029 = sbr.rel (%p1027) target = $region92
        $region91: #{decompose_whar_forward.1} parent=11 // pred_region
          _
        $region92: #{decompose_whar_forward.1} parent=11 // pred_fallthru
          _
        // Predicated region
        $region93: #{decompose_whar_forward.1} parent=11 // pred_check
          %p1030 = pneg %p557
        $region94: #{decompose_whar_forward.1} parent=11 // pred_check_branch
          %1032 = sbr.rel (%p1030) target = $region96
        $region95: #{decompose_whar_forward.1} parent=11 // pred_region
          %s1034 = ssub.s32 16, 16
          %1035 = vsyncadd [#allocation27], %s1034
          %s1037 = sshll.u32 [#allocation26], 4
          %s1038 = int_to_ptr.vmem [resolvable:$true] %s1037
          %1040 = dma.hbm_to_vmem [thread:$0]  %s43, 16, %s1038, [#allocation27]
        $region96: #{decompose_whar_forward.1} parent=11 // pred_fallthru
          _
        // Predicated region
        $region97: #{decompose_whar_forward.1} parent=11 // pred_check
          %p1041 = pneg %p578
        $region98: #{decompose_whar_forward.1} parent=11 // pred_check_branch
          %1043 = sbr.rel (%p1041) target = $region100
        $region99: #{decompose_whar_forward.1} parent=11 // pred_region
          %s1045 = ssub.s32 16, 16
          %1046 = vsyncadd [#allocation27], %s1045
          %s1048 = sshll.u32 [#allocation28], 4
          %s1049 = int_to_ptr.vmem [resolvable:$true] %s1048
          %1051 = dma.hbm_to_vmem [thread:$0]  %s45, 16, %s1049, [#allocation27]
        $region100: #{decompose_whar_forward.1} parent=11 // pred_fallthru
          _
        // Predicated region
        $region101: #{decompose_whar_forward.1} parent=11 // pred_check
          %p1052 = pneg %p599
        $region102: #{decompose_whar_forward.1} parent=11 // pred_check_branch
          %1054 = sbr.rel (%p1052) target = $region104
        $region103: #{decompose_whar_forward.1} parent=11 // pred_region
          %s1056 = ssub.s32 16, 16
          %1057 = vsyncadd [#allocation30], %s1056
          %s1059 = sshll.u32 [#allocation29], 4
          %s1060 = int_to_ptr.vmem [resolvable:$true] %s1059
          %1062 = dma.hbm_to_vmem [thread:$0]  %s47, 16, %s1060, [#allocation30]
        $region104: #{decompose_whar_forward.1} parent=11 // pred_fallthru
          _
        // Predicated region
        $region105: #{decompose_whar_forward.1} parent=11 // pred_check
          %p1063 = pneg %p620
        $region106: #{decompose_whar_forward.1} parent=11 // pred_check_branch
          %1065 = sbr.rel (%p1063) target = $region108
        $region107: #{decompose_whar_forward.1} parent=11 // pred_region
          _
        $region108: #{decompose_whar_forward.1} parent=11 // pred_fallthru
          _
        // Predicated region
        $region109: #{decompose_whar_forward.1} parent=11 // pred_check
          %p1066 = pneg %p641
        $region110: #{decompose_whar_forward.1} parent=11 // pred_check_branch
          %1068 = sbr.rel (%p1066) target = $region112
        $region111: #{decompose_whar_forward.1} parent=11 // pred_region
          _
        $region112: #{decompose_whar_forward.1} parent=11 // pred_fallthru
          _
        // Predicated region
        $region113: #{decompose_whar_forward.1} parent=11 // pred_check
          %p1069 = pneg %p662
        $region114: #{decompose_whar_forward.1} parent=11 // pred_check_branch
          %1071 = sbr.rel (%p1069) target = $region116
        $region115: #{decompose_whar_forward.1} parent=11 // pred_region
          %s1073 = ssub.s32 1024, 1024
          %1074 = vsyncadd [#allocation30], %s1073
          %s1075 = sshll.u32 [#allocation31], 4
          %s1076 = int_to_ptr.vmem [resolvable:$true] %s1075
          %1081 = dma.hbm_to_vmem [thread:$0]  %s53, 1024, %s1076, [#allocation30], 64, 64, 4
        $region116: #{decompose_whar_forward.1} parent=11 // pred_fallthru
          _
        // Predicated region
        $region117: #{decompose_whar_forward.1} parent=11 // pred_check
          %p1082 = pneg %p683
        $region118: #{decompose_whar_forward.1} parent=11 // pred_check_branch
          %1084 = sbr.rel (%p1082) target = $region120
        $region119: #{decompose_whar_forward.1} parent=11 // pred_region
          %s1086 = ssub.s32 16, 16
          %1087 = vsyncadd [#allocation33], %s1086
          %s1089 = sshll.u32 [#allocation32], 4
          %s1090 = int_to_ptr.vmem [resolvable:$true] %s1089
          %1092 = dma.hbm_to_vmem [thread:$0]  %s55, 16, %s1090, [#allocation33]
        $region120: #{decompose_whar_forward.1} parent=11 // pred_fallthru
          _
        // Predicated region
        $region121: #{decompose_whar_forward.1} parent=11 // pred_check
          %p1093 = pneg %p704
        $region122: #{decompose_whar_forward.1} parent=11 // pred_check_branch
          %1095 = sbr.rel (%p1093) target = $region124
        $region123: #{decompose_whar_forward.1} parent=11 // pred_region
          %s1097 = ssub.s32 16, 16
          %1098 = vsyncadd [#allocation33], %s1097
          %s1100 = sshll.u32 [#allocation34], 4
          %s1101 = int_to_ptr.vmem [resolvable:$true] %s1100
          %1103 = dma.hbm_to_vmem [thread:$0]  %s57, 16, %s1101, [#allocation33]
        $region124: #{decompose_whar_forward.1} parent=11 // pred_fallthru
          _
        // Predicated region
        $region125: #{decompose_whar_forward.1} parent=11 // pred_check
          %p1104 = pneg %p725
        $region126: #{decompose_whar_forward.1} parent=11 // pred_check_branch
          %1106 = sbr.rel (%p1104) target = $region128
        $region127: #{decompose_whar_forward.1} parent=11 // pred_region
          %s1108 = ssub.s32 16, 16
          %1109 = vsyncadd [#allocation36], %s1108
          %s1111 = sshll.u32 [#allocation35], 4
          %s1112 = int_to_ptr.vmem [resolvable:$true] %s1111
          %1114 = dma.hbm_to_vmem [thread:$0]  %s59, 16, %s1112, [#allocation36]
        $region128: #{decompose_whar_forward.1} parent=11 // pred_fallthru
          _
        // Predicated region
        $region129: #{decompose_whar_forward.1} parent=11 // pred_check
          %p1115 = pneg %p746
        $region130: #{decompose_whar_forward.1} parent=11 // pred_check_branch
          %1117 = sbr.rel (%p1115) target = $region132
        $region131: #{decompose_whar_forward.1} parent=11 // pred_region
          %s1119 = ssub.s32 3072, 3072
          %1120 = vsyncadd [#allocation36], %s1119
          %s1121 = sshll.u32 [#allocation37], 4
          %s1122 = int_to_ptr.vmem [resolvable:$true] %s1121
          %1127 = dma.hbm_to_vmem [thread:$0]  %s61, 3072, %s1122, [#allocation36], 64, 64, 4
        $region132: #{decompose_whar_forward.1} parent=11 // pred_fallthru
          _
        // Predicated region
        $region133: #{decompose_whar_forward.1} parent=11 // pred_check
          %p1128 = pneg %p767
        $region134: #{decompose_whar_forward.1} parent=11 // pred_check_branch
          %1130 = sbr.rel (%p1128) target = $region136
        $region135: #{decompose_whar_forward.1} parent=11 // pred_region
          %s1132 = ssub.s32 16, 16
          %1133 = vsyncadd [#allocation39], %s1132
          %s1135 = sshll.u32 [#allocation38], 4
          %s1136 = int_to_ptr.vmem [resolvable:$true] %s1135
          %1138 = dma.hbm_to_vmem [thread:$0]  %s63, 16, %s1136, [#allocation39]
        $region136: #{decompose_whar_forward.1} parent=11 // pred_fallthru
          _
      $region12: #{decompose_whar_forward.1} parent=5 // pred_fallthru
        _
      %p1139 = scmp.lt.s32.totalorder %s90, 2
      // Predicated region
      $region137: #{decompose_whar_forward.1} parent=5 // pred_check
        %p1140 = pneg %p1139
      $region138: #{decompose_whar_forward.1} parent=5 // pred_check_branch
        %1142 = sbr.rel (%p1140) target = $region140
      $region139: #{decompose_whar_forward.1} parent=5 // pred_region
        // Predicated region
        $region141: #{decompose_whar_forward.1} parent=139 // pred_check
          %p1143 = pneg %p110
        $region142: #{decompose_whar_forward.1} parent=139 // pred_check_branch
          %1145 = sbr.rel (%p1143) target = $region144
        $region143: #{decompose_whar_forward.1} parent=139 // pred_region
          %p1146 = scmp.lt.s32.totalorder %s90, 1
          %s1147 = scalar_select %p1146, %s90, 1
          %s1148 = smul.addr %s1147, 3
          %s1149 = smul.addr %s1148, 4
          %s1150 = scalar_lea.vmem %s1, %s1149
        $region144: #{decompose_whar_forward.1} parent=139 // pred_fallthru
          _
      $region140: #{decompose_whar_forward.1} parent=5 // pred_fallthru
        _
      %p1151 = scmp.le.s32.totalorder 1, %s90
      %p1152 = scmp.lt.s32.totalorder %s90, 3
      %p1153 = pnand %p1151, %p1152
      %p1154 = pneg %p1153
      // Predicated region
      $region145: #{decompose_whar_forward.1} parent=5 // pred_check
        _
      $region146: #{decompose_whar_forward.1} parent=5 // pred_check_branch
        %1156 = sbr.rel (%p1153) target = $region148
      $region147: #{decompose_whar_forward.1} parent=5 // pred_region
        %s1157 = ssub.s32 %s90, 1
        // Predicated region
        $region149: #{decompose_whar_forward.1} parent=147 // pred_check
          %p1158 = pneg %p137
        $region150: #{decompose_whar_forward.1} parent=147 // pred_check_branch
          %1160 = sbr.rel (%p1158) target = $region152
        $region151: #{decompose_whar_forward.1} parent=147 // pred_region
          %1161 = dma.done [#allocation3], 256
        $region152: #{decompose_whar_forward.1} parent=147 // pred_fallthru
          _
        // Predicated region
        $region153: #{decompose_whar_forward.1} parent=147 // pred_check
          %p1162 = pneg %p158
        $region154: #{decompose_whar_forward.1} parent=147 // pred_check_branch
          %1164 = sbr.rel (%p1162) target = $region156
        $region155: #{decompose_whar_forward.1} parent=147 // pred_region
          %1165 = dma.done [#allocation6], 256
        $region156: #{decompose_whar_forward.1} parent=147 // pred_fallthru
          _
        // Predicated region
        $region157: #{decompose_whar_forward.1} parent=147 // pred_check
          %p1166 = pneg %p179
        $region158: #{decompose_whar_forward.1} parent=147 // pred_check_branch
          %1168 = sbr.rel (%p1166) target = $region160
        $region159: #{decompose_whar_forward.1} parent=147 // pred_region
          %1169 = dma.done [#allocation6], 16
        $region160: #{decompose_whar_forward.1} parent=147 // pred_fallthru
          _
        // Predicated region
        $region161: #{decompose_whar_forward.1} parent=147 // pred_check
          %p1170 = pneg %p221
        $region162: #{decompose_whar_forward.1} parent=147 // pred_check_branch
          %1172 = sbr.rel (%p1170) target = $region164
        $region163: #{decompose_whar_forward.1} parent=147 // pred_region
          %1173 = dma.done [#allocation9], 32
        $region164: #{decompose_whar_forward.1} parent=147 // pred_fallthru
          _
        // Predicated region
        $region165: #{decompose_whar_forward.1} parent=147 // pred_check
          %p1174 = pneg %p263
        $region166: #{decompose_whar_forward.1} parent=147 // pred_check_branch
          %1176 = sbr.rel (%p1174) target = $region168
        $region167: #{decompose_whar_forward.1} parent=147 // pred_region
          %1177 = dma.done [#allocation9], 32
        $region168: #{decompose_whar_forward.1} parent=147 // pred_fallthru
          _
        // Predicated region
        $region169: #{decompose_whar_forward.1} parent=147 // pred_check
          %p1178 = pneg %p284
        $region170: #{decompose_whar_forward.1} parent=147 // pred_check_branch
          %1180 = sbr.rel (%p1178) target = $region172
        $region171: #{decompose_whar_forward.1} parent=147 // pred_region
          %1181 = dma.done [#allocation12], 1024
        $region172: #{decompose_whar_forward.1} parent=147 // pred_fallthru
          _
        // Predicated region
        $region173: #{decompose_whar_forward.1} parent=147 // pred_check
          %p1182 = pneg %p305
        $region174: #{decompose_whar_forward.1} parent=147 // pred_check_branch
          %1184 = sbr.rel (%p1182) target = $region176
        $region175: #{decompose_whar_forward.1} parent=147 // pred_region
          %1185 = dma.done [#allocation12], 32
        $region176: #{decompose_whar_forward.1} parent=147 // pred_fallthru
          _
        // Predicated region
        $region177: #{decompose_whar_forward.1} parent=147 // pred_check
          %p1186 = pneg %p326
        $region178: #{decompose_whar_forward.1} parent=147 // pred_check_branch
          %1188 = sbr.rel (%p1186) target = $region180
        $region179: #{decompose_whar_forward.1} parent=147 // pred_region
          %1189 = dma.done [#allocation15], 768
        $region180: #{decompose_whar_forward.1} parent=147 // pred_fallthru
          _
        // Predicated region
        $region181: #{decompose_whar_forward.1} parent=147 // pred_check
          %p1190 = pneg %p347
        $region182: #{decompose_whar_forward.1} parent=147 // pred_check_branch
          %1192 = sbr.rel (%p1190) target = $region184
        $region183: #{decompose_whar_forward.1} parent=147 // pred_region
          %1193 = dma.done [#allocation15], 32
        $region184: #{decompose_whar_forward.1} parent=147 // pred_fallthru
          _
        // Predicated region
        $region185: #{decompose_whar_forward.1} parent=147 // pred_check
          %p1194 = pneg %p389
        $region186: #{decompose_whar_forward.1} parent=147 // pred_check_branch
          %1196 = sbr.rel (%p1194) target = $region188
        $region187: #{decompose_whar_forward.1} parent=147 // pred_region
          %1197 = dma.done [#allocation18], 16
        $region188: #{decompose_whar_forward.1} parent=147 // pred_fallthru
          _
        // Predicated region
        $region189: #{decompose_whar_forward.1} parent=147 // pred_check
          %p1198 = pneg %p431
        $region190: #{decompose_whar_forward.1} parent=147 // pred_check_branch
          %1200 = sbr.rel (%p1198) target = $region192
        $region191: #{decompose_whar_forward.1} parent=147 // pred_region
          %1201 = dma.done [#allocation18], 16
        $region192: #{decompose_whar_forward.1} parent=147 // pred_fallthru
          _
        // Predicated region
        $region193: #{decompose_whar_forward.1} parent=147 // pred_check
          %p1202 = pneg %p452
        $region194: #{decompose_whar_forward.1} parent=147 // pred_check_branch
          %1204 = sbr.rel (%p1202) target = $region196
        $region195: #{decompose_whar_forward.1} parent=147 // pred_region
          %1205 = dma.done [#allocation21], 64
        $region196: #{decompose_whar_forward.1} parent=147 // pred_fallthru
          _
        // Predicated region
        $region197: #{decompose_whar_forward.1} parent=147 // pred_check
          %p1206 = pneg %p473
        $region198: #{decompose_whar_forward.1} parent=147 // pred_check_branch
          %1208 = sbr.rel (%p1206) target = $region200
        $region199: #{decompose_whar_forward.1} parent=147 // pred_region
          %1209 = dma.done [#allocation21], 16
        $region200: #{decompose_whar_forward.1} parent=147 // pred_fallthru
          _
        // Predicated region
        $region201: #{decompose_whar_forward.1} parent=147 // pred_check
          %p1210 = pneg %p494
        $region202: #{decompose_whar_forward.1} parent=147 // pred_check_branch
          %1212 = sbr.rel (%p1210) target = $region204
        $region203: #{decompose_whar_forward.1} parent=147 // pred_region
          %1213 = dma.done [#allocation24], 256
        $region204: #{decompose_whar_forward.1} parent=147 // pred_fallthru
          _
        // Predicated region
        $region205: #{decompose_whar_forward.1} parent=147 // pred_check
          %p1214 = pneg %p515
        $region206: #{decompose_whar_forward.1} parent=147 // pred_check_branch
          %1216 = sbr.rel (%p1214) target = $region208
        $region207: #{decompose_whar_forward.1} parent=147 // pred_region
          %1217 = dma.done [#allocation24], 16
        $region208: #{decompose_whar_forward.1} parent=147 // pred_fallthru
          _
        // Predicated region
        $region209: #{decompose_whar_forward.1} parent=147 // pred_check
          %p1218 = pneg %p557
        $region210: #{decompose_whar_forward.1} parent=147 // pred_check_branch
          %1220 = sbr.rel (%p1218) target = $region212
        $region211: #{decompose_whar_forward.1} parent=147 // pred_region
          %1221 = dma.done [#allocation27], 16
        $region212: #{decompose_whar_forward.1} parent=147 // pred_fallthru
          _
        // Predicated region
        $region213: #{decompose_whar_forward.1} parent=147 // pred_check
          %p1222 = pneg %p578
        $region214: #{decompose_whar_forward.1} parent=147 // pred_check_branch
          %1224 = sbr.rel (%p1222) target = $region216
        $region215: #{decompose_whar_forward.1} parent=147 // pred_region
          %1225 = dma.done [#allocation27], 16
        $region216: #{decompose_whar_forward.1} parent=147 // pred_fallthru
          _
        // Predicated region
        $region217: #{decompose_whar_forward.1} parent=147 // pred_check
          %p1226 = pneg %p599
        $region218: #{decompose_whar_forward.1} parent=147 // pred_check_branch
          %1228 = sbr.rel (%p1226) target = $region220
        $region219: #{decompose_whar_forward.1} parent=147 // pred_region
          %1229 = dma.done [#allocation30], 16
        $region220: #{decompose_whar_forward.1} parent=147 // pred_fallthru
          _
        // Predicated region
        $region221: #{decompose_whar_forward.1} parent=147 // pred_check
          %p1230 = pneg %p662
        $region222: #{decompose_whar_forward.1} parent=147 // pred_check_branch
          %1232 = sbr.rel (%p1230) target = $region224
        $region223: #{decompose_whar_forward.1} parent=147 // pred_region
          %1233 = dma.done [#allocation30], 1024
        $region224: #{decompose_whar_forward.1} parent=147 // pred_fallthru
          _
        // Predicated region
        $region225: #{decompose_whar_forward.1} parent=147 // pred_check
          %p1234 = pneg %p683
        $region226: #{decompose_whar_forward.1} parent=147 // pred_check_branch
          %1236 = sbr.rel (%p1234) target = $region228
        $region227: #{decompose_whar_forward.1} parent=147 // pred_region
          %1237 = dma.done [#allocation33], 16
        $region228: #{decompose_whar_forward.1} parent=147 // pred_fallthru
          _
        // Predicated region
        $region229: #{decompose_whar_forward.1} parent=147 // pred_check
          %p1238 = pneg %p704
        $region230: #{decompose_whar_forward.1} parent=147 // pred_check_branch
          %1240 = sbr.rel (%p1238) target = $region232
        $region231: #{decompose_whar_forward.1} parent=147 // pred_region
          %1241 = dma.done [#allocation33], 16
        $region232: #{decompose_whar_forward.1} parent=147 // pred_fallthru
          _
        // Predicated region
        $region233: #{decompose_whar_forward.1} parent=147 // pred_check
          %p1242 = pneg %p725
        $region234: #{decompose_whar_forward.1} parent=147 // pred_check_branch
          %1244 = sbr.rel (%p1242) target = $region236
        $region235: #{decompose_whar_forward.1} parent=147 // pred_region
          %1245 = dma.done [#allocation36], 16
        $region236: #{decompose_whar_forward.1} parent=147 // pred_fallthru
          _
        // Predicated region
        $region237: #{decompose_whar_forward.1} parent=147 // pred_check
          %p1246 = pneg %p746
        $region238: #{decompose_whar_forward.1} parent=147 // pred_check_branch
          %1248 = sbr.rel (%p1246) target = $region240
        $region239: #{decompose_whar_forward.1} parent=147 // pred_region
          %1249 = dma.done [#allocation36], 3072
        $region240: #{decompose_whar_forward.1} parent=147 // pred_fallthru
          _
        // Predicated region
        $region241: #{decompose_whar_forward.1} parent=147 // pred_check
          %p1250 = pneg %p767
        $region242: #{decompose_whar_forward.1} parent=147 // pred_check_branch
          %1252 = sbr.rel (%p1250) target = $region244
        $region243: #{decompose_whar_forward.1} parent=147 // pred_region
          %1253 = dma.done [#allocation39], 16
        $region244: #{decompose_whar_forward.1} parent=147 // pred_fallthru
          _
        %p1254 = scmp.lt.s32.totalorder %s95, 1
        %s1255 = scalar_select %p1254, %s95, 1
        %s1256 = smul.addr %s1255, 3
        %s1257 = smul.addr %s1256, 4
        %s1258 = scalar_lea.vmem %s1, %s1257
        %p1259 = pneg %p116
        %p1260 = pneg %p113
        %p1261 = pneg %p137
        %p1262 = pneg %p134
        %p1263 = pneg %p158
        %p1264 = pneg %p155
        %p1265 = pneg %p179
        %p1266 = pneg %p176
        %p1267 = pneg %p200
        %p1268 = pneg %p197
        %p1269 = pneg %p221
        %p1270 = pneg %p218
        %p1271 = pneg %p242
        %p1272 = pneg %p239
        %p1273 = pneg %p263
        %p1274 = pneg %p260
        %p1275 = pneg %p284
        %p1276 = pneg %p281
        %p1277 = pneg %p305
        %p1278 = pneg %p302
        %p1279 = pneg %p326
        %p1280 = pneg %p323
        %p1281 = pneg %p347
        %p1282 = pneg %p344
        %p1283 = pneg %p368
        %p1284 = pneg %p365
        %p1285 = pneg %p389
        %p1286 = pneg %p386
        %p1287 = pneg %p410
        %p1288 = pneg %p407
        %p1289 = pneg %p431
        %p1290 = pneg %p428
        %p1291 = pneg %p452
        %p1292 = pneg %p449
        %p1293 = pneg %p473
        %p1294 = pneg %p470
        %p1295 = pneg %p494
        %p1296 = pneg %p491
        %p1297 = pneg %p515
        %p1298 = pneg %p512
        %p1299 = pneg %p536
        %p1300 = pneg %p533
        %p1301 = pneg %p557
        %p1302 = pneg %p554
        %p1303 = pneg %p578
        %p1304 = pneg %p575
        %p1305 = pneg %p599
        %p1306 = pneg %p596
        %p1307 = pneg %p620
        %p1308 = pneg %p617
        %p1309 = pneg %p641
        %p1310 = pneg %p638
        %p1311 = pneg %p662
        %p1312 = pneg %p659
        %p1313 = pneg %p683
        %p1314 = pneg %p680
        %p1315 = pneg %p704
        %p1316 = pneg %p701
        %p1317 = pneg %p725
        %p1318 = pneg %p722
        %p1319 = pneg %p746
        %p1320 = pneg %p743
        %p1321 = pneg %p767
        %p1322 = pneg %p764
        %p1323 = pneg %p793
        %p1324 = pneg %p790
        %p1325 = scmp.lt.s32.totalorder %s95, 1
        %s1326 = scalar_select %p1325, %s95, 1
        %s1327 = smul.addr %s1326, 3
        %s1328 = scalar_lea.vmem %s65, %s1327
        %p1329 = pneg %p819
        %p1330 = pneg %p816
        %s1331 = sand.u32 %s806, 1
        %s1332 = scalar_lea.sflag [#allocation4], %s1331
        %s1333 = sand.u32 %s806, 1
        %s1334 = scalar_lea.vmem [#allocation40], %s1333
        %p1335 = scmp.lt.s32.totalorder %s95, 1
        %s1336 = scalar_select %p1335, %s95, 1
        %s1337 = smul.addr %s1336, 3
        %s1338 = smul.addr %s1337, 4
        %s1339 = scalar_lea.vmem %s1, %s1338
        %p1340 = scmp.lt.s32.totalorder %s95, 1
        %s1341 = scalar_select %p1340, %s95, 1
        %s1342 = smul.addr %s1341, 3
        %s1343 = scalar_lea.vmem %s65, %s1342
        %v1345 = vld [vmem:[%s1339] sm:$0xf]
        %v1346 = vld [vmem:[%s1339 + $0x4] sm:$0xf]
        %v1347 = vld [vmem:[%s1339 + $0x8] sm:$0xf]
        %1349 = vset.pattern.permute.xlu0 31
        %1350 = vperm.xlu0 %1349, %v1345
        %v1351 = vpop.permute.xlu0 %1350
        %1354 = vset.pattern.permute.xlu0 31
        %1355 = vperm.xlu0 %1354, %v1346
        %v1356 = vpop.permute.xlu0 %1355
        %1359 = vset.pattern.permute.xlu0 31
        %1360 = vperm.xlu0 %1359, %v1347
        %v1361 = vpop.permute.xlu0 %1360
        %vm1363 = vcmask 261120
        %v1364 = vsel %vm1363, %v1345, %v1351
        %v1365 = vsel %vm1363, %v1346, %v1356
        %v1366 = vsel %vm1363, %v1347, %v1361
        %1370 = vrot.lane.b32.xlu0 %v1364, 124
        %v1371 = vpop.permute.xlu0 %1370
        %1372 = vrot.lane.b32.xlu0 %v1365, 124
        %v1373 = vpop.permute.xlu0 %1372
        %1374 = vrot.lane.b32.xlu0 %v1366, 124
        %v1375 = vpop.permute.xlu0 %1374
        %1379 = vrot.lane.b32.xlu0 %v1364, 120
        %v1380 = vpop.permute.xlu0 %1379
        %1381 = vrot.lane.b32.xlu0 %v1365, 120
        %v1382 = vpop.permute.xlu0 %1381
        %1383 = vrot.lane.b32.xlu0 %v1366, 120
        %v1384 = vpop.permute.xlu0 %1383
        %1388 = vrot.lane.b32.xlu0 %v1364, 116
        %v1389 = vpop.permute.xlu0 %1388
        %1390 = vrot.lane.b32.xlu0 %v1365, 116
        %v1391 = vpop.permute.xlu0 %1390
        %1392 = vrot.lane.b32.xlu0 %v1366, 116
        %v1393 = vpop.permute.xlu0 %1392
        %1397 = vrot.lane.b32.xlu0 %v1364, 112
        %v1398 = vpop.permute.xlu0 %1397
        %1399 = vrot.lane.b32.xlu0 %v1365, 112
        %v1400 = vpop.permute.xlu0 %1399
        %1401 = vrot.lane.b32.xlu0 %v1366, 112
        %v1402 = vpop.permute.xlu0 %1401
        %1406 = vrot.lane.b32.xlu0 %v1364, 108
        %v1407 = vpop.permute.xlu0 %1406
        %1408 = vrot.lane.b32.xlu0 %v1365, 108
        %v1409 = vpop.permute.xlu0 %1408
        %1410 = vrot.lane.b32.xlu0 %v1366, 108
        %v1411 = vpop.permute.xlu0 %1410
        %1415 = vrot.lane.b32.xlu0 %v1364, 104
        %v1416 = vpop.permute.xlu0 %1415
        %1417 = vrot.lane.b32.xlu0 %v1365, 104
        %v1418 = vpop.permute.xlu0 %1417
        %1419 = vrot.lane.b32.xlu0 %v1366, 104
        %v1420 = vpop.permute.xlu0 %1419
        %1424 = vrot.lane.b32.xlu0 %v1364, 100
        %v1425 = vpop.permute.xlu0 %1424
        %1426 = vrot.lane.b32.xlu0 %v1365, 100
        %v1427 = vpop.permute.xlu0 %1426
        %1428 = vrot.lane.b32.xlu0 %v1366, 100
        %v1429 = vpop.permute.xlu0 %1428
        %1433 = vrot.lane.b32.xlu0 %v1364, 96
        %v1434 = vpop.permute.xlu0 %1433
        %1435 = vrot.lane.b32.xlu0 %v1365, 96
        %v1436 = vpop.permute.xlu0 %1435
        %1437 = vrot.lane.b32.xlu0 %v1366, 96
        %v1438 = vpop.permute.xlu0 %1437
        %v1439 = vcombine.low %v1364, %v1380
        %v1441 = vunpack.c.l.s4 1983009808
        %v1442 = vunpack.c.0.s8 %v1441
        %v1443 = vlaneseq
        %v1444 = vshrl.u32 %v1443, 7
        %v1445 = vsub.s32 %v1442, %v1444
        %v1446 = vrot.slane %v1439, %v1445
        %v1447 = vcombine.low %v1371, %v1389
        %v1449 = vunpack.c.l.s4 1983009808
        %v1450 = vunpack.c.0.s8 %v1449
        %v1451 = vlaneseq
        %v1452 = vshrl.u32 %v1451, 7
        %v1453 = vsub.s32 %v1450, %v1452
        %v1454 = vrot.slane %v1447, %v1453
        %v1455 = vcombine.low %v1398, %v1416
        %v1457 = vunpack.c.l.s4 1983009808
        %v1458 = vunpack.c.0.s8 %v1457
        %v1459 = vlaneseq
        %v1460 = vshrl.u32 %v1459, 7
        %v1461 = vsub.s32 %v1458, %v1460
        %v1462 = vrot.slane %v1455, %v1461
        %v1463 = vcombine.low %v1407, %v1425
        %v1465 = vunpack.c.l.s4 1983009808
        %v1466 = vunpack.c.0.s8 %v1465
        %v1467 = vlaneseq
        %v1468 = vshrl.u32 %v1467, 7
        %v1469 = vsub.s32 %v1466, %v1468
        %v1470 = vrot.slane %v1463, %v1469
        %v1471 = vcombine.low %v1446, %v1454
        %v1472 = vcombine.high %v1446, %v1454
        %v1474 = vunpack.c.l.s4 1934713408
        %v1475 = vunpack.c.0.s8 %v1474
        %v1476 = vlaneseq
        %v1477 = vshrl.u32 %v1476, 7
        %v1478 = vsub.s32 %v1475, %v1477
        %v1479 = vrot.slane %v1471, %v1478
        %v1481 = vunpack.c.l.s4 1934713408
        %v1482 = vunpack.c.0.s8 %v1481
        %v1483 = vlaneseq
        %v1484 = vshrl.u32 %v1483, 7
        %v1485 = vsub.s32 %v1482, %v1484
        %v1486 = vrot.slane %v1472, %v1485
        %v1487 = vcombine.low %v1462, %v1470
        %v1488 = vcombine.high %v1462, %v1470
        %v1490 = vunpack.c.l.s4 1934713408
        %v1491 = vunpack.c.0.s8 %v1490
        %v1492 = vlaneseq
        %v1493 = vshrl.u32 %v1492, 7
        %v1494 = vsub.s32 %v1491, %v1493
        %v1495 = vrot.slane %v1487, %v1494
        %v1497 = vunpack.c.l.s4 1934713408
        %v1498 = vunpack.c.0.s8 %v1497
        %v1499 = vlaneseq
        %v1500 = vshrl.u32 %v1499, 7
        %v1501 = vsub.s32 %v1498, %v1500
        %v1502 = vrot.slane %v1488, %v1501
        %v1503 = vcombine.low %v1479, %v1495
        %v1504 = vcombine.high %v1479, %v1495
        %v1505 = vcombine.low %v1486, %v1502
        %v1506 = vcombine.high %v1486, %v1502
        %v1509 = vunpack.c.l.s4 1983009808
        %v1510 = vunpack.c.0.s8 %v1509
        %v1511 = vlaneseq
        %v1512 = vshrl.u32 %v1511, 7
        %v1513 = vsub.s32 %v1510, %v1512
        %v1514 = vrot.slane %v1434, %v1513
        %v1515 = vcombine.high %v1514, 0.0
        %v1517 = vunpack.c.l.s4 1934713408
        %v1518 = vunpack.c.0.s8 %v1517
        %v1519 = vlaneseq
        %v1520 = vshrl.u32 %v1519, 7
        %v1521 = vsub.s32 %v1518, %v1520
        %v1522 = vrot.slane %v1514, %v1521
        %v1524 = vunpack.c.l.s4 1934713408
        %v1525 = vunpack.c.0.s8 %v1524
        %v1526 = vlaneseq
        %v1527 = vshrl.u32 %v1526, 7
        %v1528 = vsub.s32 %v1525, %v1527
        %v1529 = vrot.slane %v1515, %v1528
        %v1530 = vcombine.high %v1522, 0.0
        %v1531 = vcombine.high %v1529, 0.0
        %v1532 = vcombine.low %v1365, %v1382
        %v1534 = vunpack.c.l.s4 1983009808
        %v1535 = vunpack.c.0.s8 %v1534
        %v1536 = vlaneseq
        %v1537 = vshrl.u32 %v1536, 7
        %v1538 = vsub.s32 %v1535, %v1537
        %v1539 = vrot.slane %v1532, %v1538
        %v1540 = vcombine.low %v1373, %v1391
        %v1542 = vunpack.c.l.s4 1983009808
        %v1543 = vunpack.c.0.s8 %v1542
        %v1544 = vlaneseq
        %v1545 = vshrl.u32 %v1544, 7
        %v1546 = vsub.s32 %v1543, %v1545
        %v1547 = vrot.slane %v1540, %v1546
        %v1548 = vcombine.low %v1400, %v1418
        %v1550 = vunpack.c.l.s4 1983009808
        %v1551 = vunpack.c.0.s8 %v1550
        %v1552 = vlaneseq
        %v1553 = vshrl.u32 %v1552, 7
        %v1554 = vsub.s32 %v1551, %v1553
        %v1555 = vrot.slane %v1548, %v1554
        %v1556 = vcombine.low %v1409, %v1427
        %v1558 = vunpack.c.l.s4 1983009808
        %v1559 = vunpack.c.0.s8 %v1558
        %v1560 = vlaneseq
        %v1561 = vshrl.u32 %v1560, 7
        %v1562 = vsub.s32 %v1559, %v1561
        %v1563 = vrot.slane %v1556, %v1562
        %v1564 = vcombine.low %v1539, %v1547
        %v1565 = vcombine.high %v1539, %v1547
        %v1567 = vunpack.c.l.s4 1934713408
        %v1568 = vunpack.c.0.s8 %v1567
        %v1569 = vlaneseq
        %v1570 = vshrl.u32 %v1569, 7
        %v1571 = vsub.s32 %v1568, %v1570
        %v1572 = vrot.slane %v1564, %v1571
        %v1574 = vunpack.c.l.s4 1934713408
        %v1575 = vunpack.c.0.s8 %v1574
        %v1576 = vlaneseq
        %v1577 = vshrl.u32 %v1576, 7
        %v1578 = vsub.s32 %v1575, %v1577
        %v1579 = vrot.slane %v1565, %v1578
        %v1580 = vcombine.low %v1555, %v1563
        %v1581 = vcombine.high %v1555, %v1563
        %v1583 = vunpack.c.l.s4 1934713408
        %v1584 = vunpack.c.0.s8 %v1583
        %v1585 = vlaneseq
        %v1586 = vshrl.u32 %v1585, 7
        %v1587 = vsub.s32 %v1584, %v1586
        %v1588 = vrot.slane %v1580, %v1587
        %v1590 = vunpack.c.l.s4 1934713408
        %v1591 = vunpack.c.0.s8 %v1590
        %v1592 = vlaneseq
        %v1593 = vshrl.u32 %v1592, 7
        %v1594 = vsub.s32 %v1591, %v1593
        %v1595 = vrot.slane %v1581, %v1594
        %v1596 = vcombine.low %v1572, %v1588
        %v1597 = vcombine.high %v1572, %v1588
        %v1598 = vcombine.low %v1579, %v1595
        %v1599 = vcombine.high %v1579, %v1595
        %v1602 = vunpack.c.l.s4 1983009808
        %v1603 = vunpack.c.0.s8 %v1602
        %v1604 = vlaneseq
        %v1605 = vshrl.u32 %v1604, 7
        %v1606 = vsub.s32 %v1603, %v1605
        %v1607 = vrot.slane %v1436, %v1606
        %v1608 = vcombine.high %v1607, 0.0
        %v1610 = vunpack.c.l.s4 1934713408
        %v1611 = vunpack.c.0.s8 %v1610
        %v1612 = vlaneseq
        %v1613 = vshrl.u32 %v1612, 7
        %v1614 = vsub.s32 %v1611, %v1613
        %v1615 = vrot.slane %v1607, %v1614
        %v1617 = vunpack.c.l.s4 1934713408
        %v1618 = vunpack.c.0.s8 %v1617
        %v1619 = vlaneseq
        %v1620 = vshrl.u32 %v1619, 7
        %v1621 = vsub.s32 %v1618, %v1620
        %v1622 = vrot.slane %v1608, %v1621
        %v1623 = vcombine.high %v1615, 0.0
        %v1624 = vcombine.high %v1622, 0.0
        %v1625 = vcombine.low %v1366, %v1384
        %v1627 = vunpack.c.l.s4 1983009808
        %v1628 = vunpack.c.0.s8 %v1627
        %v1629 = vlaneseq
        %v1630 = vshrl.u32 %v1629, 7
        %v1631 = vsub.s32 %v1628, %v1630
        %v1632 = vrot.slane %v1625, %v1631
        %v1633 = vcombine.low %v1375, %v1393
        %v1635 = vunpack.c.l.s4 1983009808
        %v1636 = vunpack.c.0.s8 %v1635
        %v1637 = vlaneseq
        %v1638 = vshrl.u32 %v1637, 7
        %v1639 = vsub.s32 %v1636, %v1638
        %v1640 = vrot.slane %v1633, %v1639
        %v1641 = vcombine.low %v1402, %v1420
        %v1643 = vunpack.c.l.s4 1983009808
        %v1644 = vunpack.c.0.s8 %v1643
        %v1645 = vlaneseq
        %v1646 = vshrl.u32 %v1645, 7
        %v1647 = vsub.s32 %v1644, %v1646
        %v1648 = vrot.slane %v1641, %v1647
        %v1649 = vcombine.low %v1411, %v1429
        %v1651 = vunpack.c.l.s4 1983009808
        %v1652 = vunpack.c.0.s8 %v1651
        %v1653 = vlaneseq
        %v1654 = vshrl.u32 %v1653, 7
        %v1655 = vsub.s32 %v1652, %v1654
        %v1656 = vrot.slane %v1649, %v1655
        %v1657 = vcombine.low %v1632, %v1640
        %v1658 = vcombine.high %v1632, %v1640
        %v1660 = vunpack.c.l.s4 1934713408
        %v1661 = vunpack.c.0.s8 %v1660
        %v1662 = vlaneseq
        %v1663 = vshrl.u32 %v1662, 7
        %v1664 = vsub.s32 %v1661, %v1663
        %v1665 = vrot.slane %v1657, %v1664
        %v1667 = vunpack.c.l.s4 1934713408
        %v1668 = vunpack.c.0.s8 %v1667
        %v1669 = vlaneseq
        %v1670 = vshrl.u32 %v1669, 7
        %v1671 = vsub.s32 %v1668, %v1670
        %v1672 = vrot.slane %v1658, %v1671
        %v1673 = vcombine.low %v1648, %v1656
        %v1674 = vcombine.high %v1648, %v1656
        %v1676 = vunpack.c.l.s4 1934713408
        %v1677 = vunpack.c.0.s8 %v1676
        %v1678 = vlaneseq
        %v1679 = vshrl.u32 %v1678, 7
        %v1680 = vsub.s32 %v1677, %v1679
        %v1681 = vrot.slane %v1673, %v1680
        %v1683 = vunpack.c.l.s4 1934713408
        %v1684 = vunpack.c.0.s8 %v1683
        %v1685 = vlaneseq
        %v1686 = vshrl.u32 %v1685, 7
        %v1687 = vsub.s32 %v1684, %v1686
        %v1688 = vrot.slane %v1674, %v1687
        %v1689 = vcombine.low %v1665, %v1681
        %v1690 = vcombine.high %v1665, %v1681
        %v1691 = vcombine.low %v1672, %v1688
        %v1692 = vcombine.high %v1672, %v1688
        %v1695 = vunpack.c.l.s4 1983009808
        %v1696 = vunpack.c.0.s8 %v1695
        %v1697 = vlaneseq
        %v1698 = vshrl.u32 %v1697, 7
        %v1699 = vsub.s32 %v1696, %v1698
        %v1700 = vrot.slane %v1438, %v1699
        %v1701 = vcombine.high %v1700, 0.0
        %v1703 = vunpack.c.l.s4 1934713408
        %v1704 = vunpack.c.0.s8 %v1703
        %v1705 = vlaneseq
        %v1706 = vshrl.u32 %v1705, 7
        %v1707 = vsub.s32 %v1704, %v1706
        %v1708 = vrot.slane %v1700, %v1707
        %v1710 = vunpack.c.l.s4 1934713408
        %v1711 = vunpack.c.0.s8 %v1710
        %v1712 = vlaneseq
        %v1713 = vshrl.u32 %v1712, 7
        %v1714 = vsub.s32 %v1711, %v1713
        %v1715 = vrot.slane %v1701, %v1714
        %v1716 = vcombine.high %v1708, 0.0
        %v1717 = vcombine.high %v1715, 0.0
        %v1718 = vcombine.low %v1503, %v1505
        %v1719 = vcombine.high %v1503, %v1505
        %v1721 = vunpack.c.l.s4 1983009808
        %v1722 = vunpack.c.0.s8 %v1721
        %v1723 = vlaneseq
        %v1724 = vshrl.u32 %v1723, 7
        %v1725 = vsub.s32 %v1722, %v1724
        %v1726 = vrot.slane %v1718, %v1725
        %v1728 = vunpack.c.l.s4 1983009808
        %v1729 = vunpack.c.0.s8 %v1728
        %v1730 = vlaneseq
        %v1731 = vshrl.u32 %v1730, 7
        %v1732 = vsub.s32 %v1729, %v1731
        %v1733 = vrot.slane %v1719, %v1732
        %v1734 = vcombine.low %v1504, %v1506
        %v1735 = vcombine.high %v1504, %v1506
        %v1737 = vunpack.c.l.s4 1983009808
        %v1738 = vunpack.c.0.s8 %v1737
        %v1739 = vlaneseq
        %v1740 = vshrl.u32 %v1739, 7
        %v1741 = vsub.s32 %v1738, %v1740
        %v1742 = vrot.slane %v1734, %v1741
        %v1744 = vunpack.c.l.s4 1983009808
        %v1745 = vunpack.c.0.s8 %v1744
        %v1746 = vlaneseq
        %v1747 = vshrl.u32 %v1746, 7
        %v1748 = vsub.s32 %v1745, %v1747
        %v1749 = vrot.slane %v1735, %v1748
        %v1750 = vcombine.low %v1726, %v1742
        %v1751 = vcombine.high %v1726, %v1742
        %v1753 = vunpack.c.l.s4 1934713408
        %v1754 = vunpack.c.0.s8 %v1753
        %v1755 = vlaneseq
        %v1756 = vshrl.u32 %v1755, 7
        %v1757 = vsub.s32 %v1754, %v1756
        %v1758 = vrot.slane %v1750, %v1757
        %v1760 = vunpack.c.l.s4 1934713408
        %v1761 = vunpack.c.0.s8 %v1760
        %v1762 = vlaneseq
        %v1763 = vshrl.u32 %v1762, 7
        %v1764 = vsub.s32 %v1761, %v1763
        %v1765 = vrot.slane %v1751, %v1764
        %v1766 = vcombine.low %v1733, %v1749
        %v1767 = vcombine.high %v1733, %v1749
        %v1769 = vunpack.c.l.s4 1934713408
        %v1770 = vunpack.c.0.s8 %v1769
        %v1771 = vlaneseq
        %v1772 = vshrl.u32 %v1771, 7
        %v1773 = vsub.s32 %v1770, %v1772
        %v1774 = vrot.slane %v1766, %v1773
        %v1776 = vunpack.c.l.s4 1934713408
        %v1777 = vunpack.c.0.s8 %v1776
        %v1778 = vlaneseq
        %v1779 = vshrl.u32 %v1778, 7
        %v1780 = vsub.s32 %v1777, %v1779
        %v1781 = vrot.slane %v1767, %v1780
        %v1782 = vcombine.high %v1758, 0.0
        %v1783 = vcombine.high %v1765, 0.0
        %v1784 = vcombine.high %v1774, 0.0
        %v1785 = vcombine.high %v1781, 0.0
        %v1786 = vcombine.low %v1522, %v1529
        %v1788 = vunpack.c.l.s4 1983009808
        %v1789 = vunpack.c.0.s8 %v1788
        %v1790 = vlaneseq
        %v1791 = vshrl.u32 %v1790, 7
        %v1792 = vsub.s32 %v1789, %v1791
        %v1793 = vrot.slane %v1786, %v1792
        %v1794 = vcombine.low %v1530, %v1531
        %v1796 = vunpack.c.l.s4 1983009808
        %v1797 = vunpack.c.0.s8 %v1796
        %v1798 = vlaneseq
        %v1799 = vshrl.u32 %v1798, 7
        %v1800 = vsub.s32 %v1797, %v1799
        %v1801 = vrot.slane %v1794, %v1800
        %v1802 = vcombine.low %v1793, %v1801
        %v1804 = vunpack.c.l.s4 1934713408
        %v1805 = vunpack.c.0.s8 %v1804
        %v1806 = vlaneseq
        %v1807 = vshrl.u32 %v1806, 7
        %v1808 = vsub.s32 %v1805, %v1807
        %v1809 = vrot.slane %v1802, %v1808
        %v1810 = vcombine.low %v1596, %v1598
        %v1811 = vcombine.high %v1596, %v1598
        %v1813 = vunpack.c.l.s4 1983009808
        %v1814 = vunpack.c.0.s8 %v1813
        %v1815 = vlaneseq
        %v1816 = vshrl.u32 %v1815, 7
        %v1817 = vsub.s32 %v1814, %v1816
        %v1818 = vrot.slane %v1810, %v1817
        %v1820 = vunpack.c.l.s4 1983009808
        %v1821 = vunpack.c.0.s8 %v1820
        %v1822 = vlaneseq
        %v1823 = vshrl.u32 %v1822, 7
        %v1824 = vsub.s32 %v1821, %v1823
        %v1825 = vrot.slane %v1811, %v1824
        %v1826 = vcombine.low %v1597, %v1599
        %v1827 = vcombine.high %v1597, %v1599
        %v1829 = vunpack.c.l.s4 1983009808
        %v1830 = vunpack.c.0.s8 %v1829
        %v1831 = vlaneseq
        %v1832 = vshrl.u32 %v1831, 7
        %v1833 = vsub.s32 %v1830, %v1832
        %v1834 = vrot.slane %v1826, %v1833
        %v1836 = vunpack.c.l.s4 1983009808
        %v1837 = vunpack.c.0.s8 %v1836
        %v1838 = vlaneseq
        %v1839 = vshrl.u32 %v1838, 7
        %v1840 = vsub.s32 %v1837, %v1839
        %v1841 = vrot.slane %v1827, %v1840
        %v1842 = vcombine.low %v1818, %v1834
        %v1843 = vcombine.high %v1818, %v1834
        %v1845 = vunpack.c.l.s4 1934713408
        %v1846 = vunpack.c.0.s8 %v1845
        %v1847 = vlaneseq
        %v1848 = vshrl.u32 %v1847, 7
        %v1849 = vsub.s32 %v1846, %v1848
        %v1850 = vrot.slane %v1842, %v1849
        %v1852 = vunpack.c.l.s4 1934713408
        %v1853 = vunpack.c.0.s8 %v1852
        %v1854 = vlaneseq
        %v1855 = vshrl.u32 %v1854, 7
        %v1856 = vsub.s32 %v1853, %v1855
        %v1857 = vrot.slane %v1843, %v1856
        %v1858 = vcombine.low %v1825, %v1841
        %v1859 = vcombine.high %v1825, %v1841
        %v1861 = vunpack.c.l.s4 1934713408
        %v1862 = vunpack.c.0.s8 %v1861
        %v1863 = vlaneseq
        %v1864 = vshrl.u32 %v1863, 7
        %v1865 = vsub.s32 %v1862, %v1864
        %v1866 = vrot.slane %v1858, %v1865
        %v1868 = vunpack.c.l.s4 1934713408
        %v1869 = vunpack.c.0.s8 %v1868
        %v1870 = vlaneseq
        %v1871 = vshrl.u32 %v1870, 7
        %v1872 = vsub.s32 %v1869, %v1871
        %v1873 = vrot.slane %v1859, %v1872
        %v1874 = vcombine.high %v1850, 0.0
        %v1875 = vcombine.high %v1857, 0.0
        %v1876 = vcombine.high %v1866, 0.0
        %v1877 = vcombine.high %v1873, 0.0
        %v1878 = vcombine.low %v1615, %v1622
        %v1880 = vunpack.c.l.s4 1983009808
        %v1881 = vunpack.c.0.s8 %v1880
        %v1882 = vlaneseq
        %v1883 = vshrl.u32 %v1882, 7
        %v1884 = vsub.s32 %v1881, %v1883
        %v1885 = vrot.slane %v1878, %v1884
        %v1886 = vcombine.low %v1623, %v1624
        %v1888 = vunpack.c.l.s4 1983009808
        %v1889 = vunpack.c.0.s8 %v1888
        %v1890 = vlaneseq
        %v1891 = vshrl.u32 %v1890, 7
        %v1892 = vsub.s32 %v1889, %v1891
        %v1893 = vrot.slane %v1886, %v1892
        %v1894 = vcombine.low %v1885, %v1893
        %v1896 = vunpack.c.l.s4 1934713408
        %v1897 = vunpack.c.0.s8 %v1896
        %v1898 = vlaneseq
        %v1899 = vshrl.u32 %v1898, 7
        %v1900 = vsub.s32 %v1897, %v1899
        %v1901 = vrot.slane %v1894, %v1900
        %v1902 = vcombine.low %v1689, %v1691
        %v1903 = vcombine.high %v1689, %v1691
        %v1905 = vunpack.c.l.s4 1983009808
        %v1906 = vunpack.c.0.s8 %v1905
        %v1907 = vlaneseq
        %v1908 = vshrl.u32 %v1907, 7
        %v1909 = vsub.s32 %v1906, %v1908
        %v1910 = vrot.slane %v1902, %v1909
        %v1912 = vunpack.c.l.s4 1983009808
        %v1913 = vunpack.c.0.s8 %v1912
        %v1914 = vlaneseq
        %v1915 = vshrl.u32 %v1914, 7
        %v1916 = vsub.s32 %v1913, %v1915
        %v1917 = vrot.slane %v1903, %v1916
        %v1918 = vcombine.low %v1690, %v1692
        %v1919 = vcombine.high %v1690, %v1692
        %v1921 = vunpack.c.l.s4 1983009808
        %v1922 = vunpack.c.0.s8 %v1921
        %v1923 = vlaneseq
        %v1924 = vshrl.u32 %v1923, 7
        %v1925 = vsub.s32 %v1922, %v1924
        %v1926 = vrot.slane %v1918, %v1925
        %v1928 = vunpack.c.l.s4 1983009808
        %v1929 = vunpack.c.0.s8 %v1928
        %v1930 = vlaneseq
        %v1931 = vshrl.u32 %v1930, 7
        %v1932 = vsub.s32 %v1929, %v1931
        %v1933 = vrot.slane %v1919, %v1932
        %v1934 = vcombine.low %v1910, %v1926
        %v1935 = vcombine.high %v1910, %v1926
        %v1937 = vunpack.c.l.s4 1934713408
        %v1938 = vunpack.c.0.s8 %v1937
        %v1939 = vlaneseq
        %v1940 = vshrl.u32 %v1939, 7
        %v1941 = vsub.s32 %v1938, %v1940
        %v1942 = vrot.slane %v1934, %v1941
        %v1944 = vunpack.c.l.s4 1934713408
        %v1945 = vunpack.c.0.s8 %v1944
        %v1946 = vlaneseq
        %v1947 = vshrl.u32 %v1946, 7
        %v1948 = vsub.s32 %v1945, %v1947
        %v1949 = vrot.slane %v1935, %v1948
        %v1950 = vcombine.low %v1917, %v1933
        %v1951 = vcombine.high %v1917, %v1933
        %v1953 = vunpack.c.l.s4 1934713408
        %v1954 = vunpack.c.0.s8 %v1953
        %v1955 = vlaneseq
        %v1956 = vshrl.u32 %v1955, 7
        %v1957 = vsub.s32 %v1954, %v1956
        %v1958 = vrot.slane %v1950, %v1957
        %v1960 = vunpack.c.l.s4 1934713408
        %v1961 = vunpack.c.0.s8 %v1960
        %v1962 = vlaneseq
        %v1963 = vshrl.u32 %v1962, 7
        %v1964 = vsub.s32 %v1961, %v1963
        %v1965 = vrot.slane %v1951, %v1964
        %v1966 = vcombine.high %v1942, 0.0
        %v1967 = vcombine.high %v1949, 0.0
        %v1968 = vcombine.high %v1958, 0.0
        %v1969 = vcombine.high %v1965, 0.0
        %v1970 = vcombine.low %v1708, %v1715
        %v1972 = vunpack.c.l.s4 1983009808
        %v1973 = vunpack.c.0.s8 %v1972
        %v1974 = vlaneseq
        %v1975 = vshrl.u32 %v1974, 7
        %v1976 = vsub.s32 %v1973, %v1975
        %v1977 = vrot.slane %v1970, %v1976
        %v1978 = vcombine.low %v1716, %v1717
        %v1980 = vunpack.c.l.s4 1983009808
        %v1981 = vunpack.c.0.s8 %v1980
        %v1982 = vlaneseq
        %v1983 = vshrl.u32 %v1982, 7
        %v1984 = vsub.s32 %v1981, %v1983
        %v1985 = vrot.slane %v1978, %v1984
        %v1986 = vcombine.low %v1977, %v1985
        %v1988 = vunpack.c.l.s4 1934713408
        %v1989 = vunpack.c.0.s8 %v1988
        %v1990 = vlaneseq
        %v1991 = vshrl.u32 %v1990, 7
        %v1992 = vsub.s32 %v1989, %v1991
        %v1993 = vrot.slane %v1986, %v1992
        %v1994 = vcombine.low %v1758, %v1765
        %v1996 = vunpack.c.l.s4 1983009808
        %v1997 = vunpack.c.0.s8 %v1996
        %v1998 = vlaneseq
        %v1999 = vshrl.u32 %v1998, 7
        %v2000 = vsub.s32 %v1997, %v1999
        %v2001 = vrot.slane %v1994, %v2000
        %v2002 = vcombine.low %v1782, %v1783
        %v2004 = vunpack.c.l.s4 1983009808
        %v2005 = vunpack.c.0.s8 %v2004
        %v2006 = vlaneseq
        %v2007 = vshrl.u32 %v2006, 7
        %v2008 = vsub.s32 %v2005, %v2007
        %v2009 = vrot.slane %v2002, %v2008
        %v2010 = vcombine.low %v1774, %v1781
        %v2012 = vunpack.c.l.s4 1983009808
        %v2013 = vunpack.c.0.s8 %v2012
        %v2014 = vlaneseq
        %v2015 = vshrl.u32 %v2014, 7
        %v2016 = vsub.s32 %v2013, %v2015
        %v2017 = vrot.slane %v2010, %v2016
        %v2018 = vcombine.low %v1784, %v1785
        %v2020 = vunpack.c.l.s4 1983009808
        %v2021 = vunpack.c.0.s8 %v2020
        %v2022 = vlaneseq
        %v2023 = vshrl.u32 %v2022, 7
        %v2024 = vsub.s32 %v2021, %v2023
        %v2025 = vrot.slane %v2018, %v2024
        %v2026 = vcombine.low %v2001, %v2009
        %v2027 = vcombine.high %v2001, %v2009
        %v2029 = vunpack.c.l.s4 1934713408
        %v2030 = vunpack.c.0.s8 %v2029
        %v2031 = vlaneseq
        %v2032 = vshrl.u32 %v2031, 7
        %v2033 = vsub.s32 %v2030, %v2032
        %v2034 = vrot.slane %v2026, %v2033
        %v2036 = vunpack.c.l.s4 1934713408
        %v2037 = vunpack.c.0.s8 %v2036
        %v2038 = vlaneseq
        %v2039 = vshrl.u32 %v2038, 7
        %v2040 = vsub.s32 %v2037, %v2039
        %v2041 = vrot.slane %v2027, %v2040
        %v2042 = vcombine.low %v2017, %v2025
        %v2043 = vcombine.high %v2017, %v2025
        %v2045 = vunpack.c.l.s4 1934713408
        %v2046 = vunpack.c.0.s8 %v2045
        %v2047 = vlaneseq
        %v2048 = vshrl.u32 %v2047, 7
        %v2049 = vsub.s32 %v2046, %v2048
        %v2050 = vrot.slane %v2042, %v2049
        %v2052 = vunpack.c.l.s4 1934713408
        %v2053 = vunpack.c.0.s8 %v2052
        %v2054 = vlaneseq
        %v2055 = vshrl.u32 %v2054, 7
        %v2056 = vsub.s32 %v2053, %v2055
        %v2057 = vrot.slane %v2043, %v2056
        %v2058 = vcombine.low %v2034, %v2050
        %v2059 = vcombine.high %v2034, %v2050
        %v2060 = vcombine.low %v2041, %v2057
        %v2061 = vcombine.high %v2041, %v2057
        %v2062 = vcombine.low %v1850, %v1857
        %v2064 = vunpack.c.l.s4 1983009808
        %v2065 = vunpack.c.0.s8 %v2064
        %v2066 = vlaneseq
        %v2067 = vshrl.u32 %v2066, 7
        %v2068 = vsub.s32 %v2065, %v2067
        %v2069 = vrot.slane %v2062, %v2068
        %v2070 = vcombine.low %v1874, %v1875
        %v2072 = vunpack.c.l.s4 1983009808
        %v2073 = vunpack.c.0.s8 %v2072
        %v2074 = vlaneseq
        %v2075 = vshrl.u32 %v2074, 7
        %v2076 = vsub.s32 %v2073, %v2075
        %v2077 = vrot.slane %v2070, %v2076
        %v2078 = vcombine.low %v1866, %v1873
        %v2080 = vunpack.c.l.s4 1983009808
        %v2081 = vunpack.c.0.s8 %v2080
        %v2082 = vlaneseq
        %v2083 = vshrl.u32 %v2082, 7
        %v2084 = vsub.s32 %v2081, %v2083
        %v2085 = vrot.slane %v2078, %v2084
        %v2086 = vcombine.low %v1876, %v1877
        %v2088 = vunpack.c.l.s4 1983009808
        %v2089 = vunpack.c.0.s8 %v2088
        %v2090 = vlaneseq
        %v2091 = vshrl.u32 %v2090, 7
        %v2092 = vsub.s32 %v2089, %v2091
        %v2093 = vrot.slane %v2086, %v2092
        %v2094 = vcombine.low %v2069, %v2077
        %v2095 = vcombine.high %v2069, %v2077
        %v2097 = vunpack.c.l.s4 1934713408
        %v2098 = vunpack.c.0.s8 %v2097
        %v2099 = vlaneseq
        %v2100 = vshrl.u32 %v2099, 7
        %v2101 = vsub.s32 %v2098, %v2100
        %v2102 = vrot.slane %v2094, %v2101
        %v2104 = vunpack.c.l.s4 1934713408
        %v2105 = vunpack.c.0.s8 %v2104
        %v2106 = vlaneseq
        %v2107 = vshrl.u32 %v2106, 7
        %v2108 = vsub.s32 %v2105, %v2107
        %v2109 = vrot.slane %v2095, %v2108
        %v2110 = vcombine.low %v2085, %v2093
        %v2111 = vcombine.high %v2085, %v2093
        %v2113 = vunpack.c.l.s4 1934713408
        %v2114 = vunpack.c.0.s8 %v2113
        %v2115 = vlaneseq
        %v2116 = vshrl.u32 %v2115, 7
        %v2117 = vsub.s32 %v2114, %v2116
        %v2118 = vrot.slane %v2110, %v2117
        %v2120 = vunpack.c.l.s4 1934713408
        %v2121 = vunpack.c.0.s8 %v2120
        %v2122 = vlaneseq
        %v2123 = vshrl.u32 %v2122, 7
        %v2124 = vsub.s32 %v2121, %v2123
        %v2125 = vrot.slane %v2111, %v2124
        %v2126 = vcombine.low %v2102, %v2118
        %v2127 = vcombine.high %v2102, %v2118
        %v2128 = vcombine.low %v2109, %v2125
        %v2129 = vcombine.high %v2109, %v2125
        %v2130 = vcombine.low %v1942, %v1949
        %v2132 = vunpack.c.l.s4 1983009808
        %v2133 = vunpack.c.0.s8 %v2132
        %v2134 = vlaneseq
        %v2135 = vshrl.u32 %v2134, 7
        %v2136 = vsub.s32 %v2133, %v2135
        %v2137 = vrot.slane %v2130, %v2136
        %v2138 = vcombine.low %v1966, %v1967
        %v2140 = vunpack.c.l.s4 1983009808
        %v2141 = vunpack.c.0.s8 %v2140
        %v2142 = vlaneseq
        %v2143 = vshrl.u32 %v2142, 7
        %v2144 = vsub.s32 %v2141, %v2143
        %v2145 = vrot.slane %v2138, %v2144
        %v2146 = vcombine.low %v1958, %v1965
        %v2148 = vunpack.c.l.s4 1983009808
        %v2149 = vunpack.c.0.s8 %v2148
        %v2150 = vlaneseq
        %v2151 = vshrl.u32 %v2150, 7
        %v2152 = vsub.s32 %v2149, %v2151
        %v2153 = vrot.slane %v2146, %v2152
        %v2154 = vcombine.low %v1968, %v1969
        %v2156 = vunpack.c.l.s4 1983009808
        %v2157 = vunpack.c.0.s8 %v2156
        %v2158 = vlaneseq
        %v2159 = vshrl.u32 %v2158, 7
        %v2160 = vsub.s32 %v2157, %v2159
        %v2161 = vrot.slane %v2154, %v2160
        %v2162 = vcombine.low %v2137, %v2145
        %v2163 = vcombine.high %v2137, %v2145
        %v2165 = vunpack.c.l.s4 1934713408
        %v2166 = vunpack.c.0.s8 %v2165
        %v2167 = vlaneseq
        %v2168 = vshrl.u32 %v2167, 7
        %v2169 = vsub.s32 %v2166, %v2168
        %v2170 = vrot.slane %v2162, %v2169
        %v2172 = vunpack.c.l.s4 1934713408
        %v2173 = vunpack.c.0.s8 %v2172
        %v2174 = vlaneseq
        %v2175 = vshrl.u32 %v2174, 7
        %v2176 = vsub.s32 %v2173, %v2175
        %v2177 = vrot.slane %v2163, %v2176
        %v2178 = vcombine.low %v2153, %v2161
        %v2179 = vcombine.high %v2153, %v2161
        %v2181 = vunpack.c.l.s4 1934713408
        %v2182 = vunpack.c.0.s8 %v2181
        %v2183 = vlaneseq
        %v2184 = vshrl.u32 %v2183, 7
        %v2185 = vsub.s32 %v2182, %v2184
        %v2186 = vrot.slane %v2178, %v2185
        %v2188 = vunpack.c.l.s4 1934713408
        %v2189 = vunpack.c.0.s8 %v2188
        %v2190 = vlaneseq
        %v2191 = vshrl.u32 %v2190, 7
        %v2192 = vsub.s32 %v2189, %v2191
        %v2193 = vrot.slane %v2179, %v2192
        %v2194 = vcombine.low %v2170, %v2186
        %v2195 = vcombine.high %v2170, %v2186
        %v2196 = vcombine.low %v2177, %v2193
        %v2197 = vcombine.high %v2177, %v2193
        %2201 = vrot.lane.b32.xlu0 %v2059, 4
        %v2202 = vpop.permute.xlu0 %2201
        %2203 = vrot.lane.b32.xlu0 %v2127, 4
        %v2204 = vpop.permute.xlu0 %2203
        %2205 = vrot.lane.b32.xlu0 %v2195, 4
        %v2206 = vpop.permute.xlu0 %2205
        %2213 = vrot.lane.b32.xlu0 %v2060, 8
        %v2214 = vpop.permute.xlu0 %2213
        %2215 = vrot.lane.b32.xlu0 %v2128, 8
        %v2216 = vpop.permute.xlu0 %2215
        %2217 = vrot.lane.b32.xlu0 %v2196, 8
        %v2218 = vpop.permute.xlu0 %2217
        %2225 = vrot.lane.b32.xlu0 %v2061, 12
        %v2226 = vpop.permute.xlu0 %2225
        %2227 = vrot.lane.b32.xlu0 %v2129, 12
        %v2228 = vpop.permute.xlu0 %2227
        %2229 = vrot.lane.b32.xlu0 %v2197, 12
        %v2230 = vpop.permute.xlu0 %2229
        %vm2234 = vcmask 31744
        %v2235 = vsel %vm2234, %v2058, %v2202
        %v2236 = vsel %vm2234, %v2126, %v2204
        %v2237 = vsel %vm2234, %v2194, %v2206
        %vm2238 = vcmask 64512
        %v2239 = vsel %vm2238, %v2235, %v2214
        %v2240 = vsel %vm2238, %v2236, %v2216
        %v2241 = vsel %vm2238, %v2237, %v2218
        %vm2242 = vcmask 97280
        %v2243 = vsel %vm2242, %v2239, %v2226
        %v2244 = vsel %vm2242, %v2240, %v2228
        %v2245 = vsel %vm2242, %v2241, %v2230
        %v2246 = vcombine.low %v1765, %v1774
        %v2248 = vunpack.c.l.s4 1983009808
        %v2249 = vunpack.c.0.s8 %v2248
        %v2250 = vlaneseq
        %v2251 = vshrl.u32 %v2250, 7
        %v2252 = vsub.s32 %v2249, %v2251
        %v2253 = vrot.slane %v2246, %v2252
        %v2254 = vcombine.low %v1781, %v1809
        %v2256 = vunpack.c.l.s4 1983009808
        %v2257 = vunpack.c.0.s8 %v2256
        %v2258 = vlaneseq
        %v2259 = vshrl.u32 %v2258, 7
        %v2260 = vsub.s32 %v2257, %v2259
        %v2261 = vrot.slane %v2254, %v2260
        %v2262 = vcombine.low %v2009, %v2253
        %v2263 = vcombine.high %v2009, %v2253
        %v2265 = vunpack.c.l.s4 1934713408
        %v2266 = vunpack.c.0.s8 %v2265
        %v2267 = vlaneseq
        %v2268 = vshrl.u32 %v2267, 7
        %v2269 = vsub.s32 %v2266, %v2268
        %v2270 = vrot.slane %v2262, %v2269
        %v2272 = vunpack.c.l.s4 1934713408
        %v2273 = vunpack.c.0.s8 %v2272
        %v2274 = vlaneseq
        %v2275 = vshrl.u32 %v2274, 7
        %v2276 = vsub.s32 %v2273, %v2275
        %v2277 = vrot.slane %v2263, %v2276
        %v2278 = vcombine.low %v2025, %v2261
        %v2279 = vcombine.high %v2025, %v2261
        %v2281 = vunpack.c.l.s4 1934713408
        %v2282 = vunpack.c.0.s8 %v2281
        %v2283 = vlaneseq
        %v2284 = vshrl.u32 %v2283, 7
        %v2285 = vsub.s32 %v2282, %v2284
        %v2286 = vrot.slane %v2278, %v2285
        %v2288 = vunpack.c.l.s4 1934713408
        %v2289 = vunpack.c.0.s8 %v2288
        %v2290 = vlaneseq
        %v2291 = vshrl.u32 %v2290, 7
        %v2292 = vsub.s32 %v2289, %v2291
        %v2293 = vrot.slane %v2279, %v2292
        %v2294 = vcombine.low %v2270, %v2286
        %v2295 = vcombine.high %v2270, %v2286
        %v2296 = vcombine.low %v2277, %v2293
        %v2297 = vcombine.high %v2277, %v2293
        %v2298 = vcombine.low %v1857, %v1866
        %v2300 = vunpack.c.l.s4 1983009808
        %v2301 = vunpack.c.0.s8 %v2300
        %v2302 = vlaneseq
        %v2303 = vshrl.u32 %v2302, 7
        %v2304 = vsub.s32 %v2301, %v2303
        %v2305 = vrot.slane %v2298, %v2304
        %v2306 = vcombine.low %v1873, %v1901
        %v2308 = vunpack.c.l.s4 1983009808
        %v2309 = vunpack.c.0.s8 %v2308
        %v2310 = vlaneseq
        %v2311 = vshrl.u32 %v2310, 7
        %v2312 = vsub.s32 %v2309, %v2311
        %v2313 = vrot.slane %v2306, %v2312
        %v2314 = vcombine.low %v2077, %v2305
        %v2315 = vcombine.high %v2077, %v2305
        %v2317 = vunpack.c.l.s4 1934713408
        %v2318 = vunpack.c.0.s8 %v2317
        %v2319 = vlaneseq
        %v2320 = vshrl.u32 %v2319, 7
        %v2321 = vsub.s32 %v2318, %v2320
        %v2322 = vrot.slane %v2314, %v2321
        %v2324 = vunpack.c.l.s4 1934713408
        %v2325 = vunpack.c.0.s8 %v2324
        %v2326 = vlaneseq
        %v2327 = vshrl.u32 %v2326, 7
        %v2328 = vsub.s32 %v2325, %v2327
        %v2329 = vrot.slane %v2315, %v2328
        %v2330 = vcombine.low %v2093, %v2313
        %v2331 = vcombine.high %v2093, %v2313
        %v2333 = vunpack.c.l.s4 1934713408
        %v2334 = vunpack.c.0.s8 %v2333
        %v2335 = vlaneseq
        %v2336 = vshrl.u32 %v2335, 7
        %v2337 = vsub.s32 %v2334, %v2336
        %v2338 = vrot.slane %v2330, %v2337
        %v2340 = vunpack.c.l.s4 1934713408
        %v2341 = vunpack.c.0.s8 %v2340
        %v2342 = vlaneseq
        %v2343 = vshrl.u32 %v2342, 7
        %v2344 = vsub.s32 %v2341, %v2343
        %v2345 = vrot.slane %v2331, %v2344
        %v2346 = vcombine.low %v2322, %v2338
        %v2347 = vcombine.high %v2322, %v2338
        %v2348 = vcombine.low %v2329, %v2345
        %v2349 = vcombine.high %v2329, %v2345
        %v2350 = vcombine.low %v1949, %v1958
        %v2352 = vunpack.c.l.s4 1983009808
        %v2353 = vunpack.c.0.s8 %v2352
        %v2354 = vlaneseq
        %v2355 = vshrl.u32 %v2354, 7
        %v2356 = vsub.s32 %v2353, %v2355
        %v2357 = vrot.slane %v2350, %v2356
        %v2358 = vcombine.low %v1965, %v1993
        %v2360 = vunpack.c.l.s4 1983009808
        %v2361 = vunpack.c.0.s8 %v2360
        %v2362 = vlaneseq
        %v2363 = vshrl.u32 %v2362, 7
        %v2364 = vsub.s32 %v2361, %v2363
        %v2365 = vrot.slane %v2358, %v2364
        %v2366 = vcombine.low %v2145, %v2357
        %v2367 = vcombine.high %v2145, %v2357
        %v2369 = vunpack.c.l.s4 1934713408
        %v2370 = vunpack.c.0.s8 %v2369
        %v2371 = vlaneseq
        %v2372 = vshrl.u32 %v2371, 7
        %v2373 = vsub.s32 %v2370, %v2372
        %v2374 = vrot.slane %v2366, %v2373
        %v2376 = vunpack.c.l.s4 1934713408
        %v2377 = vunpack.c.0.s8 %v2376
        %v2378 = vlaneseq
        %v2379 = vshrl.u32 %v2378, 7
        %v2380 = vsub.s32 %v2377, %v2379
        %v2381 = vrot.slane %v2367, %v2380
        %v2382 = vcombine.low %v2161, %v2365
        %v2383 = vcombine.high %v2161, %v2365
        %v2385 = vunpack.c.l.s4 1934713408
        %v2386 = vunpack.c.0.s8 %v2385
        %v2387 = vlaneseq
        %v2388 = vshrl.u32 %v2387, 7
        %v2389 = vsub.s32 %v2386, %v2388
        %v2390 = vrot.slane %v2382, %v2389
        %v2392 = vunpack.c.l.s4 1934713408
        %v2393 = vunpack.c.0.s8 %v2392
        %v2394 = vlaneseq
        %v2395 = vshrl.u32 %v2394, 7
        %v2396 = vsub.s32 %v2393, %v2395
        %v2397 = vrot.slane %v2383, %v2396
        %v2398 = vcombine.low %v2374, %v2390
        %v2399 = vcombine.high %v2374, %v2390
        %v2400 = vcombine.low %v2381, %v2397
        %v2401 = vcombine.high %v2381, %v2397
        %2405 = vrot.lane.b32.xlu0 %v2295, 4
        %v2406 = vpop.permute.xlu0 %2405
        %2407 = vrot.lane.b32.xlu0 %v2347, 4
        %v2408 = vpop.permute.xlu0 %2407
        %2409 = vrot.lane.b32.xlu0 %v2399, 4
        %v2410 = vpop.permute.xlu0 %2409
        %2417 = vrot.lane.b32.xlu0 %v2296, 8
        %v2418 = vpop.permute.xlu0 %2417
        %2419 = vrot.lane.b32.xlu0 %v2348, 8
        %v2420 = vpop.permute.xlu0 %2419
        %2421 = vrot.lane.b32.xlu0 %v2400, 8
        %v2422 = vpop.permute.xlu0 %2421
        %2429 = vrot.lane.b32.xlu0 %v2297, 12
        %v2430 = vpop.permute.xlu0 %2429
        %2431 = vrot.lane.b32.xlu0 %v2349, 12
        %v2432 = vpop.permute.xlu0 %2431
        %2433 = vrot.lane.b32.xlu0 %v2401, 12
        %v2434 = vpop.permute.xlu0 %2433
        %v2438 = vsel %vm2234, %v2294, %v2406
        %v2439 = vsel %vm2234, %v2346, %v2408
        %v2440 = vsel %vm2234, %v2398, %v2410
        %v2441 = vsel %vm2238, %v2438, %v2418
        %v2442 = vsel %vm2238, %v2439, %v2420
        %v2443 = vsel %vm2238, %v2440, %v2422
        %v2444 = vsel %vm2242, %v2441, %v2430
        %v2445 = vsel %vm2242, %v2442, %v2432
        %v2446 = vsel %vm2242, %v2443, %v2434
        %v2447 = vld [vmem:[#allocation2] sm:$0xff]
        %v2448 = vld [vmem:[#allocation2 + $0x8] sm:$0xff]
        %v2449 = vld [vmem:[#allocation5] sm:$0xff]
        %v2450 = vld [vmem:[#allocation5 + $0x8] sm:$0xff]
        %vm2451 = vcmask 130048
        %v2453 = vsel %vm2451, %v2444, 0
        %v2456 = vsel %vm2451, %v2445, 0
        %v2459 = vsel %vm2451, %v2446, 0
        %2461 = vmatprep.subr.mxu0 0.0
        %2462 = vmatpush1.msra.mxu0 %v2449
        %2463 = vmatprep.subr.mxu0 0.0
        %2464 = vmatpush1.msra.mxu0 %v2450
        %2465 = vmatprep.subr.mxu0 0.0
        %2466 = vmatpush1.msra.mxu0 0.0
        %2467 = vmatprep.subr.mxu0 0.0
        %2468 = vmatpush1.msra.mxu0 0.0
        %2469 = vmatprep.subr.mxu0 0.0
        %2470 = vmatpush1.msra.mxu0 0.0
        %2471 = vmatprep.subr.mxu0 0.0
        %2472 = vmatpush1.msra.mxu0 0.0
        %2473 = vmatprep.subr.mxu0 0.0
        %2474 = vmatpush1.msra.mxu0 0.0
        %2475 = vmatprep.subr.mxu0 0.0
        %2476 = vmatpush1.msra.mxu0 0.0
        %2477 = vmatprep.subr.mxu0 0.0
        %2478 = vmatpush1.msra.mxu0 0.0
        %2479 = vmatprep.subr.mxu0 0.0
        %2480 = vmatpush1.msra.mxu0 0.0
        %2481 = vmatprep.subr.mxu0 0.0
        %2482 = vmatpush1.msra.mxu0 0.0
        %2483 = vmatprep.subr.mxu0 0.0
        %2484 = vmatpush1.msra.mxu0 0.0
        %2485 = vmatprep.subr.mxu0 0.0
        %2486 = vmatpush1.msra.mxu0 0.0
        %2487 = vmatprep.subr.mxu0 0.0
        %2488 = vmatpush1.msra.mxu0 0.0
        %2489 = vmatprep.subr.mxu0 0.0
        %2490 = vmatpush1.msra.mxu0 0.0
        %2491 = vmatprep.subr.mxu0 0.0
        %2492 = vmatpush1.msra.mxu0 0.0
        %2493 = vmatprep.subr.mxu0 0.0
        %2494 = vmatpush1.msra.mxu0 0.0
        %2495 = vmatprep.subr.mxu0 0.0
        %2496 = vmatpush1.msra.mxu0 0.0
        %2497 = vmatprep.subr.mxu0 0.0
        %2498 = vmatpush1.msra.mxu0 0.0
        %2499 = vmatprep.subr.mxu0 0.0
        %2500 = vmatpush1.msra.mxu0 0.0
        %2501 = vmatprep.subr.mxu0 0.0
        %2502 = vmatpush1.msra.mxu0 0.0
        %2503 = vmatprep.subr.mxu0 0.0
        %2504 = vmatpush1.msra.mxu0 0.0
        %2505 = vmatprep.subr.mxu0 0.0
        %2506 = vmatpush1.msra.mxu0 0.0
        %2507 = vmatprep.subr.mxu0 0.0
        %2508 = vmatpush1.msra.mxu0 0.0
        %2509 = vmatprep.subr.mxu0 0.0
        %2510 = vmatpush1.msra.mxu0 0.0
        %2511 = vmatprep.subr.mxu0 0.0
        %2512 = vmatpush1.msra.mxu0 0.0
        %2513 = vmatprep.subr.mxu0 0.0
        %2514 = vmatpush1.msra.mxu0 0.0
        %2515 = vmatprep.subr.mxu0 0.0
        %2516 = vmatpush1.msra.mxu0 0.0
        %2517 = vmatprep.subr.mxu0 0.0
        %2518 = vmatpush1.msra.mxu0 0.0
        %2519 = vmatprep.subr.mxu0 0.0
        %2520 = vmatpush1.msra.mxu0 0.0
        %2521 = vmatprep.subr.mxu0 0.0
        %2522 = vmatpush1.msra.mxu0 0.0
        %2523 = vmatprep.subr.mxu0 0.0
        %2524 = vmatpush1.msra.mxu0 0.0
        %2525 = vmatprep.mubr.f32.mxu0 0.0
        %2526 = vmatmul.mubr.f32.gmra.mrb[0].mxu0 %v2453
        %v2527 = vpop.f32.mrb[0].mxu0
        %v2528 = vadd.f32 0.0, %v2527
        %v2529 = vpop.f32.mrb[0].mxu0
        %2530 = vmatprep.mubr.f32.mxu0 0.0
        %2531 = vmatmul.mubr.f32.gmra.mrb[0].mxu0 %v2456
        %v2532 = vpop.f32.mrb[0].mxu0
        %v2533 = vadd.f32 0.0, %v2532
        %v2534 = vpop.f32.mrb[0].mxu0
        %2535 = vmatprep.mubr.f32.mxu0 0.0
        %2536 = vmatmul.mubr.f32.gmra.mrb[0].mxu0 %v2459
        %v2537 = vpop.f32.mrb[0].mxu0
        %v2538 = vadd.f32 0.0, %v2537
        %v2539 = vpop.f32.mrb[0].mxu0
        %2540 = vdwg.mxu0
        %v2542 = vsel %vm2451, %v2243, 0
        %v2545 = vsel %vm2451, %v2244, 0
        %v2548 = vsel %vm2451, %v2245, 0
        %2550 = vmatprep.subr.mxu0 0.0
        %2551 = vmatpush1.msra.mxu0 %v2447
        %2552 = vmatprep.subr.mxu0 0.0
        %2553 = vmatpush1.msra.mxu0 %v2448
        %2554 = vmatprep.subr.mxu0 0.0
        %2555 = vmatpush1.msra.mxu0 0.0
        %2556 = vmatprep.subr.mxu0 0.0
        %2557 = vmatpush1.msra.mxu0 0.0
        %2558 = vmatprep.subr.mxu0 0.0
        %2559 = vmatpush1.msra.mxu0 0.0
        %2560 = vmatprep.subr.mxu0 0.0
        %2561 = vmatpush1.msra.mxu0 0.0
        %2562 = vmatprep.subr.mxu0 0.0
        %2563 = vmatpush1.msra.mxu0 0.0
        %2564 = vmatprep.subr.mxu0 0.0
        %2565 = vmatpush1.msra.mxu0 0.0
        %2566 = vmatprep.subr.mxu0 0.0
        %2567 = vmatpush1.msra.mxu0 0.0
        %2568 = vmatprep.subr.mxu0 0.0
        %2569 = vmatpush1.msra.mxu0 0.0
        %2570 = vmatprep.subr.mxu0 0.0
        %2571 = vmatpush1.msra.mxu0 0.0
        %2572 = vmatprep.subr.mxu0 0.0
        %2573 = vmatpush1.msra.mxu0 0.0
        %2574 = vmatprep.subr.mxu0 0.0
        %2575 = vmatpush1.msra.mxu0 0.0
        %2576 = vmatprep.subr.mxu0 0.0
        %2577 = vmatpush1.msra.mxu0 0.0
        %2578 = vmatprep.subr.mxu0 0.0
        %2579 = vmatpush1.msra.mxu0 0.0
        %2580 = vmatprep.subr.mxu0 0.0
        %2581 = vmatpush1.msra.mxu0 0.0
        %2582 = vmatprep.subr.mxu0 0.0
        %2583 = vmatpush1.msra.mxu0 0.0
        %2584 = vmatprep.subr.mxu0 0.0
        %2585 = vmatpush1.msra.mxu0 0.0
        %2586 = vmatprep.subr.mxu0 0.0
        %2587 = vmatpush1.msra.mxu0 0.0
        %2588 = vmatprep.subr.mxu0 0.0
        %2589 = vmatpush1.msra.mxu0 0.0
        %2590 = vmatprep.subr.mxu0 0.0
        %2591 = vmatpush1.msra.mxu0 0.0
        %2592 = vmatprep.subr.mxu0 0.0
        %2593 = vmatpush1.msra.mxu0 0.0
        %2594 = vmatprep.subr.mxu0 0.0
        %2595 = vmatpush1.msra.mxu0 0.0
        %2596 = vmatprep.subr.mxu0 0.0
        %2597 = vmatpush1.msra.mxu0 0.0
        %2598 = vmatprep.subr.mxu0 0.0
        %2599 = vmatpush1.msra.mxu0 0.0
        %2600 = vmatprep.subr.mxu0 0.0
        %2601 = vmatpush1.msra.mxu0 0.0
        %2602 = vmatprep.subr.mxu0 0.0
        %2603 = vmatpush1.msra.mxu0 0.0
        %2604 = vmatprep.subr.mxu0 0.0
        %2605 = vmatpush1.msra.mxu0 0.0
        %2606 = vmatprep.subr.mxu0 0.0
        %2607 = vmatpush1.msra.mxu0 0.0
        %2608 = vmatprep.subr.mxu0 0.0
        %2609 = vmatpush1.msra.mxu0 0.0
        %2610 = vmatprep.subr.mxu0 0.0
        %2611 = vmatpush1.msra.mxu0 0.0
        %2612 = vmatprep.subr.mxu0 0.0
        %2613 = vmatpush1.msra.mxu0 0.0
        %2614 = vmatprep.mubr.f32.mxu0 0.0
        %2615 = vmatmul.mubr.f32.gmra.mrb[0].mxu0 %v2542
        %v2616 = vpop.f32.mrb[0].mxu0
        %v2617 = vadd.f32 %v2528, %v2616
        %v2618 = vpop.f32.mrb[0].mxu0
        %2619 = vmatprep.mubr.f32.mxu0 0.0
        %2620 = vmatmul.mubr.f32.gmra.mrb[0].mxu0 %v2545
        %v2621 = vpop.f32.mrb[0].mxu0
        %v2622 = vadd.f32 %v2533, %v2621
        %v2623 = vpop.f32.mrb[0].mxu0
        %2624 = vmatprep.mubr.f32.mxu0 0.0
        %2625 = vmatmul.mubr.f32.gmra.mrb[0].mxu0 %v2548
        %v2626 = vpop.f32.mrb[0].mxu0
        %v2627 = vadd.f32 %v2538, %v2626
        %v2628 = vpop.f32.mrb[0].mxu0
        %2629 = vdwg.mxu0
        %v2630 = vld [vmem:[#allocation7] sm:$0x1]
        %v2632 = vlaneseq
        %v2633 = vshrl.u32 %v2632, 7
        %v2634 = vsub.s32 0, %v2633
        %v2635 = vrot.slane %v2630, %v2634
        %v2637 = vadd.f32 %v2617, %v2635
        %v2638 = vadd.f32 %v2622, %v2635
        %v2639 = vadd.f32 %v2627, %v2635
        %v2640 = vld [vmem:[%s9] sm:$0x1f]
        %v2641 = vld [vmem:[#allocation8] sm:$0x1]
        %v2645 = vrot.slane %v2637, 6
        %v2646 = vrot.slane %v2638, 6
        %v2647 = vrot.slane %v2639, 6
        %vm2651 = vcmask 1041408
        %v2652 = vsel %vm2651, 0.0, %v2645
        %v2653 = vsel %vm2651, 0.0, %v2646
        %v2654 = vsel %vm2651, 0.0, %v2647
        %v2655 = vsel %vm2651, %v2645, 0.0
        %v2656 = vsel %vm2651, %v2646, 0.0
        %v2657 = vsel %vm2651, %v2647, 0.0
        %v2659 = vlaneseq
        %v2660 = vshrl.u32 %v2659, 7
        %v2661 = vsub.s32 0, %v2660
        %v2662 = vrot.slane %v2641, %v2661
        %v2664 = vlaneseq
        %v2665 = vshrl.u32 %v2664, 7
        %v2666 = vsub.s32 0, %v2665
        %v2667 = vrot.slane %v2640, %v2666
        %v2668 = vmul.f32 %v2667, %v2652
        %v2669 = vmul.f32 %v2667, %v2653
        %v2670 = vmul.f32 %v2667, %v2654
        %v2671 = vadd.f32 %v2662, %v2668
        %v2672 = vadd.f32 %v2662, %v2669
        %v2673 = vadd.f32 %v2662, %v2670
        %v2674 = vlaneseq
        %v2675 = vshrl.u32 %v2674, 7
        %v2676 = vsub.s32 1, %v2675
        %v2677 = vrot.slane %v2640, %v2676
        %v2678 = vmul.f32 %v2677, %v2652
        %v2679 = vmul.f32 %v2677, %v2655
        %v2680 = vmul.f32 %v2677, %v2653
        %v2681 = vmul.f32 %v2677, %v2656
        %v2682 = vmul.f32 %v2677, %v2654
        %v2683 = vmul.f32 %v2677, %v2657
        %vm2690 = vcmask 1046528
        %v2691 = vrot.slane %v2678, 1
        %v2692 = vrot.slane %v2679, 1
        %v2693 = vsel %vm2690, %v2691, %v2692
        %v2694 = vrot.slane %v2680, 1
        %v2695 = vrot.slane %v2681, 1
        %v2696 = vsel %vm2690, %v2694, %v2695
        %v2697 = vrot.slane %v2682, 1
        %v2698 = vrot.slane %v2683, 1
        %v2699 = vsel %vm2690, %v2697, %v2698
        %v2703 = vadd.f32 %v2671, %v2693
        %v2704 = vadd.f32 %v2672, %v2696
        %v2705 = vadd.f32 %v2673, %v2699
        %v2706 = vlaneseq
        %v2707 = vshrl.u32 %v2706, 7
        %v2708 = vsub.s32 2, %v2707
        %v2709 = vrot.slane %v2640, %v2708
        %v2710 = vmul.f32 %v2709, %v2652
        %v2711 = vmul.f32 %v2709, %v2655
        %v2712 = vmul.f32 %v2709, %v2653
        %v2713 = vmul.f32 %v2709, %v2656
        %v2714 = vmul.f32 %v2709, %v2654
        %v2715 = vmul.f32 %v2709, %v2657
        %vm2722 = vcmask 1045504
        %v2723 = vrot.slane %v2710, 2
        %v2724 = vrot.slane %v2711, 2
        %v2725 = vsel %vm2722, %v2723, %v2724
        %v2726 = vrot.slane %v2712, 2
        %v2727 = vrot.slane %v2713, 2
        %v2728 = vsel %vm2722, %v2726, %v2727
        %v2729 = vrot.slane %v2714, 2
        %v2730 = vrot.slane %v2715, 2
        %v2731 = vsel %vm2722, %v2729, %v2730
        %v2735 = vadd.f32 %v2703, %v2725
        %v2736 = vadd.f32 %v2704, %v2728
        %v2737 = vadd.f32 %v2705, %v2731
        %v2738 = vlaneseq
        %v2739 = vshrl.u32 %v2738, 7
        %v2740 = vsub.s32 3, %v2739
        %v2741 = vrot.slane %v2640, %v2740
        %v2742 = vmul.f32 %v2741, %v2652
        %v2743 = vmul.f32 %v2741, %v2655
        %v2744 = vmul.f32 %v2741, %v2653
        %v2745 = vmul.f32 %v2741, %v2656
        %v2746 = vmul.f32 %v2741, %v2654
        %v2747 = vmul.f32 %v2741, %v2657
        %vm2754 = vcmask 1044480
        %v2755 = vrot.slane %v2742, 3
        %v2756 = vrot.slane %v2743, 3
        %v2757 = vsel %vm2754, %v2755, %v2756
        %v2758 = vrot.slane %v2744, 3
        %v2759 = vrot.slane %v2745, 3
        %v2760 = vsel %vm2754, %v2758, %v2759
        %v2761 = vrot.slane %v2746, 3
        %v2762 = vrot.slane %v2747, 3
        %v2763 = vsel %vm2754, %v2761, %v2762
        %v2767 = vadd.f32 %v2735, %v2757
        %v2768 = vadd.f32 %v2736, %v2760
        %v2769 = vadd.f32 %v2737, %v2763
        %v2770 = vlaneseq
        %v2771 = vshrl.u32 %v2770, 7
        %v2772 = vsub.s32 4, %v2771
        %v2773 = vrot.slane %v2640, %v2772
        %v2774 = vmul.f32 %v2773, %v2652
        %v2775 = vmul.f32 %v2773, %v2655
        %v2776 = vmul.f32 %v2773, %v2653
        %v2777 = vmul.f32 %v2773, %v2656
        %v2778 = vmul.f32 %v2773, %v2654
        %v2779 = vmul.f32 %v2773, %v2657
        %vm2786 = vcmask 1043456
        %v2787 = vrot.slane %v2774, 4
        %v2788 = vrot.slane %v2775, 4
        %v2789 = vsel %vm2786, %v2787, %v2788
        %v2790 = vrot.slane %v2776, 4
        %v2791 = vrot.slane %v2777, 4
        %v2792 = vsel %vm2786, %v2790, %v2791
        %v2793 = vrot.slane %v2778, 4
        %v2794 = vrot.slane %v2779, 4
        %v2795 = vsel %vm2786, %v2793, %v2794
        %v2799 = vadd.f32 %v2767, %v2789
        %v2800 = vadd.f32 %v2768, %v2792
        %v2801 = vadd.f32 %v2769, %v2795
        %v2802 = vadd.f32 %v2799, %v2637
        %v2803 = vadd.f32 %v2800, %v2638
        %v2804 = vadd.f32 %v2801, %v2639
        %v2805 = vpack.c.bf16 %v2803, %v2802
        %v2806 = vpack.c.bf16 %v2804, %v2804
        %v2807 = vld [vmem:[%s13] sm:$0xf]
        %v2808 = vld [vmem:[%s13 + $0x4] sm:$0xf]
        %v2809 = vld [vmem:[%s13 + $0x8] sm:$0xf]
        %v2810 = vld [vmem:[%s13 + $0xc] sm:$0xf]
        %v2811 = vld [vmem:[%s13 + $0x10] sm:$0xf]
        %v2812 = vld [vmem:[%s13 + $0x14] sm:$0xf]
        %v2813 = vld [vmem:[%s13 + $0x18] sm:$0xf]
        %v2814 = vld [vmem:[%s13 + $0x1c] sm:$0xf]
        %v2815 = vld [vmem:[#allocation10] sm:$0x1]
        %v2817 = vlaneseq
        %v2818 = vshrl.u32 %v2817, 7
        %v2819 = vsub.s32 0, %v2818
        %v2820 = vrot.slane %v2815, %v2819
        %v2830 = vunpack.c.l.b16 %v2807
        %v2831 = vunpack.c.l.b16 %v2808
        %v2832 = vunpack.c.l.b16 %v2809
        %v2833 = vunpack.c.l.b16 %v2810
        %v2834 = vunpack.c.l.b16 %v2811
        %v2835 = vunpack.c.l.b16 %v2812
        %v2836 = vunpack.c.l.b16 %v2813
        %v2837 = vunpack.c.l.b16 %v2814
        %v2838 = vpack.c.b16 %v2831, %v2830
        %v2839 = vpack.c.b16 %v2833, %v2832
        %v2840 = vpack.c.b16 %v2835, %v2834
        %v2841 = vpack.c.b16 %v2837, %v2836
        %vm2846 = vcmask 523264
        %v2848 = vsel %vm2846, %v2805, 0
        %v2851 = vsel %vm2846, %v2806, 0
        %2853 = vmatprep.subr.bf16.mxu0 0
        %2854 = vmatpush1.bf16.msra.mxu0 %v2838
        %2855 = vmatprep.subr.bf16.mxu0 0
        %2856 = vmatpush1.bf16.msra.mxu0 %v2839
        %2857 = vmatprep.subr.bf16.mxu0 0
        %2858 = vmatpush1.bf16.msra.mxu0 %v2840
        %2859 = vmatprep.subr.bf16.mxu0 0
        %2860 = vmatpush1.bf16.msra.mxu0 %v2841
        %2861 = vmatprep.subr.bf16.mxu0 0
        %2862 = vmatpush1.bf16.msra.mxu0 0
        %2863 = vmatprep.subr.bf16.mxu0 0
        %2864 = vmatpush1.bf16.msra.mxu0 0
        %2865 = vmatprep.subr.bf16.mxu0 0
        %2866 = vmatpush1.bf16.msra.mxu0 0
        %2867 = vmatprep.subr.bf16.mxu0 0
        %2868 = vmatpush1.bf16.msra.mxu0 0
        %2869 = vmatprep.subr.bf16.mxu0 0
        %2870 = vmatpush1.bf16.msra.mxu0 0
        %2871 = vmatprep.subr.bf16.mxu0 0
        %2872 = vmatpush1.bf16.msra.mxu0 0
        %2873 = vmatprep.subr.bf16.mxu0 0
        %2874 = vmatpush1.bf16.msra.mxu0 0
        %2875 = vmatprep.subr.bf16.mxu0 0
        %2876 = vmatpush1.bf16.msra.mxu0 0
        %2877 = vmatprep.subr.bf16.mxu0 0
        %2878 = vmatpush1.bf16.msra.mxu0 0
        %2879 = vmatprep.subr.bf16.mxu0 0
        %2880 = vmatpush1.bf16.msra.mxu0 0
        %2881 = vmatprep.subr.bf16.mxu0 0
        %2882 = vmatpush1.bf16.msra.mxu0 0
        %2883 = vmatprep.subr.bf16.mxu0 0
        %2884 = vmatpush1.bf16.msra.mxu0 0
        %2885 = vmatprep.mubr.bf16.mxu0 0
        %2886 = vmatmul.mubr.bf16.gmra.mrb[0].mxu0 %v2848
        %v2887 = vpop.f32.mrb[0].mxu0
        %v2888 = vadd.f32 %v2820, %v2887
        %v2889 = vpop.f32.mrb[0].mxu0
        %v2890 = vpop.f32.mrb[0].mxu0
        %v2891 = vadd.f32 %v2820, %v2890
        %v2892 = vpop.f32.mrb[0].mxu0
        %2893 = vmatprep.mubr.bf16.mxu0 0
        %2894 = vmatmul.mubr.bf16.gmra.mrb[0].mxu0 %v2851
        %v2895 = vpop.f32.mrb[0].mxu0
        %v2896 = vadd.f32 %v2820, %v2895
        %v2897 = vpop.f32.mrb[0].mxu0
        %v2898 = vpop.f32.mrb[0].mxu0
        %v2899 = vpop.f32.mrb[0].mxu0
        %2900 = vdwg.mxu0
        %v2901 = vmul.f32 %v2888, %v2888
        %v2902 = vmul.f32 %v2891, %v2891
        %v2903 = vmul.f32 %v2896, %v2896
        %v2904 = vmul.f32 %v2888, %v2901
        %v2905 = vmul.f32 %v2891, %v2902
        %v2906 = vmul.f32 %v2896, %v2903
        %v2907 = vmul.f32 %v2904, 0.044715
        %v2908 = vmul.f32 %v2905, 0.044715
        %v2909 = vmul.f32 %v2906, 0.044715
        %v2910 = vadd.f32 %v2888, %v2907
        %v2911 = vadd.f32 %v2891, %v2908
        %v2912 = vadd.f32 %v2896, %v2909
        %v2913 = vmul.f32 %v2910, 0.7978846
        %v2914 = vmul.f32 %v2911, 0.7978846
        %v2915 = vmul.f32 %v2912, 0.7978846
        %v2916 = vtanh.pop %v2913
        %v2917 = vtanh.pop %v2914
        %v2918 = vtanh.pop %v2915
        %v2919 = vadd.f32 %v2916, 1.0
        %v2920 = vadd.f32 %v2917, 1.0
        %v2921 = vadd.f32 %v2918, 1.0
        %v2922 = vmul.f32 %v2919, 0.5
        %v2923 = vmul.f32 %v2920, 0.5
        %v2924 = vmul.f32 %v2921, 0.5
        %v2925 = vmul.f32 %v2888, %v2922
        %v2926 = vmul.f32 %v2891, %v2923
        %v2927 = vmul.f32 %v2896, %v2924
        %v2928 = vpack.c.bf16 %v2926, %v2925
        %v2929 = vpack.c.bf16 %v2927, %v2927
        %v2930 = vld [vmem:[#allocation11] sm:$0xf]
        %v2931 = vld [vmem:[#allocation11 + $0x4] sm:$0xf]
        %v2932 = vld [vmem:[#allocation11 + $0x8] sm:$0xf]
        %v2933 = vld [vmem:[#allocation11 + $0xc] sm:$0xf]
        %v2934 = vld [vmem:[#allocation11 + $0x10] sm:$0xf]
        %v2935 = vld [vmem:[#allocation11 + $0x14] sm:$0xf]
        %v2936 = vld [vmem:[#allocation11 + $0x18] sm:$0xf]
        %v2937 = vld [vmem:[#allocation11 + $0x1c] sm:$0xf]
        %v2938 = vld [vmem:[#allocation13] sm:$0x1]
        %v2940 = vlaneseq
        %v2941 = vshrl.u32 %v2940, 7
        %v2942 = vsub.s32 0, %v2941
        %v2943 = vrot.slane %v2938, %v2942
        %v2953 = vunpack.c.l.b16 %v2930
        %v2954 = vunpack.c.l.b16 %v2931
        %v2955 = vunpack.c.l.b16 %v2932
        %v2956 = vunpack.c.l.b16 %v2933
        %v2957 = vunpack.c.l.b16 %v2934
        %v2958 = vunpack.c.l.b16 %v2935
        %v2959 = vunpack.c.l.b16 %v2936
        %v2960 = vunpack.c.l.b16 %v2937
        %v2961 = vpack.c.b16 %v2954, %v2953
        %v2962 = vpack.c.b16 %v2956, %v2955
        %v2963 = vpack.c.b16 %v2958, %v2957
        %v2964 = vpack.c.b16 %v2960, %v2959
        %v2970 = vsel %vm2846, %v2928, 0
        %v2973 = vsel %vm2846, %v2929, 0
        %2975 = vmatprep.subr.bf16.mxu0 0
        %2976 = vmatpush1.bf16.msra.mxu0 %v2961
        %2977 = vmatprep.subr.bf16.mxu0 0
        %2978 = vmatpush1.bf16.msra.mxu0 %v2962
        %2979 = vmatprep.subr.bf16.mxu0 0
        %2980 = vmatpush1.bf16.msra.mxu0 %v2963
        %2981 = vmatprep.subr.bf16.mxu0 0
        %2982 = vmatpush1.bf16.msra.mxu0 %v2964
        %2983 = vmatprep.subr.bf16.mxu0 0
        %2984 = vmatpush1.bf16.msra.mxu0 0
        %2985 = vmatprep.subr.bf16.mxu0 0
        %2986 = vmatpush1.bf16.msra.mxu0 0
        %2987 = vmatprep.subr.bf16.mxu0 0
        %2988 = vmatpush1.bf16.msra.mxu0 0
        %2989 = vmatprep.subr.bf16.mxu0 0
        %2990 = vmatpush1.bf16.msra.mxu0 0
        %2991 = vmatprep.subr.bf16.mxu0 0
        %2992 = vmatpush1.bf16.msra.mxu0 0
        %2993 = vmatprep.subr.bf16.mxu0 0
        %2994 = vmatpush1.bf16.msra.mxu0 0
        %2995 = vmatprep.subr.bf16.mxu0 0
        %2996 = vmatpush1.bf16.msra.mxu0 0
        %2997 = vmatprep.subr.bf16.mxu0 0
        %2998 = vmatpush1.bf16.msra.mxu0 0
        %2999 = vmatprep.subr.bf16.mxu0 0
        %3000 = vmatpush1.bf16.msra.mxu0 0
        %3001 = vmatprep.subr.bf16.mxu0 0
        %3002 = vmatpush1.bf16.msra.mxu0 0
        %3003 = vmatprep.subr.bf16.mxu0 0
        %3004 = vmatpush1.bf16.msra.mxu0 0
        %3005 = vmatprep.subr.bf16.mxu0 0
        %3006 = vmatpush1.bf16.msra.mxu0 0
        %3007 = vmatprep.mubr.bf16.mxu0 0
        %3008 = vmatmul.mubr.bf16.gmra.mrb[0].mxu0 %v2970
        %v3009 = vpop.f32.mrb[0].mxu0
        %v3010 = vadd.f32 %v2943, %v3009
        %v3011 = vpop.f32.mrb[0].mxu0
        %v3012 = vpop.f32.mrb[0].mxu0
        %v3013 = vadd.f32 %v2943, %v3012
        %v3014 = vpop.f32.mrb[0].mxu0
        %3015 = vmatprep.mubr.bf16.mxu0 0
        %3016 = vmatmul.mubr.bf16.gmra.mrb[0].mxu0 %v2973
        %v3017 = vpop.f32.mrb[0].mxu0
        %v3018 = vadd.f32 %v2943, %v3017
        %v3019 = vpop.f32.mrb[0].mxu0
        %v3020 = vpop.f32.mrb[0].mxu0
        %v3021 = vpop.f32.mrb[0].mxu0
        %3022 = vdwg.mxu0
        %v3023 = vadd.f32 %v3010, %v2802
        %v3024 = vadd.f32 %v3013, %v2803
        %v3025 = vadd.f32 %v3018, %v2804
        %s3026 = scalar_lea.vmem %s9, 8
        %v3027 = vld [vmem:[%s3026] sm:$0x1f]
        %s3028 = scalar_lea.vmem [#allocation8], 1
        %v3029 = vld [vmem:[%s3028] sm:$0x1]
        %v3033 = vrot.slane %v3023, 6
        %v3034 = vrot.slane %v3024, 6
        %v3035 = vrot.slane %v3025, 6
        %v3039 = vsel %vm2651, 0.0, %v3033
        %v3040 = vsel %vm2651, 0.0, %v3034
        %v3041 = vsel %vm2651, 0.0, %v3035
        %v3042 = vsel %vm2651, %v3033, 0.0
        %v3043 = vsel %vm2651, %v3034, 0.0
        %v3044 = vsel %vm2651, %v3035, 0.0
        %v3046 = vlaneseq
        %v3047 = vshrl.u32 %v3046, 7
        %v3048 = vsub.s32 0, %v3047
        %v3049 = vrot.slane %v3029, %v3048
        %v3051 = vlaneseq
        %v3052 = vshrl.u32 %v3051, 7
        %v3053 = vsub.s32 0, %v3052
        %v3054 = vrot.slane %v3027, %v3053
        %v3055 = vmul.f32 %v3054, %v3039
        %v3056 = vmul.f32 %v3054, %v3040
        %v3057 = vmul.f32 %v3054, %v3041
        %v3058 = vadd.f32 %v3049, %v3055
        %v3059 = vadd.f32 %v3049, %v3056
        %v3060 = vadd.f32 %v3049, %v3057
        %v3061 = vlaneseq
        %v3062 = vshrl.u32 %v3061, 7
        %v3063 = vsub.s32 1, %v3062
        %v3064 = vrot.slane %v3027, %v3063
        %v3065 = vmul.f32 %v3064, %v3039
        %v3066 = vmul.f32 %v3064, %v3042
        %v3067 = vmul.f32 %v3064, %v3040
        %v3068 = vmul.f32 %v3064, %v3043
        %v3069 = vmul.f32 %v3064, %v3041
        %v3070 = vmul.f32 %v3064, %v3044
        %v3077 = vrot.slane %v3065, 1
        %v3078 = vrot.slane %v3066, 1
        %v3079 = vsel %vm2690, %v3077, %v3078
        %v3080 = vrot.slane %v3067, 1
        %v3081 = vrot.slane %v3068, 1
        %v3082 = vsel %vm2690, %v3080, %v3081
        %v3083 = vrot.slane %v3069, 1
        %v3084 = vrot.slane %v3070, 1
        %v3085 = vsel %vm2690, %v3083, %v3084
        %v3089 = vadd.f32 %v3058, %v3079
        %v3090 = vadd.f32 %v3059, %v3082
        %v3091 = vadd.f32 %v3060, %v3085
        %v3092 = vlaneseq
        %v3093 = vshrl.u32 %v3092, 7
        %v3094 = vsub.s32 2, %v3093
        %v3095 = vrot.slane %v3027, %v3094
        %v3096 = vmul.f32 %v3095, %v3039
        %v3097 = vmul.f32 %v3095, %v3042
        %v3098 = vmul.f32 %v3095, %v3040
        %v3099 = vmul.f32 %v3095, %v3043
        %v3100 = vmul.f32 %v3095, %v3041
        %v3101 = vmul.f32 %v3095, %v3044
        %v3108 = vrot.slane %v3096, 2
        %v3109 = vrot.slane %v3097, 2
        %v3110 = vsel %vm2722, %v3108, %v3109
        %v3111 = vrot.slane %v3098, 2
        %v3112 = vrot.slane %v3099, 2
        %v3113 = vsel %vm2722, %v3111, %v3112
        %v3114 = vrot.slane %v3100, 2
        %v3115 = vrot.slane %v3101, 2
        %v3116 = vsel %vm2722, %v3114, %v3115
        %v3120 = vadd.f32 %v3089, %v3110
        %v3121 = vadd.f32 %v3090, %v3113
        %v3122 = vadd.f32 %v3091, %v3116
        %v3123 = vlaneseq
        %v3124 = vshrl.u32 %v3123, 7
        %v3125 = vsub.s32 3, %v3124
        %v3126 = vrot.slane %v3027, %v3125
        %v3127 = vmul.f32 %v3126, %v3039
        %v3128 = vmul.f32 %v3126, %v3042
        %v3129 = vmul.f32 %v3126, %v3040
        %v3130 = vmul.f32 %v3126, %v3043
        %v3131 = vmul.f32 %v3126, %v3041
        %v3132 = vmul.f32 %v3126, %v3044
        %v3139 = vrot.slane %v3127, 3
        %v3140 = vrot.slane %v3128, 3
        %v3141 = vsel %vm2754, %v3139, %v3140
        %v3142 = vrot.slane %v3129, 3
        %v3143 = vrot.slane %v3130, 3
        %v3144 = vsel %vm2754, %v3142, %v3143
        %v3145 = vrot.slane %v3131, 3
        %v3146 = vrot.slane %v3132, 3
        %v3147 = vsel %vm2754, %v3145, %v3146
        %v3151 = vadd.f32 %v3120, %v3141
        %v3152 = vadd.f32 %v3121, %v3144
        %v3153 = vadd.f32 %v3122, %v3147
        %v3154 = vlaneseq
        %v3155 = vshrl.u32 %v3154, 7
        %v3156 = vsub.s32 4, %v3155
        %v3157 = vrot.slane %v3027, %v3156
        %v3158 = vmul.f32 %v3157, %v3039
        %v3159 = vmul.f32 %v3157, %v3042
        %v3160 = vmul.f32 %v3157, %v3040
        %v3161 = vmul.f32 %v3157, %v3043
        %v3162 = vmul.f32 %v3157, %v3041
        %v3163 = vmul.f32 %v3157, %v3044
        %v3170 = vrot.slane %v3158, 4
        %v3171 = vrot.slane %v3159, 4
        %v3172 = vsel %vm2786, %v3170, %v3171
        %v3173 = vrot.slane %v3160, 4
        %v3174 = vrot.slane %v3161, 4
        %v3175 = vsel %vm2786, %v3173, %v3174
        %v3176 = vrot.slane %v3162, 4
        %v3177 = vrot.slane %v3163, 4
        %v3178 = vsel %vm2786, %v3176, %v3177
        %v3182 = vadd.f32 %v3151, %v3172
        %v3183 = vadd.f32 %v3152, %v3175
        %v3184 = vadd.f32 %v3153, %v3178
        %v3185 = vadd.f32 %v3182, %v3023
        %v3186 = vadd.f32 %v3183, %v3024
        %v3187 = vadd.f32 %v3184, %v3025
        %v3188 = vpack.c.bf16 %v3186, %v3185
        %v3189 = vpack.c.bf16 %v3187, %v3187
        %s3190 = scalar_lea.vmem %s13, 32
        %v3191 = vld [vmem:[%s3190] sm:$0xf]
        %v3192 = vld [vmem:[%s3190 + $0x4] sm:$0xf]
        %v3193 = vld [vmem:[%s3190 + $0x8] sm:$0xf]
        %v3194 = vld [vmem:[%s3190 + $0xc] sm:$0xf]
        %v3195 = vld [vmem:[%s3190 + $0x10] sm:$0xf]
        %v3196 = vld [vmem:[%s3190 + $0x14] sm:$0xf]
        %v3197 = vld [vmem:[%s3190 + $0x18] sm:$0xf]
        %v3198 = vld [vmem:[%s3190 + $0x1c] sm:$0xf]
        %s3199 = scalar_lea.vmem [#allocation10], 1
        %v3200 = vld [vmem:[%s3199] sm:$0x1]
        %v3202 = vlaneseq
        %v3203 = vshrl.u32 %v3202, 7
        %v3204 = vsub.s32 0, %v3203
        %v3205 = vrot.slane %v3200, %v3204
        %v3215 = vunpack.c.l.b16 %v3191
        %v3216 = vunpack.c.l.b16 %v3192
        %v3217 = vunpack.c.l.b16 %v3193
        %v3218 = vunpack.c.l.b16 %v3194
        %v3219 = vunpack.c.l.b16 %v3195
        %v3220 = vunpack.c.l.b16 %v3196
        %v3221 = vunpack.c.l.b16 %v3197
        %v3222 = vunpack.c.l.b16 %v3198
        %v3223 = vpack.c.b16 %v3216, %v3215
        %v3224 = vpack.c.b16 %v3218, %v3217
        %v3225 = vpack.c.b16 %v3220, %v3219
        %v3226 = vpack.c.b16 %v3222, %v3221
        %v3232 = vsel %vm2846, %v3188, 0
        %v3235 = vsel %vm2846, %v3189, 0
        %3237 = vmatprep.subr.bf16.mxu0 0
        %3238 = vmatpush1.bf16.msra.mxu0 %v3223
        %3239 = vmatprep.subr.bf16.mxu0 0
        %3240 = vmatpush1.bf16.msra.mxu0 %v3224
        %3241 = vmatprep.subr.bf16.mxu0 0
        %3242 = vmatpush1.bf16.msra.mxu0 %v3225
        %3243 = vmatprep.subr.bf16.mxu0 0
        %3244 = vmatpush1.bf16.msra.mxu0 %v3226
        %3245 = vmatprep.subr.bf16.mxu0 0
        %3246 = vmatpush1.bf16.msra.mxu0 0
        %3247 = vmatprep.subr.bf16.mxu0 0
        %3248 = vmatpush1.bf16.msra.mxu0 0
        %3249 = vmatprep.subr.bf16.mxu0 0
        %3250 = vmatpush1.bf16.msra.mxu0 0
        %3251 = vmatprep.subr.bf16.mxu0 0
        %3252 = vmatpush1.bf16.msra.mxu0 0
        %3253 = vmatprep.subr.bf16.mxu0 0
        %3254 = vmatpush1.bf16.msra.mxu0 0
        %3255 = vmatprep.subr.bf16.mxu0 0
        %3256 = vmatpush1.bf16.msra.mxu0 0
        %3257 = vmatprep.subr.bf16.mxu0 0
        %3258 = vmatpush1.bf16.msra.mxu0 0
        %3259 = vmatprep.subr.bf16.mxu0 0
        %3260 = vmatpush1.bf16.msra.mxu0 0
        %3261 = vmatprep.subr.bf16.mxu0 0
        %3262 = vmatpush1.bf16.msra.mxu0 0
        %3263 = vmatprep.subr.bf16.mxu0 0
        %3264 = vmatpush1.bf16.msra.mxu0 0
        %3265 = vmatprep.subr.bf16.mxu0 0
        %3266 = vmatpush1.bf16.msra.mxu0 0
        %3267 = vmatprep.subr.bf16.mxu0 0
        %3268 = vmatpush1.bf16.msra.mxu0 0
        %3269 = vmatprep.mubr.bf16.mxu0 0
        %3270 = vmatmul.mubr.bf16.gmra.mrb[0].mxu0 %v3232
        %v3271 = vpop.f32.mrb[0].mxu0
        %v3272 = vadd.f32 %v3205, %v3271
        %v3273 = vpop.f32.mrb[0].mxu0
        %v3274 = vpop.f32.mrb[0].mxu0
        %v3275 = vadd.f32 %v3205, %v3274
        %v3276 = vpop.f32.mrb[0].mxu0
        %3277 = vmatprep.mubr.bf16.mxu0 0
        %3278 = vmatmul.mubr.bf16.gmra.mrb[0].mxu0 %v3235
        %v3279 = vpop.f32.mrb[0].mxu0
        %v3280 = vadd.f32 %v3205, %v3279
        %v3281 = vpop.f32.mrb[0].mxu0
        %v3282 = vpop.f32.mrb[0].mxu0
        %v3283 = vpop.f32.mrb[0].mxu0
        %3284 = vdwg.mxu0
        %v3285 = vmul.f32 %v3272, %v3272
        %v3286 = vmul.f32 %v3275, %v3275
        %v3287 = vmul.f32 %v3280, %v3280
        %v3288 = vmul.f32 %v3272, %v3285
        %v3289 = vmul.f32 %v3275, %v3286
        %v3290 = vmul.f32 %v3280, %v3287
        %v3291 = vmul.f32 %v3288, 0.044715
        %v3292 = vmul.f32 %v3289, 0.044715
        %v3293 = vmul.f32 %v3290, 0.044715
        %v3294 = vadd.f32 %v3272, %v3291
        %v3295 = vadd.f32 %v3275, %v3292
        %v3296 = vadd.f32 %v3280, %v3293
        %v3297 = vmul.f32 %v3294, 0.7978846
        %v3298 = vmul.f32 %v3295, 0.7978846
        %v3299 = vmul.f32 %v3296, 0.7978846
        %v3300 = vtanh.pop %v3297
        %v3301 = vtanh.pop %v3298
        %v3302 = vtanh.pop %v3299
        %v3303 = vadd.f32 %v3300, 1.0
        %v3304 = vadd.f32 %v3301, 1.0
        %v3305 = vadd.f32 %v3302, 1.0
        %v3306 = vmul.f32 %v3303, 0.5
        %v3307 = vmul.f32 %v3304, 0.5
        %v3308 = vmul.f32 %v3305, 0.5
        %v3309 = vmul.f32 %v3272, %v3306
        %v3310 = vmul.f32 %v3275, %v3307
        %v3311 = vmul.f32 %v3280, %v3308
        %v3312 = vpack.c.bf16 %v3310, %v3309
        %v3313 = vpack.c.bf16 %v3311, %v3311
        %s3314 = scalar_lea.vmem [#allocation11], 32
        %v3315 = vld [vmem:[%s3314] sm:$0xf]
        %v3316 = vld [vmem:[%s3314 + $0x4] sm:$0xf]
        %v3317 = vld [vmem:[%s3314 + $0x8] sm:$0xf]
        %v3318 = vld [vmem:[%s3314 + $0xc] sm:$0xf]
        %v3319 = vld [vmem:[%s3314 + $0x10] sm:$0xf]
        %v3320 = vld [vmem:[%s3314 + $0x14] sm:$0xf]
        %v3321 = vld [vmem:[%s3314 + $0x18] sm:$0xf]
        %v3322 = vld [vmem:[%s3314 + $0x1c] sm:$0xf]
        %s3323 = scalar_lea.vmem [#allocation13], 1
        %v3324 = vld [vmem:[%s3323] sm:$0x1]
        %v3326 = vlaneseq
        %v3327 = vshrl.u32 %v3326, 7
        %v3328 = vsub.s32 0, %v3327
        %v3329 = vrot.slane %v3324, %v3328
        %v3339 = vunpack.c.l.b16 %v3315
        %v3340 = vunpack.c.l.b16 %v3316
        %v3341 = vunpack.c.l.b16 %v3317
        %v3342 = vunpack.c.l.b16 %v3318
        %v3343 = vunpack.c.l.b16 %v3319
        %v3344 = vunpack.c.l.b16 %v3320
        %v3345 = vunpack.c.l.b16 %v3321
        %v3346 = vunpack.c.l.b16 %v3322
        %v3347 = vpack.c.b16 %v3340, %v3339
        %v3348 = vpack.c.b16 %v3342, %v3341
        %v3349 = vpack.c.b16 %v3344, %v3343
        %v3350 = vpack.c.b16 %v3346, %v3345
        %v3356 = vsel %vm2846, %v3312, 0
        %v3359 = vsel %vm2846, %v3313, 0
        %3361 = vmatprep.subr.bf16.mxu0 0
        %3362 = vmatpush1.bf16.msra.mxu0 %v3347
        %3363 = vmatprep.subr.bf16.mxu0 0
        %3364 = vmatpush1.bf16.msra.mxu0 %v3348
        %3365 = vmatprep.subr.bf16.mxu0 0
        %3366 = vmatpush1.bf16.msra.mxu0 %v3349
        %3367 = vmatprep.subr.bf16.mxu0 0
        %3368 = vmatpush1.bf16.msra.mxu0 %v3350
        %3369 = vmatprep.subr.bf16.mxu0 0
        %3370 = vmatpush1.bf16.msra.mxu0 0
        %3371 = vmatprep.subr.bf16.mxu0 0
        %3372 = vmatpush1.bf16.msra.mxu0 0
        %3373 = vmatprep.subr.bf16.mxu0 0
        %3374 = vmatpush1.bf16.msra.mxu0 0
        %3375 = vmatprep.subr.bf16.mxu0 0
        %3376 = vmatpush1.bf16.msra.mxu0 0
        %3377 = vmatprep.subr.bf16.mxu0 0
        %3378 = vmatpush1.bf16.msra.mxu0 0
        %3379 = vmatprep.subr.bf16.mxu0 0
        %3380 = vmatpush1.bf16.msra.mxu0 0
        %3381 = vmatprep.subr.bf16.mxu0 0
        %3382 = vmatpush1.bf16.msra.mxu0 0
        %3383 = vmatprep.subr.bf16.mxu0 0
        %3384 = vmatpush1.bf16.msra.mxu0 0
        %3385 = vmatprep.subr.bf16.mxu0 0
        %3386 = vmatpush1.bf16.msra.mxu0 0
        %3387 = vmatprep.subr.bf16.mxu0 0
        %3388 = vmatpush1.bf16.msra.mxu0 0
        %3389 = vmatprep.subr.bf16.mxu0 0
        %3390 = vmatpush1.bf16.msra.mxu0 0
        %3391 = vmatprep.subr.bf16.mxu0 0
        %3392 = vmatpush1.bf16.msra.mxu0 0
        %3393 = vmatprep.mubr.bf16.mxu0 0
        %3394 = vmatmul.mubr.bf16.gmra.mrb[0].mxu0 %v3356
        %v3395 = vpop.f32.mrb[0].mxu0
        %v3396 = vadd.f32 %v3329, %v3395
        %v3397 = vpop.f32.mrb[0].mxu0
        %v3398 = vpop.f32.mrb[0].mxu0
        %v3399 = vadd.f32 %v3329, %v3398
        %v3400 = vpop.f32.mrb[0].mxu0
        %3401 = vmatprep.mubr.bf16.mxu0 0
        %3402 = vmatmul.mubr.bf16.gmra.mrb[0].mxu0 %v3359
        %v3403 = vpop.f32.mrb[0].mxu0
        %v3404 = vadd.f32 %v3329, %v3403
        %v3405 = vpop.f32.mrb[0].mxu0
        %v3406 = vpop.f32.mrb[0].mxu0
        %v3407 = vpop.f32.mrb[0].mxu0
        %3408 = vdwg.mxu0
        %v3409 = vadd.f32 %v3396, %v3185
        %v3410 = vadd.f32 %v3399, %v3186
        %v3411 = vadd.f32 %v3404, %v3187
        %3415 = vrot.lane.b32.xlu0 %v3409, 112
        %v3416 = vpop.permute.xlu0 %3415
        %3417 = vrot.lane.b32.xlu0 %v3410, 112
        %v3418 = vpop.permute.xlu0 %3417
        %3419 = vrot.lane.b32.xlu0 %v3411, 112
        %v3420 = vpop.permute.xlu0 %3419
        %v3424 = vadd.f32 %v3409, %v3416
        %v3425 = vadd.f32 %v3410, %v3418
        %v3426 = vadd.f32 %v3411, %v3420
        %3427 = vrot.lane.b32.xlu0 %v3409, 96
        %v3428 = vpop.permute.xlu0 %3427
        %3429 = vrot.lane.b32.xlu0 %v3410, 96
        %v3430 = vpop.permute.xlu0 %3429
        %3431 = vrot.lane.b32.xlu0 %v3411, 96
        %v3432 = vpop.permute.xlu0 %3431
        %v3436 = vadd.f32 %v3424, %v3428
        %v3437 = vadd.f32 %v3425, %v3430
        %v3438 = vadd.f32 %v3426, %v3432
        %3439 = vrot.lane.b32.xlu0 %v3409, 80
        %v3440 = vpop.permute.xlu0 %3439
        %3441 = vrot.lane.b32.xlu0 %v3410, 80
        %v3442 = vpop.permute.xlu0 %3441
        %3443 = vrot.lane.b32.xlu0 %v3411, 80
        %v3444 = vpop.permute.xlu0 %3443
        %v3448 = vadd.f32 %v3436, %v3440
        %v3449 = vadd.f32 %v3437, %v3442
        %v3450 = vadd.f32 %v3438, %v3444
        %v3451 = vmul.f32 %v3448, 0.25
        %v3452 = vmul.f32 %v3449, 0.25
        %v3453 = vmul.f32 %v3450, 0.25
        %v3454 = vcombine.low %v3451, %v3453
        %v3455 = vcombine.high %v3451, %v3453
        %v3457 = vunpack.c.l.s4 1983009808
        %v3458 = vunpack.c.0.s8 %v3457
        %v3459 = vlaneseq
        %v3460 = vshrl.u32 %v3459, 7
        %v3461 = vsub.s32 %v3458, %v3460
        %v3462 = vrot.slane %v3454, %v3461
        %v3464 = vunpack.c.l.s4 1983009808
        %v3465 = vunpack.c.0.s8 %v3464
        %v3466 = vlaneseq
        %v3467 = vshrl.u32 %v3466, 7
        %v3468 = vsub.s32 %v3465, %v3467
        %v3469 = vrot.slane %v3455, %v3468
        %v3470 = vcombine.high %v3452, 0.0
        %v3472 = vunpack.c.l.s4 1983009808
        %v3473 = vunpack.c.0.s8 %v3472
        %v3474 = vlaneseq
        %v3475 = vshrl.u32 %v3474, 7
        %v3476 = vsub.s32 %v3473, %v3475
        %v3477 = vrot.slane %v3452, %v3476
        %v3479 = vunpack.c.l.s4 1983009808
        %v3480 = vunpack.c.0.s8 %v3479
        %v3481 = vlaneseq
        %v3482 = vshrl.u32 %v3481, 7
        %v3483 = vsub.s32 %v3480, %v3482
        %v3484 = vrot.slane %v3470, %v3483
        %v3485 = vcombine.low %v3462, %v3477
        %v3486 = vcombine.high %v3462, %v3477
        %v3488 = vunpack.c.l.s4 1934713408
        %v3489 = vunpack.c.0.s8 %v3488
        %v3490 = vlaneseq
        %v3491 = vshrl.u32 %v3490, 7
        %v3492 = vsub.s32 %v3489, %v3491
        %v3493 = vrot.slane %v3485, %v3492
        %v3495 = vunpack.c.l.s4 1934713408
        %v3496 = vunpack.c.0.s8 %v3495
        %v3497 = vlaneseq
        %v3498 = vshrl.u32 %v3497, 7
        %v3499 = vsub.s32 %v3496, %v3498
        %v3500 = vrot.slane %v3486, %v3499
        %v3501 = vcombine.low %v3469, %v3484
        %v3502 = vcombine.high %v3469, %v3484
        %v3504 = vunpack.c.l.s4 1934713408
        %v3505 = vunpack.c.0.s8 %v3504
        %v3506 = vlaneseq
        %v3507 = vshrl.u32 %v3506, 7
        %v3508 = vsub.s32 %v3505, %v3507
        %v3509 = vrot.slane %v3501, %v3508
        %v3511 = vunpack.c.l.s4 1934713408
        %v3512 = vunpack.c.0.s8 %v3511
        %v3513 = vlaneseq
        %v3514 = vshrl.u32 %v3513, 7
        %v3515 = vsub.s32 %v3512, %v3514
        %v3516 = vrot.slane %v3502, %v3515
        %v3517 = vcombine.high %v3493, 0.0
        %v3518 = vcombine.high %v3500, 0.0
        %v3519 = vcombine.high %v3509, 0.0
        %v3520 = vcombine.high %v3516, 0.0
        %v3521 = vcombine.low %v3493, %v3500
        %v3523 = vunpack.c.l.s4 1983009808
        %v3524 = vunpack.c.0.s8 %v3523
        %v3525 = vlaneseq
        %v3526 = vshrl.u32 %v3525, 7
        %v3527 = vsub.s32 %v3524, %v3526
        %v3528 = vrot.slane %v3521, %v3527
        %v3529 = vcombine.low %v3517, %v3518
        %v3531 = vunpack.c.l.s4 1983009808
        %v3532 = vunpack.c.0.s8 %v3531
        %v3533 = vlaneseq
        %v3534 = vshrl.u32 %v3533, 7
        %v3535 = vsub.s32 %v3532, %v3534
        %v3536 = vrot.slane %v3529, %v3535
        %v3537 = vcombine.low %v3509, %v3516
        %v3539 = vunpack.c.l.s4 1983009808
        %v3540 = vunpack.c.0.s8 %v3539
        %v3541 = vlaneseq
        %v3542 = vshrl.u32 %v3541, 7
        %v3543 = vsub.s32 %v3540, %v3542
        %v3544 = vrot.slane %v3537, %v3543
        %v3545 = vcombine.low %v3519, %v3520
        %v3547 = vunpack.c.l.s4 1983009808
        %v3548 = vunpack.c.0.s8 %v3547
        %v3549 = vlaneseq
        %v3550 = vshrl.u32 %v3549, 7
        %v3551 = vsub.s32 %v3548, %v3550
        %v3552 = vrot.slane %v3545, %v3551
        %v3553 = vcombine.low %v3528, %v3536
        %v3554 = vcombine.high %v3528, %v3536
        %v3556 = vunpack.c.l.s4 1934713408
        %v3557 = vunpack.c.0.s8 %v3556
        %v3558 = vlaneseq
        %v3559 = vshrl.u32 %v3558, 7
        %v3560 = vsub.s32 %v3557, %v3559
        %v3561 = vrot.slane %v3553, %v3560
        %v3563 = vunpack.c.l.s4 1934713408
        %v3564 = vunpack.c.0.s8 %v3563
        %v3565 = vlaneseq
        %v3566 = vshrl.u32 %v3565, 7
        %v3567 = vsub.s32 %v3564, %v3566
        %v3568 = vrot.slane %v3554, %v3567
        %v3569 = vcombine.low %v3544, %v3552
        %v3570 = vcombine.high %v3544, %v3552
        %v3572 = vunpack.c.l.s4 1934713408
        %v3573 = vunpack.c.0.s8 %v3572
        %v3574 = vlaneseq
        %v3575 = vshrl.u32 %v3574, 7
        %v3576 = vsub.s32 %v3573, %v3575
        %v3577 = vrot.slane %v3569, %v3576
        %v3579 = vunpack.c.l.s4 1934713408
        %v3580 = vunpack.c.0.s8 %v3579
        %v3581 = vlaneseq
        %v3582 = vshrl.u32 %v3581, 7
        %v3583 = vsub.s32 %v3580, %v3582
        %v3584 = vrot.slane %v3570, %v3583
        %v3585 = vcombine.low %v3561, %v3577
        %v3586 = vcombine.high %v3561, %v3577
        %v3587 = vcombine.low %v3568, %v3584
        %3589 = vrot.lane.b32.xlu0 %v3586, 16
        %v3590 = vpop.permute.xlu0 %3589
        %3593 = vrot.lane.b32.xlu0 %v3587, 32
        %v3594 = vpop.permute.xlu0 %3593
        %v3596 = vsel %vm2451, %v3585, %v3590
        %v3597 = vsel %vm1363, %v3596, %v3594
        %v3598 = vpack.c.bf16 %v3597, %v3597
        %v3599 = vld [vmem:[#allocation14] sm:$0xff]
        %v3600 = vld [vmem:[#allocation14 + $0x8] sm:$0xff]
        %v3601 = vld [vmem:[#allocation14 + $0x10] sm:$0xff]
        %v3602 = vld [vmem:[#allocation14 + $0x18] sm:$0xff]
        %v3603 = vld [vmem:[#allocation14 + $0x20] sm:$0xff]
        %v3604 = vld [vmem:[#allocation14 + $0x28] sm:$0xff]
        %v3605 = vld [vmem:[#allocation16] sm:$0x3]
        %v3607 = vlaneseq
        %v3608 = vshrl.u32 %v3607, 7
        %v3609 = vsub.s32 0, %v3608
        %v3610 = vrot.slane %v3605, %v3609
        %v3611 = vlaneseq
        %v3612 = vshrl.u32 %v3611, 7
        %v3613 = vsub.s32 1, %v3612
        %v3614 = vrot.slane %v3605, %v3613
        %v3623 = vunpack.c.l.b16 %v3599
        %v3624 = vunpack.c.h.b16 %v3599
        %v3625 = vunpack.c.l.b16 %v3600
        %v3626 = vunpack.c.h.b16 %v3600
        %v3627 = vunpack.c.l.b16 %v3601
        %v3628 = vunpack.c.h.b16 %v3601
        %v3629 = vunpack.c.l.b16 %v3602
        %v3630 = vunpack.c.h.b16 %v3602
        %v3631 = vunpack.c.l.b16 %v3603
        %v3632 = vunpack.c.h.b16 %v3603
        %v3633 = vunpack.c.l.b16 %v3604
        %v3634 = vunpack.c.h.b16 %v3604
        %v3635 = vpack.c.b16 %v3625, %v3623
        %v3636 = vpack.c.b16 %v3626, %v3624
        %v3637 = vpack.c.b16 %v3629, %v3627
        %v3638 = vpack.c.b16 %v3630, %v3628
        %v3639 = vpack.c.b16 %v3633, %v3631
        %v3640 = vpack.c.b16 %v3634, %v3632
        %vm3647 = vcmask 392192
        %v3649 = vsel %vm3647, %v3598, 0
        %3651 = vmatprep.subr.bf16.mxu0 %v3636
        %3652 = vmatpush1.bf16.msra.mxu0 %v3635
        %3653 = vmatprep.subr.bf16.mxu0 %v3638
        %3654 = vmatpush1.bf16.msra.mxu0 %v3637
        %3655 = vmatprep.subr.bf16.mxu0 %v3640
        %3656 = vmatpush1.bf16.msra.mxu0 %v3639
        %3657 = vmatprep.subr.bf16.mxu0 0
        %3658 = vmatpush1.bf16.msra.mxu0 0
        %3659 = vmatprep.subr.bf16.mxu0 0
        %3660 = vmatpush1.bf16.msra.mxu0 0
        %3661 = vmatprep.subr.bf16.mxu0 0
        %3662 = vmatpush1.bf16.msra.mxu0 0
        %3663 = vmatprep.subr.bf16.mxu0 0
        %3664 = vmatpush1.bf16.msra.mxu0 0
        %3665 = vmatprep.subr.bf16.mxu0 0
        %3666 = vmatpush1.bf16.msra.mxu0 0
        %3667 = vmatprep.subr.bf16.mxu0 0
        %3668 = vmatpush1.bf16.msra.mxu0 0
        %3669 = vmatprep.subr.bf16.mxu0 0
        %3670 = vmatpush1.bf16.msra.mxu0 0
        %3671 = vmatprep.subr.bf16.mxu0 0
        %3672 = vmatpush1.bf16.msra.mxu0 0
        %3673 = vmatprep.subr.bf16.mxu0 0
        %3674 = vmatpush1.bf16.msra.mxu0 0
        %3675 = vmatprep.subr.bf16.mxu0 0
        %3676 = vmatpush1.bf16.msra.mxu0 0
        %3677 = vmatprep.subr.bf16.mxu0 0
        %3678 = vmatpush1.bf16.msra.mxu0 0
        %3679 = vmatprep.subr.bf16.mxu0 0
        %3680 = vmatpush1.bf16.msra.mxu0 0
        %3681 = vmatprep.subr.bf16.mxu0 0
        %3682 = vmatpush1.bf16.msra.mxu0 0
        %3683 = vmatprep.mubr.bf16.mxu0 0
        %3684 = vmatmul.mubr.bf16.gmra.mrb[0].mxu0 %v3649
        %v3685 = vpop.f32.mrb[0].mxu0
        %v3686 = vadd.f32 %v3610, %v3685
        %v3687 = vpop.f32.mrb[0].mxu0
        %v3688 = vadd.f32 %v3614, %v3687
        %v3689 = vpop.f32.mrb[0].mxu0
        %v3690 = vpop.f32.mrb[0].mxu0
        %3691 = vdwg.mxu0
        %v3692 = vld [vmem:[%s25] sm:$0xf]
        %v3694 = vrot.slane %v3686, 5
        %vm3696 = vcmask 1042432
        %v3697 = vsel %vm3696, 0.0, %v3694
        %v3698 = vld [vmem:[#allocation17] sm:$0x1]
        %v3700 = vlaneseq
        %v3701 = vshrl.u32 %v3700, 7
        %v3702 = vsub.s32 0, %v3701
        %v3703 = vrot.slane %v3698, %v3702
        %v3705 = vlaneseq
        %v3706 = vshrl.u32 %v3705, 7
        %v3707 = vsub.s32 0, %v3706
        %v3708 = vrot.slane %v3692, %v3707
        %v3709 = vmul.f32 %v3708, %v3697
        %v3710 = vadd.f32 %v3703, %v3709
        %v3711 = vlaneseq
        %v3712 = vshrl.u32 %v3711, 7
        %v3713 = vsub.s32 1, %v3712
        %v3714 = vrot.slane %v3692, %v3713
        %v3715 = vmul.f32 %v3714, %v3697
        %v3716 = vmul.f32 %v3714, %v3694
        %v3719 = vrot.slane %v3715, 1
        %v3720 = vrot.slane %v3716, 1
        %v3721 = vsel %vm2690, %v3719, %v3720
        %v3723 = vadd.f32 %v3710, %v3721
        %v3724 = vlaneseq
        %v3725 = vshrl.u32 %v3724, 7
        %v3726 = vsub.s32 2, %v3725
        %v3727 = vrot.slane %v3692, %v3726
        %v3728 = vmul.f32 %v3727, %v3697
        %v3729 = vmul.f32 %v3727, %v3694
        %v3732 = vrot.slane %v3728, 2
        %v3733 = vrot.slane %v3729, 2
        %v3734 = vsel %vm2722, %v3732, %v3733
        %v3736 = vadd.f32 %v3723, %v3734
        %v3737 = vlaneseq
        %v3738 = vshrl.u32 %v3737, 7
        %v3739 = vsub.s32 3, %v3738
        %v3740 = vrot.slane %v3692, %v3739
        %v3741 = vmul.f32 %v3740, %v3697
        %v3742 = vmul.f32 %v3740, %v3694
        %v3745 = vrot.slane %v3741, 3
        %v3746 = vrot.slane %v3742, 3
        %v3747 = vsel %vm2754, %v3745, %v3746
        %v3749 = vadd.f32 %v3736, %v3747
        %v3750 = vsub.f32 0.0, %v3749
        %v3751 = vmul.f32 %v3750, 1.442695
        %v3752 = vpow.pop %v3751
        %v3753 = vadd.f32 %v3752, 1.0
        %v3754 = vrcp.pop %v3753
        %v3755 = vmul.f32 1.0, %v3754
        %v3756 = vmul.f32 %v3749, %v3755
        %v3757 = vpack.c.bf16 %v3756, %v3756
        %v3758 = vld [vmem:[%s29] sm:$0xf]
        %v3759 = vld [vmem:[%s29 + $0x4] sm:$0xf]
        %v3760 = vld [vmem:[%s29 + $0x8] sm:$0xf]
        %v3761 = vld [vmem:[%s29 + $0xc] sm:$0xf]
        %v3762 = vld [vmem:[%s29 + $0x10] sm:$0xf]
        %v3763 = vld [vmem:[%s29 + $0x14] sm:$0xf]
        %v3764 = vld [vmem:[%s29 + $0x18] sm:$0xf]
        %v3765 = vld [vmem:[%s29 + $0x1c] sm:$0xf]
        %v3766 = vld [vmem:[%s29 + $0x20] sm:$0xf]
        %v3767 = vld [vmem:[%s29 + $0x24] sm:$0xf]
        %v3768 = vld [vmem:[%s29 + $0x28] sm:$0xf]
        %v3769 = vld [vmem:[%s29 + $0x2c] sm:$0xf]
        %v3770 = vld [vmem:[#allocation19] sm:$0x1]
        %v3772 = vlaneseq
        %v3773 = vshrl.u32 %v3772, 7
        %v3774 = vsub.s32 0, %v3773
        %v3775 = vrot.slane %v3770, %v3774
        %v3789 = vunpack.c.l.b16 %v3758
        %v3790 = vunpack.c.l.b16 %v3759
        %v3791 = vunpack.c.l.b16 %v3760
        %v3792 = vunpack.c.l.b16 %v3761
        %v3793 = vunpack.c.l.b16 %v3762
        %v3794 = vunpack.c.l.b16 %v3763
        %v3795 = vunpack.c.l.b16 %v3764
        %v3796 = vunpack.c.l.b16 %v3765
        %v3797 = vunpack.c.l.b16 %v3766
        %v3798 = vunpack.c.l.b16 %v3767
        %v3799 = vunpack.c.l.b16 %v3768
        %v3800 = vunpack.c.l.b16 %v3769
        %v3801 = vpack.c.b16 %v3790, %v3789
        %v3802 = vpack.c.b16 %v3792, %v3791
        %v3803 = vpack.c.b16 %v3794, %v3793
        %v3804 = vpack.c.b16 %v3796, %v3795
        %v3805 = vpack.c.b16 %v3798, %v3797
        %v3806 = vpack.c.b16 %v3800, %v3799
        %vm3813 = vcmask 785408
        %v3815 = vsel %vm3813, %v3757, 0
        %3817 = vmatprep.subr.bf16.mxu0 0
        %3818 = vmatpush1.bf16.msra.mxu0 %v3801
        %3819 = vmatprep.subr.bf16.mxu0 0
        %3820 = vmatpush1.bf16.msra.mxu0 %v3802
        %3821 = vmatprep.subr.bf16.mxu0 0
        %3822 = vmatpush1.bf16.msra.mxu0 %v3803
        %3823 = vmatprep.subr.bf16.mxu0 0
        %3824 = vmatpush1.bf16.msra.mxu0 %v3804
        %3825 = vmatprep.subr.bf16.mxu0 0
        %3826 = vmatpush1.bf16.msra.mxu0 %v3805
        %3827 = vmatprep.subr.bf16.mxu0 0
        %3828 = vmatpush1.bf16.msra.mxu0 %v3806
        %3829 = vmatprep.subr.bf16.mxu0 0
        %3830 = vmatpush1.bf16.msra.mxu0 0
        %3831 = vmatprep.subr.bf16.mxu0 0
        %3832 = vmatpush1.bf16.msra.mxu0 0
        %3833 = vmatprep.subr.bf16.mxu0 0
        %3834 = vmatpush1.bf16.msra.mxu0 0
        %3835 = vmatprep.subr.bf16.mxu0 0
        %3836 = vmatpush1.bf16.msra.mxu0 0
        %3837 = vmatprep.subr.bf16.mxu0 0
        %3838 = vmatpush1.bf16.msra.mxu0 0
        %3839 = vmatprep.subr.bf16.mxu0 0
        %3840 = vmatpush1.bf16.msra.mxu0 0
        %3841 = vmatprep.subr.bf16.mxu0 0
        %3842 = vmatpush1.bf16.msra.mxu0 0
        %3843 = vmatprep.subr.bf16.mxu0 0
        %3844 = vmatpush1.bf16.msra.mxu0 0
        %3845 = vmatprep.subr.bf16.mxu0 0
        %3846 = vmatpush1.bf16.msra.mxu0 0
        %3847 = vmatprep.subr.bf16.mxu0 0
        %3848 = vmatpush1.bf16.msra.mxu0 0
        %3849 = vmatprep.mubr.bf16.mxu0 0
        %3850 = vmatmul.mubr.bf16.gmra.mrb[0].mxu0 %v3815
        %v3851 = vpop.f32.mrb[0].mxu0
        %v3852 = vadd.f32 %v3775, %v3851
        %v3853 = vpop.f32.mrb[0].mxu0
        %v3854 = vpop.f32.mrb[0].mxu0
        %v3855 = vpop.f32.mrb[0].mxu0
        %3856 = vdwg.mxu0
        %v3857 = vld [vmem:[#allocation20] sm:$0x7]
        %v3858 = vld [vmem:[#allocation22] sm:$0x1]
        %v3860 = vlaneseq
        %v3861 = vshrl.u32 %v3860, 7
        %v3862 = vsub.s32 0, %v3861
        %v3863 = vrot.slane %v3858, %v3862
        %vm3865 = vcmask 23552
        %v3867 = vsel %vm3865, %v3852, 0
        %v3870 = vsel %vm3696, %v3857, 0
        %3872 = vmatprep.subr.mxu0 0.0
        %3873 = vmatpush1.msra.mxu0 %v3870
        %3874 = vmatprep.subr.mxu0 0.0
        %3875 = vmatpush1.msra.mxu0 0.0
        %3876 = vmatprep.subr.mxu0 0.0
        %3877 = vmatpush1.msra.mxu0 0.0
        %3878 = vmatprep.subr.mxu0 0.0
        %3879 = vmatpush1.msra.mxu0 0.0
        %3880 = vmatprep.subr.mxu0 0.0
        %3881 = vmatpush1.msra.mxu0 0.0
        %3882 = vmatprep.subr.mxu0 0.0
        %3883 = vmatpush1.msra.mxu0 0.0
        %3884 = vmatprep.subr.mxu0 0.0
        %3885 = vmatpush1.msra.mxu0 0.0
        %3886 = vmatprep.subr.mxu0 0.0
        %3887 = vmatpush1.msra.mxu0 0.0
        %3888 = vmatprep.subr.mxu0 0.0
        %3889 = vmatpush1.msra.mxu0 0.0
        %3890 = vmatprep.subr.mxu0 0.0
        %3891 = vmatpush1.msra.mxu0 0.0
        %3892 = vmatprep.subr.mxu0 0.0
        %3893 = vmatpush1.msra.mxu0 0.0
        %3894 = vmatprep.subr.mxu0 0.0
        %3895 = vmatpush1.msra.mxu0 0.0
        %3896 = vmatprep.subr.mxu0 0.0
        %3897 = vmatpush1.msra.mxu0 0.0
        %3898 = vmatprep.subr.mxu0 0.0
        %3899 = vmatpush1.msra.mxu0 0.0
        %3900 = vmatprep.subr.mxu0 0.0
        %3901 = vmatpush1.msra.mxu0 0.0
        %3902 = vmatprep.subr.mxu0 0.0
        %3903 = vmatpush1.msra.mxu0 0.0
        %3904 = vmatprep.subr.mxu0 0.0
        %3905 = vmatpush1.msra.mxu0 0.0
        %3906 = vmatprep.subr.mxu0 0.0
        %3907 = vmatpush1.msra.mxu0 0.0
        %3908 = vmatprep.subr.mxu0 0.0
        %3909 = vmatpush1.msra.mxu0 0.0
        %3910 = vmatprep.subr.mxu0 0.0
        %3911 = vmatpush1.msra.mxu0 0.0
        %3912 = vmatprep.subr.mxu0 0.0
        %3913 = vmatpush1.msra.mxu0 0.0
        %3914 = vmatprep.subr.mxu0 0.0
        %3915 = vmatpush1.msra.mxu0 0.0
        %3916 = vmatprep.subr.mxu0 0.0
        %3917 = vmatpush1.msra.mxu0 0.0
        %3918 = vmatprep.subr.mxu0 0.0
        %3919 = vmatpush1.msra.mxu0 0.0
        %3920 = vmatprep.subr.mxu0 0.0
        %3921 = vmatpush1.msra.mxu0 0.0
        %3922 = vmatprep.subr.mxu0 0.0
        %3923 = vmatpush1.msra.mxu0 0.0
        %3924 = vmatprep.subr.mxu0 0.0
        %3925 = vmatpush1.msra.mxu0 0.0
        %3926 = vmatprep.subr.mxu0 0.0
        %3927 = vmatpush1.msra.mxu0 0.0
        %3928 = vmatprep.subr.mxu0 0.0
        %3929 = vmatpush1.msra.mxu0 0.0
        %3930 = vmatprep.subr.mxu0 0.0
        %3931 = vmatpush1.msra.mxu0 0.0
        %3932 = vmatprep.subr.mxu0 0.0
        %3933 = vmatpush1.msra.mxu0 0.0
        %3934 = vmatprep.subr.mxu0 0.0
        %3935 = vmatpush1.msra.mxu0 0.0
        %3936 = vmatprep.mubr.f32.mxu0 0.0
        %3937 = vmatmul.mubr.f32.gmra.mrb[0].mxu0 %v3867
        %v3938 = vpop.f32.mrb[0].mxu0
        %v3939 = vadd.f32 %v3863, %v3938
        %v3940 = vpop.f32.mrb[0].mxu0
        %3941 = vdwg.mxu0
        %v3942 = vmax.f32 %v3939, 0.0
        %v3943 = vand.u32 2147483647, %v3939
        %v3944 = vsub.f32 0.0, %v3943
        %v3945 = vmul.f32 %v3944, 1.442695
        %v3946 = vpow.pop %v3945
        %v3947 = vadd.f32 %v3946, 1.0
        %v3948 = vlog2.pop %v3947
        %v3949 = vmul.f32 %v3948, 0.6931472
        %v3950 = vadd.f32 %v3942, %v3949
        %v3951 = vld [vmem:[#allocation23] sm:$0xff]
        %v3952 = vld [vmem:[#allocation23 + $0x8] sm:$0xff]
        %v3953 = vmul.f32 %v3951, 1.442695
        %v3954 = vpow.pop %v3953
        %v3955 = vmul.f32 %v3952, 1.442695
        %v3956 = vpow.pop %v3955
        %v3957 = vsub.f32 0.0, %v3954
        %v3958 = vsub.f32 0.0, %v3956
        %v3960 = vcombine.high %v3950, %v3950
        %v3962 = vunpack.c.l.s4 1966171168
        %v3963 = vunpack.c.0.s8 %v3962
        %v3964 = vlaneseq
        %v3965 = vshrl.u32 %v3964, 7
        %v3966 = vsub.s32 %v3963, %v3965
        %v3967 = vrot.slane %v3950, %v3966
        %v3969 = vunpack.c.l.s4 1966171168
        %v3970 = vunpack.c.0.s8 %v3969
        %v3971 = vlaneseq
        %v3972 = vshrl.u32 %v3971, 7
        %v3973 = vsub.s32 %v3970, %v3972
        %v3974 = vrot.slane %v3960, %v3973
        %v3975 = vcombine.high %v3967, %v3967
        %v3976 = vcombine.high %v3974, %v3974
        %v3978 = vunpack.c.l.s4 1966171168
        %v3979 = vunpack.c.0.s8 %v3978
        %v3980 = vlaneseq
        %v3981 = vshrl.u32 %v3980, 7
        %v3982 = vsub.s32 %v3979, %v3981
        %v3983 = vrot.slane %v3967, %v3982
        %v3985 = vunpack.c.l.s4 1966171168
        %v3986 = vunpack.c.0.s8 %v3985
        %v3987 = vlaneseq
        %v3988 = vshrl.u32 %v3987, 7
        %v3989 = vsub.s32 %v3986, %v3988
        %v3990 = vrot.slane %v3974, %v3989
        %v3992 = vunpack.c.l.s4 1966171168
        %v3993 = vunpack.c.0.s8 %v3992
        %v3994 = vlaneseq
        %v3995 = vshrl.u32 %v3994, 7
        %v3996 = vsub.s32 %v3993, %v3995
        %v3997 = vrot.slane %v3975, %v3996
        %v3999 = vunpack.c.l.s4 1966171168
        %v4000 = vunpack.c.0.s8 %v3999
        %v4001 = vlaneseq
        %v4002 = vshrl.u32 %v4001, 7
        %v4003 = vsub.s32 %v4000, %v4002
        %v4004 = vrot.slane %v3976, %v4003
        %v4005 = vcombine.high %v3983, %v3983
        %v4006 = vcombine.high %v3990, %v3990
        %v4007 = vcombine.high %v3997, %v3997
        %v4008 = vcombine.high %v4004, %v4004
        %v4009 = vlaneseq
        %v4010 = vshrl.u32 %v4009, 7
        %v4011 = vsub.s32 0, %v4010
        %v4012 = vrot.slane %v3983, %v4011
        %v4013 = vlaneseq
        %v4014 = vshrl.u32 %v4013, 7
        %v4015 = vsub.s32 0, %v4014
        %v4016 = vrot.slane %v3997, %v4015
        %v4017 = vlaneseq
        %v4018 = vshrl.u32 %v4017, 7
        %v4019 = vsub.s32 0, %v4018
        %v4020 = vrot.slane %v4005, %v4019
        %v4021 = vlaneseq
        %v4022 = vshrl.u32 %v4021, 7
        %v4023 = vsub.s32 0, %v4022
        %v4024 = vrot.slane %v4007, %v4023
        %v4025 = vlaneseq
        %v4026 = vshrl.u32 %v4025, 7
        %v4027 = vsub.s32 0, %v4026
        %v4028 = vrot.slane %v3990, %v4027
        %v4029 = vlaneseq
        %v4030 = vshrl.u32 %v4029, 7
        %v4031 = vsub.s32 0, %v4030
        %v4032 = vrot.slane %v4004, %v4031
        %v4033 = vlaneseq
        %v4034 = vshrl.u32 %v4033, 7
        %v4035 = vsub.s32 0, %v4034
        %v4036 = vrot.slane %v4006, %v4035
        %v4037 = vlaneseq
        %v4038 = vshrl.u32 %v4037, 7
        %v4039 = vsub.s32 0, %v4038
        %v4040 = vrot.slane %v4008, %v4039
        %v4049 = vmul.f32 %v4012, %v3957
        %v4050 = vmul.f32 %v4012, %v3958
        %v4051 = vmul.f32 %v4016, %v3957
        %v4052 = vmul.f32 %v4016, %v3958
        %v4053 = vmul.f32 %v4020, %v3957
        %v4054 = vmul.f32 %v4020, %v3958
        %v4055 = vmul.f32 %v4024, %v3957
        %v4056 = vmul.f32 %v4024, %v3958
        %v4057 = vmul.f32 %v4028, %v3957
        %v4058 = vmul.f32 %v4028, %v3958
        %v4059 = vmul.f32 %v4032, %v3957
        %v4060 = vmul.f32 %v4032, %v3958
        %v4061 = vmul.f32 %v4036, %v3957
        %v4062 = vmul.f32 %v4036, %v3958
        %v4063 = vmul.f32 %v4040, %v3957
        %v4064 = vmul.f32 %v4040, %v3958
        %v4065 = vmul.f32 %v4049, 1.442695
        %v4066 = vpow.pop %v4065
        %v4067 = vmul.f32 %v4050, 1.442695
        %v4068 = vpow.pop %v4067
        %v4069 = vmul.f32 %v4051, 1.442695
        %v4070 = vpow.pop %v4069
        %v4071 = vmul.f32 %v4052, 1.442695
        %v4072 = vpow.pop %v4071
        %v4073 = vmul.f32 %v4053, 1.442695
        %v4074 = vpow.pop %v4073
        %v4075 = vmul.f32 %v4054, 1.442695
        %v4076 = vpow.pop %v4075
        %v4077 = vmul.f32 %v4055, 1.442695
        %v4078 = vpow.pop %v4077
        %v4079 = vmul.f32 %v4056, 1.442695
        %v4080 = vpow.pop %v4079
        %v4081 = vmul.f32 %v4057, 1.442695
        %v4082 = vpow.pop %v4081
        %v4083 = vmul.f32 %v4058, 1.442695
        %v4084 = vpow.pop %v4083
        %v4085 = vmul.f32 %v4059, 1.442695
        %v4086 = vpow.pop %v4085
        %v4087 = vmul.f32 %v4060, 1.442695
        %v4088 = vpow.pop %v4087
        %v4089 = vmul.f32 %v4061, 1.442695
        %v4090 = vpow.pop %v4089
        %v4091 = vmul.f32 %v4062, 1.442695
        %v4092 = vpow.pop %v4091
        %v4093 = vmul.f32 %v4063, 1.442695
        %v4094 = vpow.pop %v4093
        %v4095 = vmul.f32 %v4064, 1.442695
        %v4096 = vpow.pop %v4095
        %v4097 = vlaneseq
        %v4098 = vshrl.u32 %v4097, 7
        %v4099 = vsub.s32 0, %v4098
        %v4100 = vrot.slane %v3852, %v4099
        %s4102 = sor.u32 256, 3
        %4103 = vbcast.lane.b32.xlu0 %v4100, %s4102
        %v4104 = vpop.permute.xlu0 %4103
        %s4106 = sor.u32 256, 11
        %4107 = vbcast.lane.b32.xlu0 %v4100, %s4106
        %v4108 = vpop.permute.xlu0 %4107
        %v4109 = vlaneseq
        %v4110 = vshrl.u32 %v4109, 7
        %v4111 = vsub.s32 1, %v4110
        %v4112 = vrot.slane %v3852, %v4111
        %s4114 = sor.u32 256, 3
        %4115 = vbcast.lane.b32.xlu0 %v4112, %s4114
        %v4116 = vpop.permute.xlu0 %4115
        %s4118 = sor.u32 256, 11
        %4119 = vbcast.lane.b32.xlu0 %v4112, %s4118
        %v4120 = vpop.permute.xlu0 %4119
        %v4121 = vlaneseq
        %v4122 = vshrl.u32 %v4121, 7
        %v4123 = vsub.s32 2, %v4122
        %v4124 = vrot.slane %v3852, %v4123
        %s4126 = sor.u32 256, 3
        %4127 = vbcast.lane.b32.xlu0 %v4124, %s4126
        %v4128 = vpop.permute.xlu0 %4127
        %s4130 = sor.u32 256, 11
        %4131 = vbcast.lane.b32.xlu0 %v4124, %s4130
        %v4132 = vpop.permute.xlu0 %4131
        %v4133 = vlaneseq
        %v4134 = vshrl.u32 %v4133, 7
        %v4135 = vsub.s32 3, %v4134
        %v4136 = vrot.slane %v3852, %v4135
        %s4138 = sor.u32 256, 3
        %4139 = vbcast.lane.b32.xlu0 %v4136, %s4138
        %v4140 = vpop.permute.xlu0 %4139
        %s4142 = sor.u32 256, 11
        %4143 = vbcast.lane.b32.xlu0 %v4136, %s4142
        %v4144 = vpop.permute.xlu0 %4143
        %v4145 = vlaneseq
        %v4146 = vshrl.u32 %v4145, 7
        %v4147 = vsub.s32 4, %v4146
        %v4148 = vrot.slane %v3852, %v4147
        %s4150 = sor.u32 256, 3
        %4151 = vbcast.lane.b32.xlu0 %v4148, %s4150
        %v4152 = vpop.permute.xlu0 %4151
        %s4154 = sor.u32 256, 11
        %4155 = vbcast.lane.b32.xlu0 %v4148, %s4154
        %v4156 = vpop.permute.xlu0 %4155
        %v4157 = vlaneseq
        %v4158 = vshrl.u32 %v4157, 7
        %v4159 = vsub.s32 5, %v4158
        %v4160 = vrot.slane %v3852, %v4159
        %s4162 = sor.u32 256, 3
        %4163 = vbcast.lane.b32.xlu0 %v4160, %s4162
        %v4164 = vpop.permute.xlu0 %4163
        %s4166 = sor.u32 256, 11
        %4167 = vbcast.lane.b32.xlu0 %v4160, %s4166
        %v4168 = vpop.permute.xlu0 %4167
        %v4169 = vlaneseq
        %v4170 = vshrl.u32 %v4169, 7
        %v4171 = vsub.s32 6, %v4170
        %v4172 = vrot.slane %v3852, %v4171
        %s4174 = sor.u32 256, 3
        %4175 = vbcast.lane.b32.xlu0 %v4172, %s4174
        %v4176 = vpop.permute.xlu0 %4175
        %s4178 = sor.u32 256, 11
        %4179 = vbcast.lane.b32.xlu0 %v4172, %s4178
        %v4180 = vpop.permute.xlu0 %4179
        %v4181 = vlaneseq
        %v4182 = vshrl.u32 %v4181, 7
        %v4183 = vsub.s32 7, %v4182
        %v4184 = vrot.slane %v3852, %v4183
        %s4186 = sor.u32 256, 3
        %4187 = vbcast.lane.b32.xlu0 %v4184, %s4186
        %v4188 = vpop.permute.xlu0 %4187
        %s4190 = sor.u32 256, 11
        %4191 = vbcast.lane.b32.xlu0 %v4184, %s4190
        %v4192 = vpop.permute.xlu0 %4191
        %v4193 = vmul.f32 %v4012, %v4104
        %v4194 = vmul.f32 %v4012, %v4108
        %v4195 = vmul.f32 %v4016, %v4116
        %v4196 = vmul.f32 %v4016, %v4120
        %v4197 = vmul.f32 %v4020, %v4128
        %v4198 = vmul.f32 %v4020, %v4132
        %v4199 = vmul.f32 %v4024, %v4140
        %v4200 = vmul.f32 %v4024, %v4144
        %v4201 = vmul.f32 %v4028, %v4152
        %v4202 = vmul.f32 %v4028, %v4156
        %v4203 = vmul.f32 %v4032, %v4164
        %v4204 = vmul.f32 %v4032, %v4168
        %v4205 = vmul.f32 %v4036, %v4176
        %v4206 = vmul.f32 %v4036, %v4180
        %v4207 = vmul.f32 %v4040, %v4188
        %v4208 = vmul.f32 %v4040, %v4192
        %v4210 = vcombine.high %v3756, %v3756
        %v4212 = vunpack.c.l.s4 1966171168
        %v4213 = vunpack.c.0.s8 %v4212
        %v4214 = vlaneseq
        %v4215 = vshrl.u32 %v4214, 7
        %v4216 = vsub.s32 %v4213, %v4215
        %v4217 = vrot.slane %v3756, %v4216
        %v4219 = vunpack.c.l.s4 1966171168
        %v4220 = vunpack.c.0.s8 %v4219
        %v4221 = vlaneseq
        %v4222 = vshrl.u32 %v4221, 7
        %v4223 = vsub.s32 %v4220, %v4222
        %v4224 = vrot.slane %v4210, %v4223
        %v4225 = vcombine.high %v4217, %v4217
        %v4226 = vcombine.high %v4224, %v4224
        %v4228 = vunpack.c.l.s4 1966171168
        %v4229 = vunpack.c.0.s8 %v4228
        %v4230 = vlaneseq
        %v4231 = vshrl.u32 %v4230, 7
        %v4232 = vsub.s32 %v4229, %v4231
        %v4233 = vrot.slane %v4217, %v4232
        %v4235 = vunpack.c.l.s4 1966171168
        %v4236 = vunpack.c.0.s8 %v4235
        %v4237 = vlaneseq
        %v4238 = vshrl.u32 %v4237, 7
        %v4239 = vsub.s32 %v4236, %v4238
        %v4240 = vrot.slane %v4224, %v4239
        %v4242 = vunpack.c.l.s4 1966171168
        %v4243 = vunpack.c.0.s8 %v4242
        %v4244 = vlaneseq
        %v4245 = vshrl.u32 %v4244, 7
        %v4246 = vsub.s32 %v4243, %v4245
        %v4247 = vrot.slane %v4225, %v4246
        %v4249 = vunpack.c.l.s4 1966171168
        %v4250 = vunpack.c.0.s8 %v4249
        %v4251 = vlaneseq
        %v4252 = vshrl.u32 %v4251, 7
        %v4253 = vsub.s32 %v4250, %v4252
        %v4254 = vrot.slane %v4226, %v4253
        %v4255 = vcombine.high %v4233, %v4233
        %v4256 = vcombine.high %v4240, %v4240
        %v4257 = vcombine.high %v4247, %v4247
        %v4258 = vcombine.high %v4254, %v4254
        %v4259 = vlaneseq
        %v4260 = vshrl.u32 %v4259, 7
        %v4261 = vsub.s32 0, %v4260
        %v4262 = vrot.slane %v4233, %v4261
        %v4263 = vlaneseq
        %v4264 = vshrl.u32 %v4263, 7
        %v4265 = vsub.s32 0, %v4264
        %v4266 = vrot.slane %v4247, %v4265
        %v4267 = vlaneseq
        %v4268 = vshrl.u32 %v4267, 7
        %v4269 = vsub.s32 0, %v4268
        %v4270 = vrot.slane %v4255, %v4269
        %v4271 = vlaneseq
        %v4272 = vshrl.u32 %v4271, 7
        %v4273 = vsub.s32 0, %v4272
        %v4274 = vrot.slane %v4257, %v4273
        %v4275 = vlaneseq
        %v4276 = vshrl.u32 %v4275, 7
        %v4277 = vsub.s32 0, %v4276
        %v4278 = vrot.slane %v4240, %v4277
        %v4279 = vlaneseq
        %v4280 = vshrl.u32 %v4279, 7
        %v4281 = vsub.s32 0, %v4280
        %v4282 = vrot.slane %v4254, %v4281
        %v4283 = vlaneseq
        %v4284 = vshrl.u32 %v4283, 7
        %v4285 = vsub.s32 0, %v4284
        %v4286 = vrot.slane %v4256, %v4285
        %v4287 = vlaneseq
        %v4288 = vshrl.u32 %v4287, 7
        %v4289 = vsub.s32 0, %v4288
        %v4290 = vrot.slane %v4258, %v4289
        %v4299 = vmul.f32 %v4193, %v4262
        %v4300 = vmul.f32 %v4194, %v4262
        %v4301 = vmul.f32 %v4195, %v4266
        %v4302 = vmul.f32 %v4196, %v4266
        %v4303 = vmul.f32 %v4197, %v4270
        %v4304 = vmul.f32 %v4198, %v4270
        %v4305 = vmul.f32 %v4199, %v4274
        %v4306 = vmul.f32 %v4200, %v4274
        %v4307 = vmul.f32 %v4201, %v4278
        %v4308 = vmul.f32 %v4202, %v4278
        %v4309 = vmul.f32 %v4203, %v4282
        %v4310 = vmul.f32 %v4204, %v4282
        %v4311 = vmul.f32 %v4205, %v4286
        %v4312 = vmul.f32 %v4206, %v4286
        %v4313 = vmul.f32 %v4207, %v4290
        %v4314 = vmul.f32 %v4208, %v4290
        %v4315 = vsub.f32 0.0, %v3686
        %v4316 = vsub.f32 0.0, %v3688
        %v4317 = vmul.f32 %v4315, 1.442695
        %v4318 = vpow.pop %v4317
        %v4319 = vmul.f32 %v4316, 1.442695
        %v4320 = vpow.pop %v4319
        %v4321 = vadd.f32 %v4318, 1.0
        %v4322 = vadd.f32 %v4320, 1.0
        %v4323 = vrcp.pop %v4321
        %v4324 = vmul.f32 1.0, %v4323
        %v4325 = vrcp.pop %v4322
        %v4326 = vmul.f32 1.0, %v4325
        %v4327 = vmul.f32 %v3686, %v4324
        %v4328 = vmul.f32 %v3688, %v4326
        %v4329 = vld [vmem:[#allocation25] sm:$0x1]
        %v4330 = vmul.f32 %v4066, 0.0
        %v4331 = vmul.f32 %v4068, 0.0
        %v4332 = vadd.f32 %v4330, %v4299
        %v4333 = vadd.f32 %v4331, %v4300
        %s4335 = sor.u32 256, 19
        %4336 = vbcast.lane.b32.xlu0 %v4100, %s4335
        %v4337 = vpop.permute.xlu0 %4336
        %s4339 = sor.u32 256, 27
        %4340 = vbcast.lane.b32.xlu0 %v4100, %s4339
        %v4341 = vpop.permute.xlu0 %4340
        %v4342 = vmul.f32 %v4332, %v4337
        %v4343 = vmul.f32 %v4333, %v4341
        %v4344 = vsel %vm3813, %v4342, 0.0
        %v4345 = vsel %vm3813, %v4343, 0.0
        %v4346 = vadd.f32 %v4344, %v4345
        %v4347 = vrot.slane %v4346, 4
        %v4348 = vadd.f32 %v4346, %v4347
        %v4349 = vrot.slane %v4348, 2
        %v4350 = vadd.f32 %v4348, %v4349
        %v4351 = vrot.slane %v4350, 1
        %v4352 = vadd.f32 %v4350, %v4351
        %v4353 = vmul.f32 %v4070, %v4332
        %v4354 = vmul.f32 %v4072, %v4333
        %v4355 = vadd.f32 %v4353, %v4301
        %v4356 = vadd.f32 %v4354, %v4302
        %s4358 = sor.u32 256, 19
        %4359 = vbcast.lane.b32.xlu0 %v4112, %s4358
        %v4360 = vpop.permute.xlu0 %4359
        %s4362 = sor.u32 256, 27
        %4363 = vbcast.lane.b32.xlu0 %v4112, %s4362
        %v4364 = vpop.permute.xlu0 %4363
        %v4365 = vmul.f32 %v4355, %v4360
        %v4366 = vmul.f32 %v4356, %v4364
        %v4367 = vsel %vm3813, %v4365, 0.0
        %v4368 = vsel %vm3813, %v4366, 0.0
        %v4369 = vadd.f32 %v4367, %v4368
        %v4370 = vrot.slane %v4369, 4
        %v4371 = vadd.f32 %v4369, %v4370
        %v4372 = vrot.slane %v4371, 2
        %v4373 = vadd.f32 %v4371, %v4372
        %v4374 = vrot.slane %v4373, 1
        %v4375 = vadd.f32 %v4373, %v4374
        %v4376 = vmul.f32 %v4074, %v4355
        %v4377 = vmul.f32 %v4076, %v4356
        %v4378 = vadd.f32 %v4376, %v4303
        %v4379 = vadd.f32 %v4377, %v4304
        %s4381 = sor.u32 256, 19
        %4382 = vbcast.lane.b32.xlu0 %v4124, %s4381
        %v4383 = vpop.permute.xlu0 %4382
        %s4385 = sor.u32 256, 27
        %4386 = vbcast.lane.b32.xlu0 %v4124, %s4385
        %v4387 = vpop.permute.xlu0 %4386
        %v4388 = vmul.f32 %v4378, %v4383
        %v4389 = vmul.f32 %v4379, %v4387
        %v4390 = vsel %vm3813, %v4388, 0.0
        %v4391 = vsel %vm3813, %v4389, 0.0
        %v4392 = vadd.f32 %v4390, %v4391
        %v4393 = vrot.slane %v4392, 4
        %v4394 = vadd.f32 %v4392, %v4393
        %v4395 = vrot.slane %v4394, 2
        %v4396 = vadd.f32 %v4394, %v4395
        %v4397 = vrot.slane %v4396, 1
        %v4398 = vadd.f32 %v4396, %v4397
        %v4399 = vmul.f32 %v4078, %v4378
        %v4400 = vmul.f32 %v4080, %v4379
        %v4401 = vadd.f32 %v4399, %v4305
        %v4402 = vadd.f32 %v4400, %v4306
        %s4404 = sor.u32 256, 19
        %4405 = vbcast.lane.b32.xlu0 %v4136, %s4404
        %v4406 = vpop.permute.xlu0 %4405
        %s4408 = sor.u32 256, 27
        %4409 = vbcast.lane.b32.xlu0 %v4136, %s4408
        %v4410 = vpop.permute.xlu0 %4409
        %v4411 = vmul.f32 %v4401, %v4406
        %v4412 = vmul.f32 %v4402, %v4410
        %v4413 = vsel %vm3813, %v4411, 0.0
        %v4414 = vsel %vm3813, %v4412, 0.0
        %v4415 = vadd.f32 %v4413, %v4414
        %v4416 = vrot.slane %v4415, 4
        %v4417 = vadd.f32 %v4415, %v4416
        %v4418 = vrot.slane %v4417, 2
        %v4419 = vadd.f32 %v4417, %v4418
        %v4420 = vrot.slane %v4419, 1
        %v4421 = vadd.f32 %v4419, %v4420
        %v4422 = vmul.f32 %v4082, %v4401
        %v4423 = vmul.f32 %v4084, %v4402
        %v4424 = vadd.f32 %v4422, %v4307
        %v4425 = vadd.f32 %v4423, %v4308
        %s4427 = sor.u32 256, 19
        %4428 = vbcast.lane.b32.xlu0 %v4148, %s4427
        %v4429 = vpop.permute.xlu0 %4428
        %s4431 = sor.u32 256, 27
        %4432 = vbcast.lane.b32.xlu0 %v4148, %s4431
        %v4433 = vpop.permute.xlu0 %4432
        %v4434 = vmul.f32 %v4424, %v4429
        %v4435 = vmul.f32 %v4425, %v4433
        %v4436 = vsel %vm3813, %v4434, 0.0
        %v4437 = vsel %vm3813, %v4435, 0.0
        %v4438 = vadd.f32 %v4436, %v4437
        %v4439 = vrot.slane %v4438, 4
        %v4440 = vadd.f32 %v4438, %v4439
        %v4441 = vrot.slane %v4440, 2
        %v4442 = vadd.f32 %v4440, %v4441
        %v4443 = vrot.slane %v4442, 1
        %v4444 = vadd.f32 %v4442, %v4443
        %v4445 = vmul.f32 %v4086, %v4424
        %v4446 = vmul.f32 %v4088, %v4425
        %v4447 = vadd.f32 %v4445, %v4309
        %v4448 = vadd.f32 %v4446, %v4310
        %s4450 = sor.u32 256, 19
        %4451 = vbcast.lane.b32.xlu0 %v4160, %s4450
        %v4452 = vpop.permute.xlu0 %4451
        %s4454 = sor.u32 256, 27
        %4455 = vbcast.lane.b32.xlu0 %v4160, %s4454
        %v4456 = vpop.permute.xlu0 %4455
        %v4457 = vmul.f32 %v4447, %v4452
        %v4458 = vmul.f32 %v4448, %v4456
        %v4459 = vsel %vm3813, %v4457, 0.0
        %v4460 = vsel %vm3813, %v4458, 0.0
        %v4461 = vadd.f32 %v4459, %v4460
        %v4462 = vrot.slane %v4461, 4
        %v4463 = vadd.f32 %v4461, %v4462
        %v4464 = vrot.slane %v4463, 2
        %v4465 = vadd.f32 %v4463, %v4464
        %v4466 = vrot.slane %v4465, 1
        %v4467 = vadd.f32 %v4465, %v4466
        %v4468 = vmul.f32 %v4090, %v4447
        %v4469 = vmul.f32 %v4092, %v4448
        %v4470 = vadd.f32 %v4468, %v4311
        %v4471 = vadd.f32 %v4469, %v4312
        %s4473 = sor.u32 256, 19
        %4474 = vbcast.lane.b32.xlu0 %v4172, %s4473
        %v4475 = vpop.permute.xlu0 %4474
        %s4477 = sor.u32 256, 27
        %4478 = vbcast.lane.b32.xlu0 %v4172, %s4477
        %v4479 = vpop.permute.xlu0 %4478
        %v4480 = vmul.f32 %v4470, %v4475
        %v4481 = vmul.f32 %v4471, %v4479
        %v4482 = vsel %vm3813, %v4480, 0.0
        %v4483 = vsel %vm3813, %v4481, 0.0
        %v4484 = vadd.f32 %v4482, %v4483
        %v4485 = vrot.slane %v4484, 4
        %v4486 = vadd.f32 %v4484, %v4485
        %v4487 = vrot.slane %v4486, 2
        %v4488 = vadd.f32 %v4486, %v4487
        %v4489 = vrot.slane %v4488, 1
        %v4490 = vadd.f32 %v4488, %v4489
        %v4491 = vmul.f32 %v4094, %v4470
        %v4492 = vmul.f32 %v4096, %v4471
        %v4493 = vadd.f32 %v4491, %v4313
        %v4494 = vadd.f32 %v4492, %v4314
        %s4496 = sor.u32 256, 19
        %4497 = vbcast.lane.b32.xlu0 %v4184, %s4496
        %v4498 = vpop.permute.xlu0 %4497
        %s4500 = sor.u32 256, 27
        %4501 = vbcast.lane.b32.xlu0 %v4184, %s4500
        %v4502 = vpop.permute.xlu0 %4501
        %v4503 = vmul.f32 %v4493, %v4498
        %v4504 = vmul.f32 %v4494, %v4502
        %v4505 = vsel %vm3813, %v4503, 0.0
        %v4506 = vsel %vm3813, %v4504, 0.0
        %v4507 = vadd.f32 %v4505, %v4506
        %v4508 = vrot.slane %v4507, 4
        %v4509 = vadd.f32 %v4507, %v4508
        %v4510 = vrot.slane %v4509, 2
        %v4511 = vadd.f32 %v4509, %v4510
        %v4512 = vrot.slane %v4511, 1
        %v4513 = vadd.f32 %v4511, %v4512
        %vm4514 = vcmask 1040384
        %v4515 = vsel %vm4514, %v4352, %v4375
        %v4516 = vsel %vm2651, %v4515, %v4398
        %v4517 = vsel %vm3696, %v4516, %v4421
        %v4518 = vsel %vm2786, %v4517, %v4444
        %v4519 = vsel %vm2754, %v4518, %v4467
        %v4520 = vsel %vm2722, %v4519, %v4490
        %v4521 = vsel %vm2690, %v4520, %v4513
        %v4523 = vlaneseq
        %v4524 = vshrl.u32 %v4523, 7
        %v4525 = vsub.s32 0, %v4524
        %v4526 = vrot.slane %v4329, %v4525
        %v4528 = vmul.f32 %v4526, %v3756
        %v4529 = vadd.f32 %v4521, %v4528
        %4532 = vrot.lane.b32.xlu0 %v4327, 32
        %v4533 = vpop.permute.xlu0 %4532
        %4534 = vrot.lane.b32.xlu0 %v4328, 32
        %v4535 = vpop.permute.xlu0 %4534
        %v4536 = vsel %vm1363, %v4533, %v4535
        %v4538 = vmul.f32 %v4529, %v4536
        %v4539 = vpack.c.bf16 %v4538, %v4538
        %v4540 = vld [vmem:[%s41] sm:$0xf]
        %v4541 = vld [vmem:[%s41 + $0x4] sm:$0xf]
        %v4542 = vld [vmem:[%s41 + $0x8] sm:$0xf]
        %v4543 = vld [vmem:[%s41 + $0xc] sm:$0xf]
        %v4544 = vld [vmem:[%s41 + $0x10] sm:$0xf]
        %v4545 = vld [vmem:[%s41 + $0x14] sm:$0xf]
        %v4546 = vld [vmem:[%s41 + $0x18] sm:$0xf]
        %v4547 = vld [vmem:[%s41 + $0x1c] sm:$0xf]
        %v4548 = vld [vmem:[%s41 + $0x20] sm:$0xf]
        %v4549 = vld [vmem:[%s41 + $0x24] sm:$0xf]
        %v4550 = vld [vmem:[%s41 + $0x28] sm:$0xf]
        %v4551 = vld [vmem:[%s41 + $0x2c] sm:$0xf]
        %v4552 = vld [vmem:[#allocation26] sm:$0x1]
        %v4554 = vlaneseq
        %v4555 = vshrl.u32 %v4554, 7
        %v4556 = vsub.s32 0, %v4555
        %v4557 = vrot.slane %v4552, %v4556
        %v4571 = vunpack.c.l.b16 %v4540
        %v4572 = vunpack.c.l.b16 %v4541
        %v4573 = vunpack.c.l.b16 %v4542
        %v4574 = vunpack.c.l.b16 %v4543
        %v4575 = vunpack.c.l.b16 %v4544
        %v4576 = vunpack.c.l.b16 %v4545
        %v4577 = vunpack.c.l.b16 %v4546
        %v4578 = vunpack.c.l.b16 %v4547
        %v4579 = vunpack.c.l.b16 %v4548
        %v4580 = vunpack.c.l.b16 %v4549
        %v4581 = vunpack.c.l.b16 %v4550
        %v4582 = vunpack.c.l.b16 %v4551
        %v4583 = vpack.c.b16 %v4572, %v4571
        %v4584 = vpack.c.b16 %v4574, %v4573
        %v4585 = vpack.c.b16 %v4576, %v4575
        %v4586 = vpack.c.b16 %v4578, %v4577
        %v4587 = vpack.c.b16 %v4580, %v4579
        %v4588 = vpack.c.b16 %v4582, %v4581
        %v4596 = vsel %vm3813, %v4539, 0
        %4598 = vmatprep.subr.bf16.mxu0 0
        %4599 = vmatpush1.bf16.msra.mxu0 %v4583
        %4600 = vmatprep.subr.bf16.mxu0 0
        %4601 = vmatpush1.bf16.msra.mxu0 %v4584
        %4602 = vmatprep.subr.bf16.mxu0 0
        %4603 = vmatpush1.bf16.msra.mxu0 %v4585
        %4604 = vmatprep.subr.bf16.mxu0 0
        %4605 = vmatpush1.bf16.msra.mxu0 %v4586
        %4606 = vmatprep.subr.bf16.mxu0 0
        %4607 = vmatpush1.bf16.msra.mxu0 %v4587
        %4608 = vmatprep.subr.bf16.mxu0 0
        %4609 = vmatpush1.bf16.msra.mxu0 %v4588
        %4610 = vmatprep.subr.bf16.mxu0 0
        %4611 = vmatpush1.bf16.msra.mxu0 0
        %4612 = vmatprep.subr.bf16.mxu0 0
        %4613 = vmatpush1.bf16.msra.mxu0 0
        %4614 = vmatprep.subr.bf16.mxu0 0
        %4615 = vmatpush1.bf16.msra.mxu0 0
        %4616 = vmatprep.subr.bf16.mxu0 0
        %4617 = vmatpush1.bf16.msra.mxu0 0
        %4618 = vmatprep.subr.bf16.mxu0 0
        %4619 = vmatpush1.bf16.msra.mxu0 0
        %4620 = vmatprep.subr.bf16.mxu0 0
        %4621 = vmatpush1.bf16.msra.mxu0 0
        %4622 = vmatprep.subr.bf16.mxu0 0
        %4623 = vmatpush1.bf16.msra.mxu0 0
        %4624 = vmatprep.subr.bf16.mxu0 0
        %4625 = vmatpush1.bf16.msra.mxu0 0
        %4626 = vmatprep.subr.bf16.mxu0 0
        %4627 = vmatpush1.bf16.msra.mxu0 0
        %4628 = vmatprep.subr.bf16.mxu0 0
        %4629 = vmatpush1.bf16.msra.mxu0 0
        %4630 = vmatprep.mubr.bf16.mxu0 0
        %4631 = vmatmul.mubr.bf16.gmra.mrb[0].mxu0 %v4596
        %v4632 = vpop.f32.mrb[0].mxu0
        %v4633 = vadd.f32 %v4557, %v4632
        %v4634 = vpop.f32.mrb[0].mxu0
        %v4635 = vpop.f32.mrb[0].mxu0
        %v4636 = vpop.f32.mrb[0].mxu0
        %4637 = vdwg.mxu0
        %v4638 = vadd.f32 %v3597, %v4633
        %v4639 = vld [vmem:[#allocation28] sm:$0x1]
        %v4640 = vld [vmem:[#allocation29] sm:$0x1]
        %v4641 = vsel %vm3647, %v4638, 0.0
        %4642 = vadd.xlane.f32.xlu0 %v4641
        %v4643 = vpop.xlane.xlu0 %4642
        %v4644 = vrcp.pop 48.0
        %v4645 = vmul.f32 %v4643, %v4644
        %v4646 = vsub.f32 %v4638, %v4645
        %v4647 = vmul.f32 %v4646, %v4646
        %v4648 = vsel %vm3647, %v4647, 0.0
        %4649 = vadd.xlane.f32.xlu0 %v4648
        %v4650 = vpop.xlane.xlu0 %4649
        %v4651 = vmul.f32 %v4650, %v4644
        %v4652 = vadd.f32 %v4651, 1e-05
        %v4653 = vrsqrt.pop %v4652
        %v4654 = vmul.f32 %v4646, %v4653
        %v4656 = vlaneseq
        %v4657 = vshrl.u32 %v4656, 7
        %v4658 = vsub.s32 0, %v4657
        %v4659 = vrot.slane %v4639, %v4658
        %v4661 = vmul.f32 %v4654, %v4659
        %v4663 = vlaneseq
        %v4664 = vshrl.u32 %v4663, 7
        %v4665 = vsub.s32 0, %v4664
        %v4666 = vrot.slane %v4640, %v4665
        %v4668 = vadd.f32 %v4661, %v4666
        %4670 = vrot.lane.b32.xlu0 %v4668, 112
        %v4671 = vpop.permute.xlu0 %4670
        %4673 = vrot.lane.b32.xlu0 %v4668, 96
        %v4674 = vpop.permute.xlu0 %4673
        %v4676 = vcombine.low %v4668, %v4674
        %v4677 = vcombine.high %v4668, %v4674
        %v4679 = vunpack.c.l.s4 1983009808
        %v4680 = vunpack.c.0.s8 %v4679
        %v4681 = vlaneseq
        %v4682 = vshrl.u32 %v4681, 7
        %v4683 = vsub.s32 %v4680, %v4682
        %v4684 = vrot.slane %v4676, %v4683
        %v4686 = vunpack.c.l.s4 1983009808
        %v4687 = vunpack.c.0.s8 %v4686
        %v4688 = vlaneseq
        %v4689 = vshrl.u32 %v4688, 7
        %v4690 = vsub.s32 %v4687, %v4689
        %v4691 = vrot.slane %v4677, %v4690
        %v4692 = vcombine.high %v4671, 0.0
        %v4694 = vunpack.c.l.s4 1983009808
        %v4695 = vunpack.c.0.s8 %v4694
        %v4696 = vlaneseq
        %v4697 = vshrl.u32 %v4696, 7
        %v4698 = vsub.s32 %v4695, %v4697
        %v4699 = vrot.slane %v4671, %v4698
        %v4701 = vunpack.c.l.s4 1983009808
        %v4702 = vunpack.c.0.s8 %v4701
        %v4703 = vlaneseq
        %v4704 = vshrl.u32 %v4703, 7
        %v4705 = vsub.s32 %v4702, %v4704
        %v4706 = vrot.slane %v4692, %v4705
        %v4707 = vcombine.low %v4684, %v4699
        %v4708 = vcombine.high %v4684, %v4699
        %v4710 = vunpack.c.l.s4 1934713408
        %v4711 = vunpack.c.0.s8 %v4710
        %v4712 = vlaneseq
        %v4713 = vshrl.u32 %v4712, 7
        %v4714 = vsub.s32 %v4711, %v4713
        %v4715 = vrot.slane %v4707, %v4714
        %v4717 = vunpack.c.l.s4 1934713408
        %v4718 = vunpack.c.0.s8 %v4717
        %v4719 = vlaneseq
        %v4720 = vshrl.u32 %v4719, 7
        %v4721 = vsub.s32 %v4718, %v4720
        %v4722 = vrot.slane %v4708, %v4721
        %v4723 = vcombine.low %v4691, %v4706
        %v4724 = vcombine.high %v4691, %v4706
        %v4726 = vunpack.c.l.s4 1934713408
        %v4727 = vunpack.c.0.s8 %v4726
        %v4728 = vlaneseq
        %v4729 = vshrl.u32 %v4728, 7
        %v4730 = vsub.s32 %v4727, %v4729
        %v4731 = vrot.slane %v4723, %v4730
        %v4733 = vunpack.c.l.s4 1934713408
        %v4734 = vunpack.c.0.s8 %v4733
        %v4735 = vlaneseq
        %v4736 = vshrl.u32 %v4735, 7
        %v4737 = vsub.s32 %v4734, %v4736
        %v4738 = vrot.slane %v4724, %v4737
        %v4739 = vcombine.high %v4715, 0.0
        %v4740 = vcombine.high %v4722, 0.0
        %v4741 = vcombine.high %v4731, 0.0
        %v4742 = vcombine.high %v4738, 0.0
        %4743 = vxpose.xlu0.b32.start [1/16] %v4715, 128
        %4744 = vxpose.xlu0.b32.cont [2/16] 0.0, 128
        %4745 = vxpose.xlu0.b32.cont [3/16] 0.0, 128
        %4746 = vxpose.xlu0.b32.cont [4/16] 0.0, 128
        %4747 = vxpose.xlu0.b32.cont [5/16] 0.0, 128
        %4748 = vxpose.xlu0.b32.cont [6/16] 0.0, 128
        %4749 = vxpose.xlu0.b32.cont [7/16] 0.0, 128
        %4750 = vxpose.xlu0.b32.cont [8/16] 0.0, 128
        %4751 = vxpose.xlu0.b32.cont [9/16] 0.0, 128
        %4752 = vxpose.xlu0.b32.cont [10/16] 0.0, 128
        %4753 = vxpose.xlu0.b32.cont [11/16] 0.0, 128
        %4754 = vxpose.xlu0.b32.cont [12/16] 0.0, 128
        %4755 = vxpose.xlu0.b32.cont [13/16] 0.0, 128
        %4756 = vxpose.xlu0.b32.cont [14/16] 0.0, 128
        %4757 = vxpose.xlu0.b32.cont [15/16] 0.0, 128
        %4758 = vxpose.xlu0.b32.end [16/16] 0.0, 128
        %v4759 = vpop.trf.xlu0
        %v4760 = vpop.trf.xlu0
        %v4761 = vpop.trf.xlu0
        %v4762 = vpop.trf.xlu0
        %v4763 = vpop.trf.xlu0
        %v4764 = vpop.trf.xlu0
        %v4765 = vpop.trf.xlu0
        %v4766 = vpop.trf.xlu0
        %v4767 = vpop.trf.xlu0
        %v4768 = vpop.trf.xlu0
        %v4769 = vpop.trf.xlu0
        %v4770 = vpop.trf.xlu0
        %v4771 = vpop.trf.xlu0
        %v4772 = vpop.trf.xlu0
        %v4773 = vpop.trf.xlu0
        %v4774 = vpop.trf.xlu0
        %4775 = vxpose.xlu0.b32.start [1/16] %v4739, 128
        %4776 = vxpose.xlu0.b32.cont [2/16] 0.0, 128
        %4777 = vxpose.xlu0.b32.cont [3/16] 0.0, 128
        %4778 = vxpose.xlu0.b32.cont [4/16] 0.0, 128
        %4779 = vxpose.xlu0.b32.cont [5/16] 0.0, 128
        %4780 = vxpose.xlu0.b32.cont [6/16] 0.0, 128
        %4781 = vxpose.xlu0.b32.cont [7/16] 0.0, 128
        %4782 = vxpose.xlu0.b32.cont [8/16] 0.0, 128
        %4783 = vxpose.xlu0.b32.cont [9/16] 0.0, 128
        %4784 = vxpose.xlu0.b32.cont [10/16] 0.0, 128
        %4785 = vxpose.xlu0.b32.cont [11/16] 0.0, 128
        %4786 = vxpose.xlu0.b32.cont [12/16] 0.0, 128
        %4787 = vxpose.xlu0.b32.cont [13/16] 0.0, 128
        %4788 = vxpose.xlu0.b32.cont [14/16] 0.0, 128
        %4789 = vxpose.xlu0.b32.cont [15/16] 0.0, 128
        %4790 = vxpose.xlu0.b32.end [16/16] 0.0, 128
        %v4791 = vpop.trf.xlu0
        %v4792 = vpop.trf.xlu0
        %v4793 = vpop.trf.xlu0
        %v4794 = vpop.trf.xlu0
        %v4795 = vpop.trf.xlu0
        %v4796 = vpop.trf.xlu0
        %v4797 = vpop.trf.xlu0
        %v4798 = vpop.trf.xlu0
        %v4799 = vpop.trf.xlu0
        %v4800 = vpop.trf.xlu0
        %v4801 = vpop.trf.xlu0
        %v4802 = vpop.trf.xlu0
        %v4803 = vpop.trf.xlu0
        %v4804 = vpop.trf.xlu0
        %v4805 = vpop.trf.xlu0
        %v4806 = vpop.trf.xlu0
        %4807 = vxpose.xlu0.b32.start [1/16] %v4722, 128
        %4808 = vxpose.xlu0.b32.cont [2/16] 0.0, 128
        %4809 = vxpose.xlu0.b32.cont [3/16] 0.0, 128
        %4810 = vxpose.xlu0.b32.cont [4/16] 0.0, 128
        %4811 = vxpose.xlu0.b32.cont [5/16] 0.0, 128
        %4812 = vxpose.xlu0.b32.cont [6/16] 0.0, 128
        %4813 = vxpose.xlu0.b32.cont [7/16] 0.0, 128
        %4814 = vxpose.xlu0.b32.cont [8/16] 0.0, 128
        %4815 = vxpose.xlu0.b32.cont [9/16] 0.0, 128
        %4816 = vxpose.xlu0.b32.cont [10/16] 0.0, 128
        %4817 = vxpose.xlu0.b32.cont [11/16] 0.0, 128
        %4818 = vxpose.xlu0.b32.cont [12/16] 0.0, 128
        %4819 = vxpose.xlu0.b32.cont [13/16] 0.0, 128
        %4820 = vxpose.xlu0.b32.cont [14/16] 0.0, 128
        %4821 = vxpose.xlu0.b32.cont [15/16] 0.0, 128
        %4822 = vxpose.xlu0.b32.end [16/16] 0.0, 128
        %v4823 = vpop.trf.xlu0
        %v4824 = vpop.trf.xlu0
        %v4825 = vpop.trf.xlu0
        %v4826 = vpop.trf.xlu0
        %v4827 = vpop.trf.xlu0
        %v4828 = vpop.trf.xlu0
        %v4829 = vpop.trf.xlu0
        %v4830 = vpop.trf.xlu0
        %v4831 = vpop.trf.xlu0
        %v4832 = vpop.trf.xlu0
        %v4833 = vpop.trf.xlu0
        %v4834 = vpop.trf.xlu0
        %v4835 = vpop.trf.xlu0
        %v4836 = vpop.trf.xlu0
        %v4837 = vpop.trf.xlu0
        %v4838 = vpop.trf.xlu0
        %4839 = vxpose.xlu0.b32.start [1/16] %v4740, 128
        %4840 = vxpose.xlu0.b32.cont [2/16] 0.0, 128
        %4841 = vxpose.xlu0.b32.cont [3/16] 0.0, 128
        %4842 = vxpose.xlu0.b32.cont [4/16] 0.0, 128
        %4843 = vxpose.xlu0.b32.cont [5/16] 0.0, 128
        %4844 = vxpose.xlu0.b32.cont [6/16] 0.0, 128
        %4845 = vxpose.xlu0.b32.cont [7/16] 0.0, 128
        %4846 = vxpose.xlu0.b32.cont [8/16] 0.0, 128
        %4847 = vxpose.xlu0.b32.cont [9/16] 0.0, 128
        %4848 = vxpose.xlu0.b32.cont [10/16] 0.0, 128
        %4849 = vxpose.xlu0.b32.cont [11/16] 0.0, 128
        %4850 = vxpose.xlu0.b32.cont [12/16] 0.0, 128
        %4851 = vxpose.xlu0.b32.cont [13/16] 0.0, 128
        %4852 = vxpose.xlu0.b32.cont [14/16] 0.0, 128
        %4853 = vxpose.xlu0.b32.cont [15/16] 0.0, 128
        %4854 = vxpose.xlu0.b32.end [16/16] 0.0, 128
        %v4855 = vpop.trf.xlu0
        %v4856 = vpop.trf.xlu0
        %v4857 = vpop.trf.xlu0
        %v4858 = vpop.trf.xlu0
        %v4859 = vpop.trf.xlu0
        %v4860 = vpop.trf.xlu0
        %v4861 = vpop.trf.xlu0
        %v4862 = vpop.trf.xlu0
        %v4863 = vpop.trf.xlu0
        %v4864 = vpop.trf.xlu0
        %v4865 = vpop.trf.xlu0
        %v4866 = vpop.trf.xlu0
        %v4867 = vpop.trf.xlu0
        %v4868 = vpop.trf.xlu0
        %v4869 = vpop.trf.xlu0
        %v4870 = vpop.trf.xlu0
        %4871 = vxpose.xlu0.b32.start [1/16] %v4731, 128
        %4872 = vxpose.xlu0.b32.cont [2/16] 0.0, 128
        %4873 = vxpose.xlu0.b32.cont [3/16] 0.0, 128
        %4874 = vxpose.xlu0.b32.cont [4/16] 0.0, 128
        %4875 = vxpose.xlu0.b32.cont [5/16] 0.0, 128
        %4876 = vxpose.xlu0.b32.cont [6/16] 0.0, 128
        %4877 = vxpose.xlu0.b32.cont [7/16] 0.0, 128
        %4878 = vxpose.xlu0.b32.cont [8/16] 0.0, 128
        %4879 = vxpose.xlu0.b32.cont [9/16] 0.0, 128
        %4880 = vxpose.xlu0.b32.cont [10/16] 0.0, 128
        %4881 = vxpose.xlu0.b32.cont [11/16] 0.0, 128
        %4882 = vxpose.xlu0.b32.cont [12/16] 0.0, 128
        %4883 = vxpose.xlu0.b32.cont [13/16] 0.0, 128
        %4884 = vxpose.xlu0.b32.cont [14/16] 0.0, 128
        %4885 = vxpose.xlu0.b32.cont [15/16] 0.0, 128
        %4886 = vxpose.xlu0.b32.end [16/16] 0.0, 128
        %v4887 = vpop.trf.xlu0
        %v4888 = vpop.trf.xlu0
        %v4889 = vpop.trf.xlu0
        %v4890 = vpop.trf.xlu0
        %v4891 = vpop.trf.xlu0
        %v4892 = vpop.trf.xlu0
        %v4893 = vpop.trf.xlu0
        %v4894 = vpop.trf.xlu0
        %v4895 = vpop.trf.xlu0
        %v4896 = vpop.trf.xlu0
        %v4897 = vpop.trf.xlu0
        %v4898 = vpop.trf.xlu0
        %v4899 = vpop.trf.xlu0
        %v4900 = vpop.trf.xlu0
        %v4901 = vpop.trf.xlu0
        %v4902 = vpop.trf.xlu0
        %4903 = vxpose.xlu0.b32.start [1/16] %v4741, 128
        %4904 = vxpose.xlu0.b32.cont [2/16] 0.0, 128
        %4905 = vxpose.xlu0.b32.cont [3/16] 0.0, 128
        %4906 = vxpose.xlu0.b32.cont [4/16] 0.0, 128
        %4907 = vxpose.xlu0.b32.cont [5/16] 0.0, 128
        %4908 = vxpose.xlu0.b32.cont [6/16] 0.0, 128
        %4909 = vxpose.xlu0.b32.cont [7/16] 0.0, 128
        %4910 = vxpose.xlu0.b32.cont [8/16] 0.0, 128
        %4911 = vxpose.xlu0.b32.cont [9/16] 0.0, 128
        %4912 = vxpose.xlu0.b32.cont [10/16] 0.0, 128
        %4913 = vxpose.xlu0.b32.cont [11/16] 0.0, 128
        %4914 = vxpose.xlu0.b32.cont [12/16] 0.0, 128
        %4915 = vxpose.xlu0.b32.cont [13/16] 0.0, 128
        %4916 = vxpose.xlu0.b32.cont [14/16] 0.0, 128
        %4917 = vxpose.xlu0.b32.cont [15/16] 0.0, 128
        %4918 = vxpose.xlu0.b32.end [16/16] 0.0, 128
        %v4919 = vpop.trf.xlu0
        %v4920 = vpop.trf.xlu0
        %v4921 = vpop.trf.xlu0
        %v4922 = vpop.trf.xlu0
        %v4923 = vpop.trf.xlu0
        %v4924 = vpop.trf.xlu0
        %v4925 = vpop.trf.xlu0
        %v4926 = vpop.trf.xlu0
        %v4927 = vpop.trf.xlu0
        %v4928 = vpop.trf.xlu0
        %v4929 = vpop.trf.xlu0
        %v4930 = vpop.trf.xlu0
        %v4931 = vpop.trf.xlu0
        %v4932 = vpop.trf.xlu0
        %v4933 = vpop.trf.xlu0
        %v4934 = vpop.trf.xlu0
        %4935 = vxpose.xlu0.b32.start [1/16] %v4738, 128
        %4936 = vxpose.xlu0.b32.cont [2/16] 0.0, 128
        %4937 = vxpose.xlu0.b32.cont [3/16] 0.0, 128
        %4938 = vxpose.xlu0.b32.cont [4/16] 0.0, 128
        %4939 = vxpose.xlu0.b32.cont [5/16] 0.0, 128
        %4940 = vxpose.xlu0.b32.cont [6/16] 0.0, 128
        %4941 = vxpose.xlu0.b32.cont [7/16] 0.0, 128
        %4942 = vxpose.xlu0.b32.cont [8/16] 0.0, 128
        %4943 = vxpose.xlu0.b32.cont [9/16] 0.0, 128
        %4944 = vxpose.xlu0.b32.cont [10/16] 0.0, 128
        %4945 = vxpose.xlu0.b32.cont [11/16] 0.0, 128
        %4946 = vxpose.xlu0.b32.cont [12/16] 0.0, 128
        %4947 = vxpose.xlu0.b32.cont [13/16] 0.0, 128
        %4948 = vxpose.xlu0.b32.cont [14/16] 0.0, 128
        %4949 = vxpose.xlu0.b32.cont [15/16] 0.0, 128
        %4950 = vxpose.xlu0.b32.end [16/16] 0.0, 128
        %v4951 = vpop.trf.xlu0
        %v4952 = vpop.trf.xlu0
        %v4953 = vpop.trf.xlu0
        %v4954 = vpop.trf.xlu0
        %v4955 = vpop.trf.xlu0
        %v4956 = vpop.trf.xlu0
        %v4957 = vpop.trf.xlu0
        %v4958 = vpop.trf.xlu0
        %v4959 = vpop.trf.xlu0
        %v4960 = vpop.trf.xlu0
        %v4961 = vpop.trf.xlu0
        %v4962 = vpop.trf.xlu0
        %v4963 = vpop.trf.xlu0
        %v4964 = vpop.trf.xlu0
        %v4965 = vpop.trf.xlu0
        %v4966 = vpop.trf.xlu0
        %4967 = vxpose.xlu0.b32.start [1/16] %v4742, 128
        %4968 = vxpose.xlu0.b32.cont [2/16] 0.0, 128
        %4969 = vxpose.xlu0.b32.cont [3/16] 0.0, 128
        %4970 = vxpose.xlu0.b32.cont [4/16] 0.0, 128
        %4971 = vxpose.xlu0.b32.cont [5/16] 0.0, 128
        %4972 = vxpose.xlu0.b32.cont [6/16] 0.0, 128
        %4973 = vxpose.xlu0.b32.cont [7/16] 0.0, 128
        %4974 = vxpose.xlu0.b32.cont [8/16] 0.0, 128
        %4975 = vxpose.xlu0.b32.cont [9/16] 0.0, 128
        %4976 = vxpose.xlu0.b32.cont [10/16] 0.0, 128
        %4977 = vxpose.xlu0.b32.cont [11/16] 0.0, 128
        %4978 = vxpose.xlu0.b32.cont [12/16] 0.0, 128
        %4979 = vxpose.xlu0.b32.cont [13/16] 0.0, 128
        %4980 = vxpose.xlu0.b32.cont [14/16] 0.0, 128
        %4981 = vxpose.xlu0.b32.cont [15/16] 0.0, 128
        %4982 = vxpose.xlu0.b32.end [16/16] 0.0, 128
        %v4983 = vpop.trf.xlu0
        %v4984 = vpop.trf.xlu0
        %v4985 = vpop.trf.xlu0
        %v4986 = vpop.trf.xlu0
        %v4987 = vpop.trf.xlu0
        %v4988 = vpop.trf.xlu0
        %v4989 = vpop.trf.xlu0
        %v4990 = vpop.trf.xlu0
        %v4991 = vpop.trf.xlu0
        %v4992 = vpop.trf.xlu0
        %v4993 = vpop.trf.xlu0
        %v4994 = vpop.trf.xlu0
        %v4995 = vpop.trf.xlu0
        %v4996 = vpop.trf.xlu0
        %v4997 = vpop.trf.xlu0
        %v4998 = vpop.trf.xlu0
        %v4999 = vcombine.low %v4759, %v4823
        %v5000 = vcombine.high %v4759, %v4823
        %v5002 = vunpack.c.l.s4 1983009808
        %v5003 = vunpack.c.0.s8 %v5002
        %v5004 = vlaneseq
        %v5005 = vshrl.u32 %v5004, 7
        %v5006 = vsub.s32 %v5003, %v5005
        %v5007 = vrot.slane %v4999, %v5006
        %v5009 = vunpack.c.l.s4 1983009808
        %v5010 = vunpack.c.0.s8 %v5009
        %v5011 = vlaneseq
        %v5012 = vshrl.u32 %v5011, 7
        %v5013 = vsub.s32 %v5010, %v5012
        %v5014 = vrot.slane %v5000, %v5013
        %v5015 = vcombine.low %v4791, %v4855
        %v5016 = vcombine.high %v4791, %v4855
        %v5018 = vunpack.c.l.s4 1983009808
        %v5019 = vunpack.c.0.s8 %v5018
        %v5020 = vlaneseq
        %v5021 = vshrl.u32 %v5020, 7
        %v5022 = vsub.s32 %v5019, %v5021
        %v5023 = vrot.slane %v5015, %v5022
        %v5025 = vunpack.c.l.s4 1983009808
        %v5026 = vunpack.c.0.s8 %v5025
        %v5027 = vlaneseq
        %v5028 = vshrl.u32 %v5027, 7
        %v5029 = vsub.s32 %v5026, %v5028
        %v5030 = vrot.slane %v5016, %v5029
        %v5031 = vcombine.low %v4887, %v4951
        %v5032 = vcombine.high %v4887, %v4951
        %v5034 = vunpack.c.l.s4 1983009808
        %v5035 = vunpack.c.0.s8 %v5034
        %v5036 = vlaneseq
        %v5037 = vshrl.u32 %v5036, 7
        %v5038 = vsub.s32 %v5035, %v5037
        %v5039 = vrot.slane %v5031, %v5038
        %v5041 = vunpack.c.l.s4 1983009808
        %v5042 = vunpack.c.0.s8 %v5041
        %v5043 = vlaneseq
        %v5044 = vshrl.u32 %v5043, 7
        %v5045 = vsub.s32 %v5042, %v5044
        %v5046 = vrot.slane %v5032, %v5045
        %v5047 = vcombine.low %v4919, %v4983
        %v5048 = vcombine.high %v4919, %v4983
        %v5050 = vunpack.c.l.s4 1983009808
        %v5051 = vunpack.c.0.s8 %v5050
        %v5052 = vlaneseq
        %v5053 = vshrl.u32 %v5052, 7
        %v5054 = vsub.s32 %v5051, %v5053
        %v5055 = vrot.slane %v5047, %v5054
        %v5057 = vunpack.c.l.s4 1983009808
        %v5058 = vunpack.c.0.s8 %v5057
        %v5059 = vlaneseq
        %v5060 = vshrl.u32 %v5059, 7
        %v5061 = vsub.s32 %v5058, %v5060
        %v5062 = vrot.slane %v5048, %v5061
        %v5063 = vcombine.low %v5007, %v5023
        %v5064 = vcombine.high %v5007, %v5023
        %v5066 = vunpack.c.l.s4 1934713408
        %v5067 = vunpack.c.0.s8 %v5066
        %v5068 = vlaneseq
        %v5069 = vshrl.u32 %v5068, 7
        %v5070 = vsub.s32 %v5067, %v5069
        %v5071 = vrot.slane %v5063, %v5070
        %v5073 = vunpack.c.l.s4 1934713408
        %v5074 = vunpack.c.0.s8 %v5073
        %v5075 = vlaneseq
        %v5076 = vshrl.u32 %v5075, 7
        %v5077 = vsub.s32 %v5074, %v5076
        %v5078 = vrot.slane %v5064, %v5077
        %v5079 = vcombine.low %v5014, %v5030
        %v5080 = vcombine.high %v5014, %v5030
        %v5082 = vunpack.c.l.s4 1934713408
        %v5083 = vunpack.c.0.s8 %v5082
        %v5084 = vlaneseq
        %v5085 = vshrl.u32 %v5084, 7
        %v5086 = vsub.s32 %v5083, %v5085
        %v5087 = vrot.slane %v5079, %v5086
        %v5089 = vunpack.c.l.s4 1934713408
        %v5090 = vunpack.c.0.s8 %v5089
        %v5091 = vlaneseq
        %v5092 = vshrl.u32 %v5091, 7
        %v5093 = vsub.s32 %v5090, %v5092
        %v5094 = vrot.slane %v5080, %v5093
        %v5095 = vcombine.low %v5039, %v5055
        %v5096 = vcombine.high %v5039, %v5055
        %v5098 = vunpack.c.l.s4 1934713408
        %v5099 = vunpack.c.0.s8 %v5098
        %v5100 = vlaneseq
        %v5101 = vshrl.u32 %v5100, 7
        %v5102 = vsub.s32 %v5099, %v5101
        %v5103 = vrot.slane %v5095, %v5102
        %v5105 = vunpack.c.l.s4 1934713408
        %v5106 = vunpack.c.0.s8 %v5105
        %v5107 = vlaneseq
        %v5108 = vshrl.u32 %v5107, 7
        %v5109 = vsub.s32 %v5106, %v5108
        %v5110 = vrot.slane %v5096, %v5109
        %v5111 = vcombine.low %v5046, %v5062
        %v5112 = vcombine.high %v5046, %v5062
        %v5114 = vunpack.c.l.s4 1934713408
        %v5115 = vunpack.c.0.s8 %v5114
        %v5116 = vlaneseq
        %v5117 = vshrl.u32 %v5116, 7
        %v5118 = vsub.s32 %v5115, %v5117
        %v5119 = vrot.slane %v5111, %v5118
        %v5121 = vunpack.c.l.s4 1934713408
        %v5122 = vunpack.c.0.s8 %v5121
        %v5123 = vlaneseq
        %v5124 = vshrl.u32 %v5123, 7
        %v5125 = vsub.s32 %v5122, %v5124
        %v5126 = vrot.slane %v5112, %v5125
        %v5127 = vcombine.low %v5071, %v5103
        %v5128 = vcombine.high %v5071, %v5103
        %v5129 = vcombine.low %v5078, %v5110
        %v5130 = vcombine.high %v5078, %v5110
        %v5131 = vcombine.low %v5087, %v5119
        %v5132 = vcombine.high %v5087, %v5119
        %v5133 = vcombine.low %v5094, %v5126
        %v5134 = vcombine.high %v5094, %v5126
        %v5135 = vcombine.low %v4760, %v4824
        %v5136 = vcombine.high %v4760, %v4824
        %v5138 = vunpack.c.l.s4 1983009808
        %v5139 = vunpack.c.0.s8 %v5138
        %v5140 = vlaneseq
        %v5141 = vshrl.u32 %v5140, 7
        %v5142 = vsub.s32 %v5139, %v5141
        %v5143 = vrot.slane %v5135, %v5142
        %v5145 = vunpack.c.l.s4 1983009808
        %v5146 = vunpack.c.0.s8 %v5145
        %v5147 = vlaneseq
        %v5148 = vshrl.u32 %v5147, 7
        %v5149 = vsub.s32 %v5146, %v5148
        %v5150 = vrot.slane %v5136, %v5149
        %v5151 = vcombine.low %v4792, %v4856
        %v5152 = vcombine.high %v4792, %v4856
        %v5154 = vunpack.c.l.s4 1983009808
        %v5155 = vunpack.c.0.s8 %v5154
        %v5156 = vlaneseq
        %v5157 = vshrl.u32 %v5156, 7
        %v5158 = vsub.s32 %v5155, %v5157
        %v5159 = vrot.slane %v5151, %v5158
        %v5161 = vunpack.c.l.s4 1983009808
        %v5162 = vunpack.c.0.s8 %v5161
        %v5163 = vlaneseq
        %v5164 = vshrl.u32 %v5163, 7
        %v5165 = vsub.s32 %v5162, %v5164
        %v5166 = vrot.slane %v5152, %v5165
        %v5167 = vcombine.low %v4888, %v4952
        %v5168 = vcombine.high %v4888, %v4952
        %v5170 = vunpack.c.l.s4 1983009808
        %v5171 = vunpack.c.0.s8 %v5170
        %v5172 = vlaneseq
        %v5173 = vshrl.u32 %v5172, 7
        %v5174 = vsub.s32 %v5171, %v5173
        %v5175 = vrot.slane %v5167, %v5174
        %v5177 = vunpack.c.l.s4 1983009808
        %v5178 = vunpack.c.0.s8 %v5177
        %v5179 = vlaneseq
        %v5180 = vshrl.u32 %v5179, 7
        %v5181 = vsub.s32 %v5178, %v5180
        %v5182 = vrot.slane %v5168, %v5181
        %v5183 = vcombine.low %v4920, %v4984
        %v5184 = vcombine.high %v4920, %v4984
        %v5186 = vunpack.c.l.s4 1983009808
        %v5187 = vunpack.c.0.s8 %v5186
        %v5188 = vlaneseq
        %v5189 = vshrl.u32 %v5188, 7
        %v5190 = vsub.s32 %v5187, %v5189
        %v5191 = vrot.slane %v5183, %v5190
        %v5193 = vunpack.c.l.s4 1983009808
        %v5194 = vunpack.c.0.s8 %v5193
        %v5195 = vlaneseq
        %v5196 = vshrl.u32 %v5195, 7
        %v5197 = vsub.s32 %v5194, %v5196
        %v5198 = vrot.slane %v5184, %v5197
        %v5199 = vcombine.low %v5143, %v5159
        %v5200 = vcombine.high %v5143, %v5159
        %v5202 = vunpack.c.l.s4 1934713408
        %v5203 = vunpack.c.0.s8 %v5202
        %v5204 = vlaneseq
        %v5205 = vshrl.u32 %v5204, 7
        %v5206 = vsub.s32 %v5203, %v5205
        %v5207 = vrot.slane %v5199, %v5206
        %v5209 = vunpack.c.l.s4 1934713408
        %v5210 = vunpack.c.0.s8 %v5209
        %v5211 = vlaneseq
        %v5212 = vshrl.u32 %v5211, 7
        %v5213 = vsub.s32 %v5210, %v5212
        %v5214 = vrot.slane %v5200, %v5213
        %v5215 = vcombine.low %v5150, %v5166
        %v5216 = vcombine.high %v5150, %v5166
        %v5218 = vunpack.c.l.s4 1934713408
        %v5219 = vunpack.c.0.s8 %v5218
        %v5220 = vlaneseq
        %v5221 = vshrl.u32 %v5220, 7
        %v5222 = vsub.s32 %v5219, %v5221
        %v5223 = vrot.slane %v5215, %v5222
        %v5225 = vunpack.c.l.s4 1934713408
        %v5226 = vunpack.c.0.s8 %v5225
        %v5227 = vlaneseq
        %v5228 = vshrl.u32 %v5227, 7
        %v5229 = vsub.s32 %v5226, %v5228
        %v5230 = vrot.slane %v5216, %v5229
        %v5231 = vcombine.low %v5175, %v5191
        %v5232 = vcombine.high %v5175, %v5191
        %v5234 = vunpack.c.l.s4 1934713408
        %v5235 = vunpack.c.0.s8 %v5234
        %v5236 = vlaneseq
        %v5237 = vshrl.u32 %v5236, 7
        %v5238 = vsub.s32 %v5235, %v5237
        %v5239 = vrot.slane %v5231, %v5238
        %v5241 = vunpack.c.l.s4 1934713408
        %v5242 = vunpack.c.0.s8 %v5241
        %v5243 = vlaneseq
        %v5244 = vshrl.u32 %v5243, 7
        %v5245 = vsub.s32 %v5242, %v5244
        %v5246 = vrot.slane %v5232, %v5245
        %v5247 = vcombine.low %v5182, %v5198
        %v5248 = vcombine.high %v5182, %v5198
        %v5250 = vunpack.c.l.s4 1934713408
        %v5251 = vunpack.c.0.s8 %v5250
        %v5252 = vlaneseq
        %v5253 = vshrl.u32 %v5252, 7
        %v5254 = vsub.s32 %v5251, %v5253
        %v5255 = vrot.slane %v5247, %v5254
        %v5257 = vunpack.c.l.s4 1934713408
        %v5258 = vunpack.c.0.s8 %v5257
        %v5259 = vlaneseq
        %v5260 = vshrl.u32 %v5259, 7
        %v5261 = vsub.s32 %v5258, %v5260
        %v5262 = vrot.slane %v5248, %v5261
        %v5263 = vcombine.low %v5207, %v5239
        %v5264 = vcombine.high %v5207, %v5239
        %v5265 = vcombine.low %v5214, %v5246
        %v5266 = vcombine.high %v5214, %v5246
        %v5267 = vcombine.low %v5223, %v5255
        %v5268 = vcombine.high %v5223, %v5255
        %v5269 = vcombine.low %v5230, %v5262
        %v5270 = vcombine.high %v5230, %v5262
        %5271 = vxpose.xlu0.b32.start [1/16] %v5127, 128
        %5272 = vxpose.xlu0.b32.cont [2/16] 0.0, 128
        %5273 = vxpose.xlu0.b32.cont [3/16] 0.0, 128
        %5274 = vxpose.xlu0.b32.cont [4/16] 0.0, 128
        %5275 = vxpose.xlu0.b32.cont [5/16] 0.0, 128
        %5276 = vxpose.xlu0.b32.cont [6/16] 0.0, 128
        %5277 = vxpose.xlu0.b32.cont [7/16] 0.0, 128
        %5278 = vxpose.xlu0.b32.cont [8/16] 0.0, 128
        %5279 = vxpose.xlu0.b32.cont [9/16] 0.0, 128
        %5280 = vxpose.xlu0.b32.cont [10/16] 0.0, 128
        %5281 = vxpose.xlu0.b32.cont [11/16] 0.0, 128
        %5282 = vxpose.xlu0.b32.cont [12/16] 0.0, 128
        %5283 = vxpose.xlu0.b32.cont [13/16] 0.0, 128
        %5284 = vxpose.xlu0.b32.cont [14/16] 0.0, 128
        %5285 = vxpose.xlu0.b32.cont [15/16] 0.0, 128
        %5286 = vxpose.xlu0.b32.end [16/16] 0.0, 128
        %v5287 = vpop.trf.xlu0
        %v5288 = vpop.trf.xlu0
        %v5289 = vpop.trf.xlu0
        %v5290 = vpop.trf.xlu0
        %v5291 = vpop.trf.xlu0
        %v5292 = vpop.trf.xlu0
        %v5293 = vpop.trf.xlu0
        %v5294 = vpop.trf.xlu0
        %v5295 = vpop.trf.xlu0
        %v5296 = vpop.trf.xlu0
        %v5297 = vpop.trf.xlu0
        %v5298 = vpop.trf.xlu0
        %v5299 = vpop.trf.xlu0
        %v5300 = vpop.trf.xlu0
        %v5301 = vpop.trf.xlu0
        %v5302 = vpop.trf.xlu0
        %5303 = vxpose.xlu0.b32.start [1/16] %v5128, 128
        %5304 = vxpose.xlu0.b32.cont [2/16] 0.0, 128
        %5305 = vxpose.xlu0.b32.cont [3/16] 0.0, 128
        %5306 = vxpose.xlu0.b32.cont [4/16] 0.0, 128
        %5307 = vxpose.xlu0.b32.cont [5/16] 0.0, 128
        %5308 = vxpose.xlu0.b32.cont [6/16] 0.0, 128
        %5309 = vxpose.xlu0.b32.cont [7/16] 0.0, 128
        %5310 = vxpose.xlu0.b32.cont [8/16] 0.0, 128
        %5311 = vxpose.xlu0.b32.cont [9/16] 0.0, 128
        %5312 = vxpose.xlu0.b32.cont [10/16] 0.0, 128
        %5313 = vxpose.xlu0.b32.cont [11/16] 0.0, 128
        %5314 = vxpose.xlu0.b32.cont [12/16] 0.0, 128
        %5315 = vxpose.xlu0.b32.cont [13/16] 0.0, 128
        %5316 = vxpose.xlu0.b32.cont [14/16] 0.0, 128
        %5317 = vxpose.xlu0.b32.cont [15/16] 0.0, 128
        %5318 = vxpose.xlu0.b32.end [16/16] 0.0, 128
        %v5319 = vpop.trf.xlu0
        %v5320 = vpop.trf.xlu0
        %v5321 = vpop.trf.xlu0
        %v5322 = vpop.trf.xlu0
        %v5323 = vpop.trf.xlu0
        %v5324 = vpop.trf.xlu0
        %v5325 = vpop.trf.xlu0
        %v5326 = vpop.trf.xlu0
        %v5327 = vpop.trf.xlu0
        %v5328 = vpop.trf.xlu0
        %v5329 = vpop.trf.xlu0
        %v5330 = vpop.trf.xlu0
        %v5331 = vpop.trf.xlu0
        %v5332 = vpop.trf.xlu0
        %v5333 = vpop.trf.xlu0
        %v5334 = vpop.trf.xlu0
        %5335 = vxpose.xlu0.b32.start [1/16] %v5129, 128
        %5336 = vxpose.xlu0.b32.cont [2/16] 0.0, 128
        %5337 = vxpose.xlu0.b32.cont [3/16] 0.0, 128
        %5338 = vxpose.xlu0.b32.cont [4/16] 0.0, 128
        %5339 = vxpose.xlu0.b32.cont [5/16] 0.0, 128
        %5340 = vxpose.xlu0.b32.cont [6/16] 0.0, 128
        %5341 = vxpose.xlu0.b32.cont [7/16] 0.0, 128
        %5342 = vxpose.xlu0.b32.cont [8/16] 0.0, 128
        %5343 = vxpose.xlu0.b32.cont [9/16] 0.0, 128
        %5344 = vxpose.xlu0.b32.cont [10/16] 0.0, 128
        %5345 = vxpose.xlu0.b32.cont [11/16] 0.0, 128
        %5346 = vxpose.xlu0.b32.cont [12/16] 0.0, 128
        %5347 = vxpose.xlu0.b32.cont [13/16] 0.0, 128
        %5348 = vxpose.xlu0.b32.cont [14/16] 0.0, 128
        %5349 = vxpose.xlu0.b32.cont [15/16] 0.0, 128
        %5350 = vxpose.xlu0.b32.end [16/16] 0.0, 128
        %v5351 = vpop.trf.xlu0
        %v5352 = vpop.trf.xlu0
        %v5353 = vpop.trf.xlu0
        %v5354 = vpop.trf.xlu0
        %v5355 = vpop.trf.xlu0
        %v5356 = vpop.trf.xlu0
        %v5357 = vpop.trf.xlu0
        %v5358 = vpop.trf.xlu0
        %v5359 = vpop.trf.xlu0
        %v5360 = vpop.trf.xlu0
        %v5361 = vpop.trf.xlu0
        %v5362 = vpop.trf.xlu0
        %v5363 = vpop.trf.xlu0
        %v5364 = vpop.trf.xlu0
        %v5365 = vpop.trf.xlu0
        %v5366 = vpop.trf.xlu0
        %5367 = vxpose.xlu0.b32.start [1/16] %v5130, 128
        %5368 = vxpose.xlu0.b32.cont [2/16] 0.0, 128
        %5369 = vxpose.xlu0.b32.cont [3/16] 0.0, 128
        %5370 = vxpose.xlu0.b32.cont [4/16] 0.0, 128
        %5371 = vxpose.xlu0.b32.cont [5/16] 0.0, 128
        %5372 = vxpose.xlu0.b32.cont [6/16] 0.0, 128
        %5373 = vxpose.xlu0.b32.cont [7/16] 0.0, 128
        %5374 = vxpose.xlu0.b32.cont [8/16] 0.0, 128
        %5375 = vxpose.xlu0.b32.cont [9/16] 0.0, 128
        %5376 = vxpose.xlu0.b32.cont [10/16] 0.0, 128
        %5377 = vxpose.xlu0.b32.cont [11/16] 0.0, 128
        %5378 = vxpose.xlu0.b32.cont [12/16] 0.0, 128
        %5379 = vxpose.xlu0.b32.cont [13/16] 0.0, 128
        %5380 = vxpose.xlu0.b32.cont [14/16] 0.0, 128
        %5381 = vxpose.xlu0.b32.cont [15/16] 0.0, 128
        %5382 = vxpose.xlu0.b32.end [16/16] 0.0, 128
        %v5383 = vpop.trf.xlu0
        %v5384 = vpop.trf.xlu0
        %v5385 = vpop.trf.xlu0
        %v5386 = vpop.trf.xlu0
        %v5387 = vpop.trf.xlu0
        %v5388 = vpop.trf.xlu0
        %v5389 = vpop.trf.xlu0
        %v5390 = vpop.trf.xlu0
        %v5391 = vpop.trf.xlu0
        %v5392 = vpop.trf.xlu0
        %v5393 = vpop.trf.xlu0
        %v5394 = vpop.trf.xlu0
        %v5395 = vpop.trf.xlu0
        %v5396 = vpop.trf.xlu0
        %v5397 = vpop.trf.xlu0
        %v5398 = vpop.trf.xlu0
        %5399 = vxpose.xlu0.b32.start [1/16] %v5131, 128
        %5400 = vxpose.xlu0.b32.cont [2/16] 0.0, 128
        %5401 = vxpose.xlu0.b32.cont [3/16] 0.0, 128
        %5402 = vxpose.xlu0.b32.cont [4/16] 0.0, 128
        %5403 = vxpose.xlu0.b32.cont [5/16] 0.0, 128
        %5404 = vxpose.xlu0.b32.cont [6/16] 0.0, 128
        %5405 = vxpose.xlu0.b32.cont [7/16] 0.0, 128
        %5406 = vxpose.xlu0.b32.cont [8/16] 0.0, 128
        %5407 = vxpose.xlu0.b32.cont [9/16] 0.0, 128
        %5408 = vxpose.xlu0.b32.cont [10/16] 0.0, 128
        %5409 = vxpose.xlu0.b32.cont [11/16] 0.0, 128
        %5410 = vxpose.xlu0.b32.cont [12/16] 0.0, 128
        %5411 = vxpose.xlu0.b32.cont [13/16] 0.0, 128
        %5412 = vxpose.xlu0.b32.cont [14/16] 0.0, 128
        %5413 = vxpose.xlu0.b32.cont [15/16] 0.0, 128
        %5414 = vxpose.xlu0.b32.end [16/16] 0.0, 128
        %v5415 = vpop.trf.xlu0
        %v5416 = vpop.trf.xlu0
        %v5417 = vpop.trf.xlu0
        %v5418 = vpop.trf.xlu0
        %v5419 = vpop.trf.xlu0
        %v5420 = vpop.trf.xlu0
        %v5421 = vpop.trf.xlu0
        %v5422 = vpop.trf.xlu0
        %v5423 = vpop.trf.xlu0
        %v5424 = vpop.trf.xlu0
        %v5425 = vpop.trf.xlu0
        %v5426 = vpop.trf.xlu0
        %v5427 = vpop.trf.xlu0
        %v5428 = vpop.trf.xlu0
        %v5429 = vpop.trf.xlu0
        %v5430 = vpop.trf.xlu0
        %5431 = vxpose.xlu0.b32.start [1/16] %v5132, 128
        %5432 = vxpose.xlu0.b32.cont [2/16] 0.0, 128
        %5433 = vxpose.xlu0.b32.cont [3/16] 0.0, 128
        %5434 = vxpose.xlu0.b32.cont [4/16] 0.0, 128
        %5435 = vxpose.xlu0.b32.cont [5/16] 0.0, 128
        %5436 = vxpose.xlu0.b32.cont [6/16] 0.0, 128
        %5437 = vxpose.xlu0.b32.cont [7/16] 0.0, 128
        %5438 = vxpose.xlu0.b32.cont [8/16] 0.0, 128
        %5439 = vxpose.xlu0.b32.cont [9/16] 0.0, 128
        %5440 = vxpose.xlu0.b32.cont [10/16] 0.0, 128
        %5441 = vxpose.xlu0.b32.cont [11/16] 0.0, 128
        %5442 = vxpose.xlu0.b32.cont [12/16] 0.0, 128
        %5443 = vxpose.xlu0.b32.cont [13/16] 0.0, 128
        %5444 = vxpose.xlu0.b32.cont [14/16] 0.0, 128
        %5445 = vxpose.xlu0.b32.cont [15/16] 0.0, 128
        %5446 = vxpose.xlu0.b32.end [16/16] 0.0, 128
        %v5447 = vpop.trf.xlu0
        %v5448 = vpop.trf.xlu0
        %v5449 = vpop.trf.xlu0
        %v5450 = vpop.trf.xlu0
        %v5451 = vpop.trf.xlu0
        %v5452 = vpop.trf.xlu0
        %v5453 = vpop.trf.xlu0
        %v5454 = vpop.trf.xlu0
        %v5455 = vpop.trf.xlu0
        %v5456 = vpop.trf.xlu0
        %v5457 = vpop.trf.xlu0
        %v5458 = vpop.trf.xlu0
        %v5459 = vpop.trf.xlu0
        %v5460 = vpop.trf.xlu0
        %v5461 = vpop.trf.xlu0
        %v5462 = vpop.trf.xlu0
        %5463 = vxpose.xlu0.b32.start [1/16] %v5133, 128
        %5464 = vxpose.xlu0.b32.cont [2/16] 0.0, 128
        %5465 = vxpose.xlu0.b32.cont [3/16] 0.0, 128
        %5466 = vxpose.xlu0.b32.cont [4/16] 0.0, 128
        %5467 = vxpose.xlu0.b32.cont [5/16] 0.0, 128
        %5468 = vxpose.xlu0.b32.cont [6/16] 0.0, 128
        %5469 = vxpose.xlu0.b32.cont [7/16] 0.0, 128
        %5470 = vxpose.xlu0.b32.cont [8/16] 0.0, 128
        %5471 = vxpose.xlu0.b32.cont [9/16] 0.0, 128
        %5472 = vxpose.xlu0.b32.cont [10/16] 0.0, 128
        %5473 = vxpose.xlu0.b32.cont [11/16] 0.0, 128
        %5474 = vxpose.xlu0.b32.cont [12/16] 0.0, 128
        %5475 = vxpose.xlu0.b32.cont [13/16] 0.0, 128
        %5476 = vxpose.xlu0.b32.cont [14/16] 0.0, 128
        %5477 = vxpose.xlu0.b32.cont [15/16] 0.0, 128
        %5478 = vxpose.xlu0.b32.end [16/16] 0.0, 128
        %v5479 = vpop.trf.xlu0
        %v5480 = vpop.trf.xlu0
        %v5481 = vpop.trf.xlu0
        %v5482 = vpop.trf.xlu0
        %v5483 = vpop.trf.xlu0
        %v5484 = vpop.trf.xlu0
        %v5485 = vpop.trf.xlu0
        %v5486 = vpop.trf.xlu0
        %v5487 = vpop.trf.xlu0
        %v5488 = vpop.trf.xlu0
        %v5489 = vpop.trf.xlu0
        %v5490 = vpop.trf.xlu0
        %v5491 = vpop.trf.xlu0
        %v5492 = vpop.trf.xlu0
        %v5493 = vpop.trf.xlu0
        %v5494 = vpop.trf.xlu0
        %5495 = vxpose.xlu0.b32.start [1/16] %v5134, 128
        %5496 = vxpose.xlu0.b32.cont [2/16] 0.0, 128
        %5497 = vxpose.xlu0.b32.cont [3/16] 0.0, 128
        %5498 = vxpose.xlu0.b32.cont [4/16] 0.0, 128
        %5499 = vxpose.xlu0.b32.cont [5/16] 0.0, 128
        %5500 = vxpose.xlu0.b32.cont [6/16] 0.0, 128
        %5501 = vxpose.xlu0.b32.cont [7/16] 0.0, 128
        %5502 = vxpose.xlu0.b32.cont [8/16] 0.0, 128
        %5503 = vxpose.xlu0.b32.cont [9/16] 0.0, 128
        %5504 = vxpose.xlu0.b32.cont [10/16] 0.0, 128
        %5505 = vxpose.xlu0.b32.cont [11/16] 0.0, 128
        %5506 = vxpose.xlu0.b32.cont [12/16] 0.0, 128
        %5507 = vxpose.xlu0.b32.cont [13/16] 0.0, 128
        %5508 = vxpose.xlu0.b32.cont [14/16] 0.0, 128
        %5509 = vxpose.xlu0.b32.cont [15/16] 0.0, 128
        %5510 = vxpose.xlu0.b32.end [16/16] 0.0, 128
        %v5511 = vpop.trf.xlu0
        %v5512 = vpop.trf.xlu0
        %v5513 = vpop.trf.xlu0
        %v5514 = vpop.trf.xlu0
        %v5515 = vpop.trf.xlu0
        %v5516 = vpop.trf.xlu0
        %v5517 = vpop.trf.xlu0
        %v5518 = vpop.trf.xlu0
        %v5519 = vpop.trf.xlu0
        %v5520 = vpop.trf.xlu0
        %v5521 = vpop.trf.xlu0
        %v5522 = vpop.trf.xlu0
        %v5523 = vpop.trf.xlu0
        %v5524 = vpop.trf.xlu0
        %v5525 = vpop.trf.xlu0
        %v5526 = vpop.trf.xlu0
        %5527 = vxpose.xlu0.b32.start [1/16] %v5263, 128
        %5528 = vxpose.xlu0.b32.cont [2/16] 0.0, 128
        %5529 = vxpose.xlu0.b32.cont [3/16] 0.0, 128
        %5530 = vxpose.xlu0.b32.cont [4/16] 0.0, 128
        %5531 = vxpose.xlu0.b32.cont [5/16] 0.0, 128
        %5532 = vxpose.xlu0.b32.cont [6/16] 0.0, 128
        %5533 = vxpose.xlu0.b32.cont [7/16] 0.0, 128
        %5534 = vxpose.xlu0.b32.cont [8/16] 0.0, 128
        %5535 = vxpose.xlu0.b32.cont [9/16] 0.0, 128
        %5536 = vxpose.xlu0.b32.cont [10/16] 0.0, 128
        %5537 = vxpose.xlu0.b32.cont [11/16] 0.0, 128
        %5538 = vxpose.xlu0.b32.cont [12/16] 0.0, 128
        %5539 = vxpose.xlu0.b32.cont [13/16] 0.0, 128
        %5540 = vxpose.xlu0.b32.cont [14/16] 0.0, 128
        %5541 = vxpose.xlu0.b32.cont [15/16] 0.0, 128
        %5542 = vxpose.xlu0.b32.end [16/16] 0.0, 128
        %v5543 = vpop.trf.xlu0
        %v5544 = vpop.trf.xlu0
        %v5545 = vpop.trf.xlu0
        %v5546 = vpop.trf.xlu0
        %v5547 = vpop.trf.xlu0
        %v5548 = vpop.trf.xlu0
        %v5549 = vpop.trf.xlu0
        %v5550 = vpop.trf.xlu0
        %v5551 = vpop.trf.xlu0
        %v5552 = vpop.trf.xlu0
        %v5553 = vpop.trf.xlu0
        %v5554 = vpop.trf.xlu0
        %v5555 = vpop.trf.xlu0
        %v5556 = vpop.trf.xlu0
        %v5557 = vpop.trf.xlu0
        %v5558 = vpop.trf.xlu0
        %5559 = vxpose.xlu0.b32.start [1/16] %v5264, 128
        %5560 = vxpose.xlu0.b32.cont [2/16] 0.0, 128
        %5561 = vxpose.xlu0.b32.cont [3/16] 0.0, 128
        %5562 = vxpose.xlu0.b32.cont [4/16] 0.0, 128
        %5563 = vxpose.xlu0.b32.cont [5/16] 0.0, 128
        %5564 = vxpose.xlu0.b32.cont [6/16] 0.0, 128
        %5565 = vxpose.xlu0.b32.cont [7/16] 0.0, 128
        %5566 = vxpose.xlu0.b32.cont [8/16] 0.0, 128
        %5567 = vxpose.xlu0.b32.cont [9/16] 0.0, 128
        %5568 = vxpose.xlu0.b32.cont [10/16] 0.0, 128
        %5569 = vxpose.xlu0.b32.cont [11/16] 0.0, 128
        %5570 = vxpose.xlu0.b32.cont [12/16] 0.0, 128
        %5571 = vxpose.xlu0.b32.cont [13/16] 0.0, 128
        %5572 = vxpose.xlu0.b32.cont [14/16] 0.0, 128
        %5573 = vxpose.xlu0.b32.cont [15/16] 0.0, 128
        %5574 = vxpose.xlu0.b32.end [16/16] 0.0, 128
        %v5575 = vpop.trf.xlu0
        %v5576 = vpop.trf.xlu0
        %v5577 = vpop.trf.xlu0
        %v5578 = vpop.trf.xlu0
        %v5579 = vpop.trf.xlu0
        %v5580 = vpop.trf.xlu0
        %v5581 = vpop.trf.xlu0
        %v5582 = vpop.trf.xlu0
        %v5583 = vpop.trf.xlu0
        %v5584 = vpop.trf.xlu0
        %v5585 = vpop.trf.xlu0
        %v5586 = vpop.trf.xlu0
        %v5587 = vpop.trf.xlu0
        %v5588 = vpop.trf.xlu0
        %v5589 = vpop.trf.xlu0
        %v5590 = vpop.trf.xlu0
        %5591 = vxpose.xlu0.b32.start [1/16] %v5265, 128
        %5592 = vxpose.xlu0.b32.cont [2/16] 0.0, 128
        %5593 = vxpose.xlu0.b32.cont [3/16] 0.0, 128
        %5594 = vxpose.xlu0.b32.cont [4/16] 0.0, 128
        %5595 = vxpose.xlu0.b32.cont [5/16] 0.0, 128
        %5596 = vxpose.xlu0.b32.cont [6/16] 0.0, 128
        %5597 = vxpose.xlu0.b32.cont [7/16] 0.0, 128
        %5598 = vxpose.xlu0.b32.cont [8/16] 0.0, 128
        %5599 = vxpose.xlu0.b32.cont [9/16] 0.0, 128
        %5600 = vxpose.xlu0.b32.cont [10/16] 0.0, 128
        %5601 = vxpose.xlu0.b32.cont [11/16] 0.0, 128
        %5602 = vxpose.xlu0.b32.cont [12/16] 0.0, 128
        %5603 = vxpose.xlu0.b32.cont [13/16] 0.0, 128
        %5604 = vxpose.xlu0.b32.cont [14/16] 0.0, 128
        %5605 = vxpose.xlu0.b32.cont [15/16] 0.0, 128
        %5606 = vxpose.xlu0.b32.end [16/16] 0.0, 128
        %v5607 = vpop.trf.xlu0
        %v5608 = vpop.trf.xlu0
        %v5609 = vpop.trf.xlu0
        %v5610 = vpop.trf.xlu0
        %v5611 = vpop.trf.xlu0
        %v5612 = vpop.trf.xlu0
        %v5613 = vpop.trf.xlu0
        %v5614 = vpop.trf.xlu0
        %v5615 = vpop.trf.xlu0
        %v5616 = vpop.trf.xlu0
        %v5617 = vpop.trf.xlu0
        %v5618 = vpop.trf.xlu0
        %v5619 = vpop.trf.xlu0
        %v5620 = vpop.trf.xlu0
        %v5621 = vpop.trf.xlu0
        %v5622 = vpop.trf.xlu0
        %5623 = vxpose.xlu0.b32.start [1/16] %v5266, 128
        %5624 = vxpose.xlu0.b32.cont [2/16] 0.0, 128
        %5625 = vxpose.xlu0.b32.cont [3/16] 0.0, 128
        %5626 = vxpose.xlu0.b32.cont [4/16] 0.0, 128
        %5627 = vxpose.xlu0.b32.cont [5/16] 0.0, 128
        %5628 = vxpose.xlu0.b32.cont [6/16] 0.0, 128
        %5629 = vxpose.xlu0.b32.cont [7/16] 0.0, 128
        %5630 = vxpose.xlu0.b32.cont [8/16] 0.0, 128
        %5631 = vxpose.xlu0.b32.cont [9/16] 0.0, 128
        %5632 = vxpose.xlu0.b32.cont [10/16] 0.0, 128
        %5633 = vxpose.xlu0.b32.cont [11/16] 0.0, 128
        %5634 = vxpose.xlu0.b32.cont [12/16] 0.0, 128
        %5635 = vxpose.xlu0.b32.cont [13/16] 0.0, 128
        %5636 = vxpose.xlu0.b32.cont [14/16] 0.0, 128
        %5637 = vxpose.xlu0.b32.cont [15/16] 0.0, 128
        %5638 = vxpose.xlu0.b32.end [16/16] 0.0, 128
        %v5639 = vpop.trf.xlu0
        %v5640 = vpop.trf.xlu0
        %v5641 = vpop.trf.xlu0
        %v5642 = vpop.trf.xlu0
        %v5643 = vpop.trf.xlu0
        %v5644 = vpop.trf.xlu0
        %v5645 = vpop.trf.xlu0
        %v5646 = vpop.trf.xlu0
        %v5647 = vpop.trf.xlu0
        %v5648 = vpop.trf.xlu0
        %v5649 = vpop.trf.xlu0
        %v5650 = vpop.trf.xlu0
        %v5651 = vpop.trf.xlu0
        %v5652 = vpop.trf.xlu0
        %v5653 = vpop.trf.xlu0
        %v5654 = vpop.trf.xlu0
        %5655 = vxpose.xlu0.b32.start [1/16] %v5267, 128
        %5656 = vxpose.xlu0.b32.cont [2/16] 0.0, 128
        %5657 = vxpose.xlu0.b32.cont [3/16] 0.0, 128
        %5658 = vxpose.xlu0.b32.cont [4/16] 0.0, 128
        %5659 = vxpose.xlu0.b32.cont [5/16] 0.0, 128
        %5660 = vxpose.xlu0.b32.cont [6/16] 0.0, 128
        %5661 = vxpose.xlu0.b32.cont [7/16] 0.0, 128
        %5662 = vxpose.xlu0.b32.cont [8/16] 0.0, 128
        %5663 = vxpose.xlu0.b32.cont [9/16] 0.0, 128
        %5664 = vxpose.xlu0.b32.cont [10/16] 0.0, 128
        %5665 = vxpose.xlu0.b32.cont [11/16] 0.0, 128
        %5666 = vxpose.xlu0.b32.cont [12/16] 0.0, 128
        %5667 = vxpose.xlu0.b32.cont [13/16] 0.0, 128
        %5668 = vxpose.xlu0.b32.cont [14/16] 0.0, 128
        %5669 = vxpose.xlu0.b32.cont [15/16] 0.0, 128
        %5670 = vxpose.xlu0.b32.end [16/16] 0.0, 128
        %v5671 = vpop.trf.xlu0
        %v5672 = vpop.trf.xlu0
        %v5673 = vpop.trf.xlu0
        %v5674 = vpop.trf.xlu0
        %v5675 = vpop.trf.xlu0
        %v5676 = vpop.trf.xlu0
        %v5677 = vpop.trf.xlu0
        %v5678 = vpop.trf.xlu0
        %v5679 = vpop.trf.xlu0
        %v5680 = vpop.trf.xlu0
        %v5681 = vpop.trf.xlu0
        %v5682 = vpop.trf.xlu0
        %v5683 = vpop.trf.xlu0
        %v5684 = vpop.trf.xlu0
        %v5685 = vpop.trf.xlu0
        %v5686 = vpop.trf.xlu0
        %5687 = vxpose.xlu0.b32.start [1/16] %v5268, 128
        %5688 = vxpose.xlu0.b32.cont [2/16] 0.0, 128
        %5689 = vxpose.xlu0.b32.cont [3/16] 0.0, 128
        %5690 = vxpose.xlu0.b32.cont [4/16] 0.0, 128
        %5691 = vxpose.xlu0.b32.cont [5/16] 0.0, 128
        %5692 = vxpose.xlu0.b32.cont [6/16] 0.0, 128
        %5693 = vxpose.xlu0.b32.cont [7/16] 0.0, 128
        %5694 = vxpose.xlu0.b32.cont [8/16] 0.0, 128
        %5695 = vxpose.xlu0.b32.cont [9/16] 0.0, 128
        %5696 = vxpose.xlu0.b32.cont [10/16] 0.0, 128
        %5697 = vxpose.xlu0.b32.cont [11/16] 0.0, 128
        %5698 = vxpose.xlu0.b32.cont [12/16] 0.0, 128
        %5699 = vxpose.xlu0.b32.cont [13/16] 0.0, 128
        %5700 = vxpose.xlu0.b32.cont [14/16] 0.0, 128
        %5701 = vxpose.xlu0.b32.cont [15/16] 0.0, 128
        %5702 = vxpose.xlu0.b32.end [16/16] 0.0, 128
        %v5703 = vpop.trf.xlu0
        %v5704 = vpop.trf.xlu0
        %v5705 = vpop.trf.xlu0
        %v5706 = vpop.trf.xlu0
        %v5707 = vpop.trf.xlu0
        %v5708 = vpop.trf.xlu0
        %v5709 = vpop.trf.xlu0
        %v5710 = vpop.trf.xlu0
        %v5711 = vpop.trf.xlu0
        %v5712 = vpop.trf.xlu0
        %v5713 = vpop.trf.xlu0
        %v5714 = vpop.trf.xlu0
        %v5715 = vpop.trf.xlu0
        %v5716 = vpop.trf.xlu0
        %v5717 = vpop.trf.xlu0
        %v5718 = vpop.trf.xlu0
        %5719 = vxpose.xlu0.b32.start [1/16] %v5269, 128
        %5720 = vxpose.xlu0.b32.cont [2/16] 0.0, 128
        %5721 = vxpose.xlu0.b32.cont [3/16] 0.0, 128
        %5722 = vxpose.xlu0.b32.cont [4/16] 0.0, 128
        %5723 = vxpose.xlu0.b32.cont [5/16] 0.0, 128
        %5724 = vxpose.xlu0.b32.cont [6/16] 0.0, 128
        %5725 = vxpose.xlu0.b32.cont [7/16] 0.0, 128
        %5726 = vxpose.xlu0.b32.cont [8/16] 0.0, 128
        %5727 = vxpose.xlu0.b32.cont [9/16] 0.0, 128
        %5728 = vxpose.xlu0.b32.cont [10/16] 0.0, 128
        %5729 = vxpose.xlu0.b32.cont [11/16] 0.0, 128
        %5730 = vxpose.xlu0.b32.cont [12/16] 0.0, 128
        %5731 = vxpose.xlu0.b32.cont [13/16] 0.0, 128
        %5732 = vxpose.xlu0.b32.cont [14/16] 0.0, 128
        %5733 = vxpose.xlu0.b32.cont [15/16] 0.0, 128
        %5734 = vxpose.xlu0.b32.end [16/16] 0.0, 128
        %v5735 = vpop.trf.xlu0
        %v5736 = vpop.trf.xlu0
        %v5737 = vpop.trf.xlu0
        %v5738 = vpop.trf.xlu0
        %v5739 = vpop.trf.xlu0
        %v5740 = vpop.trf.xlu0
        %v5741 = vpop.trf.xlu0
        %v5742 = vpop.trf.xlu0
        %v5743 = vpop.trf.xlu0
        %v5744 = vpop.trf.xlu0
        %v5745 = vpop.trf.xlu0
        %v5746 = vpop.trf.xlu0
        %v5747 = vpop.trf.xlu0
        %v5748 = vpop.trf.xlu0
        %v5749 = vpop.trf.xlu0
        %v5750 = vpop.trf.xlu0
        %5751 = vxpose.xlu0.b32.start [1/16] %v5270, 128
        %5752 = vxpose.xlu0.b32.cont [2/16] 0.0, 128
        %5753 = vxpose.xlu0.b32.cont [3/16] 0.0, 128
        %5754 = vxpose.xlu0.b32.cont [4/16] 0.0, 128
        %5755 = vxpose.xlu0.b32.cont [5/16] 0.0, 128
        %5756 = vxpose.xlu0.b32.cont [6/16] 0.0, 128
        %5757 = vxpose.xlu0.b32.cont [7/16] 0.0, 128
        %5758 = vxpose.xlu0.b32.cont [8/16] 0.0, 128
        %5759 = vxpose.xlu0.b32.cont [9/16] 0.0, 128
        %5760 = vxpose.xlu0.b32.cont [10/16] 0.0, 128
        %5761 = vxpose.xlu0.b32.cont [11/16] 0.0, 128
        %5762 = vxpose.xlu0.b32.cont [12/16] 0.0, 128
        %5763 = vxpose.xlu0.b32.cont [13/16] 0.0, 128
        %5764 = vxpose.xlu0.b32.cont [14/16] 0.0, 128
        %5765 = vxpose.xlu0.b32.cont [15/16] 0.0, 128
        %5766 = vxpose.xlu0.b32.end [16/16] 0.0, 128
        %v5767 = vpop.trf.xlu0
        %v5768 = vpop.trf.xlu0
        %v5769 = vpop.trf.xlu0
        %v5770 = vpop.trf.xlu0
        %v5771 = vpop.trf.xlu0
        %v5772 = vpop.trf.xlu0
        %v5773 = vpop.trf.xlu0
        %v5774 = vpop.trf.xlu0
        %v5775 = vpop.trf.xlu0
        %v5776 = vpop.trf.xlu0
        %v5777 = vpop.trf.xlu0
        %v5778 = vpop.trf.xlu0
        %v5779 = vpop.trf.xlu0
        %v5780 = vpop.trf.xlu0
        %v5781 = vpop.trf.xlu0
        %v5782 = vpop.trf.xlu0
        %v5783 = vcombine.low %v5287, %v5351
        %v5785 = vunpack.c.l.s4 1983009808
        %v5786 = vunpack.c.0.s8 %v5785
        %v5787 = vlaneseq
        %v5788 = vshrl.u32 %v5787, 7
        %v5789 = vsub.s32 %v5786, %v5788
        %v5790 = vrot.slane %v5783, %v5789
        %v5791 = vcombine.low %v5319, %v5383
        %v5793 = vunpack.c.l.s4 1983009808
        %v5794 = vunpack.c.0.s8 %v5793
        %v5795 = vlaneseq
        %v5796 = vshrl.u32 %v5795, 7
        %v5797 = vsub.s32 %v5794, %v5796
        %v5798 = vrot.slane %v5791, %v5797
        %v5799 = vcombine.low %v5415, %v5479
        %v5801 = vunpack.c.l.s4 1983009808
        %v5802 = vunpack.c.0.s8 %v5801
        %v5803 = vlaneseq
        %v5804 = vshrl.u32 %v5803, 7
        %v5805 = vsub.s32 %v5802, %v5804
        %v5806 = vrot.slane %v5799, %v5805
        %v5807 = vcombine.low %v5447, %v5511
        %v5809 = vunpack.c.l.s4 1983009808
        %v5810 = vunpack.c.0.s8 %v5809
        %v5811 = vlaneseq
        %v5812 = vshrl.u32 %v5811, 7
        %v5813 = vsub.s32 %v5810, %v5812
        %v5814 = vrot.slane %v5807, %v5813
        %v5815 = vcombine.low %v5790, %v5798
        %v5816 = vcombine.high %v5790, %v5798
        %v5818 = vunpack.c.l.s4 1934713408
        %v5819 = vunpack.c.0.s8 %v5818
        %v5820 = vlaneseq
        %v5821 = vshrl.u32 %v5820, 7
        %v5822 = vsub.s32 %v5819, %v5821
        %v5823 = vrot.slane %v5815, %v5822
        %v5825 = vunpack.c.l.s4 1934713408
        %v5826 = vunpack.c.0.s8 %v5825
        %v5827 = vlaneseq
        %v5828 = vshrl.u32 %v5827, 7
        %v5829 = vsub.s32 %v5826, %v5828
        %v5830 = vrot.slane %v5816, %v5829
        %v5831 = vcombine.low %v5806, %v5814
        %v5832 = vcombine.high %v5806, %v5814
        %v5834 = vunpack.c.l.s4 1934713408
        %v5835 = vunpack.c.0.s8 %v5834
        %v5836 = vlaneseq
        %v5837 = vshrl.u32 %v5836, 7
        %v5838 = vsub.s32 %v5835, %v5837
        %v5839 = vrot.slane %v5831, %v5838
        %v5841 = vunpack.c.l.s4 1934713408
        %v5842 = vunpack.c.0.s8 %v5841
        %v5843 = vlaneseq
        %v5844 = vshrl.u32 %v5843, 7
        %v5845 = vsub.s32 %v5842, %v5844
        %v5846 = vrot.slane %v5832, %v5845
        %v5847 = vcombine.low %v5823, %v5839
        %v5848 = vcombine.high %v5823, %v5839
        %v5849 = vcombine.low %v5830, %v5846
        %v5850 = vcombine.low %v5543, %v5607
        %v5852 = vunpack.c.l.s4 1983009808
        %v5853 = vunpack.c.0.s8 %v5852
        %v5854 = vlaneseq
        %v5855 = vshrl.u32 %v5854, 7
        %v5856 = vsub.s32 %v5853, %v5855
        %v5857 = vrot.slane %v5850, %v5856
        %v5858 = vcombine.low %v5575, %v5639
        %v5860 = vunpack.c.l.s4 1983009808
        %v5861 = vunpack.c.0.s8 %v5860
        %v5862 = vlaneseq
        %v5863 = vshrl.u32 %v5862, 7
        %v5864 = vsub.s32 %v5861, %v5863
        %v5865 = vrot.slane %v5858, %v5864
        %v5866 = vcombine.low %v5671, %v5735
        %v5868 = vunpack.c.l.s4 1983009808
        %v5869 = vunpack.c.0.s8 %v5868
        %v5870 = vlaneseq
        %v5871 = vshrl.u32 %v5870, 7
        %v5872 = vsub.s32 %v5869, %v5871
        %v5873 = vrot.slane %v5866, %v5872
        %v5874 = vcombine.low %v5703, %v5767
        %v5876 = vunpack.c.l.s4 1983009808
        %v5877 = vunpack.c.0.s8 %v5876
        %v5878 = vlaneseq
        %v5879 = vshrl.u32 %v5878, 7
        %v5880 = vsub.s32 %v5877, %v5879
        %v5881 = vrot.slane %v5874, %v5880
        %v5882 = vcombine.low %v5857, %v5865
        %v5883 = vcombine.high %v5857, %v5865
        %v5885 = vunpack.c.l.s4 1934713408
        %v5886 = vunpack.c.0.s8 %v5885
        %v5887 = vlaneseq
        %v5888 = vshrl.u32 %v5887, 7
        %v5889 = vsub.s32 %v5886, %v5888
        %v5890 = vrot.slane %v5882, %v5889
        %v5892 = vunpack.c.l.s4 1934713408
        %v5893 = vunpack.c.0.s8 %v5892
        %v5894 = vlaneseq
        %v5895 = vshrl.u32 %v5894, 7
        %v5896 = vsub.s32 %v5893, %v5895
        %v5897 = vrot.slane %v5883, %v5896
        %v5898 = vcombine.low %v5873, %v5881
        %v5899 = vcombine.high %v5873, %v5881
        %v5901 = vunpack.c.l.s4 1934713408
        %v5902 = vunpack.c.0.s8 %v5901
        %v5903 = vlaneseq
        %v5904 = vshrl.u32 %v5903, 7
        %v5905 = vsub.s32 %v5902, %v5904
        %v5906 = vrot.slane %v5898, %v5905
        %v5908 = vunpack.c.l.s4 1934713408
        %v5909 = vunpack.c.0.s8 %v5908
        %v5910 = vlaneseq
        %v5911 = vshrl.u32 %v5910, 7
        %v5912 = vsub.s32 %v5909, %v5911
        %v5913 = vrot.slane %v5899, %v5912
        %v5914 = vcombine.low %v5890, %v5906
        %v5915 = vcombine.high %v5890, %v5906
        %v5916 = vcombine.low %v5897, %v5913
        %v5917 = vcombine.low %v5847, %v5849
        %v5918 = vcombine.high %v5847, %v5849
        %v5920 = vunpack.c.l.s4 1983009808
        %v5921 = vunpack.c.0.s8 %v5920
        %v5922 = vlaneseq
        %v5923 = vshrl.u32 %v5922, 7
        %v5924 = vsub.s32 %v5921, %v5923
        %v5925 = vrot.slane %v5917, %v5924
        %v5927 = vunpack.c.l.s4 1983009808
        %v5928 = vunpack.c.0.s8 %v5927
        %v5929 = vlaneseq
        %v5930 = vshrl.u32 %v5929, 7
        %v5931 = vsub.s32 %v5928, %v5930
        %v5932 = vrot.slane %v5918, %v5931
        %v5933 = vcombine.high %v5848, 0.0
        %v5935 = vunpack.c.l.s4 1983009808
        %v5936 = vunpack.c.0.s8 %v5935
        %v5937 = vlaneseq
        %v5938 = vshrl.u32 %v5937, 7
        %v5939 = vsub.s32 %v5936, %v5938
        %v5940 = vrot.slane %v5848, %v5939
        %v5942 = vunpack.c.l.s4 1983009808
        %v5943 = vunpack.c.0.s8 %v5942
        %v5944 = vlaneseq
        %v5945 = vshrl.u32 %v5944, 7
        %v5946 = vsub.s32 %v5943, %v5945
        %v5947 = vrot.slane %v5933, %v5946
        %v5948 = vcombine.low %v5925, %v5940
        %v5949 = vcombine.high %v5925, %v5940
        %v5951 = vunpack.c.l.s4 1934713408
        %v5952 = vunpack.c.0.s8 %v5951
        %v5953 = vlaneseq
        %v5954 = vshrl.u32 %v5953, 7
        %v5955 = vsub.s32 %v5952, %v5954
        %v5956 = vrot.slane %v5948, %v5955
        %v5958 = vunpack.c.l.s4 1934713408
        %v5959 = vunpack.c.0.s8 %v5958
        %v5960 = vlaneseq
        %v5961 = vshrl.u32 %v5960, 7
        %v5962 = vsub.s32 %v5959, %v5961
        %v5963 = vrot.slane %v5949, %v5962
        %v5964 = vcombine.low %v5932, %v5947
        %v5965 = vcombine.high %v5932, %v5947
        %v5967 = vunpack.c.l.s4 1934713408
        %v5968 = vunpack.c.0.s8 %v5967
        %v5969 = vlaneseq
        %v5970 = vshrl.u32 %v5969, 7
        %v5971 = vsub.s32 %v5968, %v5970
        %v5972 = vrot.slane %v5964, %v5971
        %v5974 = vunpack.c.l.s4 1934713408
        %v5975 = vunpack.c.0.s8 %v5974
        %v5976 = vlaneseq
        %v5977 = vshrl.u32 %v5976, 7
        %v5978 = vsub.s32 %v5975, %v5977
        %v5979 = vrot.slane %v5965, %v5978
        %v5980 = vcombine.high %v5956, 0.0
        %v5981 = vcombine.high %v5963, 0.0
        %v5982 = vcombine.high %v5972, 0.0
        %v5983 = vcombine.high %v5979, 0.0
        %v5984 = vcombine.low %v5914, %v5916
        %v5985 = vcombine.high %v5914, %v5916
        %v5987 = vunpack.c.l.s4 1983009808
        %v5988 = vunpack.c.0.s8 %v5987
        %v5989 = vlaneseq
        %v5990 = vshrl.u32 %v5989, 7
        %v5991 = vsub.s32 %v5988, %v5990
        %v5992 = vrot.slane %v5984, %v5991
        %v5994 = vunpack.c.l.s4 1983009808
        %v5995 = vunpack.c.0.s8 %v5994
        %v5996 = vlaneseq
        %v5997 = vshrl.u32 %v5996, 7
        %v5998 = vsub.s32 %v5995, %v5997
        %v5999 = vrot.slane %v5985, %v5998
        %v6000 = vcombine.high %v5915, 0.0
        %v6002 = vunpack.c.l.s4 1983009808
        %v6003 = vunpack.c.0.s8 %v6002
        %v6004 = vlaneseq
        %v6005 = vshrl.u32 %v6004, 7
        %v6006 = vsub.s32 %v6003, %v6005
        %v6007 = vrot.slane %v5915, %v6006
        %v6009 = vunpack.c.l.s4 1983009808
        %v6010 = vunpack.c.0.s8 %v6009
        %v6011 = vlaneseq
        %v6012 = vshrl.u32 %v6011, 7
        %v6013 = vsub.s32 %v6010, %v6012
        %v6014 = vrot.slane %v6000, %v6013
        %v6015 = vcombine.low %v5992, %v6007
        %v6016 = vcombine.high %v5992, %v6007
        %v6018 = vunpack.c.l.s4 1934713408
        %v6019 = vunpack.c.0.s8 %v6018
        %v6020 = vlaneseq
        %v6021 = vshrl.u32 %v6020, 7
        %v6022 = vsub.s32 %v6019, %v6021
        %v6023 = vrot.slane %v6015, %v6022
        %v6025 = vunpack.c.l.s4 1934713408
        %v6026 = vunpack.c.0.s8 %v6025
        %v6027 = vlaneseq
        %v6028 = vshrl.u32 %v6027, 7
        %v6029 = vsub.s32 %v6026, %v6028
        %v6030 = vrot.slane %v6016, %v6029
        %v6031 = vcombine.low %v5999, %v6014
        %v6032 = vcombine.high %v5999, %v6014
        %v6034 = vunpack.c.l.s4 1934713408
        %v6035 = vunpack.c.0.s8 %v6034
        %v6036 = vlaneseq
        %v6037 = vshrl.u32 %v6036, 7
        %v6038 = vsub.s32 %v6035, %v6037
        %v6039 = vrot.slane %v6031, %v6038
        %v6041 = vunpack.c.l.s4 1934713408
        %v6042 = vunpack.c.0.s8 %v6041
        %v6043 = vlaneseq
        %v6044 = vshrl.u32 %v6043, 7
        %v6045 = vsub.s32 %v6042, %v6044
        %v6046 = vrot.slane %v6032, %v6045
        %v6047 = vcombine.high %v6023, 0.0
        %v6048 = vcombine.high %v6030, 0.0
        %v6049 = vcombine.high %v6039, 0.0
        %v6050 = vcombine.high %v6046, 0.0
        %6052 = vrot.lane.b32.xlu0 %v5980, 8
        %v6053 = vpop.permute.xlu0 %6052
        %6056 = vrot.lane.b32.xlu0 %v5963, 16
        %v6057 = vpop.permute.xlu0 %6056
        %6060 = vrot.lane.b32.xlu0 %v5981, 24
        %v6061 = vpop.permute.xlu0 %6060
        %6064 = vrot.lane.b32.xlu0 %v5972, 32
        %v6065 = vpop.permute.xlu0 %6064
        %6068 = vrot.lane.b32.xlu0 %v5982, 40
        %v6069 = vpop.permute.xlu0 %6068
        %6072 = vrot.lane.b32.xlu0 %v5979, 48
        %v6073 = vpop.permute.xlu0 %6072
        %6076 = vrot.lane.b32.xlu0 %v5983, 56
        %v6077 = vpop.permute.xlu0 %6076
        %6080 = vrot.lane.b32.xlu0 %v6023, 64
        %v6081 = vpop.permute.xlu0 %6080
        %6084 = vrot.lane.b32.xlu0 %v6047, 72
        %v6085 = vpop.permute.xlu0 %6084
        %6088 = vrot.lane.b32.xlu0 %v6030, 80
        %v6089 = vpop.permute.xlu0 %6088
        %6092 = vrot.lane.b32.xlu0 %v6048, 88
        %v6093 = vpop.permute.xlu0 %6092
        %6096 = vrot.lane.b32.xlu0 %v6039, 96
        %v6097 = vpop.permute.xlu0 %6096
        %6100 = vrot.lane.b32.xlu0 %v6049, 104
        %v6101 = vpop.permute.xlu0 %6100
        %6104 = vrot.lane.b32.xlu0 %v6046, 112
        %v6105 = vpop.permute.xlu0 %6104
        %6108 = vrot.lane.b32.xlu0 %v6050, 120
        %v6109 = vpop.permute.xlu0 %6108
        %v6111 = vsel %vm2238, %v5956, %v6053
        %v6112 = vsel %vm2451, %v6111, %v6057
        %vm6113 = vcmask 195584
        %v6114 = vsel %vm6113, %v6112, %v6061
        %v6115 = vsel %vm1363, %v6114, %v6065
        %vm6116 = vcmask 326656
        %v6117 = vsel %vm6116, %v6115, %v6069
        %v6118 = vsel %vm3647, %v6117, %v6073
        %vm6119 = vcmask 457728
        %v6120 = vsel %vm6119, %v6118, %v6077
        %v6121 = vsel %vm2846, %v6120, %v6081
        %vm6122 = vcmask 588800
        %v6123 = vsel %vm6122, %v6121, %v6085
        %vm6124 = vcmask 654336
        %v6125 = vsel %vm6124, %v6123, %v6089
        %vm6126 = vcmask 719872
        %v6127 = vsel %vm6126, %v6125, %v6093
        %v6128 = vsel %vm3813, %v6127, %v6097
        %vm6129 = vcmask 850944
        %v6130 = vsel %vm6129, %v6128, %v6101
        %vm6131 = vcmask 916480
        %v6132 = vsel %vm6131, %v6130, %v6105
        %vm6133 = vcmask 982016
        %v6134 = vsel %vm6133, %v6132, %v6109
        %v6135 = vpack.c.bf16 %v6134, %v6134
        %v6136 = vld [vmem:[%s49] sm:$0xff]
        %v6137 = vld [vmem:[%s49 + $0x8] sm:$0xf]
        %v6138 = vld [vmem:[%s49 + $0xc] sm:$0xff]
        %v6139 = vld [vmem:[%s49 + $0x14] sm:$0xf]
        %v6140 = vld [vmem:[%s49 + $0x18] sm:$0xff]
        %v6141 = vld [vmem:[%s49 + $0x20] sm:$0xf]
        %v6142 = vld [vmem:[%s49 + $0x24] sm:$0xff]
        %v6143 = vld [vmem:[%s49 + $0x2c] sm:$0xf]
        %v6144 = vld [vmem:[%s49 + $0x30] sm:$0xff]
        %v6145 = vld [vmem:[%s49 + $0x38] sm:$0xf]
        %v6146 = vld [vmem:[%s49 + $0x3c] sm:$0xff]
        %v6147 = vld [vmem:[%s49 + $0x44] sm:$0xf]
        %v6148 = vld [vmem:[%s49 + $0x48] sm:$0xff]
        %v6149 = vld [vmem:[%s49 + $0x50] sm:$0xf]
        %v6150 = vld [vmem:[%s49 + $0x54] sm:$0xff]
        %v6151 = vld [vmem:[%s49 + $0x5c] sm:$0xf]
        %v6152 = vld [vmem:[%s49 + $0x60] sm:$0xff]
        %v6153 = vld [vmem:[%s49 + $0x68] sm:$0xf]
        %v6154 = vld [vmem:[%s49 + $0x6c] sm:$0xff]
        %v6155 = vld [vmem:[%s49 + $0x74] sm:$0xf]
        %v6156 = vld [vmem:[%s49 + $0x78] sm:$0xff]
        %v6157 = vld [vmem:[%s49 + $0x80] sm:$0xf]
        %v6158 = vld [vmem:[%s49 + $0x84] sm:$0xff]
        %v6159 = vld [vmem:[%s49 + $0x8c] sm:$0xf]
        %v6160 = vld [vmem:[%s49 + $0x90] sm:$0xff]
        %v6161 = vld [vmem:[%s49 + $0x98] sm:$0xf]
        %v6162 = vld [vmem:[%s49 + $0x9c] sm:$0xff]
        %v6163 = vld [vmem:[%s49 + $0xa4] sm:$0xf]
        %v6164 = vld [vmem:[%s49 + $0xa8] sm:$0xff]
        %v6165 = vld [vmem:[%s49 + $0xb0] sm:$0xf]
        %v6166 = vld [vmem:[%s49 + $0xb4] sm:$0xff]
        %v6167 = vld [vmem:[%s49 + $0xbc] sm:$0xf]
        %v6168 = vld [vmem:[%s51] sm:$0x7]
        %v6170 = vlaneseq
        %v6171 = vshrl.u32 %v6170, 7
        %v6172 = vsub.s32 0, %v6171
        %v6173 = vrot.slane %v6168, %v6172
        %v6174 = vlaneseq
        %v6175 = vshrl.u32 %v6174, 7
        %v6176 = vsub.s32 1, %v6175
        %v6177 = vrot.slane %v6168, %v6176
        %v6178 = vlaneseq
        %v6179 = vshrl.u32 %v6178, 7
        %v6180 = vsub.s32 2, %v6179
        %v6181 = vrot.slane %v6168, %v6180
        %v6217 = vunpack.c.l.b16 %v6136
        %v6218 = vunpack.c.h.b16 %v6136
        %v6219 = vunpack.c.l.b16 %v6137
        %v6220 = vunpack.c.l.b16 %v6138
        %v6221 = vunpack.c.h.b16 %v6138
        %v6222 = vunpack.c.l.b16 %v6139
        %v6223 = vunpack.c.l.b16 %v6140
        %v6224 = vunpack.c.h.b16 %v6140
        %v6225 = vunpack.c.l.b16 %v6141
        %v6226 = vunpack.c.l.b16 %v6142
        %v6227 = vunpack.c.h.b16 %v6142
        %v6228 = vunpack.c.l.b16 %v6143
        %v6229 = vunpack.c.l.b16 %v6144
        %v6230 = vunpack.c.h.b16 %v6144
        %v6231 = vunpack.c.l.b16 %v6145
        %v6232 = vunpack.c.l.b16 %v6146
        %v6233 = vunpack.c.h.b16 %v6146
        %v6234 = vunpack.c.l.b16 %v6147
        %v6235 = vunpack.c.l.b16 %v6148
        %v6236 = vunpack.c.h.b16 %v6148
        %v6237 = vunpack.c.l.b16 %v6149
        %v6238 = vunpack.c.l.b16 %v6150
        %v6239 = vunpack.c.h.b16 %v6150
        %v6240 = vunpack.c.l.b16 %v6151
        %v6241 = vunpack.c.l.b16 %v6152
        %v6242 = vunpack.c.h.b16 %v6152
        %v6243 = vunpack.c.l.b16 %v6153
        %v6244 = vunpack.c.l.b16 %v6154
        %v6245 = vunpack.c.h.b16 %v6154
        %v6246 = vunpack.c.l.b16 %v6155
        %v6247 = vunpack.c.l.b16 %v6156
        %v6248 = vunpack.c.h.b16 %v6156
        %v6249 = vunpack.c.l.b16 %v6157
        %v6250 = vunpack.c.l.b16 %v6158
        %v6251 = vunpack.c.h.b16 %v6158
        %v6252 = vunpack.c.l.b16 %v6159
        %v6253 = vunpack.c.l.b16 %v6160
        %v6254 = vunpack.c.h.b16 %v6160
        %v6255 = vunpack.c.l.b16 %v6161
        %v6256 = vunpack.c.l.b16 %v6162
        %v6257 = vunpack.c.h.b16 %v6162
        %v6258 = vunpack.c.l.b16 %v6163
        %v6259 = vunpack.c.l.b16 %v6164
        %v6260 = vunpack.c.h.b16 %v6164
        %v6261 = vunpack.c.l.b16 %v6165
        %v6262 = vunpack.c.l.b16 %v6166
        %v6263 = vunpack.c.h.b16 %v6166
        %v6264 = vunpack.c.l.b16 %v6167
        %v6265 = vpack.c.b16 %v6220, %v6217
        %v6266 = vpack.c.b16 %v6221, %v6218
        %v6267 = vpack.c.b16 %v6222, %v6219
        %v6268 = vpack.c.b16 %v6226, %v6223
        %v6269 = vpack.c.b16 %v6227, %v6224
        %v6270 = vpack.c.b16 %v6228, %v6225
        %v6271 = vpack.c.b16 %v6232, %v6229
        %v6272 = vpack.c.b16 %v6233, %v6230
        %v6273 = vpack.c.b16 %v6234, %v6231
        %v6274 = vpack.c.b16 %v6238, %v6235
        %v6275 = vpack.c.b16 %v6239, %v6236
        %v6276 = vpack.c.b16 %v6240, %v6237
        %v6277 = vpack.c.b16 %v6244, %v6241
        %v6278 = vpack.c.b16 %v6245, %v6242
        %v6279 = vpack.c.b16 %v6246, %v6243
        %v6280 = vpack.c.b16 %v6250, %v6247
        %v6281 = vpack.c.b16 %v6251, %v6248
        %v6282 = vpack.c.b16 %v6252, %v6249
        %v6283 = vpack.c.b16 %v6256, %v6253
        %v6284 = vpack.c.b16 %v6257, %v6254
        %v6285 = vpack.c.b16 %v6258, %v6255
        %v6286 = vpack.c.b16 %v6262, %v6259
        %v6287 = vpack.c.b16 %v6263, %v6260
        %v6288 = vpack.c.b16 %v6264, %v6261
        %6313 = vmatprep.subr.bf16.mxu0 %v6266
        %6314 = vmatpush1.bf16.msra.mxu0 %v6265
        %6315 = vmatprep.subr.bf16.mxu0 %v6269
        %6316 = vmatpush1.bf16.msra.mxu0 %v6268
        %6317 = vmatprep.subr.bf16.mxu0 %v6272
        %6318 = vmatpush1.bf16.msra.mxu0 %v6271
        %6319 = vmatprep.subr.bf16.mxu0 %v6275
        %6320 = vmatpush1.bf16.msra.mxu0 %v6274
        %6321 = vmatprep.subr.bf16.mxu0 %v6278
        %6322 = vmatpush1.bf16.msra.mxu0 %v6277
        %6323 = vmatprep.subr.bf16.mxu0 %v6281
        %6324 = vmatpush1.bf16.msra.mxu0 %v6280
        %6325 = vmatprep.subr.bf16.mxu0 %v6284
        %6326 = vmatpush1.bf16.msra.mxu0 %v6283
        %6327 = vmatprep.subr.bf16.mxu0 %v6287
        %6328 = vmatpush1.bf16.msra.mxu0 %v6286
        %6329 = vmatprep.subr.bf16.mxu0 0
        %6330 = vmatpush1.bf16.msra.mxu0 0
        %6331 = vmatprep.subr.bf16.mxu0 0
        %6332 = vmatpush1.bf16.msra.mxu0 0
        %6333 = vmatprep.subr.bf16.mxu0 0
        %6334 = vmatpush1.bf16.msra.mxu0 0
        %6335 = vmatprep.subr.bf16.mxu0 0
        %6336 = vmatpush1.bf16.msra.mxu0 0
        %6337 = vmatprep.subr.bf16.mxu0 0
        %6338 = vmatpush1.bf16.msra.mxu0 0
        %6339 = vmatprep.subr.bf16.mxu0 0
        %6340 = vmatpush1.bf16.msra.mxu0 0
        %6341 = vmatprep.subr.bf16.mxu0 0
        %6342 = vmatpush1.bf16.msra.mxu0 0
        %6343 = vmatprep.subr.bf16.mxu0 0
        %6344 = vmatpush1.bf16.msra.mxu0 0
        %6345 = vmatprep.mubr.bf16.mxu0 0
        %6346 = vmatmul.mubr.bf16.gmra.mrb[0].mxu0 %v6135
        %v6347 = vpop.f32.mrb[0].mxu0
        %v6348 = vadd.f32 %v6173, %v6347
        %v6349 = vpop.f32.mrb[0].mxu0
        %v6350 = vadd.f32 %v6177, %v6349
        %v6351 = vpop.f32.mrb[0].mxu0
        %v6352 = vpop.f32.mrb[0].mxu0
        %6353 = vdwg.mxu0
        %6354 = vmatprep.subr.bf16.mxu0 0
        %6355 = vmatpush1.bf16.msra.mxu0 %v6267
        %6356 = vmatprep.subr.bf16.mxu0 0
        %6357 = vmatpush1.bf16.msra.mxu0 %v6270
        %6358 = vmatprep.subr.bf16.mxu0 0
        %6359 = vmatpush1.bf16.msra.mxu0 %v6273
        %6360 = vmatprep.subr.bf16.mxu0 0
        %6361 = vmatpush1.bf16.msra.mxu0 %v6276
        %6362 = vmatprep.subr.bf16.mxu0 0
        %6363 = vmatpush1.bf16.msra.mxu0 %v6279
        %6364 = vmatprep.subr.bf16.mxu0 0
        %6365 = vmatpush1.bf16.msra.mxu0 %v6282
        %6366 = vmatprep.subr.bf16.mxu0 0
        %6367 = vmatpush1.bf16.msra.mxu0 %v6285
        %6368 = vmatprep.subr.bf16.mxu0 0
        %6369 = vmatpush1.bf16.msra.mxu0 %v6288
        %6370 = vmatprep.subr.bf16.mxu0 0
        %6371 = vmatpush1.bf16.msra.mxu0 0
        %6372 = vmatprep.subr.bf16.mxu0 0
        %6373 = vmatpush1.bf16.msra.mxu0 0
        %6374 = vmatprep.subr.bf16.mxu0 0
        %6375 = vmatpush1.bf16.msra.mxu0 0
        %6376 = vmatprep.subr.bf16.mxu0 0
        %6377 = vmatpush1.bf16.msra.mxu0 0
        %6378 = vmatprep.subr.bf16.mxu0 0
        %6379 = vmatpush1.bf16.msra.mxu0 0
        %6380 = vmatprep.subr.bf16.mxu0 0
        %6381 = vmatpush1.bf16.msra.mxu0 0
        %6382 = vmatprep.subr.bf16.mxu0 0
        %6383 = vmatpush1.bf16.msra.mxu0 0
        %6384 = vmatprep.subr.bf16.mxu0 0
        %6385 = vmatpush1.bf16.msra.mxu0 0
        %6386 = vmatprep.mubr.bf16.mxu0 0
        %6387 = vmatmul.mubr.bf16.gmra.mrb[0].mxu0 %v6135
        %v6388 = vpop.f32.mrb[0].mxu0
        %v6389 = vadd.f32 %v6181, %v6388
        %v6390 = vpop.f32.mrb[0].mxu0
        %v6391 = vpop.f32.mrb[0].mxu0
        %v6392 = vpop.f32.mrb[0].mxu0
        %6393 = vdwg.mxu0
        %6395 = vrot.lane.b32.xlu0 %v6348, 112
        %v6396 = vpop.permute.xlu0 %6395
        %6398 = vrot.lane.b32.xlu0 %v6348, 96
        %v6399 = vpop.permute.xlu0 %6398
        %6401 = vrot.lane.b32.xlu0 %v6348, 80
        %v6402 = vpop.permute.xlu0 %6401
        %6404 = vrot.lane.b32.xlu0 %v6348, 64
        %v6405 = vpop.permute.xlu0 %6404
        %6407 = vrot.lane.b32.xlu0 %v6348, 48
        %v6408 = vpop.permute.xlu0 %6407
        %6410 = vrot.lane.b32.xlu0 %v6348, 32
        %v6411 = vpop.permute.xlu0 %6410
        %6413 = vrot.lane.b32.xlu0 %v6348, 16
        %v6414 = vpop.permute.xlu0 %6413
        %v6416 = vcombine.low %v6348, %v6399
        %v6418 = vunpack.c.l.s4 1983009808
        %v6419 = vunpack.c.0.s8 %v6418
        %v6420 = vlaneseq
        %v6421 = vshrl.u32 %v6420, 7
        %v6422 = vsub.s32 %v6419, %v6421
        %v6423 = vrot.slane %v6416, %v6422
        %v6424 = vcombine.low %v6396, %v6402
        %v6426 = vunpack.c.l.s4 1983009808
        %v6427 = vunpack.c.0.s8 %v6426
        %v6428 = vlaneseq
        %v6429 = vshrl.u32 %v6428, 7
        %v6430 = vsub.s32 %v6427, %v6429
        %v6431 = vrot.slane %v6424, %v6430
        %v6432 = vcombine.low %v6405, %v6411
        %v6434 = vunpack.c.l.s4 1983009808
        %v6435 = vunpack.c.0.s8 %v6434
        %v6436 = vlaneseq
        %v6437 = vshrl.u32 %v6436, 7
        %v6438 = vsub.s32 %v6435, %v6437
        %v6439 = vrot.slane %v6432, %v6438
        %v6440 = vcombine.low %v6408, %v6414
        %v6442 = vunpack.c.l.s4 1983009808
        %v6443 = vunpack.c.0.s8 %v6442
        %v6444 = vlaneseq
        %v6445 = vshrl.u32 %v6444, 7
        %v6446 = vsub.s32 %v6443, %v6445
        %v6447 = vrot.slane %v6440, %v6446
        %v6448 = vcombine.low %v6423, %v6431
        %v6449 = vcombine.high %v6423, %v6431
        %v6451 = vunpack.c.l.s4 1934713408
        %v6452 = vunpack.c.0.s8 %v6451
        %v6453 = vlaneseq
        %v6454 = vshrl.u32 %v6453, 7
        %v6455 = vsub.s32 %v6452, %v6454
        %v6456 = vrot.slane %v6448, %v6455
        %v6458 = vunpack.c.l.s4 1934713408
        %v6459 = vunpack.c.0.s8 %v6458
        %v6460 = vlaneseq
        %v6461 = vshrl.u32 %v6460, 7
        %v6462 = vsub.s32 %v6459, %v6461
        %v6463 = vrot.slane %v6449, %v6462
        %v6464 = vcombine.low %v6439, %v6447
        %v6465 = vcombine.high %v6439, %v6447
        %v6467 = vunpack.c.l.s4 1934713408
        %v6468 = vunpack.c.0.s8 %v6467
        %v6469 = vlaneseq
        %v6470 = vshrl.u32 %v6469, 7
        %v6471 = vsub.s32 %v6468, %v6470
        %v6472 = vrot.slane %v6464, %v6471
        %v6474 = vunpack.c.l.s4 1934713408
        %v6475 = vunpack.c.0.s8 %v6474
        %v6476 = vlaneseq
        %v6477 = vshrl.u32 %v6476, 7
        %v6478 = vsub.s32 %v6475, %v6477
        %v6479 = vrot.slane %v6465, %v6478
        %v6480 = vcombine.low %v6456, %v6472
        %v6481 = vcombine.high %v6456, %v6472
        %v6482 = vcombine.low %v6463, %v6479
        %v6483 = vcombine.low %v6480, %v6482
        %v6484 = vcombine.high %v6480, %v6482
        %v6486 = vunpack.c.l.s4 1983009808
        %v6487 = vunpack.c.0.s8 %v6486
        %v6488 = vlaneseq
        %v6489 = vshrl.u32 %v6488, 7
        %v6490 = vsub.s32 %v6487, %v6489
        %v6491 = vrot.slane %v6483, %v6490
        %v6493 = vunpack.c.l.s4 1983009808
        %v6494 = vunpack.c.0.s8 %v6493
        %v6495 = vlaneseq
        %v6496 = vshrl.u32 %v6495, 7
        %v6497 = vsub.s32 %v6494, %v6496
        %v6498 = vrot.slane %v6484, %v6497
        %v6499 = vcombine.high %v6481, 0.0
        %v6501 = vunpack.c.l.s4 1983009808
        %v6502 = vunpack.c.0.s8 %v6501
        %v6503 = vlaneseq
        %v6504 = vshrl.u32 %v6503, 7
        %v6505 = vsub.s32 %v6502, %v6504
        %v6506 = vrot.slane %v6481, %v6505
        %v6508 = vunpack.c.l.s4 1983009808
        %v6509 = vunpack.c.0.s8 %v6508
        %v6510 = vlaneseq
        %v6511 = vshrl.u32 %v6510, 7
        %v6512 = vsub.s32 %v6509, %v6511
        %v6513 = vrot.slane %v6499, %v6512
        %v6514 = vcombine.low %v6491, %v6506
        %v6515 = vcombine.high %v6491, %v6506
        %v6517 = vunpack.c.l.s4 1934713408
        %v6518 = vunpack.c.0.s8 %v6517
        %v6519 = vlaneseq
        %v6520 = vshrl.u32 %v6519, 7
        %v6521 = vsub.s32 %v6518, %v6520
        %v6522 = vrot.slane %v6514, %v6521
        %v6524 = vunpack.c.l.s4 1934713408
        %v6525 = vunpack.c.0.s8 %v6524
        %v6526 = vlaneseq
        %v6527 = vshrl.u32 %v6526, 7
        %v6528 = vsub.s32 %v6525, %v6527
        %v6529 = vrot.slane %v6515, %v6528
        %v6530 = vcombine.low %v6498, %v6513
        %v6531 = vcombine.high %v6498, %v6513
        %v6533 = vunpack.c.l.s4 1934713408
        %v6534 = vunpack.c.0.s8 %v6533
        %v6535 = vlaneseq
        %v6536 = vshrl.u32 %v6535, 7
        %v6537 = vsub.s32 %v6534, %v6536
        %v6538 = vrot.slane %v6530, %v6537
        %v6540 = vunpack.c.l.s4 1934713408
        %v6541 = vunpack.c.0.s8 %v6540
        %v6542 = vlaneseq
        %v6543 = vshrl.u32 %v6542, 7
        %v6544 = vsub.s32 %v6541, %v6543
        %v6545 = vrot.slane %v6531, %v6544
        %v6546 = vcombine.high %v6522, 0.0
        %v6547 = vcombine.high %v6529, 0.0
        %v6548 = vcombine.high %v6538, 0.0
        %v6549 = vcombine.high %v6545, 0.0
        %6551 = vrot.lane.b32.xlu0 %v6350, 112
        %v6552 = vpop.permute.xlu0 %6551
        %6554 = vrot.lane.b32.xlu0 %v6350, 96
        %v6555 = vpop.permute.xlu0 %6554
        %6557 = vrot.lane.b32.xlu0 %v6350, 80
        %v6558 = vpop.permute.xlu0 %6557
        %6560 = vrot.lane.b32.xlu0 %v6350, 64
        %v6561 = vpop.permute.xlu0 %6560
        %6563 = vrot.lane.b32.xlu0 %v6350, 48
        %v6564 = vpop.permute.xlu0 %6563
        %6566 = vrot.lane.b32.xlu0 %v6350, 32
        %v6567 = vpop.permute.xlu0 %6566
        %6569 = vrot.lane.b32.xlu0 %v6350, 16
        %v6570 = vpop.permute.xlu0 %6569
        %v6572 = vcombine.low %v6350, %v6555
        %v6574 = vunpack.c.l.s4 1983009808
        %v6575 = vunpack.c.0.s8 %v6574
        %v6576 = vlaneseq
        %v6577 = vshrl.u32 %v6576, 7
        %v6578 = vsub.s32 %v6575, %v6577
        %v6579 = vrot.slane %v6572, %v6578
        %v6580 = vcombine.low %v6552, %v6558
        %v6582 = vunpack.c.l.s4 1983009808
        %v6583 = vunpack.c.0.s8 %v6582
        %v6584 = vlaneseq
        %v6585 = vshrl.u32 %v6584, 7
        %v6586 = vsub.s32 %v6583, %v6585
        %v6587 = vrot.slane %v6580, %v6586
        %v6588 = vcombine.low %v6561, %v6567
        %v6590 = vunpack.c.l.s4 1983009808
        %v6591 = vunpack.c.0.s8 %v6590
        %v6592 = vlaneseq
        %v6593 = vshrl.u32 %v6592, 7
        %v6594 = vsub.s32 %v6591, %v6593
        %v6595 = vrot.slane %v6588, %v6594
        %v6596 = vcombine.low %v6564, %v6570
        %v6598 = vunpack.c.l.s4 1983009808
        %v6599 = vunpack.c.0.s8 %v6598
        %v6600 = vlaneseq
        %v6601 = vshrl.u32 %v6600, 7
        %v6602 = vsub.s32 %v6599, %v6601
        %v6603 = vrot.slane %v6596, %v6602
        %v6604 = vcombine.low %v6579, %v6587
        %v6605 = vcombine.high %v6579, %v6587
        %v6607 = vunpack.c.l.s4 1934713408
        %v6608 = vunpack.c.0.s8 %v6607
        %v6609 = vlaneseq
        %v6610 = vshrl.u32 %v6609, 7
        %v6611 = vsub.s32 %v6608, %v6610
        %v6612 = vrot.slane %v6604, %v6611
        %v6614 = vunpack.c.l.s4 1934713408
        %v6615 = vunpack.c.0.s8 %v6614
        %v6616 = vlaneseq
        %v6617 = vshrl.u32 %v6616, 7
        %v6618 = vsub.s32 %v6615, %v6617
        %v6619 = vrot.slane %v6605, %v6618
        %v6620 = vcombine.low %v6595, %v6603
        %v6621 = vcombine.high %v6595, %v6603
        %v6623 = vunpack.c.l.s4 1934713408
        %v6624 = vunpack.c.0.s8 %v6623
        %v6625 = vlaneseq
        %v6626 = vshrl.u32 %v6625, 7
        %v6627 = vsub.s32 %v6624, %v6626
        %v6628 = vrot.slane %v6620, %v6627
        %v6630 = vunpack.c.l.s4 1934713408
        %v6631 = vunpack.c.0.s8 %v6630
        %v6632 = vlaneseq
        %v6633 = vshrl.u32 %v6632, 7
        %v6634 = vsub.s32 %v6631, %v6633
        %v6635 = vrot.slane %v6621, %v6634
        %v6636 = vcombine.low %v6612, %v6628
        %v6637 = vcombine.high %v6612, %v6628
        %v6638 = vcombine.low %v6619, %v6635
        %v6639 = vcombine.low %v6636, %v6638
        %v6640 = vcombine.high %v6636, %v6638
        %v6642 = vunpack.c.l.s4 1983009808
        %v6643 = vunpack.c.0.s8 %v6642
        %v6644 = vlaneseq
        %v6645 = vshrl.u32 %v6644, 7
        %v6646 = vsub.s32 %v6643, %v6645
        %v6647 = vrot.slane %v6639, %v6646
        %v6649 = vunpack.c.l.s4 1983009808
        %v6650 = vunpack.c.0.s8 %v6649
        %v6651 = vlaneseq
        %v6652 = vshrl.u32 %v6651, 7
        %v6653 = vsub.s32 %v6650, %v6652
        %v6654 = vrot.slane %v6640, %v6653
        %v6655 = vcombine.high %v6637, 0.0
        %v6657 = vunpack.c.l.s4 1983009808
        %v6658 = vunpack.c.0.s8 %v6657
        %v6659 = vlaneseq
        %v6660 = vshrl.u32 %v6659, 7
        %v6661 = vsub.s32 %v6658, %v6660
        %v6662 = vrot.slane %v6637, %v6661
        %v6664 = vunpack.c.l.s4 1983009808
        %v6665 = vunpack.c.0.s8 %v6664
        %v6666 = vlaneseq
        %v6667 = vshrl.u32 %v6666, 7
        %v6668 = vsub.s32 %v6665, %v6667
        %v6669 = vrot.slane %v6655, %v6668
        %v6670 = vcombine.low %v6647, %v6662
        %v6671 = vcombine.high %v6647, %v6662
        %v6673 = vunpack.c.l.s4 1934713408
        %v6674 = vunpack.c.0.s8 %v6673
        %v6675 = vlaneseq
        %v6676 = vshrl.u32 %v6675, 7
        %v6677 = vsub.s32 %v6674, %v6676
        %v6678 = vrot.slane %v6670, %v6677
        %v6680 = vunpack.c.l.s4 1934713408
        %v6681 = vunpack.c.0.s8 %v6680
        %v6682 = vlaneseq
        %v6683 = vshrl.u32 %v6682, 7
        %v6684 = vsub.s32 %v6681, %v6683
        %v6685 = vrot.slane %v6671, %v6684
        %v6686 = vcombine.low %v6654, %v6669
        %v6687 = vcombine.high %v6654, %v6669
        %v6689 = vunpack.c.l.s4 1934713408
        %v6690 = vunpack.c.0.s8 %v6689
        %v6691 = vlaneseq
        %v6692 = vshrl.u32 %v6691, 7
        %v6693 = vsub.s32 %v6690, %v6692
        %v6694 = vrot.slane %v6686, %v6693
        %v6696 = vunpack.c.l.s4 1934713408
        %v6697 = vunpack.c.0.s8 %v6696
        %v6698 = vlaneseq
        %v6699 = vshrl.u32 %v6698, 7
        %v6700 = vsub.s32 %v6697, %v6699
        %v6701 = vrot.slane %v6687, %v6700
        %v6702 = vcombine.high %v6678, 0.0
        %v6703 = vcombine.high %v6685, 0.0
        %v6704 = vcombine.high %v6694, 0.0
        %v6705 = vcombine.high %v6701, 0.0
        %6707 = vrot.lane.b32.xlu0 %v6389, 112
        %v6708 = vpop.permute.xlu0 %6707
        %6710 = vrot.lane.b32.xlu0 %v6389, 96
        %v6711 = vpop.permute.xlu0 %6710
        %6713 = vrot.lane.b32.xlu0 %v6389, 80
        %v6714 = vpop.permute.xlu0 %6713
        %6716 = vrot.lane.b32.xlu0 %v6389, 64
        %v6717 = vpop.permute.xlu0 %6716
        %6719 = vrot.lane.b32.xlu0 %v6389, 48
        %v6720 = vpop.permute.xlu0 %6719
        %6722 = vrot.lane.b32.xlu0 %v6389, 32
        %v6723 = vpop.permute.xlu0 %6722
        %6725 = vrot.lane.b32.xlu0 %v6389, 16
        %v6726 = vpop.permute.xlu0 %6725
        %v6728 = vcombine.low %v6389, %v6711
        %v6730 = vunpack.c.l.s4 1983009808
        %v6731 = vunpack.c.0.s8 %v6730
        %v6732 = vlaneseq
        %v6733 = vshrl.u32 %v6732, 7
        %v6734 = vsub.s32 %v6731, %v6733
        %v6735 = vrot.slane %v6728, %v6734
        %v6736 = vcombine.low %v6708, %v6714
        %v6738 = vunpack.c.l.s4 1983009808
        %v6739 = vunpack.c.0.s8 %v6738
        %v6740 = vlaneseq
        %v6741 = vshrl.u32 %v6740, 7
        %v6742 = vsub.s32 %v6739, %v6741
        %v6743 = vrot.slane %v6736, %v6742
        %v6744 = vcombine.low %v6717, %v6723
        %v6746 = vunpack.c.l.s4 1983009808
        %v6747 = vunpack.c.0.s8 %v6746
        %v6748 = vlaneseq
        %v6749 = vshrl.u32 %v6748, 7
        %v6750 = vsub.s32 %v6747, %v6749
        %v6751 = vrot.slane %v6744, %v6750
        %v6752 = vcombine.low %v6720, %v6726
        %v6754 = vunpack.c.l.s4 1983009808
        %v6755 = vunpack.c.0.s8 %v6754
        %v6756 = vlaneseq
        %v6757 = vshrl.u32 %v6756, 7
        %v6758 = vsub.s32 %v6755, %v6757
        %v6759 = vrot.slane %v6752, %v6758
        %v6760 = vcombine.low %v6735, %v6743
        %v6761 = vcombine.high %v6735, %v6743
        %v6763 = vunpack.c.l.s4 1934713408
        %v6764 = vunpack.c.0.s8 %v6763
        %v6765 = vlaneseq
        %v6766 = vshrl.u32 %v6765, 7
        %v6767 = vsub.s32 %v6764, %v6766
        %v6768 = vrot.slane %v6760, %v6767
        %v6770 = vunpack.c.l.s4 1934713408
        %v6771 = vunpack.c.0.s8 %v6770
        %v6772 = vlaneseq
        %v6773 = vshrl.u32 %v6772, 7
        %v6774 = vsub.s32 %v6771, %v6773
        %v6775 = vrot.slane %v6761, %v6774
        %v6776 = vcombine.low %v6751, %v6759
        %v6777 = vcombine.high %v6751, %v6759
        %v6779 = vunpack.c.l.s4 1934713408
        %v6780 = vunpack.c.0.s8 %v6779
        %v6781 = vlaneseq
        %v6782 = vshrl.u32 %v6781, 7
        %v6783 = vsub.s32 %v6780, %v6782
        %v6784 = vrot.slane %v6776, %v6783
        %v6786 = vunpack.c.l.s4 1934713408
        %v6787 = vunpack.c.0.s8 %v6786
        %v6788 = vlaneseq
        %v6789 = vshrl.u32 %v6788, 7
        %v6790 = vsub.s32 %v6787, %v6789
        %v6791 = vrot.slane %v6777, %v6790
        %v6792 = vcombine.low %v6768, %v6784
        %v6793 = vcombine.high %v6768, %v6784
        %v6794 = vcombine.low %v6775, %v6791
        %v6795 = vcombine.low %v6792, %v6794
        %v6796 = vcombine.high %v6792, %v6794
        %v6798 = vunpack.c.l.s4 1983009808
        %v6799 = vunpack.c.0.s8 %v6798
        %v6800 = vlaneseq
        %v6801 = vshrl.u32 %v6800, 7
        %v6802 = vsub.s32 %v6799, %v6801
        %v6803 = vrot.slane %v6795, %v6802
        %v6805 = vunpack.c.l.s4 1983009808
        %v6806 = vunpack.c.0.s8 %v6805
        %v6807 = vlaneseq
        %v6808 = vshrl.u32 %v6807, 7
        %v6809 = vsub.s32 %v6806, %v6808
        %v6810 = vrot.slane %v6796, %v6809
        %v6811 = vcombine.high %v6793, 0.0
        %v6813 = vunpack.c.l.s4 1983009808
        %v6814 = vunpack.c.0.s8 %v6813
        %v6815 = vlaneseq
        %v6816 = vshrl.u32 %v6815, 7
        %v6817 = vsub.s32 %v6814, %v6816
        %v6818 = vrot.slane %v6793, %v6817
        %v6820 = vunpack.c.l.s4 1983009808
        %v6821 = vunpack.c.0.s8 %v6820
        %v6822 = vlaneseq
        %v6823 = vshrl.u32 %v6822, 7
        %v6824 = vsub.s32 %v6821, %v6823
        %v6825 = vrot.slane %v6811, %v6824
        %v6826 = vcombine.low %v6803, %v6818
        %v6827 = vcombine.high %v6803, %v6818
        %v6829 = vunpack.c.l.s4 1934713408
        %v6830 = vunpack.c.0.s8 %v6829
        %v6831 = vlaneseq
        %v6832 = vshrl.u32 %v6831, 7
        %v6833 = vsub.s32 %v6830, %v6832
        %v6834 = vrot.slane %v6826, %v6833
        %v6836 = vunpack.c.l.s4 1934713408
        %v6837 = vunpack.c.0.s8 %v6836
        %v6838 = vlaneseq
        %v6839 = vshrl.u32 %v6838, 7
        %v6840 = vsub.s32 %v6837, %v6839
        %v6841 = vrot.slane %v6827, %v6840
        %v6842 = vcombine.low %v6810, %v6825
        %v6843 = vcombine.high %v6810, %v6825
        %v6845 = vunpack.c.l.s4 1934713408
        %v6846 = vunpack.c.0.s8 %v6845
        %v6847 = vlaneseq
        %v6848 = vshrl.u32 %v6847, 7
        %v6849 = vsub.s32 %v6846, %v6848
        %v6850 = vrot.slane %v6842, %v6849
        %v6852 = vunpack.c.l.s4 1934713408
        %v6853 = vunpack.c.0.s8 %v6852
        %v6854 = vlaneseq
        %v6855 = vshrl.u32 %v6854, 7
        %v6856 = vsub.s32 %v6853, %v6855
        %v6857 = vrot.slane %v6843, %v6856
        %v6858 = vcombine.high %v6834, 0.0
        %v6859 = vcombine.high %v6841, 0.0
        %v6860 = vcombine.high %v6850, 0.0
        %v6861 = vcombine.high %v6857, 0.0
        %v6863 = vsel %vm2451, %v6522, 0
        %v6866 = vsel %vm2451, %v6678, 0
        %6868 = vmatprep.subr.mxu0 0.0
        %6869 = vmatpush1.xpose.msra.mxu0 %v6866
        %6870 = vmatprep.subr.mxu0 0.0
        %6871 = vmatpush1.xpose.msra.mxu0 0.0
        %6872 = vmatprep.subr.mxu0 0.0
        %6873 = vmatpush1.xpose.msra.mxu0 0.0
        %6874 = vmatprep.subr.mxu0 0.0
        %6875 = vmatpush1.xpose.msra.mxu0 0.0
        %6876 = vmatprep.subr.mxu0 0.0
        %6877 = vmatpush1.xpose.msra.mxu0 0.0
        %6878 = vmatprep.subr.mxu0 0.0
        %6879 = vmatpush1.xpose.msra.mxu0 0.0
        %6880 = vmatprep.subr.mxu0 0.0
        %6881 = vmatpush1.xpose.msra.mxu0 0.0
        %6882 = vmatprep.subr.mxu0 0.0
        %6883 = vmatpush1.xpose.msra.mxu0 0.0
        %6884 = vmatprep.subr.mxu0 0.0
        %6885 = vmatpush1.xpose.msra.mxu0 0.0
        %6886 = vmatprep.subr.mxu0 0.0
        %6887 = vmatpush1.xpose.msra.mxu0 0.0
        %6888 = vmatprep.subr.mxu0 0.0
        %6889 = vmatpush1.xpose.msra.mxu0 0.0
        %6890 = vmatprep.subr.mxu0 0.0
        %6891 = vmatpush1.xpose.msra.mxu0 0.0
        %6892 = vmatprep.subr.mxu0 0.0
        %6893 = vmatpush1.xpose.msra.mxu0 0.0
        %6894 = vmatprep.subr.mxu0 0.0
        %6895 = vmatpush1.xpose.msra.mxu0 0.0
        %6896 = vmatprep.subr.mxu0 0.0
        %6897 = vmatpush1.xpose.msra.mxu0 0.0
        %6898 = vmatprep.subr.mxu0 0.0
        %6899 = vmatpush1.xpose.msra.mxu0 0.0
        %6900 = vmatprep.subr.mxu0 0.0
        %6901 = vmatpush1.xpose.msra.mxu0 0.0
        %6902 = vmatprep.subr.mxu0 0.0
        %6903 = vmatpush1.xpose.msra.mxu0 0.0
        %6904 = vmatprep.subr.mxu0 0.0
        %6905 = vmatpush1.xpose.msra.mxu0 0.0
        %6906 = vmatprep.subr.mxu0 0.0
        %6907 = vmatpush1.xpose.msra.mxu0 0.0
        %6908 = vmatprep.subr.mxu0 0.0
        %6909 = vmatpush1.xpose.msra.mxu0 0.0
        %6910 = vmatprep.subr.mxu0 0.0
        %6911 = vmatpush1.xpose.msra.mxu0 0.0
        %6912 = vmatprep.subr.mxu0 0.0
        %6913 = vmatpush1.xpose.msra.mxu0 0.0
        %6914 = vmatprep.subr.mxu0 0.0
        %6915 = vmatpush1.xpose.msra.mxu0 0.0
        %6916 = vmatprep.subr.mxu0 0.0
        %6917 = vmatpush1.xpose.msra.mxu0 0.0
        %6918 = vmatprep.subr.mxu0 0.0
        %6919 = vmatpush1.xpose.msra.mxu0 0.0
        %6920 = vmatprep.subr.mxu0 0.0
        %6921 = vmatpush1.xpose.msra.mxu0 0.0
        %6922 = vmatprep.subr.mxu0 0.0
        %6923 = vmatpush1.xpose.msra.mxu0 0.0
        %6924 = vmatprep.subr.mxu0 0.0
        %6925 = vmatpush1.xpose.msra.mxu0 0.0
        %6926 = vmatprep.subr.mxu0 0.0
        %6927 = vmatpush1.xpose.msra.mxu0 0.0
        %6928 = vmatprep.subr.mxu0 0.0
        %6929 = vmatpush1.xpose.msra.mxu0 0.0
        %6930 = vmatprep.subr.mxu0 0.0
        %6931 = vmatpush1.xpose.msra.mxu0 0.0
        %6932 = vmatprep.mubr.f32.mxu0 0.0
        %6933 = vmatmul.mubr.f32.gmra.mrb[0].mxu0 %v6863
        %v6934 = vpop.f32.mrb[0].mxu0
        %v6935 = vadd.f32 0.0, %v6934
        %v6936 = vpop.f32.mrb[0].mxu0
        %6937 = vdwg.mxu0
        %v6939 = vsel %vm2451, %v6546, 0
        %v6942 = vsel %vm2451, %v6702, 0
        %6944 = vmatprep.subr.mxu0 0.0
        %6945 = vmatpush1.xpose.msra.mxu0 %v6942
        %6946 = vmatprep.subr.mxu0 0.0
        %6947 = vmatpush1.xpose.msra.mxu0 0.0
        %6948 = vmatprep.subr.mxu0 0.0
        %6949 = vmatpush1.xpose.msra.mxu0 0.0
        %6950 = vmatprep.subr.mxu0 0.0
        %6951 = vmatpush1.xpose.msra.mxu0 0.0
        %6952 = vmatprep.subr.mxu0 0.0
        %6953 = vmatpush1.xpose.msra.mxu0 0.0
        %6954 = vmatprep.subr.mxu0 0.0
        %6955 = vmatpush1.xpose.msra.mxu0 0.0
        %6956 = vmatprep.subr.mxu0 0.0
        %6957 = vmatpush1.xpose.msra.mxu0 0.0
        %6958 = vmatprep.subr.mxu0 0.0
        %6959 = vmatpush1.xpose.msra.mxu0 0.0
        %6960 = vmatprep.subr.mxu0 0.0
        %6961 = vmatpush1.xpose.msra.mxu0 0.0
        %6962 = vmatprep.subr.mxu0 0.0
        %6963 = vmatpush1.xpose.msra.mxu0 0.0
        %6964 = vmatprep.subr.mxu0 0.0
        %6965 = vmatpush1.xpose.msra.mxu0 0.0
        %6966 = vmatprep.subr.mxu0 0.0
        %6967 = vmatpush1.xpose.msra.mxu0 0.0
        %6968 = vmatprep.subr.mxu0 0.0
        %6969 = vmatpush1.xpose.msra.mxu0 0.0
        %6970 = vmatprep.subr.mxu0 0.0
        %6971 = vmatpush1.xpose.msra.mxu0 0.0
        %6972 = vmatprep.subr.mxu0 0.0
        %6973 = vmatpush1.xpose.msra.mxu0 0.0
        %6974 = vmatprep.subr.mxu0 0.0
        %6975 = vmatpush1.xpose.msra.mxu0 0.0
        %6976 = vmatprep.subr.mxu0 0.0
        %6977 = vmatpush1.xpose.msra.mxu0 0.0
        %6978 = vmatprep.subr.mxu0 0.0
        %6979 = vmatpush1.xpose.msra.mxu0 0.0
        %6980 = vmatprep.subr.mxu0 0.0
        %6981 = vmatpush1.xpose.msra.mxu0 0.0
        %6982 = vmatprep.subr.mxu0 0.0
        %6983 = vmatpush1.xpose.msra.mxu0 0.0
        %6984 = vmatprep.subr.mxu0 0.0
        %6985 = vmatpush1.xpose.msra.mxu0 0.0
        %6986 = vmatprep.subr.mxu0 0.0
        %6987 = vmatpush1.xpose.msra.mxu0 0.0
        %6988 = vmatprep.subr.mxu0 0.0
        %6989 = vmatpush1.xpose.msra.mxu0 0.0
        %6990 = vmatprep.subr.mxu0 0.0
        %6991 = vmatpush1.xpose.msra.mxu0 0.0
        %6992 = vmatprep.subr.mxu0 0.0
        %6993 = vmatpush1.xpose.msra.mxu0 0.0
        %6994 = vmatprep.subr.mxu0 0.0
        %6995 = vmatpush1.xpose.msra.mxu0 0.0
        %6996 = vmatprep.subr.mxu0 0.0
        %6997 = vmatpush1.xpose.msra.mxu0 0.0
        %6998 = vmatprep.subr.mxu0 0.0
        %6999 = vmatpush1.xpose.msra.mxu0 0.0
        %7000 = vmatprep.subr.mxu0 0.0
        %7001 = vmatpush1.xpose.msra.mxu0 0.0
        %7002 = vmatprep.subr.mxu0 0.0
        %7003 = vmatpush1.xpose.msra.mxu0 0.0
        %7004 = vmatprep.subr.mxu0 0.0
        %7005 = vmatpush1.xpose.msra.mxu0 0.0
        %7006 = vmatprep.subr.mxu0 0.0
        %7007 = vmatpush1.xpose.msra.mxu0 0.0
        %7008 = vmatprep.mubr.f32.mxu0 0.0
        %7009 = vmatmul.mubr.f32.gmra.mrb[0].mxu0 %v6939
        %v7010 = vpop.f32.mrb[0].mxu0
        %v7011 = vadd.f32 0.0, %v7010
        %v7012 = vpop.f32.mrb[0].mxu0
        %7013 = vdwg.mxu0
        %v7015 = vsel %vm2451, %v6529, 0
        %v7018 = vsel %vm2451, %v6685, 0
        %7020 = vmatprep.subr.mxu0 0.0
        %7021 = vmatpush1.xpose.msra.mxu0 %v7018
        %7022 = vmatprep.subr.mxu0 0.0
        %7023 = vmatpush1.xpose.msra.mxu0 0.0
        %7024 = vmatprep.subr.mxu0 0.0
        %7025 = vmatpush1.xpose.msra.mxu0 0.0
        %7026 = vmatprep.subr.mxu0 0.0
        %7027 = vmatpush1.xpose.msra.mxu0 0.0
        %7028 = vmatprep.subr.mxu0 0.0
        %7029 = vmatpush1.xpose.msra.mxu0 0.0
        %7030 = vmatprep.subr.mxu0 0.0
        %7031 = vmatpush1.xpose.msra.mxu0 0.0
        %7032 = vmatprep.subr.mxu0 0.0
        %7033 = vmatpush1.xpose.msra.mxu0 0.0
        %7034 = vmatprep.subr.mxu0 0.0
        %7035 = vmatpush1.xpose.msra.mxu0 0.0
        %7036 = vmatprep.subr.mxu0 0.0
        %7037 = vmatpush1.xpose.msra.mxu0 0.0
        %7038 = vmatprep.subr.mxu0 0.0
        %7039 = vmatpush1.xpose.msra.mxu0 0.0
        %7040 = vmatprep.subr.mxu0 0.0
        %7041 = vmatpush1.xpose.msra.mxu0 0.0
        %7042 = vmatprep.subr.mxu0 0.0
        %7043 = vmatpush1.xpose.msra.mxu0 0.0
        %7044 = vmatprep.subr.mxu0 0.0
        %7045 = vmatpush1.xpose.msra.mxu0 0.0
        %7046 = vmatprep.subr.mxu0 0.0
        %7047 = vmatpush1.xpose.msra.mxu0 0.0
        %7048 = vmatprep.subr.mxu0 0.0
        %7049 = vmatpush1.xpose.msra.mxu0 0.0
        %7050 = vmatprep.subr.mxu0 0.0
        %7051 = vmatpush1.xpose.msra.mxu0 0.0
        %7052 = vmatprep.subr.mxu0 0.0
        %7053 = vmatpush1.xpose.msra.mxu0 0.0
        %7054 = vmatprep.subr.mxu0 0.0
        %7055 = vmatpush1.xpose.msra.mxu0 0.0
        %7056 = vmatprep.subr.mxu0 0.0
        %7057 = vmatpush1.xpose.msra.mxu0 0.0
        %7058 = vmatprep.subr.mxu0 0.0
        %7059 = vmatpush1.xpose.msra.mxu0 0.0
        %7060 = vmatprep.subr.mxu0 0.0
        %7061 = vmatpush1.xpose.msra.mxu0 0.0
        %7062 = vmatprep.subr.mxu0 0.0
        %7063 = vmatpush1.xpose.msra.mxu0 0.0
        %7064 = vmatprep.subr.mxu0 0.0
        %7065 = vmatpush1.xpose.msra.mxu0 0.0
        %7066 = vmatprep.subr.mxu0 0.0
        %7067 = vmatpush1.xpose.msra.mxu0 0.0
        %7068 = vmatprep.subr.mxu0 0.0
        %7069 = vmatpush1.xpose.msra.mxu0 0.0
        %7070 = vmatprep.subr.mxu0 0.0
        %7071 = vmatpush1.xpose.msra.mxu0 0.0
        %7072 = vmatprep.subr.mxu0 0.0
        %7073 = vmatpush1.xpose.msra.mxu0 0.0
        %7074 = vmatprep.subr.mxu0 0.0
        %7075 = vmatpush1.xpose.msra.mxu0 0.0
        %7076 = vmatprep.subr.mxu0 0.0
        %7077 = vmatpush1.xpose.msra.mxu0 0.0
        %7078 = vmatprep.subr.mxu0 0.0
        %7079 = vmatpush1.xpose.msra.mxu0 0.0
        %7080 = vmatprep.subr.mxu0 0.0
        %7081 = vmatpush1.xpose.msra.mxu0 0.0
        %7082 = vmatprep.subr.mxu0 0.0
        %7083 = vmatpush1.xpose.msra.mxu0 0.0
        %7084 = vmatprep.mubr.f32.mxu0 0.0
        %7085 = vmatmul.mubr.f32.gmra.mrb[0].mxu0 %v7015
        %v7086 = vpop.f32.mrb[0].mxu0
        %v7087 = vadd.f32 0.0, %v7086
        %v7088 = vpop.f32.mrb[0].mxu0
        %7089 = vdwg.mxu0
        %v7091 = vsel %vm2451, %v6547, 0
        %v7094 = vsel %vm2451, %v6703, 0
        %7096 = vmatprep.subr.mxu0 0.0
        %7097 = vmatpush1.xpose.msra.mxu0 %v7094
        %7098 = vmatprep.subr.mxu0 0.0
        %7099 = vmatpush1.xpose.msra.mxu0 0.0
        %7100 = vmatprep.subr.mxu0 0.0
        %7101 = vmatpush1.xpose.msra.mxu0 0.0
        %7102 = vmatprep.subr.mxu0 0.0
        %7103 = vmatpush1.xpose.msra.mxu0 0.0
        %7104 = vmatprep.subr.mxu0 0.0
        %7105 = vmatpush1.xpose.msra.mxu0 0.0
        %7106 = vmatprep.subr.mxu0 0.0
        %7107 = vmatpush1.xpose.msra.mxu0 0.0
        %7108 = vmatprep.subr.mxu0 0.0
        %7109 = vmatpush1.xpose.msra.mxu0 0.0
        %7110 = vmatprep.subr.mxu0 0.0
        %7111 = vmatpush1.xpose.msra.mxu0 0.0
        %7112 = vmatprep.subr.mxu0 0.0
        %7113 = vmatpush1.xpose.msra.mxu0 0.0
        %7114 = vmatprep.subr.mxu0 0.0
        %7115 = vmatpush1.xpose.msra.mxu0 0.0
        %7116 = vmatprep.subr.mxu0 0.0
        %7117 = vmatpush1.xpose.msra.mxu0 0.0
        %7118 = vmatprep.subr.mxu0 0.0
        %7119 = vmatpush1.xpose.msra.mxu0 0.0
        %7120 = vmatprep.subr.mxu0 0.0
        %7121 = vmatpush1.xpose.msra.mxu0 0.0
        %7122 = vmatprep.subr.mxu0 0.0
        %7123 = vmatpush1.xpose.msra.mxu0 0.0
        %7124 = vmatprep.subr.mxu0 0.0
        %7125 = vmatpush1.xpose.msra.mxu0 0.0
        %7126 = vmatprep.subr.mxu0 0.0
        %7127 = vmatpush1.xpose.msra.mxu0 0.0
        %7128 = vmatprep.subr.mxu0 0.0
        %7129 = vmatpush1.xpose.msra.mxu0 0.0
        %7130 = vmatprep.subr.mxu0 0.0
        %7131 = vmatpush1.xpose.msra.mxu0 0.0
        %7132 = vmatprep.subr.mxu0 0.0
        %7133 = vmatpush1.xpose.msra.mxu0 0.0
        %7134 = vmatprep.subr.mxu0 0.0
        %7135 = vmatpush1.xpose.msra.mxu0 0.0
        %7136 = vmatprep.subr.mxu0 0.0
        %7137 = vmatpush1.xpose.msra.mxu0 0.0
        %7138 = vmatprep.subr.mxu0 0.0
        %7139 = vmatpush1.xpose.msra.mxu0 0.0
        %7140 = vmatprep.subr.mxu0 0.0
        %7141 = vmatpush1.xpose.msra.mxu0 0.0
        %7142 = vmatprep.subr.mxu0 0.0
        %7143 = vmatpush1.xpose.msra.mxu0 0.0
        %7144 = vmatprep.subr.mxu0 0.0
        %7145 = vmatpush1.xpose.msra.mxu0 0.0
        %7146 = vmatprep.subr.mxu0 0.0
        %7147 = vmatpush1.xpose.msra.mxu0 0.0
        %7148 = vmatprep.subr.mxu0 0.0
        %7149 = vmatpush1.xpose.msra.mxu0 0.0
        %7150 = vmatprep.subr.mxu0 0.0
        %7151 = vmatpush1.xpose.msra.mxu0 0.0
        %7152 = vmatprep.subr.mxu0 0.0
        %7153 = vmatpush1.xpose.msra.mxu0 0.0
        %7154 = vmatprep.subr.mxu0 0.0
        %7155 = vmatpush1.xpose.msra.mxu0 0.0
        %7156 = vmatprep.subr.mxu0 0.0
        %7157 = vmatpush1.xpose.msra.mxu0 0.0
        %7158 = vmatprep.subr.mxu0 0.0
        %7159 = vmatpush1.xpose.msra.mxu0 0.0
        %7160 = vmatprep.mubr.f32.mxu0 0.0
        %7161 = vmatmul.mubr.f32.gmra.mrb[0].mxu0 %v7091
        %v7162 = vpop.f32.mrb[0].mxu0
        %v7163 = vadd.f32 0.0, %v7162
        %v7164 = vpop.f32.mrb[0].mxu0
        %7165 = vdwg.mxu0
        %v7167 = vsel %vm2451, %v6538, 0
        %v7170 = vsel %vm2451, %v6694, 0
        %7172 = vmatprep.subr.mxu0 0.0
        %7173 = vmatpush1.xpose.msra.mxu0 %v7170
        %7174 = vmatprep.subr.mxu0 0.0
        %7175 = vmatpush1.xpose.msra.mxu0 0.0
        %7176 = vmatprep.subr.mxu0 0.0
        %7177 = vmatpush1.xpose.msra.mxu0 0.0
        %7178 = vmatprep.subr.mxu0 0.0
        %7179 = vmatpush1.xpose.msra.mxu0 0.0
        %7180 = vmatprep.subr.mxu0 0.0
        %7181 = vmatpush1.xpose.msra.mxu0 0.0
        %7182 = vmatprep.subr.mxu0 0.0
        %7183 = vmatpush1.xpose.msra.mxu0 0.0
        %7184 = vmatprep.subr.mxu0 0.0
        %7185 = vmatpush1.xpose.msra.mxu0 0.0
        %7186 = vmatprep.subr.mxu0 0.0
        %7187 = vmatpush1.xpose.msra.mxu0 0.0
        %7188 = vmatprep.subr.mxu0 0.0
        %7189 = vmatpush1.xpose.msra.mxu0 0.0
        %7190 = vmatprep.subr.mxu0 0.0
        %7191 = vmatpush1.xpose.msra.mxu0 0.0
        %7192 = vmatprep.subr.mxu0 0.0
        %7193 = vmatpush1.xpose.msra.mxu0 0.0
        %7194 = vmatprep.subr.mxu0 0.0
        %7195 = vmatpush1.xpose.msra.mxu0 0.0
        %7196 = vmatprep.subr.mxu0 0.0
        %7197 = vmatpush1.xpose.msra.mxu0 0.0
        %7198 = vmatprep.subr.mxu0 0.0
        %7199 = vmatpush1.xpose.msra.mxu0 0.0
        %7200 = vmatprep.subr.mxu0 0.0
        %7201 = vmatpush1.xpose.msra.mxu0 0.0
        %7202 = vmatprep.subr.mxu0 0.0
        %7203 = vmatpush1.xpose.msra.mxu0 0.0
        %7204 = vmatprep.subr.mxu0 0.0
        %7205 = vmatpush1.xpose.msra.mxu0 0.0
        %7206 = vmatprep.subr.mxu0 0.0
        %7207 = vmatpush1.xpose.msra.mxu0 0.0
        %7208 = vmatprep.subr.mxu0 0.0
        %7209 = vmatpush1.xpose.msra.mxu0 0.0
        %7210 = vmatprep.subr.mxu0 0.0
        %7211 = vmatpush1.xpose.msra.mxu0 0.0
        %7212 = vmatprep.subr.mxu0 0.0
        %7213 = vmatpush1.xpose.msra.mxu0 0.0
        %7214 = vmatprep.subr.mxu0 0.0
        %7215 = vmatpush1.xpose.msra.mxu0 0.0
        %7216 = vmatprep.subr.mxu0 0.0
        %7217 = vmatpush1.xpose.msra.mxu0 0.0
        %7218 = vmatprep.subr.mxu0 0.0
        %7219 = vmatpush1.xpose.msra.mxu0 0.0
        %7220 = vmatprep.subr.mxu0 0.0
        %7221 = vmatpush1.xpose.msra.mxu0 0.0
        %7222 = vmatprep.subr.mxu0 0.0
        %7223 = vmatpush1.xpose.msra.mxu0 0.0
        %7224 = vmatprep.subr.mxu0 0.0
        %7225 = vmatpush1.xpose.msra.mxu0 0.0
        %7226 = vmatprep.subr.mxu0 0.0
        %7227 = vmatpush1.xpose.msra.mxu0 0.0
        %7228 = vmatprep.subr.mxu0 0.0
        %7229 = vmatpush1.xpose.msra.mxu0 0.0
        %7230 = vmatprep.subr.mxu0 0.0
        %7231 = vmatpush1.xpose.msra.mxu0 0.0
        %7232 = vmatprep.subr.mxu0 0.0
        %7233 = vmatpush1.xpose.msra.mxu0 0.0
        %7234 = vmatprep.subr.mxu0 0.0
        %7235 = vmatpush1.xpose.msra.mxu0 0.0
        %7236 = vmatprep.mubr.f32.mxu0 0.0
        %7237 = vmatmul.mubr.f32.gmra.mrb[0].mxu0 %v7167
        %v7238 = vpop.f32.mrb[0].mxu0
        %v7239 = vadd.f32 0.0, %v7238
        %v7240 = vpop.f32.mrb[0].mxu0
        %7241 = vdwg.mxu0
        %v7243 = vsel %vm2451, %v6548, 0
        %v7246 = vsel %vm2451, %v6704, 0
        %7248 = vmatprep.subr.mxu0 0.0
        %7249 = vmatpush1.xpose.msra.mxu0 %v7246
        %7250 = vmatprep.subr.mxu0 0.0
        %7251 = vmatpush1.xpose.msra.mxu0 0.0
        %7252 = vmatprep.subr.mxu0 0.0
        %7253 = vmatpush1.xpose.msra.mxu0 0.0
        %7254 = vmatprep.subr.mxu0 0.0
        %7255 = vmatpush1.xpose.msra.mxu0 0.0
        %7256 = vmatprep.subr.mxu0 0.0
        %7257 = vmatpush1.xpose.msra.mxu0 0.0
        %7258 = vmatprep.subr.mxu0 0.0
        %7259 = vmatpush1.xpose.msra.mxu0 0.0
        %7260 = vmatprep.subr.mxu0 0.0
        %7261 = vmatpush1.xpose.msra.mxu0 0.0
        %7262 = vmatprep.subr.mxu0 0.0
        %7263 = vmatpush1.xpose.msra.mxu0 0.0
        %7264 = vmatprep.subr.mxu0 0.0
        %7265 = vmatpush1.xpose.msra.mxu0 0.0
        %7266 = vmatprep.subr.mxu0 0.0
        %7267 = vmatpush1.xpose.msra.mxu0 0.0
        %7268 = vmatprep.subr.mxu0 0.0
        %7269 = vmatpush1.xpose.msra.mxu0 0.0
        %7270 = vmatprep.subr.mxu0 0.0
        %7271 = vmatpush1.xpose.msra.mxu0 0.0
        %7272 = vmatprep.subr.mxu0 0.0
        %7273 = vmatpush1.xpose.msra.mxu0 0.0
        %7274 = vmatprep.subr.mxu0 0.0
        %7275 = vmatpush1.xpose.msra.mxu0 0.0
        %7276 = vmatprep.subr.mxu0 0.0
        %7277 = vmatpush1.xpose.msra.mxu0 0.0
        %7278 = vmatprep.subr.mxu0 0.0
        %7279 = vmatpush1.xpose.msra.mxu0 0.0
        %7280 = vmatprep.subr.mxu0 0.0
        %7281 = vmatpush1.xpose.msra.mxu0 0.0
        %7282 = vmatprep.subr.mxu0 0.0
        %7283 = vmatpush1.xpose.msra.mxu0 0.0
        %7284 = vmatprep.subr.mxu0 0.0
        %7285 = vmatpush1.xpose.msra.mxu0 0.0
        %7286 = vmatprep.subr.mxu0 0.0
        %7287 = vmatpush1.xpose.msra.mxu0 0.0
        %7288 = vmatprep.subr.mxu0 0.0
        %7289 = vmatpush1.xpose.msra.mxu0 0.0
        %7290 = vmatprep.subr.mxu0 0.0
        %7291 = vmatpush1.xpose.msra.mxu0 0.0
        %7292 = vmatprep.subr.mxu0 0.0
        %7293 = vmatpush1.xpose.msra.mxu0 0.0
        %7294 = vmatprep.subr.mxu0 0.0
        %7295 = vmatpush1.xpose.msra.mxu0 0.0
        %7296 = vmatprep.subr.mxu0 0.0
        %7297 = vmatpush1.xpose.msra.mxu0 0.0
        %7298 = vmatprep.subr.mxu0 0.0
        %7299 = vmatpush1.xpose.msra.mxu0 0.0
        %7300 = vmatprep.subr.mxu0 0.0
        %7301 = vmatpush1.xpose.msra.mxu0 0.0
        %7302 = vmatprep.subr.mxu0 0.0
        %7303 = vmatpush1.xpose.msra.mxu0 0.0
        %7304 = vmatprep.subr.mxu0 0.0
        %7305 = vmatpush1.xpose.msra.mxu0 0.0
        %7306 = vmatprep.subr.mxu0 0.0
        %7307 = vmatpush1.xpose.msra.mxu0 0.0
        %7308 = vmatprep.subr.mxu0 0.0
        %7309 = vmatpush1.xpose.msra.mxu0 0.0
        %7310 = vmatprep.subr.mxu0 0.0
        %7311 = vmatpush1.xpose.msra.mxu0 0.0
        %7312 = vmatprep.mubr.f32.mxu0 0.0
        %7313 = vmatmul.mubr.f32.gmra.mrb[0].mxu0 %v7243
        %v7314 = vpop.f32.mrb[0].mxu0
        %v7315 = vadd.f32 0.0, %v7314
        %v7316 = vpop.f32.mrb[0].mxu0
        %7317 = vdwg.mxu0
        %v7319 = vsel %vm2451, %v6545, 0
        %v7322 = vsel %vm2451, %v6701, 0
        %7324 = vmatprep.subr.mxu0 0.0
        %7325 = vmatpush1.xpose.msra.mxu0 %v7322
        %7326 = vmatprep.subr.mxu0 0.0
        %7327 = vmatpush1.xpose.msra.mxu0 0.0
        %7328 = vmatprep.subr.mxu0 0.0
        %7329 = vmatpush1.xpose.msra.mxu0 0.0
        %7330 = vmatprep.subr.mxu0 0.0
        %7331 = vmatpush1.xpose.msra.mxu0 0.0
        %7332 = vmatprep.subr.mxu0 0.0
        %7333 = vmatpush1.xpose.msra.mxu0 0.0
        %7334 = vmatprep.subr.mxu0 0.0
        %7335 = vmatpush1.xpose.msra.mxu0 0.0
        %7336 = vmatprep.subr.mxu0 0.0
        %7337 = vmatpush1.xpose.msra.mxu0 0.0
        %7338 = vmatprep.subr.mxu0 0.0
        %7339 = vmatpush1.xpose.msra.mxu0 0.0
        %7340 = vmatprep.subr.mxu0 0.0
        %7341 = vmatpush1.xpose.msra.mxu0 0.0
        %7342 = vmatprep.subr.mxu0 0.0
        %7343 = vmatpush1.xpose.msra.mxu0 0.0
        %7344 = vmatprep.subr.mxu0 0.0
        %7345 = vmatpush1.xpose.msra.mxu0 0.0
        %7346 = vmatprep.subr.mxu0 0.0
        %7347 = vmatpush1.xpose.msra.mxu0 0.0
        %7348 = vmatprep.subr.mxu0 0.0
        %7349 = vmatpush1.xpose.msra.mxu0 0.0
        %7350 = vmatprep.subr.mxu0 0.0
        %7351 = vmatpush1.xpose.msra.mxu0 0.0
        %7352 = vmatprep.subr.mxu0 0.0
        %7353 = vmatpush1.xpose.msra.mxu0 0.0
        %7354 = vmatprep.subr.mxu0 0.0
        %7355 = vmatpush1.xpose.msra.mxu0 0.0
        %7356 = vmatprep.subr.mxu0 0.0
        %7357 = vmatpush1.xpose.msra.mxu0 0.0
        %7358 = vmatprep.subr.mxu0 0.0
        %7359 = vmatpush1.xpose.msra.mxu0 0.0
        %7360 = vmatprep.subr.mxu0 0.0
        %7361 = vmatpush1.xpose.msra.mxu0 0.0
        %7362 = vmatprep.subr.mxu0 0.0
        %7363 = vmatpush1.xpose.msra.mxu0 0.0
        %7364 = vmatprep.subr.mxu0 0.0
        %7365 = vmatpush1.xpose.msra.mxu0 0.0
        %7366 = vmatprep.subr.mxu0 0.0
        %7367 = vmatpush1.xpose.msra.mxu0 0.0
        %7368 = vmatprep.subr.mxu0 0.0
        %7369 = vmatpush1.xpose.msra.mxu0 0.0
        %7370 = vmatprep.subr.mxu0 0.0
        %7371 = vmatpush1.xpose.msra.mxu0 0.0
        %7372 = vmatprep.subr.mxu0 0.0
        %7373 = vmatpush1.xpose.msra.mxu0 0.0
        %7374 = vmatprep.subr.mxu0 0.0
        %7375 = vmatpush1.xpose.msra.mxu0 0.0
        %7376 = vmatprep.subr.mxu0 0.0
        %7377 = vmatpush1.xpose.msra.mxu0 0.0
        %7378 = vmatprep.subr.mxu0 0.0
        %7379 = vmatpush1.xpose.msra.mxu0 0.0
        %7380 = vmatprep.subr.mxu0 0.0
        %7381 = vmatpush1.xpose.msra.mxu0 0.0
        %7382 = vmatprep.subr.mxu0 0.0
        %7383 = vmatpush1.xpose.msra.mxu0 0.0
        %7384 = vmatprep.subr.mxu0 0.0
        %7385 = vmatpush1.xpose.msra.mxu0 0.0
        %7386 = vmatprep.subr.mxu0 0.0
        %7387 = vmatpush1.xpose.msra.mxu0 0.0
        %7388 = vmatprep.mubr.f32.mxu0 0.0
        %7389 = vmatmul.mubr.f32.gmra.mrb[0].mxu0 %v7319
        %v7390 = vpop.f32.mrb[0].mxu0
        %v7391 = vadd.f32 0.0, %v7390
        %v7392 = vpop.f32.mrb[0].mxu0
        %7393 = vdwg.mxu0
        %v7395 = vsel %vm2451, %v6549, 0
        %v7398 = vsel %vm2451, %v6705, 0
        %7400 = vmatprep.subr.mxu0 0.0
        %7401 = vmatpush1.xpose.msra.mxu0 %v7398
        %7402 = vmatprep.subr.mxu0 0.0
        %7403 = vmatpush1.xpose.msra.mxu0 0.0
        %7404 = vmatprep.subr.mxu0 0.0
        %7405 = vmatpush1.xpose.msra.mxu0 0.0
        %7406 = vmatprep.subr.mxu0 0.0
        %7407 = vmatpush1.xpose.msra.mxu0 0.0
        %7408 = vmatprep.subr.mxu0 0.0
        %7409 = vmatpush1.xpose.msra.mxu0 0.0
        %7410 = vmatprep.subr.mxu0 0.0
        %7411 = vmatpush1.xpose.msra.mxu0 0.0
        %7412 = vmatprep.subr.mxu0 0.0
        %7413 = vmatpush1.xpose.msra.mxu0 0.0
        %7414 = vmatprep.subr.mxu0 0.0
        %7415 = vmatpush1.xpose.msra.mxu0 0.0
        %7416 = vmatprep.subr.mxu0 0.0
        %7417 = vmatpush1.xpose.msra.mxu0 0.0
        %7418 = vmatprep.subr.mxu0 0.0
        %7419 = vmatpush1.xpose.msra.mxu0 0.0
        %7420 = vmatprep.subr.mxu0 0.0
        %7421 = vmatpush1.xpose.msra.mxu0 0.0
        %7422 = vmatprep.subr.mxu0 0.0
        %7423 = vmatpush1.xpose.msra.mxu0 0.0
        %7424 = vmatprep.subr.mxu0 0.0
        %7425 = vmatpush1.xpose.msra.mxu0 0.0
        %7426 = vmatprep.subr.mxu0 0.0
        %7427 = vmatpush1.xpose.msra.mxu0 0.0
        %7428 = vmatprep.subr.mxu0 0.0
        %7429 = vmatpush1.xpose.msra.mxu0 0.0
        %7430 = vmatprep.subr.mxu0 0.0
        %7431 = vmatpush1.xpose.msra.mxu0 0.0
        %7432 = vmatprep.subr.mxu0 0.0
        %7433 = vmatpush1.xpose.msra.mxu0 0.0
        %7434 = vmatprep.subr.mxu0 0.0
        %7435 = vmatpush1.xpose.msra.mxu0 0.0
        %7436 = vmatprep.subr.mxu0 0.0
        %7437 = vmatpush1.xpose.msra.mxu0 0.0
        %7438 = vmatprep.subr.mxu0 0.0
        %7439 = vmatpush1.xpose.msra.mxu0 0.0
        %7440 = vmatprep.subr.mxu0 0.0
        %7441 = vmatpush1.xpose.msra.mxu0 0.0
        %7442 = vmatprep.subr.mxu0 0.0
        %7443 = vmatpush1.xpose.msra.mxu0 0.0
        %7444 = vmatprep.subr.mxu0 0.0
        %7445 = vmatpush1.xpose.msra.mxu0 0.0
        %7446 = vmatprep.subr.mxu0 0.0
        %7447 = vmatpush1.xpose.msra.mxu0 0.0
        %7448 = vmatprep.subr.mxu0 0.0
        %7449 = vmatpush1.xpose.msra.mxu0 0.0
        %7450 = vmatprep.subr.mxu0 0.0
        %7451 = vmatpush1.xpose.msra.mxu0 0.0
        %7452 = vmatprep.subr.mxu0 0.0
        %7453 = vmatpush1.xpose.msra.mxu0 0.0
        %7454 = vmatprep.subr.mxu0 0.0
        %7455 = vmatpush1.xpose.msra.mxu0 0.0
        %7456 = vmatprep.subr.mxu0 0.0
        %7457 = vmatpush1.xpose.msra.mxu0 0.0
        %7458 = vmatprep.subr.mxu0 0.0
        %7459 = vmatpush1.xpose.msra.mxu0 0.0
        %7460 = vmatprep.subr.mxu0 0.0
        %7461 = vmatpush1.xpose.msra.mxu0 0.0
        %7462 = vmatprep.subr.mxu0 0.0
        %7463 = vmatpush1.xpose.msra.mxu0 0.0
        %7464 = vmatprep.mubr.f32.mxu0 0.0
        %7465 = vmatmul.mubr.f32.gmra.mrb[0].mxu0 %v7395
        %v7466 = vpop.f32.mrb[0].mxu0
        %v7467 = vadd.f32 0.0, %v7466
        %v7468 = vpop.f32.mrb[0].mxu0
        %7469 = vdwg.mxu0
        %v7470 = vmul.f32 %v6935, 0.25
        %v7471 = vmul.f32 %v7011, 0.25
        %v7472 = vmul.f32 %v7087, 0.25
        %v7473 = vmul.f32 %v7163, 0.25
        %v7474 = vmul.f32 %v7239, 0.25
        %v7475 = vmul.f32 %v7315, 0.25
        %v7476 = vmul.f32 %v7391, 0.25
        %v7477 = vmul.f32 %v7467, 0.25
        %vm7478 = vcmask 18432
        %v7479 = vsel %vm7478, %v7470, -inf
        %7480 = vmax.xlane.f32.xlu0 %v7479
        %v7481 = vpop.xlane.xlu0 %7480
        %v7482 = vsel %vm7478, %v7471, -inf
        %7483 = vmax.xlane.f32.xlu0 %v7482
        %v7484 = vpop.xlane.xlu0 %7483
        %v7485 = vsel %vm7478, %v7472, -inf
        %7486 = vmax.xlane.f32.xlu0 %v7485
        %v7487 = vpop.xlane.xlu0 %7486
        %v7488 = vsel %vm7478, %v7473, -inf
        %7489 = vmax.xlane.f32.xlu0 %v7488
        %v7490 = vpop.xlane.xlu0 %7489
        %v7491 = vsel %vm7478, %v7474, -inf
        %7492 = vmax.xlane.f32.xlu0 %v7491
        %v7493 = vpop.xlane.xlu0 %7492
        %v7494 = vsel %vm7478, %v7475, -inf
        %7495 = vmax.xlane.f32.xlu0 %v7494
        %v7496 = vpop.xlane.xlu0 %7495
        %v7497 = vsel %vm7478, %v7476, -inf
        %7498 = vmax.xlane.f32.xlu0 %v7497
        %v7499 = vpop.xlane.xlu0 %7498
        %v7500 = vsel %vm7478, %v7477, -inf
        %7501 = vmax.xlane.f32.xlu0 %v7500
        %v7502 = vpop.xlane.xlu0 %7501
        %v7503 = vsub.f32 %v7470, %v7481
        %v7504 = vsub.f32 %v7471, %v7484
        %v7505 = vsub.f32 %v7472, %v7487
        %v7506 = vsub.f32 %v7473, %v7490
        %v7507 = vsub.f32 %v7474, %v7493
        %v7508 = vsub.f32 %v7475, %v7496
        %v7509 = vsub.f32 %v7476, %v7499
        %v7510 = vsub.f32 %v7477, %v7502
        %v7511 = vmul.f32 %v7503, 1.442695
        %v7512 = vpow.pop %v7511
        %v7513 = vmul.f32 %v7504, 1.442695
        %v7514 = vpow.pop %v7513
        %v7515 = vmul.f32 %v7505, 1.442695
        %v7516 = vpow.pop %v7515
        %v7517 = vmul.f32 %v7506, 1.442695
        %v7518 = vpow.pop %v7517
        %v7519 = vmul.f32 %v7507, 1.442695
        %v7520 = vpow.pop %v7519
        %v7521 = vmul.f32 %v7508, 1.442695
        %v7522 = vpow.pop %v7521
        %v7523 = vmul.f32 %v7509, 1.442695
        %v7524 = vpow.pop %v7523
        %v7525 = vmul.f32 %v7510, 1.442695
        %v7526 = vpow.pop %v7525
        %v7527 = vsel %vm7478, %v7512, 0.0
        %7528 = vadd.xlane.f32.xlu0 %v7527
        %v7529 = vpop.xlane.xlu0 %7528
        %v7530 = vsel %vm7478, %v7514, 0.0
        %7531 = vadd.xlane.f32.xlu0 %v7530
        %v7532 = vpop.xlane.xlu0 %7531
        %v7533 = vsel %vm7478, %v7516, 0.0
        %7534 = vadd.xlane.f32.xlu0 %v7533
        %v7535 = vpop.xlane.xlu0 %7534
        %v7536 = vsel %vm7478, %v7518, 0.0
        %7537 = vadd.xlane.f32.xlu0 %v7536
        %v7538 = vpop.xlane.xlu0 %7537
        %v7539 = vsel %vm7478, %v7520, 0.0
        %7540 = vadd.xlane.f32.xlu0 %v7539
        %v7541 = vpop.xlane.xlu0 %7540
        %v7542 = vsel %vm7478, %v7522, 0.0
        %7543 = vadd.xlane.f32.xlu0 %v7542
        %v7544 = vpop.xlane.xlu0 %7543
        %v7545 = vsel %vm7478, %v7524, 0.0
        %7546 = vadd.xlane.f32.xlu0 %v7545
        %v7547 = vpop.xlane.xlu0 %7546
        %v7548 = vsel %vm7478, %v7526, 0.0
        %7549 = vadd.xlane.f32.xlu0 %v7548
        %v7550 = vpop.xlane.xlu0 %7549
        %v7551 = vrcp.pop %v7529
        %v7552 = vrcp.pop %v7532
        %v7553 = vrcp.pop %v7535
        %v7554 = vrcp.pop %v7538
        %v7555 = vrcp.pop %v7541
        %v7556 = vrcp.pop %v7544
        %v7557 = vrcp.pop %v7547
        %v7558 = vrcp.pop %v7550
        %v7559 = vmul.f32 %v7512, %v7551
        %v7560 = vmul.f32 %v7514, %v7552
        %v7561 = vmul.f32 %v7516, %v7553
        %v7562 = vmul.f32 %v7518, %v7554
        %v7563 = vmul.f32 %v7520, %v7555
        %v7564 = vmul.f32 %v7522, %v7556
        %v7565 = vmul.f32 %v7524, %v7557
        %v7566 = vmul.f32 %v7526, %v7558
        %v7568 = vsel %vm3865, %v7559, 0
        %v7571 = vsel %vm3696, %v6834, 0
        %7573 = vmatprep.subr.mxu0 0.0
        %7574 = vmatpush1.msra.mxu0 %v7571
        %7575 = vmatprep.subr.mxu0 0.0
        %7576 = vmatpush1.msra.mxu0 0.0
        %7577 = vmatprep.subr.mxu0 0.0
        %7578 = vmatpush1.msra.mxu0 0.0
        %7579 = vmatprep.subr.mxu0 0.0
        %7580 = vmatpush1.msra.mxu0 0.0
        %7581 = vmatprep.subr.mxu0 0.0
        %7582 = vmatpush1.msra.mxu0 0.0
        %7583 = vmatprep.subr.mxu0 0.0
        %7584 = vmatpush1.msra.mxu0 0.0
        %7585 = vmatprep.subr.mxu0 0.0
        %7586 = vmatpush1.msra.mxu0 0.0
        %7587 = vmatprep.subr.mxu0 0.0
        %7588 = vmatpush1.msra.mxu0 0.0
        %7589 = vmatprep.subr.mxu0 0.0
        %7590 = vmatpush1.msra.mxu0 0.0
        %7591 = vmatprep.subr.mxu0 0.0
        %7592 = vmatpush1.msra.mxu0 0.0
        %7593 = vmatprep.subr.mxu0 0.0
        %7594 = vmatpush1.msra.mxu0 0.0
        %7595 = vmatprep.subr.mxu0 0.0
        %7596 = vmatpush1.msra.mxu0 0.0
        %7597 = vmatprep.subr.mxu0 0.0
        %7598 = vmatpush1.msra.mxu0 0.0
        %7599 = vmatprep.subr.mxu0 0.0
        %7600 = vmatpush1.msra.mxu0 0.0
        %7601 = vmatprep.subr.mxu0 0.0
        %7602 = vmatpush1.msra.mxu0 0.0
        %7603 = vmatprep.subr.mxu0 0.0
        %7604 = vmatpush1.msra.mxu0 0.0
        %7605 = vmatprep.subr.mxu0 0.0
        %7606 = vmatpush1.msra.mxu0 0.0
        %7607 = vmatprep.subr.mxu0 0.0
        %7608 = vmatpush1.msra.mxu0 0.0
        %7609 = vmatprep.subr.mxu0 0.0
        %7610 = vmatpush1.msra.mxu0 0.0
        %7611 = vmatprep.subr.mxu0 0.0
        %7612 = vmatpush1.msra.mxu0 0.0
        %7613 = vmatprep.subr.mxu0 0.0
        %7614 = vmatpush1.msra.mxu0 0.0
        %7615 = vmatprep.subr.mxu0 0.0
        %7616 = vmatpush1.msra.mxu0 0.0
        %7617 = vmatprep.subr.mxu0 0.0
        %7618 = vmatpush1.msra.mxu0 0.0
        %7619 = vmatprep.subr.mxu0 0.0
        %7620 = vmatpush1.msra.mxu0 0.0
        %7621 = vmatprep.subr.mxu0 0.0
        %7622 = vmatpush1.msra.mxu0 0.0
        %7623 = vmatprep.subr.mxu0 0.0
        %7624 = vmatpush1.msra.mxu0 0.0
        %7625 = vmatprep.subr.mxu0 0.0
        %7626 = vmatpush1.msra.mxu0 0.0
        %7627 = vmatprep.subr.mxu0 0.0
        %7628 = vmatpush1.msra.mxu0 0.0
        %7629 = vmatprep.subr.mxu0 0.0
        %7630 = vmatpush1.msra.mxu0 0.0
        %7631 = vmatprep.subr.mxu0 0.0
        %7632 = vmatpush1.msra.mxu0 0.0
        %7633 = vmatprep.subr.mxu0 0.0
        %7634 = vmatpush1.msra.mxu0 0.0
        %7635 = vmatprep.subr.mxu0 0.0
        %7636 = vmatpush1.msra.mxu0 0.0
        %7637 = vmatprep.mubr.f32.mxu0 0.0
        %7638 = vmatmul.mubr.f32.gmra.mrb[0].mxu0 %v7568
        %v7639 = vpop.f32.mrb[0].mxu0
        %v7640 = vadd.f32 0.0, %v7639
        %v7641 = vpop.f32.mrb[0].mxu0
        %7642 = vdwg.mxu0
        %v7644 = vsel %vm3865, %v7560, 0
        %v7647 = vsel %vm3696, %v6858, 0
        %7649 = vmatprep.subr.mxu0 0.0
        %7650 = vmatpush1.msra.mxu0 %v7647
        %7651 = vmatprep.subr.mxu0 0.0
        %7652 = vmatpush1.msra.mxu0 0.0
        %7653 = vmatprep.subr.mxu0 0.0
        %7654 = vmatpush1.msra.mxu0 0.0
        %7655 = vmatprep.subr.mxu0 0.0
        %7656 = vmatpush1.msra.mxu0 0.0
        %7657 = vmatprep.subr.mxu0 0.0
        %7658 = vmatpush1.msra.mxu0 0.0
        %7659 = vmatprep.subr.mxu0 0.0
        %7660 = vmatpush1.msra.mxu0 0.0
        %7661 = vmatprep.subr.mxu0 0.0
        %7662 = vmatpush1.msra.mxu0 0.0
        %7663 = vmatprep.subr.mxu0 0.0
        %7664 = vmatpush1.msra.mxu0 0.0
        %7665 = vmatprep.subr.mxu0 0.0
        %7666 = vmatpush1.msra.mxu0 0.0
        %7667 = vmatprep.subr.mxu0 0.0
        %7668 = vmatpush1.msra.mxu0 0.0
        %7669 = vmatprep.subr.mxu0 0.0
        %7670 = vmatpush1.msra.mxu0 0.0
        %7671 = vmatprep.subr.mxu0 0.0
        %7672 = vmatpush1.msra.mxu0 0.0
        %7673 = vmatprep.subr.mxu0 0.0
        %7674 = vmatpush1.msra.mxu0 0.0
        %7675 = vmatprep.subr.mxu0 0.0
        %7676 = vmatpush1.msra.mxu0 0.0
        %7677 = vmatprep.subr.mxu0 0.0
        %7678 = vmatpush1.msra.mxu0 0.0
        %7679 = vmatprep.subr.mxu0 0.0
        %7680 = vmatpush1.msra.mxu0 0.0
        %7681 = vmatprep.subr.mxu0 0.0
        %7682 = vmatpush1.msra.mxu0 0.0
        %7683 = vmatprep.subr.mxu0 0.0
        %7684 = vmatpush1.msra.mxu0 0.0
        %7685 = vmatprep.subr.mxu0 0.0
        %7686 = vmatpush1.msra.mxu0 0.0
        %7687 = vmatprep.subr.mxu0 0.0
        %7688 = vmatpush1.msra.mxu0 0.0
        %7689 = vmatprep.subr.mxu0 0.0
        %7690 = vmatpush1.msra.mxu0 0.0
        %7691 = vmatprep.subr.mxu0 0.0
        %7692 = vmatpush1.msra.mxu0 0.0
        %7693 = vmatprep.subr.mxu0 0.0
        %7694 = vmatpush1.msra.mxu0 0.0
        %7695 = vmatprep.subr.mxu0 0.0
        %7696 = vmatpush1.msra.mxu0 0.0
        %7697 = vmatprep.subr.mxu0 0.0
        %7698 = vmatpush1.msra.mxu0 0.0
        %7699 = vmatprep.subr.mxu0 0.0
        %7700 = vmatpush1.msra.mxu0 0.0
        %7701 = vmatprep.subr.mxu0 0.0
        %7702 = vmatpush1.msra.mxu0 0.0
        %7703 = vmatprep.subr.mxu0 0.0
        %7704 = vmatpush1.msra.mxu0 0.0
        %7705 = vmatprep.subr.mxu0 0.0
        %7706 = vmatpush1.msra.mxu0 0.0
        %7707 = vmatprep.subr.mxu0 0.0
        %7708 = vmatpush1.msra.mxu0 0.0
        %7709 = vmatprep.subr.mxu0 0.0
        %7710 = vmatpush1.msra.mxu0 0.0
        %7711 = vmatprep.subr.mxu0 0.0
        %7712 = vmatpush1.msra.mxu0 0.0
        %7713 = vmatprep.mubr.f32.mxu0 0.0
        %7714 = vmatmul.mubr.f32.gmra.mrb[0].mxu0 %v7644
        %v7715 = vpop.f32.mrb[0].mxu0
        %v7716 = vadd.f32 0.0, %v7715
        %v7717 = vpop.f32.mrb[0].mxu0
        %7718 = vdwg.mxu0
        %v7720 = vsel %vm3865, %v7561, 0
        %v7723 = vsel %vm3696, %v6841, 0
        %7725 = vmatprep.subr.mxu0 0.0
        %7726 = vmatpush1.msra.mxu0 %v7723
        %7727 = vmatprep.subr.mxu0 0.0
        %7728 = vmatpush1.msra.mxu0 0.0
        %7729 = vmatprep.subr.mxu0 0.0
        %7730 = vmatpush1.msra.mxu0 0.0
        %7731 = vmatprep.subr.mxu0 0.0
        %7732 = vmatpush1.msra.mxu0 0.0
        %7733 = vmatprep.subr.mxu0 0.0
        %7734 = vmatpush1.msra.mxu0 0.0
        %7735 = vmatprep.subr.mxu0 0.0
        %7736 = vmatpush1.msra.mxu0 0.0
        %7737 = vmatprep.subr.mxu0 0.0
        %7738 = vmatpush1.msra.mxu0 0.0
        %7739 = vmatprep.subr.mxu0 0.0
        %7740 = vmatpush1.msra.mxu0 0.0
        %7741 = vmatprep.subr.mxu0 0.0
        %7742 = vmatpush1.msra.mxu0 0.0
        %7743 = vmatprep.subr.mxu0 0.0
        %7744 = vmatpush1.msra.mxu0 0.0
        %7745 = vmatprep.subr.mxu0 0.0
        %7746 = vmatpush1.msra.mxu0 0.0
        %7747 = vmatprep.subr.mxu0 0.0
        %7748 = vmatpush1.msra.mxu0 0.0
        %7749 = vmatprep.subr.mxu0 0.0
        %7750 = vmatpush1.msra.mxu0 0.0
        %7751 = vmatprep.subr.mxu0 0.0
        %7752 = vmatpush1.msra.mxu0 0.0
        %7753 = vmatprep.subr.mxu0 0.0
        %7754 = vmatpush1.msra.mxu0 0.0
        %7755 = vmatprep.subr.mxu0 0.0
        %7756 = vmatpush1.msra.mxu0 0.0
        %7757 = vmatprep.subr.mxu0 0.0
        %7758 = vmatpush1.msra.mxu0 0.0
        %7759 = vmatprep.subr.mxu0 0.0
        %7760 = vmatpush1.msra.mxu0 0.0
        %7761 = vmatprep.subr.mxu0 0.0
        %7762 = vmatpush1.msra.mxu0 0.0
        %7763 = vmatprep.subr.mxu0 0.0
        %7764 = vmatpush1.msra.mxu0 0.0
        %7765 = vmatprep.subr.mxu0 0.0
        %7766 = vmatpush1.msra.mxu0 0.0
        %7767 = vmatprep.subr.mxu0 0.0
        %7768 = vmatpush1.msra.mxu0 0.0
        %7769 = vmatprep.subr.mxu0 0.0
        %7770 = vmatpush1.msra.mxu0 0.0
        %7771 = vmatprep.subr.mxu0 0.0
        %7772 = vmatpush1.msra.mxu0 0.0
        %7773 = vmatprep.subr.mxu0 0.0
        %7774 = vmatpush1.msra.mxu0 0.0
        %7775 = vmatprep.subr.mxu0 0.0
        %7776 = vmatpush1.msra.mxu0 0.0
        %7777 = vmatprep.subr.mxu0 0.0
        %7778 = vmatpush1.msra.mxu0 0.0
        %7779 = vmatprep.subr.mxu0 0.0
        %7780 = vmatpush1.msra.mxu0 0.0
        %7781 = vmatprep.subr.mxu0 0.0
        %7782 = vmatpush1.msra.mxu0 0.0
        %7783 = vmatprep.subr.mxu0 0.0
        %7784 = vmatpush1.msra.mxu0 0.0
        %7785 = vmatprep.subr.mxu0 0.0
        %7786 = vmatpush1.msra.mxu0 0.0
        %7787 = vmatprep.subr.mxu0 0.0
        %7788 = vmatpush1.msra.mxu0 0.0
        %7789 = vmatprep.mubr.f32.mxu0 0.0
        %7790 = vmatmul.mubr.f32.gmra.mrb[0].mxu0 %v7720
        %v7791 = vpop.f32.mrb[0].mxu0
        %v7792 = vadd.f32 0.0, %v7791
        %v7793 = vpop.f32.mrb[0].mxu0
        %7794 = vdwg.mxu0
        %v7796 = vsel %vm3865, %v7562, 0
        %v7799 = vsel %vm3696, %v6859, 0
        %7801 = vmatprep.subr.mxu0 0.0
        %7802 = vmatpush1.msra.mxu0 %v7799
        %7803 = vmatprep.subr.mxu0 0.0
        %7804 = vmatpush1.msra.mxu0 0.0
        %7805 = vmatprep.subr.mxu0 0.0
        %7806 = vmatpush1.msra.mxu0 0.0
        %7807 = vmatprep.subr.mxu0 0.0
        %7808 = vmatpush1.msra.mxu0 0.0
        %7809 = vmatprep.subr.mxu0 0.0
        %7810 = vmatpush1.msra.mxu0 0.0
        %7811 = vmatprep.subr.mxu0 0.0
        %7812 = vmatpush1.msra.mxu0 0.0
        %7813 = vmatprep.subr.mxu0 0.0
        %7814 = vmatpush1.msra.mxu0 0.0
        %7815 = vmatprep.subr.mxu0 0.0
        %7816 = vmatpush1.msra.mxu0 0.0
        %7817 = vmatprep.subr.mxu0 0.0
        %7818 = vmatpush1.msra.mxu0 0.0
        %7819 = vmatprep.subr.mxu0 0.0
        %7820 = vmatpush1.msra.mxu0 0.0
        %7821 = vmatprep.subr.mxu0 0.0
        %7822 = vmatpush1.msra.mxu0 0.0
        %7823 = vmatprep.subr.mxu0 0.0
        %7824 = vmatpush1.msra.mxu0 0.0
        %7825 = vmatprep.subr.mxu0 0.0
        %7826 = vmatpush1.msra.mxu0 0.0
        %7827 = vmatprep.subr.mxu0 0.0
        %7828 = vmatpush1.msra.mxu0 0.0
        %7829 = vmatprep.subr.mxu0 0.0
        %7830 = vmatpush1.msra.mxu0 0.0
        %7831 = vmatprep.subr.mxu0 0.0
        %7832 = vmatpush1.msra.mxu0 0.0
        %7833 = vmatprep.subr.mxu0 0.0
        %7834 = vmatpush1.msra.mxu0 0.0
        %7835 = vmatprep.subr.mxu0 0.0
        %7836 = vmatpush1.msra.mxu0 0.0
        %7837 = vmatprep.subr.mxu0 0.0
        %7838 = vmatpush1.msra.mxu0 0.0
        %7839 = vmatprep.subr.mxu0 0.0
        %7840 = vmatpush1.msra.mxu0 0.0
        %7841 = vmatprep.subr.mxu0 0.0
        %7842 = vmatpush1.msra.mxu0 0.0
        %7843 = vmatprep.subr.mxu0 0.0
        %7844 = vmatpush1.msra.mxu0 0.0
        %7845 = vmatprep.subr.mxu0 0.0
        %7846 = vmatpush1.msra.mxu0 0.0
        %7847 = vmatprep.subr.mxu0 0.0
        %7848 = vmatpush1.msra.mxu0 0.0
        %7849 = vmatprep.subr.mxu0 0.0
        %7850 = vmatpush1.msra.mxu0 0.0
        %7851 = vmatprep.subr.mxu0 0.0
        %7852 = vmatpush1.msra.mxu0 0.0
        %7853 = vmatprep.subr.mxu0 0.0
        %7854 = vmatpush1.msra.mxu0 0.0
        %7855 = vmatprep.subr.mxu0 0.0
        %7856 = vmatpush1.msra.mxu0 0.0
        %7857 = vmatprep.subr.mxu0 0.0
        %7858 = vmatpush1.msra.mxu0 0.0
        %7859 = vmatprep.subr.mxu0 0.0
        %7860 = vmatpush1.msra.mxu0 0.0
        %7861 = vmatprep.subr.mxu0 0.0
        %7862 = vmatpush1.msra.mxu0 0.0
        %7863 = vmatprep.subr.mxu0 0.0
        %7864 = vmatpush1.msra.mxu0 0.0
        %7865 = vmatprep.mubr.f32.mxu0 0.0
        %7866 = vmatmul.mubr.f32.gmra.mrb[0].mxu0 %v7796
        %v7867 = vpop.f32.mrb[0].mxu0
        %v7868 = vadd.f32 0.0, %v7867
        %v7869 = vpop.f32.mrb[0].mxu0
        %7870 = vdwg.mxu0
        %v7872 = vsel %vm3865, %v7563, 0
        %v7875 = vsel %vm3696, %v6850, 0
        %7877 = vmatprep.subr.mxu0 0.0
        %7878 = vmatpush1.msra.mxu0 %v7875
        %7879 = vmatprep.subr.mxu0 0.0
        %7880 = vmatpush1.msra.mxu0 0.0
        %7881 = vmatprep.subr.mxu0 0.0
        %7882 = vmatpush1.msra.mxu0 0.0
        %7883 = vmatprep.subr.mxu0 0.0
        %7884 = vmatpush1.msra.mxu0 0.0
        %7885 = vmatprep.subr.mxu0 0.0
        %7886 = vmatpush1.msra.mxu0 0.0
        %7887 = vmatprep.subr.mxu0 0.0
        %7888 = vmatpush1.msra.mxu0 0.0
        %7889 = vmatprep.subr.mxu0 0.0
        %7890 = vmatpush1.msra.mxu0 0.0
        %7891 = vmatprep.subr.mxu0 0.0
        %7892 = vmatpush1.msra.mxu0 0.0
        %7893 = vmatprep.subr.mxu0 0.0
        %7894 = vmatpush1.msra.mxu0 0.0
        %7895 = vmatprep.subr.mxu0 0.0
        %7896 = vmatpush1.msra.mxu0 0.0
        %7897 = vmatprep.subr.mxu0 0.0
        %7898 = vmatpush1.msra.mxu0 0.0
        %7899 = vmatprep.subr.mxu0 0.0
        %7900 = vmatpush1.msra.mxu0 0.0
        %7901 = vmatprep.subr.mxu0 0.0
        %7902 = vmatpush1.msra.mxu0 0.0
        %7903 = vmatprep.subr.mxu0 0.0
        %7904 = vmatpush1.msra.mxu0 0.0
        %7905 = vmatprep.subr.mxu0 0.0
        %7906 = vmatpush1.msra.mxu0 0.0
        %7907 = vmatprep.subr.mxu0 0.0
        %7908 = vmatpush1.msra.mxu0 0.0
        %7909 = vmatprep.subr.mxu0 0.0
        %7910 = vmatpush1.msra.mxu0 0.0
        %7911 = vmatprep.subr.mxu0 0.0
        %7912 = vmatpush1.msra.mxu0 0.0
        %7913 = vmatprep.subr.mxu0 0.0
        %7914 = vmatpush1.msra.mxu0 0.0
        %7915 = vmatprep.subr.mxu0 0.0
        %7916 = vmatpush1.msra.mxu0 0.0
        %7917 = vmatprep.subr.mxu0 0.0
        %7918 = vmatpush1.msra.mxu0 0.0
        %7919 = vmatprep.subr.mxu0 0.0
        %7920 = vmatpush1.msra.mxu0 0.0
        %7921 = vmatprep.subr.mxu0 0.0
        %7922 = vmatpush1.msra.mxu0 0.0
        %7923 = vmatprep.subr.mxu0 0.0
        %7924 = vmatpush1.msra.mxu0 0.0
        %7925 = vmatprep.subr.mxu0 0.0
        %7926 = vmatpush1.msra.mxu0 0.0
        %7927 = vmatprep.subr.mxu0 0.0
        %7928 = vmatpush1.msra.mxu0 0.0
        %7929 = vmatprep.subr.mxu0 0.0
        %7930 = vmatpush1.msra.mxu0 0.0
        %7931 = vmatprep.subr.mxu0 0.0
        %7932 = vmatpush1.msra.mxu0 0.0
        %7933 = vmatprep.subr.mxu0 0.0
        %7934 = vmatpush1.msra.mxu0 0.0
        %7935 = vmatprep.subr.mxu0 0.0
        %7936 = vmatpush1.msra.mxu0 0.0
        %7937 = vmatprep.subr.mxu0 0.0
        %7938 = vmatpush1.msra.mxu0 0.0
        %7939 = vmatprep.subr.mxu0 0.0
        %7940 = vmatpush1.msra.mxu0 0.0
        %7941 = vmatprep.mubr.f32.mxu0 0.0
        %7942 = vmatmul.mubr.f32.gmra.mrb[0].mxu0 %v7872
        %v7943 = vpop.f32.mrb[0].mxu0
        %v7944 = vadd.f32 0.0, %v7943
        %v7945 = vpop.f32.mrb[0].mxu0
        %7946 = vdwg.mxu0
        %v7948 = vsel %vm3865, %v7564, 0
        %v7951 = vsel %vm3696, %v6860, 0
        %7953 = vmatprep.subr.mxu0 0.0
        %7954 = vmatpush1.msra.mxu0 %v7951
        %7955 = vmatprep.subr.mxu0 0.0
        %7956 = vmatpush1.msra.mxu0 0.0
        %7957 = vmatprep.subr.mxu0 0.0
        %7958 = vmatpush1.msra.mxu0 0.0
        %7959 = vmatprep.subr.mxu0 0.0
        %7960 = vmatpush1.msra.mxu0 0.0
        %7961 = vmatprep.subr.mxu0 0.0
        %7962 = vmatpush1.msra.mxu0 0.0
        %7963 = vmatprep.subr.mxu0 0.0
        %7964 = vmatpush1.msra.mxu0 0.0
        %7965 = vmatprep.subr.mxu0 0.0
        %7966 = vmatpush1.msra.mxu0 0.0
        %7967 = vmatprep.subr.mxu0 0.0
        %7968 = vmatpush1.msra.mxu0 0.0
        %7969 = vmatprep.subr.mxu0 0.0
        %7970 = vmatpush1.msra.mxu0 0.0
        %7971 = vmatprep.subr.mxu0 0.0
        %7972 = vmatpush1.msra.mxu0 0.0
        %7973 = vmatprep.subr.mxu0 0.0
        %7974 = vmatpush1.msra.mxu0 0.0
        %7975 = vmatprep.subr.mxu0 0.0
        %7976 = vmatpush1.msra.mxu0 0.0
        %7977 = vmatprep.subr.mxu0 0.0
        %7978 = vmatpush1.msra.mxu0 0.0
        %7979 = vmatprep.subr.mxu0 0.0
        %7980 = vmatpush1.msra.mxu0 0.0
        %7981 = vmatprep.subr.mxu0 0.0
        %7982 = vmatpush1.msra.mxu0 0.0
        %7983 = vmatprep.subr.mxu0 0.0
        %7984 = vmatpush1.msra.mxu0 0.0
        %7985 = vmatprep.subr.mxu0 0.0
        %7986 = vmatpush1.msra.mxu0 0.0
        %7987 = vmatprep.subr.mxu0 0.0
        %7988 = vmatpush1.msra.mxu0 0.0
        %7989 = vmatprep.subr.mxu0 0.0
        %7990 = vmatpush1.msra.mxu0 0.0
        %7991 = vmatprep.subr.mxu0 0.0
        %7992 = vmatpush1.msra.mxu0 0.0
        %7993 = vmatprep.subr.mxu0 0.0
        %7994 = vmatpush1.msra.mxu0 0.0
        %7995 = vmatprep.subr.mxu0 0.0
        %7996 = vmatpush1.msra.mxu0 0.0
        %7997 = vmatprep.subr.mxu0 0.0
        %7998 = vmatpush1.msra.mxu0 0.0
        %7999 = vmatprep.subr.mxu0 0.0
        %8000 = vmatpush1.msra.mxu0 0.0
        %8001 = vmatprep.subr.mxu0 0.0
        %8002 = vmatpush1.msra.mxu0 0.0
        %8003 = vmatprep.subr.mxu0 0.0
        %8004 = vmatpush1.msra.mxu0 0.0
        %8005 = vmatprep.subr.mxu0 0.0
        %8006 = vmatpush1.msra.mxu0 0.0
        %8007 = vmatprep.subr.mxu0 0.0
        %8008 = vmatpush1.msra.mxu0 0.0
        %8009 = vmatprep.subr.mxu0 0.0
        %8010 = vmatpush1.msra.mxu0 0.0
        %8011 = vmatprep.subr.mxu0 0.0
        %8012 = vmatpush1.msra.mxu0 0.0
        %8013 = vmatprep.subr.mxu0 0.0
        %8014 = vmatpush1.msra.mxu0 0.0
        %8015 = vmatprep.subr.mxu0 0.0
        %8016 = vmatpush1.msra.mxu0 0.0
        %8017 = vmatprep.mubr.f32.mxu0 0.0
        %8018 = vmatmul.mubr.f32.gmra.mrb[0].mxu0 %v7948
        %v8019 = vpop.f32.mrb[0].mxu0
        %v8020 = vadd.f32 0.0, %v8019
        %v8021 = vpop.f32.mrb[0].mxu0
        %8022 = vdwg.mxu0
        %v8024 = vsel %vm3865, %v7565, 0
        %v8027 = vsel %vm3696, %v6857, 0
        %8029 = vmatprep.subr.mxu0 0.0
        %8030 = vmatpush1.msra.mxu0 %v8027
        %8031 = vmatprep.subr.mxu0 0.0
        %8032 = vmatpush1.msra.mxu0 0.0
        %8033 = vmatprep.subr.mxu0 0.0
        %8034 = vmatpush1.msra.mxu0 0.0
        %8035 = vmatprep.subr.mxu0 0.0
        %8036 = vmatpush1.msra.mxu0 0.0
        %8037 = vmatprep.subr.mxu0 0.0
        %8038 = vmatpush1.msra.mxu0 0.0
        %8039 = vmatprep.subr.mxu0 0.0
        %8040 = vmatpush1.msra.mxu0 0.0
        %8041 = vmatprep.subr.mxu0 0.0
        %8042 = vmatpush1.msra.mxu0 0.0
        %8043 = vmatprep.subr.mxu0 0.0
        %8044 = vmatpush1.msra.mxu0 0.0
        %8045 = vmatprep.subr.mxu0 0.0
        %8046 = vmatpush1.msra.mxu0 0.0
        %8047 = vmatprep.subr.mxu0 0.0
        %8048 = vmatpush1.msra.mxu0 0.0
        %8049 = vmatprep.subr.mxu0 0.0
        %8050 = vmatpush1.msra.mxu0 0.0
        %8051 = vmatprep.subr.mxu0 0.0
        %8052 = vmatpush1.msra.mxu0 0.0
        %8053 = vmatprep.subr.mxu0 0.0
        %8054 = vmatpush1.msra.mxu0 0.0
        %8055 = vmatprep.subr.mxu0 0.0
        %8056 = vmatpush1.msra.mxu0 0.0
        %8057 = vmatprep.subr.mxu0 0.0
        %8058 = vmatpush1.msra.mxu0 0.0
        %8059 = vmatprep.subr.mxu0 0.0
        %8060 = vmatpush1.msra.mxu0 0.0
        %8061 = vmatprep.subr.mxu0 0.0
        %8062 = vmatpush1.msra.mxu0 0.0
        %8063 = vmatprep.subr.mxu0 0.0
        %8064 = vmatpush1.msra.mxu0 0.0
        %8065 = vmatprep.subr.mxu0 0.0
        %8066 = vmatpush1.msra.mxu0 0.0
        %8067 = vmatprep.subr.mxu0 0.0
        %8068 = vmatpush1.msra.mxu0 0.0
        %8069 = vmatprep.subr.mxu0 0.0
        %8070 = vmatpush1.msra.mxu0 0.0
        %8071 = vmatprep.subr.mxu0 0.0
        %8072 = vmatpush1.msra.mxu0 0.0
        %8073 = vmatprep.subr.mxu0 0.0
        %8074 = vmatpush1.msra.mxu0 0.0
        %8075 = vmatprep.subr.mxu0 0.0
        %8076 = vmatpush1.msra.mxu0 0.0
        %8077 = vmatprep.subr.mxu0 0.0
        %8078 = vmatpush1.msra.mxu0 0.0
        %8079 = vmatprep.subr.mxu0 0.0
        %8080 = vmatpush1.msra.mxu0 0.0
        %8081 = vmatprep.subr.mxu0 0.0
        %8082 = vmatpush1.msra.mxu0 0.0
        %8083 = vmatprep.subr.mxu0 0.0
        %8084 = vmatpush1.msra.mxu0 0.0
        %8085 = vmatprep.subr.mxu0 0.0
        %8086 = vmatpush1.msra.mxu0 0.0
        %8087 = vmatprep.subr.mxu0 0.0
        %8088 = vmatpush1.msra.mxu0 0.0
        %8089 = vmatprep.subr.mxu0 0.0
        %8090 = vmatpush1.msra.mxu0 0.0
        %8091 = vmatprep.subr.mxu0 0.0
        %8092 = vmatpush1.msra.mxu0 0.0
        %8093 = vmatprep.mubr.f32.mxu0 0.0
        %8094 = vmatmul.mubr.f32.gmra.mrb[0].mxu0 %v8024
        %v8095 = vpop.f32.mrb[0].mxu0
        %v8096 = vadd.f32 0.0, %v8095
        %v8097 = vpop.f32.mrb[0].mxu0
        %8098 = vdwg.mxu0
        %v8100 = vsel %vm3865, %v7566, 0
        %v8103 = vsel %vm3696, %v6861, 0
        %8105 = vmatprep.subr.mxu0 0.0
        %8106 = vmatpush1.msra.mxu0 %v8103
        %8107 = vmatprep.subr.mxu0 0.0
        %8108 = vmatpush1.msra.mxu0 0.0
        %8109 = vmatprep.subr.mxu0 0.0
        %8110 = vmatpush1.msra.mxu0 0.0
        %8111 = vmatprep.subr.mxu0 0.0
        %8112 = vmatpush1.msra.mxu0 0.0
        %8113 = vmatprep.subr.mxu0 0.0
        %8114 = vmatpush1.msra.mxu0 0.0
        %8115 = vmatprep.subr.mxu0 0.0
        %8116 = vmatpush1.msra.mxu0 0.0
        %8117 = vmatprep.subr.mxu0 0.0
        %8118 = vmatpush1.msra.mxu0 0.0
        %8119 = vmatprep.subr.mxu0 0.0
        %8120 = vmatpush1.msra.mxu0 0.0
        %8121 = vmatprep.subr.mxu0 0.0
        %8122 = vmatpush1.msra.mxu0 0.0
        %8123 = vmatprep.subr.mxu0 0.0
        %8124 = vmatpush1.msra.mxu0 0.0
        %8125 = vmatprep.subr.mxu0 0.0
        %8126 = vmatpush1.msra.mxu0 0.0
        %8127 = vmatprep.subr.mxu0 0.0
        %8128 = vmatpush1.msra.mxu0 0.0
        %8129 = vmatprep.subr.mxu0 0.0
        %8130 = vmatpush1.msra.mxu0 0.0
        %8131 = vmatprep.subr.mxu0 0.0
        %8132 = vmatpush1.msra.mxu0 0.0
        %8133 = vmatprep.subr.mxu0 0.0
        %8134 = vmatpush1.msra.mxu0 0.0
        %8135 = vmatprep.subr.mxu0 0.0
        %8136 = vmatpush1.msra.mxu0 0.0
        %8137 = vmatprep.subr.mxu0 0.0
        %8138 = vmatpush1.msra.mxu0 0.0
        %8139 = vmatprep.subr.mxu0 0.0
        %8140 = vmatpush1.msra.mxu0 0.0
        %8141 = vmatprep.subr.mxu0 0.0
        %8142 = vmatpush1.msra.mxu0 0.0
        %8143 = vmatprep.subr.mxu0 0.0
        %8144 = vmatpush1.msra.mxu0 0.0
        %8145 = vmatprep.subr.mxu0 0.0
        %8146 = vmatpush1.msra.mxu0 0.0
        %8147 = vmatprep.subr.mxu0 0.0
        %8148 = vmatpush1.msra.mxu0 0.0
        %8149 = vmatprep.subr.mxu0 0.0
        %8150 = vmatpush1.msra.mxu0 0.0
        %8151 = vmatprep.subr.mxu0 0.0
        %8152 = vmatpush1.msra.mxu0 0.0
        %8153 = vmatprep.subr.mxu0 0.0
        %8154 = vmatpush1.msra.mxu0 0.0
        %8155 = vmatprep.subr.mxu0 0.0
        %8156 = vmatpush1.msra.mxu0 0.0
        %8157 = vmatprep.subr.mxu0 0.0
        %8158 = vmatpush1.msra.mxu0 0.0
        %8159 = vmatprep.subr.mxu0 0.0
        %8160 = vmatpush1.msra.mxu0 0.0
        %8161 = vmatprep.subr.mxu0 0.0
        %8162 = vmatpush1.msra.mxu0 0.0
        %8163 = vmatprep.subr.mxu0 0.0
        %8164 = vmatpush1.msra.mxu0 0.0
        %8165 = vmatprep.subr.mxu0 0.0
        %8166 = vmatpush1.msra.mxu0 0.0
        %8167 = vmatprep.subr.mxu0 0.0
        %8168 = vmatpush1.msra.mxu0 0.0
        %8169 = vmatprep.mubr.f32.mxu0 0.0
        %8170 = vmatmul.mubr.f32.gmra.mrb[0].mxu0 %v8100
        %v8171 = vpop.f32.mrb[0].mxu0
        %v8172 = vadd.f32 0.0, %v8171
        %v8173 = vpop.f32.mrb[0].mxu0
        %8174 = vdwg.mxu0
        %v8175 = vcombine.low %v7640, %v7792
        %v8177 = vunpack.c.l.s4 1983009808
        %v8178 = vunpack.c.0.s8 %v8177
        %v8179 = vlaneseq
        %v8180 = vshrl.u32 %v8179, 7
        %v8181 = vsub.s32 %v8178, %v8180
        %v8182 = vrot.slane %v8175, %v8181
        %v8183 = vcombine.low %v7716, %v7868
        %v8185 = vunpack.c.l.s4 1983009808
        %v8186 = vunpack.c.0.s8 %v8185
        %v8187 = vlaneseq
        %v8188 = vshrl.u32 %v8187, 7
        %v8189 = vsub.s32 %v8186, %v8188
        %v8190 = vrot.slane %v8183, %v8189
        %v8191 = vcombine.low %v7944, %v8096
        %v8193 = vunpack.c.l.s4 1983009808
        %v8194 = vunpack.c.0.s8 %v8193
        %v8195 = vlaneseq
        %v8196 = vshrl.u32 %v8195, 7
        %v8197 = vsub.s32 %v8194, %v8196
        %v8198 = vrot.slane %v8191, %v8197
        %v8199 = vcombine.low %v8020, %v8172
        %v8201 = vunpack.c.l.s4 1983009808
        %v8202 = vunpack.c.0.s8 %v8201
        %v8203 = vlaneseq
        %v8204 = vshrl.u32 %v8203, 7
        %v8205 = vsub.s32 %v8202, %v8204
        %v8206 = vrot.slane %v8199, %v8205
        %v8207 = vcombine.low %v8182, %v8190
        %v8208 = vcombine.high %v8182, %v8190
        %v8210 = vunpack.c.l.s4 1934713408
        %v8211 = vunpack.c.0.s8 %v8210
        %v8212 = vlaneseq
        %v8213 = vshrl.u32 %v8212, 7
        %v8214 = vsub.s32 %v8211, %v8213
        %v8215 = vrot.slane %v8207, %v8214
        %v8217 = vunpack.c.l.s4 1934713408
        %v8218 = vunpack.c.0.s8 %v8217
        %v8219 = vlaneseq
        %v8220 = vshrl.u32 %v8219, 7
        %v8221 = vsub.s32 %v8218, %v8220
        %v8222 = vrot.slane %v8208, %v8221
        %v8223 = vcombine.low %v8198, %v8206
        %v8224 = vcombine.high %v8198, %v8206
        %v8226 = vunpack.c.l.s4 1934713408
        %v8227 = vunpack.c.0.s8 %v8226
        %v8228 = vlaneseq
        %v8229 = vshrl.u32 %v8228, 7
        %v8230 = vsub.s32 %v8227, %v8229
        %v8231 = vrot.slane %v8223, %v8230
        %v8233 = vunpack.c.l.s4 1934713408
        %v8234 = vunpack.c.0.s8 %v8233
        %v8235 = vlaneseq
        %v8236 = vshrl.u32 %v8235, 7
        %v8237 = vsub.s32 %v8234, %v8236
        %v8238 = vrot.slane %v8224, %v8237
        %v8239 = vcombine.low %v8215, %v8231
        %v8240 = vcombine.high %v8215, %v8231
        %v8241 = vcombine.low %v8222, %v8238
        %v8242 = vcombine.low %v8239, %v8241
        %v8243 = vcombine.high %v8239, %v8241
        %v8245 = vunpack.c.l.s4 1983009808
        %v8246 = vunpack.c.0.s8 %v8245
        %v8247 = vlaneseq
        %v8248 = vshrl.u32 %v8247, 7
        %v8249 = vsub.s32 %v8246, %v8248
        %v8250 = vrot.slane %v8242, %v8249
        %v8252 = vunpack.c.l.s4 1983009808
        %v8253 = vunpack.c.0.s8 %v8252
        %v8254 = vlaneseq
        %v8255 = vshrl.u32 %v8254, 7
        %v8256 = vsub.s32 %v8253, %v8255
        %v8257 = vrot.slane %v8243, %v8256
        %v8258 = vcombine.high %v8240, 0.0
        %v8260 = vunpack.c.l.s4 1983009808
        %v8261 = vunpack.c.0.s8 %v8260
        %v8262 = vlaneseq
        %v8263 = vshrl.u32 %v8262, 7
        %v8264 = vsub.s32 %v8261, %v8263
        %v8265 = vrot.slane %v8240, %v8264
        %v8267 = vunpack.c.l.s4 1983009808
        %v8268 = vunpack.c.0.s8 %v8267
        %v8269 = vlaneseq
        %v8270 = vshrl.u32 %v8269, 7
        %v8271 = vsub.s32 %v8268, %v8270
        %v8272 = vrot.slane %v8258, %v8271
        %v8273 = vcombine.low %v8250, %v8265
        %v8274 = vcombine.high %v8250, %v8265
        %v8276 = vunpack.c.l.s4 1934713408
        %v8277 = vunpack.c.0.s8 %v8276
        %v8278 = vlaneseq
        %v8279 = vshrl.u32 %v8278, 7
        %v8280 = vsub.s32 %v8277, %v8279
        %v8281 = vrot.slane %v8273, %v8280
        %v8283 = vunpack.c.l.s4 1934713408
        %v8284 = vunpack.c.0.s8 %v8283
        %v8285 = vlaneseq
        %v8286 = vshrl.u32 %v8285, 7
        %v8287 = vsub.s32 %v8284, %v8286
        %v8288 = vrot.slane %v8274, %v8287
        %v8289 = vcombine.low %v8257, %v8272
        %v8290 = vcombine.high %v8257, %v8272
        %v8292 = vunpack.c.l.s4 1934713408
        %v8293 = vunpack.c.0.s8 %v8292
        %v8294 = vlaneseq
        %v8295 = vshrl.u32 %v8294, 7
        %v8296 = vsub.s32 %v8293, %v8295
        %v8297 = vrot.slane %v8289, %v8296
        %v8299 = vunpack.c.l.s4 1934713408
        %v8300 = vunpack.c.0.s8 %v8299
        %v8301 = vlaneseq
        %v8302 = vshrl.u32 %v8301, 7
        %v8303 = vsub.s32 %v8300, %v8302
        %v8304 = vrot.slane %v8290, %v8303
        %v8305 = vcombine.high %v8281, 0.0
        %v8306 = vcombine.high %v8288, 0.0
        %v8307 = vcombine.high %v8297, 0.0
        %v8308 = vcombine.high %v8304, 0.0
        %8310 = vrot.lane.b32.xlu0 %v8305, 16
        %v8311 = vpop.permute.xlu0 %8310
        %8314 = vrot.lane.b32.xlu0 %v8288, 32
        %v8315 = vpop.permute.xlu0 %8314
        %8318 = vrot.lane.b32.xlu0 %v8306, 48
        %v8319 = vpop.permute.xlu0 %8318
        %8322 = vrot.lane.b32.xlu0 %v8297, 64
        %v8323 = vpop.permute.xlu0 %8322
        %8326 = vrot.lane.b32.xlu0 %v8307, 80
        %v8327 = vpop.permute.xlu0 %8326
        %8330 = vrot.lane.b32.xlu0 %v8304, 96
        %v8331 = vpop.permute.xlu0 %8330
        %8334 = vrot.lane.b32.xlu0 %v8308, 112
        %v8335 = vpop.permute.xlu0 %8334
        %v8337 = vsel %vm2451, %v8281, %v8311
        %v8338 = vsel %vm1363, %v8337, %v8315
        %v8339 = vsel %vm3647, %v8338, %v8319
        %v8340 = vsel %vm2846, %v8339, %v8323
        %v8341 = vsel %vm6124, %v8340, %v8327
        %v8342 = vsel %vm3813, %v8341, %v8331
        %v8343 = vsel %vm6131, %v8342, %v8335
        %v8344 = vpack.c.bf16 %v8343, %v8343
        %v8345 = vld [vmem:[#allocation31] sm:$0xf]
        %v8346 = vld [vmem:[#allocation31 + $0x4] sm:$0xf]
        %v8347 = vld [vmem:[#allocation31 + $0x8] sm:$0xf]
        %v8348 = vld [vmem:[#allocation31 + $0xc] sm:$0xf]
        %v8349 = vld [vmem:[#allocation31 + $0x10] sm:$0xf]
        %v8350 = vld [vmem:[#allocation31 + $0x14] sm:$0xf]
        %v8351 = vld [vmem:[#allocation31 + $0x18] sm:$0xf]
        %v8352 = vld [vmem:[#allocation31 + $0x1c] sm:$0xf]
        %v8353 = vld [vmem:[#allocation31 + $0x20] sm:$0xf]
        %v8354 = vld [vmem:[#allocation31 + $0x24] sm:$0xf]
        %v8355 = vld [vmem:[#allocation31 + $0x28] sm:$0xf]
        %v8356 = vld [vmem:[#allocation31 + $0x2c] sm:$0xf]
        %v8357 = vld [vmem:[#allocation31 + $0x30] sm:$0xf]
        %v8358 = vld [vmem:[#allocation31 + $0x34] sm:$0xf]
        %v8359 = vld [vmem:[#allocation31 + $0x38] sm:$0xf]
        %v8360 = vld [vmem:[#allocation31 + $0x3c] sm:$0xf]
        %v8361 = vld [vmem:[#allocation32] sm:$0x1]
        %v8363 = vlaneseq
        %v8364 = vshrl.u32 %v8363, 7
        %v8365 = vsub.s32 0, %v8364
        %v8366 = vrot.slane %v8361, %v8365
        %v8384 = vunpack.c.l.b16 %v8345
        %v8385 = vunpack.c.l.b16 %v8346
        %v8386 = vunpack.c.l.b16 %v8347
        %v8387 = vunpack.c.l.b16 %v8348
        %v8388 = vunpack.c.l.b16 %v8349
        %v8389 = vunpack.c.l.b16 %v8350
        %v8390 = vunpack.c.l.b16 %v8351
        %v8391 = vunpack.c.l.b16 %v8352
        %v8392 = vunpack.c.l.b16 %v8353
        %v8393 = vunpack.c.l.b16 %v8354
        %v8394 = vunpack.c.l.b16 %v8355
        %v8395 = vunpack.c.l.b16 %v8356
        %v8396 = vunpack.c.l.b16 %v8357
        %v8397 = vunpack.c.l.b16 %v8358
        %v8398 = vunpack.c.l.b16 %v8359
        %v8399 = vunpack.c.l.b16 %v8360
        %v8400 = vpack.c.b16 %v8385, %v8384
        %v8401 = vpack.c.b16 %v8387, %v8386
        %v8402 = vpack.c.b16 %v8389, %v8388
        %v8403 = vpack.c.b16 %v8391, %v8390
        %v8404 = vpack.c.b16 %v8393, %v8392
        %v8405 = vpack.c.b16 %v8395, %v8394
        %v8406 = vpack.c.b16 %v8397, %v8396
        %v8407 = vpack.c.b16 %v8399, %v8398
        %8416 = vmatprep.subr.bf16.mxu0 0
        %8417 = vmatpush1.bf16.msra.mxu0 %v8400
        %8418 = vmatprep.subr.bf16.mxu0 0
        %8419 = vmatpush1.bf16.msra.mxu0 %v8401
        %8420 = vmatprep.subr.bf16.mxu0 0
        %8421 = vmatpush1.bf16.msra.mxu0 %v8402
        %8422 = vmatprep.subr.bf16.mxu0 0
        %8423 = vmatpush1.bf16.msra.mxu0 %v8403
        %8424 = vmatprep.subr.bf16.mxu0 0
        %8425 = vmatpush1.bf16.msra.mxu0 %v8404
        %8426 = vmatprep.subr.bf16.mxu0 0
        %8427 = vmatpush1.bf16.msra.mxu0 %v8405
        %8428 = vmatprep.subr.bf16.mxu0 0
        %8429 = vmatpush1.bf16.msra.mxu0 %v8406
        %8430 = vmatprep.subr.bf16.mxu0 0
        %8431 = vmatpush1.bf16.msra.mxu0 %v8407
        %8432 = vmatprep.subr.bf16.mxu0 0
        %8433 = vmatpush1.bf16.msra.mxu0 0
        %8434 = vmatprep.subr.bf16.mxu0 0
        %8435 = vmatpush1.bf16.msra.mxu0 0
        %8436 = vmatprep.subr.bf16.mxu0 0
        %8437 = vmatpush1.bf16.msra.mxu0 0
        %8438 = vmatprep.subr.bf16.mxu0 0
        %8439 = vmatpush1.bf16.msra.mxu0 0
        %8440 = vmatprep.subr.bf16.mxu0 0
        %8441 = vmatpush1.bf16.msra.mxu0 0
        %8442 = vmatprep.subr.bf16.mxu0 0
        %8443 = vmatpush1.bf16.msra.mxu0 0
        %8444 = vmatprep.subr.bf16.mxu0 0
        %8445 = vmatpush1.bf16.msra.mxu0 0
        %8446 = vmatprep.subr.bf16.mxu0 0
        %8447 = vmatpush1.bf16.msra.mxu0 0
        %8448 = vmatprep.mubr.bf16.mxu0 0
        %8449 = vmatmul.mubr.bf16.gmra.mrb[0].mxu0 %v8344
        %v8450 = vpop.f32.mrb[0].mxu0
        %v8451 = vadd.f32 %v8366, %v8450
        %v8452 = vpop.f32.mrb[0].mxu0
        %v8453 = vpop.f32.mrb[0].mxu0
        %v8454 = vpop.f32.mrb[0].mxu0
        %8455 = vdwg.mxu0
        %v8456 = vadd.f32 %v6134, %v8451
        %v8457 = vld [vmem:[#allocation34] sm:$0x1]
        %v8458 = vld [vmem:[#allocation35] sm:$0x1]
        %v8459 = vsel %vm3696, %v8456, 0.0
        %8460 = vadd.xlane.f32.xlu0 %v8459
        %v8461 = vpop.xlane.xlu0 %8460
        %v8462 = vrcp.pop 128.0
        %v8463 = vmul.f32 %v8461, %v8462
        %v8464 = vsub.f32 %v8456, %v8463
        %v8465 = vmul.f32 %v8464, %v8464
        %v8466 = vsel %vm3696, %v8465, 0.0
        %8467 = vadd.xlane.f32.xlu0 %v8466
        %v8468 = vpop.xlane.xlu0 %8467
        %v8469 = vmul.f32 %v8468, %v8462
        %v8470 = vadd.f32 %v8469, 1e-05
        %v8471 = vrsqrt.pop %v8470
        %v8472 = vmul.f32 %v8464, %v8471
        %v8474 = vlaneseq
        %v8475 = vshrl.u32 %v8474, 7
        %v8476 = vsub.s32 0, %v8475
        %v8477 = vrot.slane %v8457, %v8476
        %v8479 = vmul.f32 %v8472, %v8477
        %v8481 = vlaneseq
        %v8482 = vshrl.u32 %v8481, 7
        %v8483 = vsub.s32 0, %v8482
        %v8484 = vrot.slane %v8458, %v8483
        %v8486 = vadd.f32 %v8479, %v8484
        %v8487 = vlaneseq
        %vm8488 = vcmp.ge.s32.totalorder %v8487, 0
        %vm8489 = vcmp.lt.s32.totalorder %v8487, 384
        %vm8490 = vmand %vm8488, %vm8489
        %8491 = vst.msk [vmem:[%s1343] sm:$0x7] %vm8490, %v8486
        %v8493 = vlaneseq
        %v8494 = vshrl.u32 %v8493, 7
        %v8495 = vsub.s32 0, %v8494
        %v8496 = vrot.slane %v8486, %v8495
        %v8497 = vlaneseq
        %v8498 = vshrl.u32 %v8497, 7
        %v8499 = vsub.s32 1, %v8498
        %v8500 = vrot.slane %v8486, %v8499
        %v8501 = vlaneseq
        %v8502 = vshrl.u32 %v8501, 7
        %v8503 = vsub.s32 2, %v8502
        %v8504 = vrot.slane %v8486, %v8503
        %v8508 = vpack.c.bf16 %v8496, %v8496
        %v8509 = vpack.c.bf16 %v8500, %v8500
        %v8510 = vpack.c.bf16 %v8504, %v8504
        %v8511 = vld [vmem:[#allocation37] sm:$0xf]
        %v8512 = vld [vmem:[#allocation37 + $0x4] sm:$0xf]
        %v8513 = vld [vmem:[#allocation37 + $0x8] sm:$0xf]
        %v8514 = vld [vmem:[#allocation37 + $0xc] sm:$0xf]
        %v8515 = vld [vmem:[#allocation37 + $0x10] sm:$0xf]
        %v8516 = vld [vmem:[#allocation37 + $0x14] sm:$0xf]
        %v8517 = vld [vmem:[#allocation37 + $0x18] sm:$0xf]
        %v8518 = vld [vmem:[#allocation37 + $0x1c] sm:$0xf]
        %v8519 = vld [vmem:[#allocation37 + $0x20] sm:$0xf]
        %v8520 = vld [vmem:[#allocation37 + $0x24] sm:$0xf]
        %v8521 = vld [vmem:[#allocation37 + $0x28] sm:$0xf]
        %v8522 = vld [vmem:[#allocation37 + $0x2c] sm:$0xf]
        %v8523 = vld [vmem:[#allocation37 + $0x30] sm:$0xf]
        %v8524 = vld [vmem:[#allocation37 + $0x34] sm:$0xf]
        %v8525 = vld [vmem:[#allocation37 + $0x38] sm:$0xf]
        %v8526 = vld [vmem:[#allocation37 + $0x3c] sm:$0xf]
        %v8527 = vld [vmem:[#allocation37 + $0x40] sm:$0xf]
        %v8528 = vld [vmem:[#allocation37 + $0x44] sm:$0xf]
        %v8529 = vld [vmem:[#allocation37 + $0x48] sm:$0xf]
        %v8530 = vld [vmem:[#allocation37 + $0x4c] sm:$0xf]
        %v8531 = vld [vmem:[#allocation37 + $0x50] sm:$0xf]
        %v8532 = vld [vmem:[#allocation37 + $0x54] sm:$0xf]
        %v8533 = vld [vmem:[#allocation37 + $0x58] sm:$0xf]
        %v8534 = vld [vmem:[#allocation37 + $0x5c] sm:$0xf]
        %v8535 = vld [vmem:[#allocation37 + $0x60] sm:$0xf]
        %v8536 = vld [vmem:[#allocation37 + $0x64] sm:$0xf]
        %v8537 = vld [vmem:[#allocation37 + $0x68] sm:$0xf]
        %v8538 = vld [vmem:[#allocation37 + $0x6c] sm:$0xf]
        %v8539 = vld [vmem:[#allocation37 + $0x70] sm:$0xf]
        %v8540 = vld [vmem:[#allocation37 + $0x74] sm:$0xf]
        %v8541 = vld [vmem:[#allocation37 + $0x78] sm:$0xf]
        %v8542 = vld [vmem:[#allocation37 + $0x7c] sm:$0xf]
        %v8543 = vld [vmem:[#allocation37 + $0x80] sm:$0xf]
        %v8544 = vld [vmem:[#allocation37 + $0x84] sm:$0xf]
        %v8545 = vld [vmem:[#allocation37 + $0x88] sm:$0xf]
        %v8546 = vld [vmem:[#allocation37 + $0x8c] sm:$0xf]
        %v8547 = vld [vmem:[#allocation37 + $0x90] sm:$0xf]
        %v8548 = vld [vmem:[#allocation37 + $0x94] sm:$0xf]
        %v8549 = vld [vmem:[#allocation37 + $0x98] sm:$0xf]
        %v8550 = vld [vmem:[#allocation37 + $0x9c] sm:$0xf]
        %v8551 = vld [vmem:[#allocation37 + $0xa0] sm:$0xf]
        %v8552 = vld [vmem:[#allocation37 + $0xa4] sm:$0xf]
        %v8553 = vld [vmem:[#allocation37 + $0xa8] sm:$0xf]
        %v8554 = vld [vmem:[#allocation37 + $0xac] sm:$0xf]
        %v8555 = vld [vmem:[#allocation37 + $0xb0] sm:$0xf]
        %v8556 = vld [vmem:[#allocation37 + $0xb4] sm:$0xf]
        %v8557 = vld [vmem:[#allocation37 + $0xb8] sm:$0xf]
        %v8558 = vld [vmem:[#allocation37 + $0xbc] sm:$0xf]
        %v8559 = vld [vmem:[#allocation38] sm:$0x1]
        %v8608 = vunpack.c.l.b16 %v8511
        %v8609 = vunpack.c.l.b16 %v8512
        %v8610 = vunpack.c.l.b16 %v8513
        %v8611 = vunpack.c.l.b16 %v8514
        %v8612 = vunpack.c.l.b16 %v8515
        %v8613 = vunpack.c.l.b16 %v8516
        %v8614 = vunpack.c.l.b16 %v8517
        %v8615 = vunpack.c.l.b16 %v8518
        %v8616 = vunpack.c.l.b16 %v8519
        %v8617 = vunpack.c.l.b16 %v8520
        %v8618 = vunpack.c.l.b16 %v8521
        %v8619 = vunpack.c.l.b16 %v8522
        %v8620 = vunpack.c.l.b16 %v8523
        %v8621 = vunpack.c.l.b16 %v8524
        %v8622 = vunpack.c.l.b16 %v8525
        %v8623 = vunpack.c.l.b16 %v8526
        %v8624 = vunpack.c.l.b16 %v8527
        %v8625 = vunpack.c.l.b16 %v8528
        %v8626 = vunpack.c.l.b16 %v8529
        %v8627 = vunpack.c.l.b16 %v8530
        %v8628 = vunpack.c.l.b16 %v8531
        %v8629 = vunpack.c.l.b16 %v8532
        %v8630 = vunpack.c.l.b16 %v8533
        %v8631 = vunpack.c.l.b16 %v8534
        %v8632 = vunpack.c.l.b16 %v8535
        %v8633 = vunpack.c.l.b16 %v8536
        %v8634 = vunpack.c.l.b16 %v8537
        %v8635 = vunpack.c.l.b16 %v8538
        %v8636 = vunpack.c.l.b16 %v8539
        %v8637 = vunpack.c.l.b16 %v8540
        %v8638 = vunpack.c.l.b16 %v8541
        %v8639 = vunpack.c.l.b16 %v8542
        %v8640 = vunpack.c.l.b16 %v8543
        %v8641 = vunpack.c.l.b16 %v8544
        %v8642 = vunpack.c.l.b16 %v8545
        %v8643 = vunpack.c.l.b16 %v8546
        %v8644 = vunpack.c.l.b16 %v8547
        %v8645 = vunpack.c.l.b16 %v8548
        %v8646 = vunpack.c.l.b16 %v8549
        %v8647 = vunpack.c.l.b16 %v8550
        %v8648 = vunpack.c.l.b16 %v8551
        %v8649 = vunpack.c.l.b16 %v8552
        %v8650 = vunpack.c.l.b16 %v8553
        %v8651 = vunpack.c.l.b16 %v8554
        %v8652 = vunpack.c.l.b16 %v8555
        %v8653 = vunpack.c.l.b16 %v8556
        %v8654 = vunpack.c.l.b16 %v8557
        %v8655 = vunpack.c.l.b16 %v8558
        %v8656 = vpack.c.b16 %v8609, %v8608
        %v8657 = vpack.c.b16 %v8611, %v8610
        %v8658 = vpack.c.b16 %v8613, %v8612
        %v8659 = vpack.c.b16 %v8615, %v8614
        %v8660 = vpack.c.b16 %v8617, %v8616
        %v8661 = vpack.c.b16 %v8619, %v8618
        %v8662 = vpack.c.b16 %v8621, %v8620
        %v8663 = vpack.c.b16 %v8623, %v8622
        %v8664 = vpack.c.b16 %v8625, %v8624
        %v8665 = vpack.c.b16 %v8627, %v8626
        %v8666 = vpack.c.b16 %v8629, %v8628
        %v8667 = vpack.c.b16 %v8631, %v8630
        %v8668 = vpack.c.b16 %v8633, %v8632
        %v8669 = vpack.c.b16 %v8635, %v8634
        %v8670 = vpack.c.b16 %v8637, %v8636
        %v8671 = vpack.c.b16 %v8639, %v8638
        %v8672 = vpack.c.b16 %v8641, %v8640
        %v8673 = vpack.c.b16 %v8643, %v8642
        %v8674 = vpack.c.b16 %v8645, %v8644
        %v8675 = vpack.c.b16 %v8647, %v8646
        %v8676 = vpack.c.b16 %v8649, %v8648
        %v8677 = vpack.c.b16 %v8651, %v8650
        %v8678 = vpack.c.b16 %v8653, %v8652
        %v8679 = vpack.c.b16 %v8655, %v8654
        %8704 = vmatprep.subr.bf16.mxu0 0
        %8705 = vmatpush1.bf16.msra.mxu0 %v8656
        %8706 = vmatprep.subr.bf16.mxu0 0
        %8707 = vmatpush1.bf16.msra.mxu0 %v8657
        %8708 = vmatprep.subr.bf16.mxu0 0
        %8709 = vmatpush1.bf16.msra.mxu0 %v8658
        %8710 = vmatprep.subr.bf16.mxu0 0
        %8711 = vmatpush1.bf16.msra.mxu0 %v8659
        %8712 = vmatprep.subr.bf16.mxu0 0
        %8713 = vmatpush1.bf16.msra.mxu0 %v8660
        %8714 = vmatprep.subr.bf16.mxu0 0
        %8715 = vmatpush1.bf16.msra.mxu0 %v8661
        %8716 = vmatprep.subr.bf16.mxu0 0
        %8717 = vmatpush1.bf16.msra.mxu0 %v8662
        %8718 = vmatprep.subr.bf16.mxu0 0
        %8719 = vmatpush1.bf16.msra.mxu0 %v8663
        %8720 = vmatprep.subr.bf16.mxu0 0
        %8721 = vmatpush1.bf16.msra.mxu0 %v8664
        %8722 = vmatprep.subr.bf16.mxu0 0
        %8723 = vmatpush1.bf16.msra.mxu0 %v8665
        %8724 = vmatprep.subr.bf16.mxu0 0
        %8725 = vmatpush1.bf16.msra.mxu0 %v8666
        %8726 = vmatprep.subr.bf16.mxu0 0
        %8727 = vmatpush1.bf16.msra.mxu0 %v8667
        %8728 = vmatprep.subr.bf16.mxu0 0
        %8729 = vmatpush1.bf16.msra.mxu0 %v8668
        %8730 = vmatprep.subr.bf16.mxu0 0
        %8731 = vmatpush1.bf16.msra.mxu0 %v8669
        %8732 = vmatprep.subr.bf16.mxu0 0
        %8733 = vmatpush1.bf16.msra.mxu0 %v8670
        %8734 = vmatprep.subr.bf16.mxu0 0
        %8735 = vmatpush1.bf16.msra.mxu0 %v8671
        %8736 = vmatprep.mubr.bf16.mxu0 %v8509
        %8737 = vmatmul.mubr.bf16.gmra.mrb[0].mxu0 %v8508
        %v8738 = vpop.f32.mrb[0].mxu0
        %v8739 = vadd.f32 %v8559, %v8738
        %v8740 = vpop.f32.mrb[0].mxu0
        %v8741 = vpop.f32.mrb[0].mxu0
        %v8742 = vpop.f32.mrb[0].mxu0
        %8743 = vdwg.mxu0
        %8744 = vmatprep.subr.bf16.mxu0 0
        %8745 = vmatpush1.bf16.msra.mxu0 %v8672
        %8746 = vmatprep.subr.bf16.mxu0 0
        %8747 = vmatpush1.bf16.msra.mxu0 %v8673
        %8748 = vmatprep.subr.bf16.mxu0 0
        %8749 = vmatpush1.bf16.msra.mxu0 %v8674
        %8750 = vmatprep.subr.bf16.mxu0 0
        %8751 = vmatpush1.bf16.msra.mxu0 %v8675
        %8752 = vmatprep.subr.bf16.mxu0 0
        %8753 = vmatpush1.bf16.msra.mxu0 %v8676
        %8754 = vmatprep.subr.bf16.mxu0 0
        %8755 = vmatpush1.bf16.msra.mxu0 %v8677
        %8756 = vmatprep.subr.bf16.mxu0 0
        %8757 = vmatpush1.bf16.msra.mxu0 %v8678
        %8758 = vmatprep.subr.bf16.mxu0 0
        %8759 = vmatpush1.bf16.msra.mxu0 %v8679
        %8760 = vmatprep.subr.bf16.mxu0 0
        %8761 = vmatpush1.bf16.msra.mxu0 0
        %8762 = vmatprep.subr.bf16.mxu0 0
        %8763 = vmatpush1.bf16.msra.mxu0 0
        %8764 = vmatprep.subr.bf16.mxu0 0
        %8765 = vmatpush1.bf16.msra.mxu0 0
        %8766 = vmatprep.subr.bf16.mxu0 0
        %8767 = vmatpush1.bf16.msra.mxu0 0
        %8768 = vmatprep.subr.bf16.mxu0 0
        %8769 = vmatpush1.bf16.msra.mxu0 0
        %8770 = vmatprep.subr.bf16.mxu0 0
        %8771 = vmatpush1.bf16.msra.mxu0 0
        %8772 = vmatprep.subr.bf16.mxu0 0
        %8773 = vmatpush1.bf16.msra.mxu0 0
        %8774 = vmatprep.subr.bf16.mxu0 0
        %8775 = vmatpush1.bf16.msra.mxu0 0
        %8776 = vmatprep.mubr.bf16.mxu0 0
        %8777 = vmatmul.mubr.bf16.gmra.mrb[0].mxu0 %v8510
        %v8778 = vpop.f32.mrb[0].mxu0
        %v8779 = vadd.f32 %v8739, %v8778
        %v8780 = vpop.f32.mrb[0].mxu0
        %v8781 = vpop.f32.mrb[0].mxu0
        %v8782 = vpop.f32.mrb[0].mxu0
        %8783 = vdwg.mxu0
        %8784 = vst [vmem:[%s1334] sm:$0x1] %v8779
        %p8785 = scmp.lt.s32.totalorder %s95, 1
        %s8786 = scalar_select %p8785, %s95, 1
        %s8787 = smul.addr %s8786, 3
        %s8788 = scalar_lea.vmem %s65, %s8787
        %s8789 = sand.u32 %s806, 1
        %s8790 = scalar_lea.sflag [#allocation4], %s8789
        %s8791 = sand.u32 %s806, 1
        %s8792 = scalar_lea.vmem [#allocation40], %s8791
        // Predicated region
        $region245: #{decompose_whar_forward.1} parent=147 // pred_check
          %p8793 = pneg %p790
        $region246: #{decompose_whar_forward.1} parent=147 // pred_check_branch
          %8795 = sbr.rel (%p8793) target = $region248
        $region247: #{decompose_whar_forward.1} parent=147 // pred_region
          _
        $region248: #{decompose_whar_forward.1} parent=147 // pred_fallthru
          _
        // Predicated region
        $region249: #{decompose_whar_forward.1} parent=147 // pred_check
          %p8796 = pneg %p816
        $region250: #{decompose_whar_forward.1} parent=147 // pred_check_branch
          %8798 = sbr.rel (%p8796) target = $region252
        $region251: #{decompose_whar_forward.1} parent=147 // pred_region
          %s8800 = ssub.s32 16, 16
          %8801 = vsyncadd %s8790, %s8800
          %s8802 = smul.addr %s95, 16
          %s8803 = scalar_lea.hbm %s67, %s8802
          %s8805 = sshll.u32 %s8792, 4
          %s8806 = int_to_ptr.vmem [resolvable:$true] %s8805
          %8808 = dma.vmem_to_hbm [thread:$0]  %s8806, 16, %s8803, %s8790
        $region252: #{decompose_whar_forward.1} parent=147 // pred_fallthru
          _
      $region148: #{decompose_whar_forward.1} parent=5 // pred_fallthru
        _
      %p8809 = scmp.le.s32.totalorder 2, %s90
      // Predicated region
      $region253: #{decompose_whar_forward.1} parent=5 // pred_check
        %p8810 = pneg %p8809
      $region254: #{decompose_whar_forward.1} parent=5 // pred_check_branch
        %8812 = sbr.rel (%p8810) target = $region256
      $region255: #{decompose_whar_forward.1} parent=5 // pred_region
        %s8813 = ssub.s32 %s90, 2
        // Predicated region
        $region257: #{decompose_whar_forward.1} parent=255 // pred_check
          %p8814 = pneg %p796
        $region258: #{decompose_whar_forward.1} parent=255 // pred_check_branch
          %8816 = sbr.rel (%p8814) target = $region260
        $region259: #{decompose_whar_forward.1} parent=255 // pred_region
          %p8817 = scmp.lt.s32.totalorder %s96, 1
          %s8818 = scalar_select %p8817, %s96, 1
          %s8819 = smul.addr %s8818, 3
          %s8820 = scalar_lea.vmem %s65, %s8819
        $region260: #{decompose_whar_forward.1} parent=255 // pred_fallthru
          _
        // Predicated region
        $region261: #{decompose_whar_forward.1} parent=255 // pred_check
          %p8821 = pneg %p822
        $region262: #{decompose_whar_forward.1} parent=255 // pred_check_branch
          %8823 = sbr.rel (%p8821) target = $region264
        $region263: #{decompose_whar_forward.1} parent=255 // pred_region
          %s8824 = sand.u32 %s807, 1
          %s8825 = scalar_lea.sflag [#allocation4], %s8824
          %s8826 = sand.u32 %s807, 1
          %s8827 = scalar_lea.vmem [#allocation40], %s8826
          %8828 = dma.done %s8825, 16
        $region264: #{decompose_whar_forward.1} parent=255 // pred_fallthru
          _
      $region256: #{decompose_whar_forward.1} parent=5 // pred_fallthru
        _
    $region6: #{decompose_whar_forward.1} parent=1 // loop_footer
      %s94 = sadd.s32 1, %s90
    $region7: #{decompose_whar_forward.1} parent=1 // loop_footer_branch
      %89 = sbr.rel target = $region3
    $region8: #{decompose_whar_forward.1} parent=1 // loop_exit
      _
    %8829 = vsyncpa [#allocation3], 1
    %s8830 = scalar_lea.sflag [#allocation3], 1
    %8831 = vsyncpa %s8830, 1
    %8832 = vsyncpa [#allocation6], 1
    %8833 = vsyncpa [#allocation9], 1
    %8834 = vsyncpa [#allocation12], 1
    %8835 = vsyncpa [#allocation15], 1
    %8836 = vsyncpa [#allocation18], 1
    %8837 = vsyncpa [#allocation21], 1
    %8838 = vsyncpa [#allocation24], 1
    %8839 = vsyncpa [#allocation27], 1
    %8840 = vsyncpa [#allocation30], 1
    %8841 = vsyncpa [#allocation33], 1
    %8842 = vsyncpa [#allocation36], 1
    %8843 = vsyncpa [#allocation39], 1
    %8844 = vsyncpa [#allocation4], 1
    %s8845 = scalar_lea.sflag [#allocation4], 1
    %8846 = vsyncpa %s8845, 1

</llo_original>
